<compile_context>
chip_gen: v7x
topology: tpu7x:2x2x1
jax: 0.10.0
libtpu: 0.0.40
codegen_flags: <defaults>
</compile_context>

<pallas_src>
import functools

import jax
import jax.numpy as jnp
import numpy as np
from jax.experimental import pallas as pl
from jax.experimental.pallas import tpu as pltpu


# --------------------------------------------------------------------------
# Pallas kernel: the entire AGCRN encoder (all layers, one timestep per grid
# step, recurrent state resident in VMEM scratch).
# --------------------------------------------------------------------------
def agcrn_encoder_kernel(x_ref, adj_ref, attn_ref, *rest,
                         cheb_k, hidden, num_layers):
    w_refs = rest[:6 * num_layers]
    out_ref = rest[6 * num_layers]
    state_ref = rest[6 * num_layers + 1]          # VMEM scratch [L, Bb, N, H]

    t = pl.program_id(1)

    @pl.when(t == 0)
    def _init():
        state_ref[...] = jnp.zeros_like(state_ref)

    # Per-timestep masked support A = attn * adj_t   (attn hoisted outside).
    A = attn_ref[...][None, :, :] * adj_ref[...]  # [Bb, N, N]

    def propagate(u):
        # Chebyshev basis applied directly to the features, concatenated along
        # channels: [T_0 u | T_1 u | ...] with T_0 u = u (identity elided).
        feats = [u]
        if cheb_k > 1:
            feats.append(jnp.einsum('bnm,bmc->bnc', A, u,
                                    preferred_element_type=jnp.float32))
        for _ in range(2, cheb_k):
            feats.append(2.0 * jnp.einsum('bnm,bmc->bnc', A, feats[-1],
                                          preferred_element_type=jnp.float32)
                         - feats[-2])
        return feats[0] if len(feats) == 1 else jnp.concatenate(feats, axis=-1)

    def per_node_matmul(g, w):
        # g: [Bb, N, K*C], w: [N, K*C, O] -> [Bb, N, O]; batched over nodes (MXU).
        g_t = jnp.transpose(g, (1, 0, 2))                            # [N, Bb, K*C]
        o = jax.lax.dot_general(g_t, w, (((2,), (1,)), ((0,), (0,))),
                                preferred_element_type=jnp.float32)  # [N, Bb, O]
        return jnp.transpose(o, (1, 0, 2))

    cur = x_ref[...]                              # [Bb, N, Din]
    for l in range(num_layers):
        wgx, wgs, bg, wux, wus, bu = [w_refs[6 * l + i][...] for i in range(6)]
        s = state_ref[l]                          # [Bb, N, H]

        gx = propagate(cur)                       # shared by gate & candidate
        gs = propagate(s)
        zr = jax.nn.sigmoid(per_node_matmul(gx, wgx)
                            + per_node_matmul(gs, wgs)
                            + bg[None, :, :])     # fused z/r gate (2H)
        z = zr[..., :hidden]
        r = zr[..., hidden:]

        gzs = propagate(z * s)
        hc = jnp.tanh(per_node_matmul(gx, wux)
                      + per_node_matmul(gzs, wus)
                      + bu[None, :, :])

        h = r * s + (1.0 - r) * hc
        state_ref[l] = h
        cur = h

    # Only the top layer's final state is needed ([B, 1, N, H] output).
    @pl.when(t == pl.num_programs(1) - 1)
    def _store():
        out_ref[...] = cur.astype(out_ref.dtype)


# --------------------------------------------------------------------------
# Plain-JAX glue: per-node weights from the pools + node embeddings, split into
# x / state input parts, Chebyshev order folded into the contraction dim.
# --------------------------------------------------------------------------
def prepare_layer_weights(node_emb, lp, d_in, hidden, cheb_k):
    N = node_emb.shape[0]
    Wg = jnp.einsum('nd,dkio->nkio', node_emb, lp['gate_w'])    # [N,K,d_in+H,2H]
    bg = node_emb @ lp['gate_b']                                # [N,2H]
    Wu = jnp.einsum('nd,dkio->nkio', node_emb, lp['update_w'])  # [N,K,d_in+H,H]
    bu = node_emb @ lp['update_b']                              # [N,H]

    def fold(W, lo, hi):
        # [N, K, d_in+H, O] -> channel slice [lo:hi) -> [N, K*(hi-lo), O]
        Wc = W[:, :, lo:hi, :]
        return Wc.reshape(N, cheb_k * (hi - lo), W.shape[-1])

    return dict(
        wgx=fold(Wg, 0, d_in), wgs=fold(Wg, d_in, d_in + hidden), bg=bg,
        wux=fold(Wu, 0, d_in), wus=fold(Wu, d_in, d_in + hidden), bu=bu,
    )


def _const_block_spec(shape):
    nd = len(shape)
    return pl.BlockSpec(shape, lambda b, t: (0,) * nd)


def agcrn_forward(source, adj_mat, node_emb, layers, hidden, cheb_k):
    B, T, N, d_in0 = source.shape
    num_layers = len(layers)
    if adj_mat is None:
        adj_mat = jnp.ones((B, T, N, N), jnp.float32)

    # Time/layer-invariant node-similarity softmax, hoisted out of the kernel.
    attn = jax.nn.softmax(jnp.maximum(node_emb @ node_emb.T, 0.0), axis=1)

    weight_args, weight_specs = [], []
    for li, lp in enumerate(layers):
        d_in = d_in0 if li == 0 else hidden
        cw = prepare_layer_weights(node_emb, lp, d_in, hidden, cheb_k)
        for name in ('wgx', 'wgs', 'bg', 'wux', 'wus', 'bu'):
            arr = cw[name]
            weight_args.append(arr)
            weight_specs.append(_const_block_spec(arr.shape))

    b_blk = 1                      # batch tile; batch axis is "parallel" (v7x)
    assert B % b_blk == 0
    grid = (B // b_blk, T)

    kernel = functools.partial(agcrn_encoder_kernel, cheb_k=cheb_k,
                               hidden=hidden, num_layers=num_layers)
    last_h = pl.pallas_call(
        kernel,
        grid=grid,
        in_specs=[
            pl.BlockSpec((b_blk, None, N, d_in0), lambda b, t: (b, t, 0, 0)),
            pl.BlockSpec((b_blk, None, N, N), lambda b, t: (b, t, 0, 0)),
            _const_block_spec((N, N)),
        ] + weight_specs,
        out_specs=pl.BlockSpec((b_blk, N, hidden), lambda b, t: (b, 0, 0)),
        out_shape=jax.ShapeDtypeStruct((B, N, hidden), jnp.float32),
        scratch_shapes=[pltpu.VMEM((num_layers, b_blk, N, hidden), jnp.float32)],
        compiler_params=pltpu.CompilerParams(
            dimension_semantics=("parallel", "arbitrary")),
    )(source, adj_mat, attn, *weight_args)

    return last_h[:, None, :, :]                                  # [B, 1, N, H]


# --------------------------------------------------------------------------
# Pure-JAX reference (mirrors the PyTorch code line by line) for verification.
# --------------------------------------------------------------------------
def avwgcn_ref(x, node_emb, adj_mask, w_pool, b_pool, cheb_k):
    N = node_emb.shape[0]
    B = adj_mask.shape[0]
    supports = jax.nn.softmax(jnp.maximum(node_emb @ node_emb.T, 0.0), axis=1)
    supports = jnp.broadcast_to(supports[None], (B, N, N)) * adj_mask
    ident = jnp.broadcast_to(jnp.eye(N, dtype=jnp.float32)[None], (B, N, N))
    support_set = [ident, supports]
    for _ in range(2, cheb_k):
        support_set.append(jnp.matmul(2.0 * supports, support_set[-1]) - support_set[-2])
    S = jnp.stack(support_set, axis=0)                             # [K,B,N,N]
    weights = jnp.einsum('nd,dkio->nkio', node_emb, w_pool)
    bias = node_emb @ b_pool
    x_g = jnp.einsum('kbnm,bmc->bknc', S, x)
    x_g = jnp.transpose(x_g, (0, 2, 1, 3))
    return jnp.einsum('bnki,nkio->bno', x_g, weights) + bias


def cell_ref(x, state, node_emb, adj_mask, lp, hidden, cheb_k):
    inp = jnp.concatenate([x, state], axis=-1)
    z_r = jax.nn.sigmoid(avwgcn_ref(inp, node_emb, adj_mask,
                                    lp['gate_w'], lp['gate_b'], cheb_k))
    z, r = z_r[..., :hidden], z_r[..., hidden:]
    cand = jnp.concatenate([x, z * state], axis=-1)
    hc = jnp.tanh(avwgcn_ref(cand, node_emb, adj_mask,
                             lp['update_w'], lp['update_b'], cheb_k))
    return r * state + (1.0 - r) * hc


def agcrn_forward_ref(source, adj_mat, node_emb, layers, hidden, cheb_k):
    B, T, N, _ = source.shape
    current = source
    for lp in layers:
        state = jnp.zeros((B, N, hidden), jnp.float32)
        outs = []
        for t in range(T):
            state = cell_ref(current[:, t], state, node_emb, adj_mat[:, t],
                             lp, hidden, cheb_k)
            outs.append(state)
        current = jnp.stack(outs, axis=1)
    return current[:, -1:, :, :]


# --------------------------------------------------------------------------
# Deterministic parameter init (PyTorch pools are uninitialized FloatTensors).
# --------------------------------------------------------------------------
def init_params(key, num_layers, d_in, hidden, cheb_k, embed_dim, num_nodes):
    keys = jax.random.split(key, 1 + 4 * num_layers)
    node_emb = jax.random.normal(keys[0], (num_nodes, embed_dim), jnp.float32)
    layers = []
    for i in range(num_layers):
        din = d_in if i == 0 else hidden
        k0, k1, k2, k3 = keys[1 + 4 * i: 5 + 4 * i]
        layers.append(dict(
            gate_w=0.3 * jax.random.normal(k0, (embed_dim, cheb_k, din + hidden, 2 * hidden), jnp.float32),
            gate_b=0.3 * jax.random.normal(k1, (embed_dim, 2 * hidden), jnp.float32),
            update_w=0.3 * jax.random.normal(k2, (embed_dim, cheb_k, din + hidden, hidden), jnp.float32),
            update_b=0.3 * jax.random.normal(k3, (embed_dim, hidden), jnp.float32),
        ))
    return node_emb, layers


if __name__ == "__main__":
    # Small AGCRN config.
    B, T = 2, 4
    NUM_NODES = 8
    INPUT_DIM = 2
    HIDDEN = 16          # rnn_units
    CHEB_K = 3
    EMBED_DIM = 4
    NUM_LAYERS = 2

    key = jax.random.PRNGKey(0)
    k_param, k_src, k_adj = jax.random.split(key, 3)
    node_emb, layers = init_params(k_param, NUM_LAYERS, INPUT_DIM, HIDDEN,
                                   CHEB_K, EMBED_DIM, NUM_NODES)
    source = jax.random.normal(k_src, (B, T, NUM_NODES, INPUT_DIM), jnp.float32)
    adj_mat = jax.random.uniform(k_adj, (B, T, NUM_NODES, NUM_NODES), jnp.float32)

    fwd = jax.jit(lambda src, adj, emb, lyrs:
                  agcrn_forward(src, adj, emb, lyrs, HIDDEN, CHEB_K))
    out = fwd(source, adj_mat, node_emb, layers)
    out = jax.block_until_ready(out)

    ref = agcrn_forward_ref(source, adj_mat, node_emb, layers, HIDDEN, CHEB_K)
    ref = jax.block_until_ready(ref)

    assert out.shape == (B, 1, NUM_NODES, HIDDEN), out.shape
    np.testing.assert_allclose(np.asarray(out), np.asarray(ref), rtol=1e-3, atol=1e-3)
    print("KERNEL_OK")
</pallas_src>

<mosaic_0001>
module attributes {stable_mosaic.version = 11 : i64} {
  func.func @agcrn_encoder_kernel(%arg0: i32, %arg1: i32, %arg2: memref<1x1x8x2xf32, #tpu.memory_space<vmem>>, %arg3: memref<1x1x8x8xf32, #tpu.memory_space<vmem>>, %arg4: memref<8x8xf32, #tpu.memory_space<vmem>>, %arg5: memref<8x6x32xf32, #tpu.memory_space<vmem>>, %arg6: memref<8x48x32xf32, #tpu.memory_space<vmem>>, %arg7: memref<8x32xf32, #tpu.memory_space<vmem>>, %arg8: memref<8x6x16xf32, #tpu.memory_space<vmem>>, %arg9: memref<8x48x16xf32, #tpu.memory_space<vmem>>, %arg10: memref<8x16xf32, #tpu.memory_space<vmem>>, %arg11: memref<8x48x32xf32, #tpu.memory_space<vmem>>, %arg12: memref<8x48x32xf32, #tpu.memory_space<vmem>>, %arg13: memref<8x32xf32, #tpu.memory_space<vmem>>, %arg14: memref<8x48x16xf32, #tpu.memory_space<vmem>>, %arg15: memref<8x48x16xf32, #tpu.memory_space<vmem>>, %arg16: memref<8x16xf32, #tpu.memory_space<vmem>>, %arg17: memref<1x8x16xf32, #tpu.memory_space<vmem>>, %arg18: memref<2x1x8x16xf32, #tpu.memory_space<vmem>>) attributes {dimension_semantics = [#tpu.dimension_semantics<parallel>, #tpu.dimension_semantics<arbitrary>], iteration_bounds = array<i64: 2, 4>, scalar_prefetch = 0 : i64, scratch_operands = 1 : i64, tpu.core_type = #tpu.core_type<tc>, window_params = [{transform_indices = @transform_0, window_bounds = array<i64: 1, 1, 8, 2>}, {transform_indices = @transform_1, window_bounds = array<i64: 1, 1, 8, 8>}, {pipeline_mode = #tpu.pipeline_mode<synchronous>, transform_indices = @transform_2, window_bounds = array<i64: 8, 8>}, {pipeline_mode = #tpu.pipeline_mode<synchronous>, transform_indices = @transform_3, window_bounds = array<i64: 8, 6, 32>}, {pipeline_mode = #tpu.pipeline_mode<synchronous>, transform_indices = @transform_4, window_bounds = array<i64: 8, 48, 32>}, {pipeline_mode = #tpu.pipeline_mode<synchronous>, transform_indices = @transform_5, window_bounds = array<i64: 8, 32>}, {pipeline_mode = #tpu.pipeline_mode<synchronous>, transform_indices = @transform_6, window_bounds = array<i64: 8, 6, 16>}, {pipeline_mode = #tpu.pipeline_mode<synchronous>, transform_indices = @transform_7, window_bounds = array<i64: 8, 48, 16>}, {pipeline_mode = #tpu.pipeline_mode<synchronous>, transform_indices = @transform_8, window_bounds = array<i64: 8, 16>}, {pipeline_mode = #tpu.pipeline_mode<synchronous>, transform_indices = @transform_9, window_bounds = array<i64: 8, 48, 32>}, {pipeline_mode = #tpu.pipeline_mode<synchronous>, transform_indices = @transform_10, window_bounds = array<i64: 8, 48, 32>}, {pipeline_mode = #tpu.pipeline_mode<synchronous>, transform_indices = @transform_11, window_bounds = array<i64: 8, 32>}, {pipeline_mode = #tpu.pipeline_mode<synchronous>, transform_indices = @transform_12, window_bounds = array<i64: 8, 48, 16>}, {pipeline_mode = #tpu.pipeline_mode<synchronous>, transform_indices = @transform_13, window_bounds = array<i64: 8, 48, 16>}, {pipeline_mode = #tpu.pipeline_mode<synchronous>, transform_indices = @transform_14, window_bounds = array<i64: 8, 16>}, {transform_indices = @transform_15, window_bounds = array<i64: 1, 8, 16>}]} {
    %c0_i32 = arith.constant 0 : i32
    %0 = arith.cmpi eq, %arg1, %c0_i32 : i32
    %1 = arith.extui %0 : i1 to i32
    %c0_i32_0 = arith.constant 0 : i32
    %2 = arith.cmpi ne, %1, %c0_i32_0 : i32
    scf.if %2 {
      %cst_87 = arith.constant 0.000000e+00 : f32
      %135 = vector.broadcast %cst_87 : f32 to vector<2x1x8x16xf32>
      %c0_88 = arith.constant 0 : index
      %c0_89 = arith.constant 0 : index
      %c0_90 = arith.constant 0 : index
      %c0_91 = arith.constant 0 : index
      %136 = vector.load %arg18[%c0_88, %c0_89, %c0_90, %c0_91] : memref<2x1x8x16xf32, #tpu.memory_space<vmem>>, vector<2x1x8x16xf32>
      tpu.vector_store %arg18[%c0_88, %c0_89, %c0_90, %c0_91], %135 {strides = array<i32>} : memref<2x1x8x16xf32, #tpu.memory_space<vmem>>, vector<2x1x8x16xf32>,
    } else {
    }
    %c0 = arith.constant 0 : index
    %c0_1 = arith.constant 0 : index
    %3 = vector.load %arg4[%c0, %c0_1] : memref<8x8xf32, #tpu.memory_space<vmem>>, vector<8x8xf32>
    %4 = vector.shape_cast %3 : vector<8x8xf32> to vector<1x8x8xf32>
    %c0_2 = arith.constant 0 : index
    %c0_3 = arith.constant 0 : index
    %c0_4 = arith.constant 0 : index
    %c0_5 = arith.constant 0 : index
    %5 = vector.load %arg3[%c0_2, %c0_3, %c0_4, %c0_5] : memref<1x1x8x8xf32, #tpu.memory_space<vmem>>, vector<1x1x8x8xf32>
    %6 = vector.shape_cast %5 : vector<1x1x8x8xf32> to vector<1x8x8xf32>
    %7 = arith.mulf %4, %6 : vector<1x8x8xf32>
    %c0_6 = arith.constant 0 : index
    %c0_7 = arith.constant 0 : index
    %c0_8 = arith.constant 0 : index
    %c0_9 = arith.constant 0 : index
    %8 = vector.load %arg2[%c0_6, %c0_7, %c0_8, %c0_9] : memref<1x1x8x2xf32, #tpu.memory_space<vmem>>, vector<1x1x8x2xf32>
    %9 = vector.shape_cast %8 : vector<1x1x8x2xf32> to vector<1x8x2xf32>
    %c0_10 = arith.constant 0 : index
    %c0_11 = arith.constant 0 : index
    %c0_12 = arith.constant 0 : index
    %10 = vector.load %arg5[%c0_10, %c0_11, %c0_12] : memref<8x6x32xf32, #tpu.memory_space<vmem>>, vector<8x6x32xf32>
    %c0_13 = arith.constant 0 : index
    %c0_14 = arith.constant 0 : index
    %c0_15 = arith.constant 0 : index
    %11 = vector.load %arg6[%c0_13, %c0_14, %c0_15] : memref<8x48x32xf32, #tpu.memory_space<vmem>>, vector<8x48x32xf32>
    %c0_16 = arith.constant 0 : index
    %c0_17 = arith.constant 0 : index
    %12 = vector.load %arg7[%c0_16, %c0_17] : memref<8x32xf32, #tpu.memory_space<vmem>>, vector<8x32xf32>
    %c0_18 = arith.constant 0 : index
    %c0_19 = arith.constant 0 : index
    %c0_20 = arith.constant 0 : index
    %13 = vector.load %arg8[%c0_18, %c0_19, %c0_20] : memref<8x6x16xf32, #tpu.memory_space<vmem>>, vector<8x6x16xf32>
    %c0_21 = arith.constant 0 : index
    %c0_22 = arith.constant 0 : index
    %c0_23 = arith.constant 0 : index
    %14 = vector.load %arg9[%c0_21, %c0_22, %c0_23] : memref<8x48x16xf32, #tpu.memory_space<vmem>>, vector<8x48x16xf32>
    %c0_24 = arith.constant 0 : index
    %c0_25 = arith.constant 0 : index
    %15 = vector.load %arg10[%c0_24, %c0_25] : memref<8x16xf32, #tpu.memory_space<vmem>>, vector<8x16xf32>
    %c0_26 = arith.constant 0 : index
    %c0_27 = arith.constant 0 : index
    %c0_28 = arith.constant 0 : index
    %c0_29 = arith.constant 0 : index
    %16 = vector.load %arg18[%c0_26, %c0_27, %c0_28, %c0_29] : memref<2x1x8x16xf32, #tpu.memory_space<vmem>>, vector<1x1x8x16xf32>
    %17 = vector.shape_cast %16 : vector<1x1x8x16xf32> to vector<1x8x16xf32>
    "tpu.trace_start"() <{level = 10 : i32, message = "bnm,bmc->bnc"}> : () -> ()
    %cst = arith.constant dense<0.000000e+00> : vector<1x8x2xf32>
    %18 = tpu.matmul %7, %9, %cst {dimension_numbers = #tpu.dot_dimension_numbers<[2], [1], [1], [2], [0, 0, 0, 1, 1, 2], [0], [0]>} : vector<1x8x8xf32>, vector<1x8x2xf32>, vector<1x8x2xf32> -> vector<1x8x2xf32>
    %cst_30 = arith.constant dense<0.000000e+00> : vector<1x8x2xf32>
    %19 = tpu.matmul %7, %18, %cst_30 {dimension_numbers = #tpu.dot_dimension_numbers<[2], [1], [1], [2], [0, 0, 0, 1, 1, 2], [0], [0]>} : vector<1x8x8xf32>, vector<1x8x2xf32>, vector<1x8x2xf32> -> vector<1x8x2xf32>
    "tpu.trace_stop"() : () -> ()
    %cst_31 = arith.constant 2.000000e+00 : f32
    %20 = vector.broadcast %cst_31 : f32 to vector<1x8x2xf32>
    %21 = arith.mulf %20, %19 : vector<1x8x2xf32>
    %22 = arith.subf %21, %9 : vector<1x8x2xf32>
    %23 = tpu.concatenate %9, %18, %22 in 2 : vector<1x8x2xf32>, vector<1x8x2xf32>, vector<1x8x2xf32> -> vector<1x8x6xf32>
    "tpu.trace_start"() <{level = 10 : i32, message = "bnm,bmc->bnc"}> : () -> ()
    %cst_32 = arith.constant dense<0.000000e+00> : vector<1x8x16xf32>
    %24 = tpu.matmul %7, %17, %cst_32 {dimension_numbers = #tpu.dot_dimension_numbers<[2], [1], [1], [2], [0, 0, 0, 1, 1, 2], [0], [0]>} : vector<1x8x8xf32>, vector<1x8x16xf32>, vector<1x8x16xf32> -> vector<1x8x16xf32>
    %cst_33 = arith.constant dense<0.000000e+00> : vector<1x8x16xf32>
    %25 = tpu.matmul %7, %24, %cst_33 {dimension_numbers = #tpu.dot_dimension_numbers<[2], [1], [1], [2], [0, 0, 0, 1, 1, 2], [0], [0]>} : vector<1x8x8xf32>, vector<1x8x16xf32>, vector<1x8x16xf32> -> vector<1x8x16xf32>
    "tpu.trace_stop"() : () -> ()
    %cst_34 = arith.constant 2.000000e+00 : f32
    %26 = vector.broadcast %cst_34 : f32 to vector<1x8x16xf32>
    %27 = arith.mulf %26, %25 : vector<1x8x16xf32>
    %28 = arith.subf %27, %17 : vector<1x8x16xf32>
    %29 = tpu.concatenate %17, %24, %28 in 2 : vector<1x8x16xf32>, vector<1x8x16xf32>, vector<1x8x16xf32> -> vector<1x8x48xf32>
    %30 = tpu.transpose %23, [1, 0, 2] : vector<1x8x6xf32> -> vector<8x1x6xf32>
    %cst_35 = arith.constant dense<0.000000e+00> : vector<8x1x32xf32>
    %31 = tpu.matmul %30, %10, %cst_35 {dimension_numbers = #tpu.dot_dimension_numbers<[2], [1], [1], [2], [0, 0, 0, 1, 1, 2], [0], [0]>} : vector<8x1x6xf32>, vector<8x6x32xf32>, vector<8x1x32xf32> -> vector<8x1x32xf32>
    %32 = tpu.transpose %31, [1, 0, 2] : vector<8x1x32xf32> -> vector<1x8x32xf32>
    %33 = tpu.transpose %29, [1, 0, 2] : vector<1x8x48xf32> -> vector<8x1x48xf32>
    %cst_36 = arith.constant dense<0.000000e+00> : vector<8x1x32xf32>
    %34 = tpu.matmul %33, %11, %cst_36 {dimension_numbers = #tpu.dot_dimension_numbers<[2], [1], [1], [2], [0, 0, 0, 1, 1, 2], [0], [0]>} : vector<8x1x48xf32>, vector<8x48x32xf32>, vector<8x1x32xf32> -> vector<8x1x32xf32>
    %35 = tpu.transpose %34, [1, 0, 2] : vector<8x1x32xf32> -> vector<1x8x32xf32>
    %36 = arith.addf %32, %35 : vector<1x8x32xf32>
    %37 = vector.shape_cast %12 : vector<8x32xf32> to vector<1x8x32xf32>
    %38 = arith.addf %36, %37 : vector<1x8x32xf32>
    %39 = arith.negf %38 : vector<1x8x32xf32>
    %40 = math.exp %39 : vector<1x8x32xf32>
    %cst_37 = arith.constant 1.000000e+00 : f32
    %41 = vector.broadcast %cst_37 : f32 to vector<1x8x32xf32>
    %42 = arith.addf %41, %40 : vector<1x8x32xf32>
    %43 = arith.divf %41, %42 : vector<1x8x32xf32>
    %44 = vector.extract_strided_slice %43 {offsets = [0, 0, 0], sizes = [1, 8, 16], strides = [1, 1, 1]} : vector<1x8x32xf32> to vector<1x8x16xf32>
    %45 = vector.extract_strided_slice %43 {offsets = [0, 0, 16], sizes = [1, 8, 16], strides = [1, 1, 1]} : vector<1x8x32xf32> to vector<1x8x16xf32>
    %46 = arith.mulf %44, %17 : vector<1x8x16xf32>
    "tpu.trace_start"() <{level = 10 : i32, message = "bnm,bmc->bnc"}> : () -> ()
    %cst_38 = arith.constant dense<0.000000e+00> : vector<1x8x16xf32>
    %47 = tpu.matmul %7, %46, %cst_38 {dimension_numbers = #tpu.dot_dimension_numbers<[2], [1], [1], [2], [0, 0, 0, 1, 1, 2], [0], [0]>} : vector<1x8x8xf32>, vector<1x8x16xf32>, vector<1x8x16xf32> -> vector<1x8x16xf32>
    %cst_39 = arith.constant dense<0.000000e+00> : vector<1x8x16xf32>
    %48 = tpu.matmul %7, %47, %cst_39 {dimension_numbers = #tpu.dot_dimension_numbers<[2], [1], [1], [2], [0, 0, 0, 1, 1, 2], [0], [0]>} : vector<1x8x8xf32>, vector<1x8x16xf32>, vector<1x8x16xf32> -> vector<1x8x16xf32>
    "tpu.trace_stop"() : () -> ()
    %cst_40 = arith.constant 2.000000e+00 : f32
    %49 = vector.broadcast %cst_40 : f32 to vector<1x8x16xf32>
    %50 = arith.mulf %49, %48 : vector<1x8x16xf32>
    %51 = arith.subf %50, %46 : vector<1x8x16xf32>
    %52 = tpu.concatenate %46, %47, %51 in 2 : vector<1x8x16xf32>, vector<1x8x16xf32>, vector<1x8x16xf32> -> vector<1x8x48xf32>
    %53 = tpu.transpose %23, [1, 0, 2] : vector<1x8x6xf32> -> vector<8x1x6xf32>
    %cst_41 = arith.constant dense<0.000000e+00> : vector<8x1x16xf32>
    %54 = tpu.matmul %53, %13, %cst_41 {dimension_numbers = #tpu.dot_dimension_numbers<[2], [1], [1], [2], [0, 0, 0, 1, 1, 2], [0], [0]>} : vector<8x1x6xf32>, vector<8x6x16xf32>, vector<8x1x16xf32> -> vector<8x1x16xf32>
    %55 = tpu.transpose %54, [1, 0, 2] : vector<8x1x16xf32> -> vector<1x8x16xf32>
    %56 = tpu.transpose %52, [1, 0, 2] : vector<1x8x48xf32> -> vector<8x1x48xf32>
    %cst_42 = arith.constant dense<0.000000e+00> : vector<8x1x16xf32>
    %57 = tpu.matmul %56, %14, %cst_42 {dimension_numbers = #tpu.dot_dimension_numbers<[2], [1], [1], [2], [0, 0, 0, 1, 1, 2], [0], [0]>} : vector<8x1x48xf32>, vector<8x48x16xf32>, vector<8x1x16xf32> -> vector<8x1x16xf32>
    %58 = tpu.transpose %57, [1, 0, 2] : vector<8x1x16xf32> -> vector<1x8x16xf32>
    %59 = arith.addf %55, %58 : vector<1x8x16xf32>
    %60 = vector.shape_cast %15 : vector<8x16xf32> to vector<1x8x16xf32>
    %61 = arith.addf %59, %60 : vector<1x8x16xf32>
    %62 = math.tanh %61 : vector<1x8x16xf32>
    %63 = arith.mulf %45, %17 : vector<1x8x16xf32>
    %cst_43 = arith.constant 1.000000e+00 : f32
    %64 = vector.broadcast %cst_43 : f32 to vector<1x8x16xf32>
    %65 = arith.subf %64, %45 : vector<1x8x16xf32>
    %66 = arith.mulf %65, %62 : vector<1x8x16xf32>
    %67 = arith.addf %63, %66 : vector<1x8x16xf32>
    %c0_44 = arith.constant 0 : index
    %c0_45 = arith.constant 0 : index
    %c0_46 = arith.constant 0 : index
    %c0_47 = arith.constant 0 : index
    %68 = vector.load %arg18[%c0_44, %c0_45, %c0_46, %c0_47] : memref<2x1x8x16xf32, #tpu.memory_space<vmem>>, vector<1x1x8x16xf32>
    %69 = vector.shape_cast %68 : vector<1x1x8x16xf32> to vector<1x8x16xf32>
    %70 = vector.shape_cast %67 : vector<1x8x16xf32> to vector<1x1x8x16xf32>
    tpu.vector_store %arg18[%c0_44, %c0_45, %c0_46, %c0_47], %70 {strides = array<i32>} : memref<2x1x8x16xf32, #tpu.memory_space<vmem>>, vector<1x1x8x16xf32>,
    %c0_48 = arith.constant 0 : index
    %c0_49 = arith.constant 0 : index
    %c0_50 = arith.constant 0 : index
    %71 = vector.load %arg11[%c0_48, %c0_49, %c0_50] : memref<8x48x32xf32, #tpu.memory_space<vmem>>, vector<8x48x32xf32>
    %c0_51 = arith.constant 0 : index
    %c0_52 = arith.constant 0 : index
    %c0_53 = arith.constant 0 : index
    %72 = vector.load %arg12[%c0_51, %c0_52, %c0_53] : memref<8x48x32xf32, #tpu.memory_space<vmem>>, vector<8x48x32xf32>
    %c0_54 = arith.constant 0 : index
    %c0_55 = arith.constant 0 : index
    %73 = vector.load %arg13[%c0_54, %c0_55] : memref<8x32xf32, #tpu.memory_space<vmem>>, vector<8x32xf32>
    %c0_56 = arith.constant 0 : index
    %c0_57 = arith.constant 0 : index
    %c0_58 = arith.constant 0 : index
    %74 = vector.load %arg14[%c0_56, %c0_57, %c0_58] : memref<8x48x16xf32, #tpu.memory_space<vmem>>, vector<8x48x16xf32>
    %c0_59 = arith.constant 0 : index
    %c0_60 = arith.constant 0 : index
    %c0_61 = arith.constant 0 : index
    %75 = vector.load %arg15[%c0_59, %c0_60, %c0_61] : memref<8x48x16xf32, #tpu.memory_space<vmem>>, vector<8x48x16xf32>
    %c0_62 = arith.constant 0 : index
    %c0_63 = arith.constant 0 : index
    %76 = vector.load %arg16[%c0_62, %c0_63] : memref<8x16xf32, #tpu.memory_space<vmem>>, vector<8x16xf32>
    %c1 = arith.constant 1 : index
    %c0_64 = arith.constant 0 : index
    %c0_65 = arith.constant 0 : index
    %c0_66 = arith.constant 0 : index
    %77 = vector.load %arg18[%c1, %c0_64, %c0_65, %c0_66] : memref<2x1x8x16xf32, #tpu.memory_space<vmem>>, vector<1x1x8x16xf32>
    %78 = vector.shape_cast %77 : vector<1x1x8x16xf32> to vector<1x8x16xf32>
    "tpu.trace_start"() <{level = 10 : i32, message = "bnm,bmc->bnc"}> : () -> ()
    %cst_67 = arith.constant dense<0.000000e+00> : vector<1x8x16xf32>
    %79 = tpu.matmul %7, %67, %cst_67 {dimension_numbers = #tpu.dot_dimension_numbers<[2], [1], [1], [2], [0, 0, 0, 1, 1, 2], [0], [0]>} : vector<1x8x8xf32>, vector<1x8x16xf32>, vector<1x8x16xf32> -> vector<1x8x16xf32>
    %cst_68 = arith.constant dense<0.000000e+00> : vector<1x8x16xf32>
    %80 = tpu.matmul %7, %79, %cst_68 {dimension_numbers = #tpu.dot_dimension_numbers<[2], [1], [1], [2], [0, 0, 0, 1, 1, 2], [0], [0]>} : vector<1x8x8xf32>, vector<1x8x16xf32>, vector<1x8x16xf32> -> vector<1x8x16xf32>
    "tpu.trace_stop"() : () -> ()
    %cst_69 = arith.constant 2.000000e+00 : f32
    %81 = vector.broadcast %cst_69 : f32 to vector<1x8x16xf32>
    %82 = arith.mulf %81, %80 : vector<1x8x16xf32>
    %83 = arith.subf %82, %67 : vector<1x8x16xf32>
    %84 = tpu.concatenate %67, %79, %83 in 2 : vector<1x8x16xf32>, vector<1x8x16xf32>, vector<1x8x16xf32> -> vector<1x8x48xf32>
    "tpu.trace_start"() <{level = 10 : i32, message = "bnm,bmc->bnc"}> : () -> ()
    %cst_70 = arith.constant dense<0.000000e+00> : vector<1x8x16xf32>
    %85 = tpu.matmul %7, %78, %cst_70 {dimension_numbers = #tpu.dot_dimension_numbers<[2], [1], [1], [2], [0, 0, 0, 1, 1, 2], [0], [0]>} : vector<1x8x8xf32>, vector<1x8x16xf32>, vector<1x8x16xf32> -> vector<1x8x16xf32>
    %cst_71 = arith.constant dense<0.000000e+00> : vector<1x8x16xf32>
    %86 = tpu.matmul %7, %85, %cst_71 {dimension_numbers = #tpu.dot_dimension_numbers<[2], [1], [1], [2], [0, 0, 0, 1, 1, 2], [0], [0]>} : vector<1x8x8xf32>, vector<1x8x16xf32>, vector<1x8x16xf32> -> vector<1x8x16xf32>
    "tpu.trace_stop"() : () -> ()
    %cst_72 = arith.constant 2.000000e+00 : f32
    %87 = vector.broadcast %cst_72 : f32 to vector<1x8x16xf32>
    %88 = arith.mulf %87, %86 : vector<1x8x16xf32>
    %89 = arith.subf %88, %78 : vector<1x8x16xf32>
    %90 = tpu.concatenate %78, %85, %89 in 2 : vector<1x8x16xf32>, vector<1x8x16xf32>, vector<1x8x16xf32> -> vector<1x8x48xf32>
    %91 = tpu.transpose %84, [1, 0, 2] : vector<1x8x48xf32> -> vector<8x1x48xf32>
    %cst_73 = arith.constant dense<0.000000e+00> : vector<8x1x32xf32>
    %92 = tpu.matmul %91, %71, %cst_73 {dimension_numbers = #tpu.dot_dimension_numbers<[2], [1], [1], [2], [0, 0, 0, 1, 1, 2], [0], [0]>} : vector<8x1x48xf32>, vector<8x48x32xf32>, vector<8x1x32xf32> -> vector<8x1x32xf32>
    %93 = tpu.transpose %92, [1, 0, 2] : vector<8x1x32xf32> -> vector<1x8x32xf32>
    %94 = tpu.transpose %90, [1, 0, 2] : vector<1x8x48xf32> -> vector<8x1x48xf32>
    %cst_74 = arith.constant dense<0.000000e+00> : vector<8x1x32xf32>
    %95 = tpu.matmul %94, %72, %cst_74 {dimension_numbers = #tpu.dot_dimension_numbers<[2], [1], [1], [2], [0, 0, 0, 1, 1, 2], [0], [0]>} : vector<8x1x48xf32>, vector<8x48x32xf32>, vector<8x1x32xf32> -> vector<8x1x32xf32>
    %96 = tpu.transpose %95, [1, 0, 2] : vector<8x1x32xf32> -> vector<1x8x32xf32>
    %97 = arith.addf %93, %96 : vector<1x8x32xf32>
    %98 = vector.shape_cast %73 : vector<8x32xf32> to vector<1x8x32xf32>
    %99 = arith.addf %97, %98 : vector<1x8x32xf32>
    %100 = arith.negf %99 : vector<1x8x32xf32>
    %101 = math.exp %100 : vector<1x8x32xf32>
    %cst_75 = arith.constant 1.000000e+00 : f32
    %102 = vector.broadcast %cst_75 : f32 to vector<1x8x32xf32>
    %103 = arith.addf %102, %101 : vector<1x8x32xf32>
    %104 = arith.divf %102, %103 : vector<1x8x32xf32>
    %105 = vector.extract_strided_slice %104 {offsets = [0, 0, 0], sizes = [1, 8, 16], strides = [1, 1, 1]} : vector<1x8x32xf32> to vector<1x8x16xf32>
    %106 = vector.extract_strided_slice %104 {offsets = [0, 0, 16], sizes = [1, 8, 16], strides = [1, 1, 1]} : vector<1x8x32xf32> to vector<1x8x16xf32>
    %107 = arith.mulf %105, %78 : vector<1x8x16xf32>
    "tpu.trace_start"() <{level = 10 : i32, message = "bnm,bmc->bnc"}> : () -> ()
    %cst_76 = arith.constant dense<0.000000e+00> : vector<1x8x16xf32>
    %108 = tpu.matmul %7, %107, %cst_76 {dimension_numbers = #tpu.dot_dimension_numbers<[2], [1], [1], [2], [0, 0, 0, 1, 1, 2], [0], [0]>} : vector<1x8x8xf32>, vector<1x8x16xf32>, vector<1x8x16xf32> -> vector<1x8x16xf32>
    %cst_77 = arith.constant dense<0.000000e+00> : vector<1x8x16xf32>
    %109 = tpu.matmul %7, %108, %cst_77 {dimension_numbers = #tpu.dot_dimension_numbers<[2], [1], [1], [2], [0, 0, 0, 1, 1, 2], [0], [0]>} : vector<1x8x8xf32>, vector<1x8x16xf32>, vector<1x8x16xf32> -> vector<1x8x16xf32>
    "tpu.trace_stop"() : () -> ()
    %cst_78 = arith.constant 2.000000e+00 : f32
    %110 = vector.broadcast %cst_78 : f32 to vector<1x8x16xf32>
    %111 = arith.mulf %110, %109 : vector<1x8x16xf32>
    %112 = arith.subf %111, %107 : vector<1x8x16xf32>
    %113 = tpu.concatenate %107, %108, %112 in 2 : vector<1x8x16xf32>, vector<1x8x16xf32>, vector<1x8x16xf32> -> vector<1x8x48xf32>
    %114 = tpu.transpose %84, [1, 0, 2] : vector<1x8x48xf32> -> vector<8x1x48xf32>
    %cst_79 = arith.constant dense<0.000000e+00> : vector<8x1x16xf32>
    %115 = tpu.matmul %114, %74, %cst_79 {dimension_numbers = #tpu.dot_dimension_numbers<[2], [1], [1], [2], [0, 0, 0, 1, 1, 2], [0], [0]>} : vector<8x1x48xf32>, vector<8x48x16xf32>, vector<8x1x16xf32> -> vector<8x1x16xf32>
    %116 = tpu.transpose %115, [1, 0, 2] : vector<8x1x16xf32> -> vector<1x8x16xf32>
    %117 = tpu.transpose %113, [1, 0, 2] : vector<1x8x48xf32> -> vector<8x1x48xf32>
    %cst_80 = arith.constant dense<0.000000e+00> : vector<8x1x16xf32>
    %118 = tpu.matmul %117, %75, %cst_80 {dimension_numbers = #tpu.dot_dimension_numbers<[2], [1], [1], [2], [0, 0, 0, 1, 1, 2], [0], [0]>} : vector<8x1x48xf32>, vector<8x48x16xf32>, vector<8x1x16xf32> -> vector<8x1x16xf32>
    %119 = tpu.transpose %118, [1, 0, 2] : vector<8x1x16xf32> -> vector<1x8x16xf32>
    %120 = arith.addf %116, %119 : vector<1x8x16xf32>
    %121 = vector.shape_cast %76 : vector<8x16xf32> to vector<1x8x16xf32>
    %122 = arith.addf %120, %121 : vector<1x8x16xf32>
    %123 = math.tanh %122 : vector<1x8x16xf32>
    %124 = arith.mulf %106, %78 : vector<1x8x16xf32>
    %cst_81 = arith.constant 1.000000e+00 : f32
    %125 = vector.broadcast %cst_81 : f32 to vector<1x8x16xf32>
    %126 = arith.subf %125, %106 : vector<1x8x16xf32>
    %127 = arith.mulf %126, %123 : vector<1x8x16xf32>
    %128 = arith.addf %124, %127 : vector<1x8x16xf32>
    %c1_82 = arith.constant 1 : index
    %c0_83 = arith.constant 0 : index
    %c0_84 = arith.constant 0 : index
    %c0_85 = arith.constant 0 : index
    %129 = vector.load %arg18[%c1_82, %c0_83, %c0_84, %c0_85] : memref<2x1x8x16xf32, #tpu.memory_space<vmem>>, vector<1x1x8x16xf32>
    %130 = vector.shape_cast %129 : vector<1x1x8x16xf32> to vector<1x8x16xf32>
    %131 = vector.shape_cast %128 : vector<1x8x16xf32> to vector<1x1x8x16xf32>
    tpu.vector_store %arg18[%c1_82, %c0_83, %c0_84, %c0_85], %131 {strides = array<i32>} : memref<2x1x8x16xf32, #tpu.memory_space<vmem>>, vector<1x1x8x16xf32>,
    %c3_i32 = arith.constant 3 : i32
    %132 = arith.cmpi eq, %arg1, %c3_i32 : i32
    %133 = arith.extui %132 : i1 to i32
    %c0_i32_86 = arith.constant 0 : i32
    %134 = arith.cmpi ne, %133, %c0_i32_86 : i32
    scf.if %134 {
      %c0_87 = arith.constant 0 : index
      %c0_88 = arith.constant 0 : index
      %c0_89 = arith.constant 0 : index
      %135 = vector.load %arg17[%c0_87, %c0_88, %c0_89] : memref<1x8x16xf32, #tpu.memory_space<vmem>>, vector<1x8x16xf32>
      tpu.vector_store %arg17[%c0_87, %c0_88, %c0_89], %128 {strides = array<i32>} : memref<1x8x16xf32, #tpu.memory_space<vmem>>, vector<1x8x16xf32>,
    } else {
    }
    return
  }
  func.func @transform_0(%arg0: i32, %arg1: i32) -> (i32, i32, i32, i32) {
    %c0_i32 = arith.constant 0 : i32
    %c0_i32_0 = arith.constant 0 : i32
    %c0_i32_1 = arith.constant 0 : i32
    return %arg0, %arg1, %c0_i32, %c0_i32_0 : i32, i32, i32, i32
  }
  func.func @transform_1(%arg0: i32, %arg1: i32) -> (i32, i32, i32, i32) {
    %c0_i32 = arith.constant 0 : i32
    %c0_i32_0 = arith.constant 0 : i32
    %c0_i32_1 = arith.constant 0 : i32
    return %arg0, %arg1, %c0_i32, %c0_i32_0 : i32, i32, i32, i32
  }
  func.func @transform_2(%arg0: i32, %arg1: i32) -> (i32, i32) {
    %c0_i32 = arith.constant 0 : i32
    %c0_i32_0 = arith.constant 0 : i32
    %c0_i32_1 = arith.constant 0 : i32
    return %c0_i32, %c0_i32_0 : i32, i32
  }
  func.func @transform_3(%arg0: i32, %arg1: i32) -> (i32, i32, i32) {
    %c0_i32 = arith.constant 0 : i32
    %c0_i32_0 = arith.constant 0 : i32
    %c0_i32_1 = arith.constant 0 : i32
    %c0_i32_2 = arith.constant 0 : i32
    return %c0_i32, %c0_i32_0, %c0_i32_1 : i32, i32, i32
  }
  func.func @transform_4(%arg0: i32, %arg1: i32) -> (i32, i32, i32) {
    %c0_i32 = arith.constant 0 : i32
    %c0_i32_0 = arith.constant 0 : i32
    %c0_i32_1 = arith.constant 0 : i32
    %c0_i32_2 = arith.constant 0 : i32
    return %c0_i32, %c0_i32_0, %c0_i32_1 : i32, i32, i32
  }
  func.func @transform_5(%arg0: i32, %arg1: i32) -> (i32, i32) {
    %c0_i32 = arith.constant 0 : i32
    %c0_i32_0 = arith.constant 0 : i32
    %c0_i32_1 = arith.constant 0 : i32
    return %c0_i32, %c0_i32_0 : i32, i32
  }
  func.func @transform_6(%arg0: i32, %arg1: i32) -> (i32, i32, i32) {
    %c0_i32 = arith.constant 0 : i32
    %c0_i32_0 = arith.constant 0 : i32
    %c0_i32_1 = arith.constant 0 : i32
    %c0_i32_2 = arith.constant 0 : i32
    return %c0_i32, %c0_i32_0, %c0_i32_1 : i32, i32, i32
  }
  func.func @transform_7(%arg0: i32, %arg1: i32) -> (i32, i32, i32) {
    %c0_i32 = arith.constant 0 : i32
    %c0_i32_0 = arith.constant 0 : i32
    %c0_i32_1 = arith.constant 0 : i32
    %c0_i32_2 = arith.constant 0 : i32
    return %c0_i32, %c0_i32_0, %c0_i32_1 : i32, i32, i32
  }
  func.func @transform_8(%arg0: i32, %arg1: i32) -> (i32, i32) {
    %c0_i32 = arith.constant 0 : i32
    %c0_i32_0 = arith.constant 0 : i32
    %c0_i32_1 = arith.constant 0 : i32
    return %c0_i32, %c0_i32_0 : i32, i32
  }
  func.func @transform_9(%arg0: i32, %arg1: i32) -> (i32, i32, i32) {
    %c0_i32 = arith.constant 0 : i32
    %c0_i32_0 = arith.constant 0 : i32
    %c0_i32_1 = arith.constant 0 : i32
    %c0_i32_2 = arith.constant 0 : i32
    return %c0_i32, %c0_i32_0, %c0_i32_1 : i32, i32, i32
  }
  func.func @transform_10(%arg0: i32, %arg1: i32) -> (i32, i32, i32) {
    %c0_i32 = arith.constant 0 : i32
    %c0_i32_0 = arith.constant 0 : i32
    %c0_i32_1 = arith.constant 0 : i32
    %c0_i32_2 = arith.constant 0 : i32
    return %c0_i32, %c0_i32_0, %c0_i32_1 : i32, i32, i32
  }
  func.func @transform_11(%arg0: i32, %arg1: i32) -> (i32, i32) {
    %c0_i32 = arith.constant 0 : i32
    %c0_i32_0 = arith.constant 0 : i32
    %c0_i32_1 = arith.constant 0 : i32
    return %c0_i32, %c0_i32_0 : i32, i32
  }
  func.func @transform_12(%arg0: i32, %arg1: i32) -> (i32, i32, i32) {
    %c0_i32 = arith.constant 0 : i32
    %c0_i32_0 = arith.constant 0 : i32
    %c0_i32_1 = arith.constant 0 : i32
    %c0_i32_2 = arith.constant 0 : i32
    return %c0_i32, %c0_i32_0, %c0_i32_1 : i32, i32, i32
  }
  func.func @transform_13(%arg0: i32, %arg1: i32) -> (i32, i32, i32) {
    %c0_i32 = arith.constant 0 : i32
    %c0_i32_0 = arith.constant 0 : i32
    %c0_i32_1 = arith.constant 0 : i32
    %c0_i32_2 = arith.constant 0 : i32
    return %c0_i32, %c0_i32_0, %c0_i32_1 : i32, i32, i32
  }
  func.func @transform_14(%arg0: i32, %arg1: i32) -> (i32, i32) {
    %c0_i32 = arith.constant 0 : i32
    %c0_i32_0 = arith.constant 0 : i32
    %c0_i32_1 = arith.constant 0 : i32
    return %c0_i32, %c0_i32_0 : i32, i32
  }
  func.func @transform_15(%arg0: i32, %arg1: i32) -> (i32, i32, i32) {
    %c0_i32 = arith.constant 0 : i32
    %c0_i32_0 = arith.constant 0 : i32
    %c0_i32_1 = arith.constant 0 : i32
    return %arg0, %c0_i32, %c0_i32_0 : i32, i32, i32
  }
}

</mosaic_0001>

<llo_original>
// kernel: _lambda_.1
$region0: #{_lambda_.1}
  #allocation0 [shape = 'u32[]', space=smem, size = 0x4, offset = 0x4, fixed_abs, tag = 'smem constant byte address 0x4 - core index']
  #allocation1 [shape = 'u32[144,128]{1,0:T(1,128)}', space=vmem, size = 0x12000, scoped, tag = 'internal scratch']
  #allocation2 [shape = 'f32[2,1,8,16]{3,2,1,0:T(8,128)}', space=vmem, size = 0x2000, scoped, tag = 'scratch operand']
  %s0 = inlined_call_operand.vmem [shape: f32[2,4,8,2], index: 0, kind: input, shape index: {}]
  %s1 = inlined_call_operand.vmem [shape: f32[2,4,8,8], index: 1, kind: input, shape index: {}]
  %s2 = inlined_call_operand.vmem [shape: f32[8,8], index: 2, kind: input, shape index: {}]
  %s3 = inlined_call_operand.vmem [shape: f32[8,6,32], index: 3, kind: input, shape index: {}]
  %s4 = inlined_call_operand.vmem [shape: f32[8,48,32], index: 4, kind: input, shape index: {}]
  %s5 = inlined_call_operand.vmem [shape: f32[8,32], index: 5, kind: input, shape index: {}]
  %s6 = inlined_call_operand.vmem [shape: f32[8,6,16], index: 6, kind: input, shape index: {}]
  %s7 = inlined_call_operand.vmem [shape: f32[8,48,16], index: 7, kind: input, shape index: {}]
  %s8 = inlined_call_operand.vmem [shape: f32[8,16], index: 8, kind: input, shape index: {}]
  %s9 = inlined_call_operand.vmem [shape: f32[8,48,32], index: 9, kind: input, shape index: {}]
  %s10 = inlined_call_operand.vmem [shape: f32[8,48,32], index: 10, kind: input, shape index: {}]
  %s11 = inlined_call_operand.vmem [shape: f32[8,32], index: 11, kind: input, shape index: {}]
  %s12 = inlined_call_operand.vmem [shape: f32[8,48,16], index: 12, kind: input, shape index: {}]
  %s13 = inlined_call_operand.vmem [shape: f32[8,48,16], index: 13, kind: input, shape index: {}]
  %s14 = inlined_call_operand.vmem [shape: f32[8,16], index: 14, kind: input, shape index: {}]
  %s15 = inlined_call_operand.hbm [shape: f32[2,8,16], index: 15, kind: output, shape index: {}]
  %s16 = sld [smem:[#allocation0]]
  $region101: #{_lambda_.1} parent=0
    _
  %s18 = ssub.s32 1, %s16
  %s19 = scalar_select 0, %s18, %s16
  $region1: #{_lambda_.1} parent=0
    #allocation3 [shape = 'u8[8192]{0}', space=vmem, size = 0x2000, scoped, tag = 'output window, operand 0']
    #allocation4 [shape = 's32[2]{0}', space=sflag, size = 0x8, scoped, tag = 'scoped memory for _lambda_.1']
    %20 = vsyncpa [#allocation4], 0
    %s21 = scalar_lea.sflag [#allocation4], 1
    %22 = vsyncpa %s21, 0
    loop: start=0, step=1, limit=10
    $region2: #{_lambda_.1} parent=1 // loop_pre_header
      _
    $region3: #{_lambda_.1} parent=1 // loop_header
      %s24 = sphi 0, %s28
      %p25 = scmp.ge.s32.totalorder %s24, 10
      %s31 = sphi 0, %s43
      %s32 = sphi 0, %s39
      %s33 = sphi 0, %s31
      %s34 = sphi 0, %s32
      %s35 = sphi 0, %s33
      %s36 = sphi 0, %s34
      %s48 = sphi 0, %s50
      %s51 = sphi 0, %s48
      %s52 = sphi 0, %s51
      %s68 = sphi 0, %s52
      %s76 = sphi 0, %s78
      %s79 = sphi 0, %s76
      %s80 = sphi 0, %s79
      %s96 = sphi 0, %s80
      %s100 = sphi 0, %s100
      %s102 = sphi 0, %s100
      %s103 = sphi 0, %s102
      %s117 = sphi 0, %s103
      %s121 = sphi 0, %s121
      %s123 = sphi 0, %s121
      %s124 = sphi 0, %s123
      %s138 = sphi 0, %s124
      %s142 = sphi 0, %s142
      %s144 = sphi 0, %s142
      %s145 = sphi 0, %s144
      %s159 = sphi 0, %s145
      %s163 = sphi 0, %s163
      %s165 = sphi 0, %s163
      %s166 = sphi 0, %s165
      %s180 = sphi 0, %s166
      %s184 = sphi 0, %s184
      %s186 = sphi 0, %s184
      %s187 = sphi 0, %s186
      %s201 = sphi 0, %s187
      %s205 = sphi 0, %s205
      %s207 = sphi 0, %s205
      %s208 = sphi 0, %s207
      %s222 = sphi 0, %s208
      %s226 = sphi 0, %s226
      %s228 = sphi 0, %s226
      %s229 = sphi 0, %s228
      %s243 = sphi 0, %s229
      %s247 = sphi 0, %s247
      %s249 = sphi 0, %s247
      %s250 = sphi 0, %s249
      %s264 = sphi 0, %s250
      %s268 = sphi 0, %s268
      %s270 = sphi 0, %s268
      %s271 = sphi 0, %s270
      %s285 = sphi 0, %s271
      %s289 = sphi 0, %s289
      %s291 = sphi 0, %s289
      %s292 = sphi 0, %s291
      %s306 = sphi 0, %s292
      %s310 = sphi 0, %s310
      %s312 = sphi 0, %s310
      %s313 = sphi 0, %s312
      %s327 = sphi 0, %s313
      %s331 = sphi 0, %s331
      %s333 = sphi 0, %s331
      %s334 = sphi 0, %s333
      %s348 = sphi 0, %s334
      %s352 = sphi 0, %s352
      %s354 = sphi 0, %s352
      %s355 = sphi 0, %s354
      %s369 = sphi 0, %s355
      %s375 = sphi 0, %s377
      %s378 = sphi 0, %s375
      %s379 = sphi 0, %s378
      %s395 = sphi 0, %s379
    $region4: #{_lambda_.1} parent=1 // loop_header_branch
      %27 = sbr.rel (%p25) target = $region8
    $region5: #{_lambda_.1} parent=1 // loop_body
      %s29 = ssub.s32 %s24, 1
      %s30 = ssub.s32 %s24, 2
      %s37 = sadd.s32 1, %s32
      %p38 = scmp.ge.s32.totalorder %s37, 4
      %s39 = scalar_select %p38, 0, %s37
      %s40 = sadd.s32 1, %s31
      %s41 = scalar_select %p38, %s40, %s31
      %p42 = scmp.ge.s32.totalorder %s41, 2
      %s43 = scalar_select %p42, 0, %s41
      %s44 = ssub.s32 %s31, %s43
      %s45 = ssub.s32 %s32, %s39
      %s46 = sor.u32 %s44, %s45
      %p47 = scmp.eq.s32.totalorder %s46, 0
      %s49 = sadd.s32 %s48, 1
      %s50 = scalar_select %p47, %s48, %s49
      %p53 = pneg %p47
      %p54 = scmp.eq.s32.totalorder %s24, 7
      %p55 = por %p53, %p54
      %p56 = scmp.ne.s32.totalorder %s48, %s51
      %p57 = scmp.eq.s32.totalorder %s24, 0
      %p58 = por %p56, %p57
      %p59 = scmp.ne.s32.totalorder %s48, %s51
      %p60 = scmp.eq.s32.totalorder %s29, 7
      %p61 = por %p59, %p60
      %p62 = scmp.ne.s32.totalorder %s51, %s52
      %p63 = scmp.eq.s32.totalorder %s29, 0
      %p64 = por %p62, %p63
      %p65 = scmp.ne.s32.totalorder %s51, %s52
      %p66 = scmp.eq.s32.totalorder %s30, 7
      %p67 = por %p65, %p66
      %p69 = scmp.ne.s32.totalorder %s52, %s68
      %p70 = scmp.eq.s32.totalorder %s30, 0
      %p71 = por %p69, %p70
      %s72 = ssub.s32 %s31, %s43
      %s73 = ssub.s32 %s32, %s39
      %s74 = sor.u32 %s72, %s73
      %p75 = scmp.eq.s32.totalorder %s74, 0
      %s77 = sadd.s32 %s76, 1
      %s78 = scalar_select %p75, %s76, %s77
      %p81 = pneg %p75
      %p82 = scmp.eq.s32.totalorder %s24, 7
      %p83 = por %p81, %p82
      %p84 = scmp.ne.s32.totalorder %s76, %s79
      %p85 = scmp.eq.s32.totalorder %s24, 0
      %p86 = por %p84, %p85
      %p87 = scmp.ne.s32.totalorder %s76, %s79
      %p88 = scmp.eq.s32.totalorder %s29, 7
      %p89 = por %p87, %p88
      %p90 = scmp.ne.s32.totalorder %s79, %s80
      %p91 = scmp.eq.s32.totalorder %s29, 0
      %p92 = por %p90, %p91
      %p93 = scmp.ne.s32.totalorder %s79, %s80
      %p94 = scmp.eq.s32.totalorder %s30, 7
      %p95 = por %p93, %p94
      %p97 = scmp.ne.s32.totalorder %s80, %s96
      %p98 = scmp.eq.s32.totalorder %s30, 0
      %p99 = por %p97, %p98
      %s101 = sadd.s32 %s100, 1
      %p104 = scmp.eq.s32.totalorder %s24, 7
      %p105 = scmp.ne.s32.totalorder %s100, %s102
      %p106 = scmp.eq.s32.totalorder %s24, 0
      %p107 = por %p105, %p106
      %p108 = scmp.ne.s32.totalorder %s100, %s102
      %p109 = scmp.eq.s32.totalorder %s29, 7
      %p110 = por %p108, %p109
      %p111 = scmp.ne.s32.totalorder %s102, %s103
      %p112 = scmp.eq.s32.totalorder %s29, 0
      %p113 = por %p111, %p112
      %p114 = scmp.ne.s32.totalorder %s102, %s103
      %p115 = scmp.eq.s32.totalorder %s30, 7
      %p116 = por %p114, %p115
      %p118 = scmp.ne.s32.totalorder %s103, %s117
      %p119 = scmp.eq.s32.totalorder %s30, 0
      %p120 = por %p118, %p119
      %s122 = sadd.s32 %s121, 1
      %p125 = scmp.eq.s32.totalorder %s24, 7
      %p126 = scmp.ne.s32.totalorder %s121, %s123
      %p127 = scmp.eq.s32.totalorder %s24, 0
      %p128 = por %p126, %p127
      %p129 = scmp.ne.s32.totalorder %s121, %s123
      %p130 = scmp.eq.s32.totalorder %s29, 7
      %p131 = por %p129, %p130
      %p132 = scmp.ne.s32.totalorder %s123, %s124
      %p133 = scmp.eq.s32.totalorder %s29, 0
      %p134 = por %p132, %p133
      %p135 = scmp.ne.s32.totalorder %s123, %s124
      %p136 = scmp.eq.s32.totalorder %s30, 7
      %p137 = por %p135, %p136
      %p139 = scmp.ne.s32.totalorder %s124, %s138
      %p140 = scmp.eq.s32.totalorder %s30, 0
      %p141 = por %p139, %p140
      %s143 = sadd.s32 %s142, 1
      %p146 = scmp.eq.s32.totalorder %s24, 7
      %p147 = scmp.ne.s32.totalorder %s142, %s144
      %p148 = scmp.eq.s32.totalorder %s24, 0
      %p149 = por %p147, %p148
      %p150 = scmp.ne.s32.totalorder %s142, %s144
      %p151 = scmp.eq.s32.totalorder %s29, 7
      %p152 = por %p150, %p151
      %p153 = scmp.ne.s32.totalorder %s144, %s145
      %p154 = scmp.eq.s32.totalorder %s29, 0
      %p155 = por %p153, %p154
      %p156 = scmp.ne.s32.totalorder %s144, %s145
      %p157 = scmp.eq.s32.totalorder %s30, 7
      %p158 = por %p156, %p157
      %p160 = scmp.ne.s32.totalorder %s145, %s159
      %p161 = scmp.eq.s32.totalorder %s30, 0
      %p162 = por %p160, %p161
      %s164 = sadd.s32 %s163, 1
      %p167 = scmp.eq.s32.totalorder %s24, 7
      %p168 = scmp.ne.s32.totalorder %s163, %s165
      %p169 = scmp.eq.s32.totalorder %s24, 0
      %p170 = por %p168, %p169
      %p171 = scmp.ne.s32.totalorder %s163, %s165
      %p172 = scmp.eq.s32.totalorder %s29, 7
      %p173 = por %p171, %p172
      %p174 = scmp.ne.s32.totalorder %s165, %s166
      %p175 = scmp.eq.s32.totalorder %s29, 0
      %p176 = por %p174, %p175
      %p177 = scmp.ne.s32.totalorder %s165, %s166
      %p178 = scmp.eq.s32.totalorder %s30, 7
      %p179 = por %p177, %p178
      %p181 = scmp.ne.s32.totalorder %s166, %s180
      %p182 = scmp.eq.s32.totalorder %s30, 0
      %p183 = por %p181, %p182
      %s185 = sadd.s32 %s184, 1
      %p188 = scmp.eq.s32.totalorder %s24, 7
      %p189 = scmp.ne.s32.totalorder %s184, %s186
      %p190 = scmp.eq.s32.totalorder %s24, 0
      %p191 = por %p189, %p190
      %p192 = scmp.ne.s32.totalorder %s184, %s186
      %p193 = scmp.eq.s32.totalorder %s29, 7
      %p194 = por %p192, %p193
      %p195 = scmp.ne.s32.totalorder %s186, %s187
      %p196 = scmp.eq.s32.totalorder %s29, 0
      %p197 = por %p195, %p196
      %p198 = scmp.ne.s32.totalorder %s186, %s187
      %p199 = scmp.eq.s32.totalorder %s30, 7
      %p200 = por %p198, %p199
      %p202 = scmp.ne.s32.totalorder %s187, %s201
      %p203 = scmp.eq.s32.totalorder %s30, 0
      %p204 = por %p202, %p203
      %s206 = sadd.s32 %s205, 1
      %p209 = scmp.eq.s32.totalorder %s24, 7
      %p210 = scmp.ne.s32.totalorder %s205, %s207
      %p211 = scmp.eq.s32.totalorder %s24, 0
      %p212 = por %p210, %p211
      %p213 = scmp.ne.s32.totalorder %s205, %s207
      %p214 = scmp.eq.s32.totalorder %s29, 7
      %p215 = por %p213, %p214
      %p216 = scmp.ne.s32.totalorder %s207, %s208
      %p217 = scmp.eq.s32.totalorder %s29, 0
      %p218 = por %p216, %p217
      %p219 = scmp.ne.s32.totalorder %s207, %s208
      %p220 = scmp.eq.s32.totalorder %s30, 7
      %p221 = por %p219, %p220
      %p223 = scmp.ne.s32.totalorder %s208, %s222
      %p224 = scmp.eq.s32.totalorder %s30, 0
      %p225 = por %p223, %p224
      %s227 = sadd.s32 %s226, 1
      %p230 = scmp.eq.s32.totalorder %s24, 7
      %p231 = scmp.ne.s32.totalorder %s226, %s228
      %p232 = scmp.eq.s32.totalorder %s24, 0
      %p233 = por %p231, %p232
      %p234 = scmp.ne.s32.totalorder %s226, %s228
      %p235 = scmp.eq.s32.totalorder %s29, 7
      %p236 = por %p234, %p235
      %p237 = scmp.ne.s32.totalorder %s228, %s229
      %p238 = scmp.eq.s32.totalorder %s29, 0
      %p239 = por %p237, %p238
      %p240 = scmp.ne.s32.totalorder %s228, %s229
      %p241 = scmp.eq.s32.totalorder %s30, 7
      %p242 = por %p240, %p241
      %p244 = scmp.ne.s32.totalorder %s229, %s243
      %p245 = scmp.eq.s32.totalorder %s30, 0
      %p246 = por %p244, %p245
      %s248 = sadd.s32 %s247, 1
      %p251 = scmp.eq.s32.totalorder %s24, 7
      %p252 = scmp.ne.s32.totalorder %s247, %s249
      %p253 = scmp.eq.s32.totalorder %s24, 0
      %p254 = por %p252, %p253
      %p255 = scmp.ne.s32.totalorder %s247, %s249
      %p256 = scmp.eq.s32.totalorder %s29, 7
      %p257 = por %p255, %p256
      %p258 = scmp.ne.s32.totalorder %s249, %s250
      %p259 = scmp.eq.s32.totalorder %s29, 0
      %p260 = por %p258, %p259
      %p261 = scmp.ne.s32.totalorder %s249, %s250
      %p262 = scmp.eq.s32.totalorder %s30, 7
      %p263 = por %p261, %p262
      %p265 = scmp.ne.s32.totalorder %s250, %s264
      %p266 = scmp.eq.s32.totalorder %s30, 0
      %p267 = por %p265, %p266
      %s269 = sadd.s32 %s268, 1
      %p272 = scmp.eq.s32.totalorder %s24, 7
      %p273 = scmp.ne.s32.totalorder %s268, %s270
      %p274 = scmp.eq.s32.totalorder %s24, 0
      %p275 = por %p273, %p274
      %p276 = scmp.ne.s32.totalorder %s268, %s270
      %p277 = scmp.eq.s32.totalorder %s29, 7
      %p278 = por %p276, %p277
      %p279 = scmp.ne.s32.totalorder %s270, %s271
      %p280 = scmp.eq.s32.totalorder %s29, 0
      %p281 = por %p279, %p280
      %p282 = scmp.ne.s32.totalorder %s270, %s271
      %p283 = scmp.eq.s32.totalorder %s30, 7
      %p284 = por %p282, %p283
      %p286 = scmp.ne.s32.totalorder %s271, %s285
      %p287 = scmp.eq.s32.totalorder %s30, 0
      %p288 = por %p286, %p287
      %s290 = sadd.s32 %s289, 1
      %p293 = scmp.eq.s32.totalorder %s24, 7
      %p294 = scmp.ne.s32.totalorder %s289, %s291
      %p295 = scmp.eq.s32.totalorder %s24, 0
      %p296 = por %p294, %p295
      %p297 = scmp.ne.s32.totalorder %s289, %s291
      %p298 = scmp.eq.s32.totalorder %s29, 7
      %p299 = por %p297, %p298
      %p300 = scmp.ne.s32.totalorder %s291, %s292
      %p301 = scmp.eq.s32.totalorder %s29, 0
      %p302 = por %p300, %p301
      %p303 = scmp.ne.s32.totalorder %s291, %s292
      %p304 = scmp.eq.s32.totalorder %s30, 7
      %p305 = por %p303, %p304
      %p307 = scmp.ne.s32.totalorder %s292, %s306
      %p308 = scmp.eq.s32.totalorder %s30, 0
      %p309 = por %p307, %p308
      %s311 = sadd.s32 %s310, 1
      %p314 = scmp.eq.s32.totalorder %s24, 7
      %p315 = scmp.ne.s32.totalorder %s310, %s312
      %p316 = scmp.eq.s32.totalorder %s24, 0
      %p317 = por %p315, %p316
      %p318 = scmp.ne.s32.totalorder %s310, %s312
      %p319 = scmp.eq.s32.totalorder %s29, 7
      %p320 = por %p318, %p319
      %p321 = scmp.ne.s32.totalorder %s312, %s313
      %p322 = scmp.eq.s32.totalorder %s29, 0
      %p323 = por %p321, %p322
      %p324 = scmp.ne.s32.totalorder %s312, %s313
      %p325 = scmp.eq.s32.totalorder %s30, 7
      %p326 = por %p324, %p325
      %p328 = scmp.ne.s32.totalorder %s313, %s327
      %p329 = scmp.eq.s32.totalorder %s30, 0
      %p330 = por %p328, %p329
      %s332 = sadd.s32 %s331, 1
      %p335 = scmp.eq.s32.totalorder %s24, 7
      %p336 = scmp.ne.s32.totalorder %s331, %s333
      %p337 = scmp.eq.s32.totalorder %s24, 0
      %p338 = por %p336, %p337
      %p339 = scmp.ne.s32.totalorder %s331, %s333
      %p340 = scmp.eq.s32.totalorder %s29, 7
      %p341 = por %p339, %p340
      %p342 = scmp.ne.s32.totalorder %s333, %s334
      %p343 = scmp.eq.s32.totalorder %s29, 0
      %p344 = por %p342, %p343
      %p345 = scmp.ne.s32.totalorder %s333, %s334
      %p346 = scmp.eq.s32.totalorder %s30, 7
      %p347 = por %p345, %p346
      %p349 = scmp.ne.s32.totalorder %s334, %s348
      %p350 = scmp.eq.s32.totalorder %s30, 0
      %p351 = por %p349, %p350
      %s353 = sadd.s32 %s352, 1
      %p356 = scmp.eq.s32.totalorder %s24, 7
      %p357 = scmp.ne.s32.totalorder %s352, %s354
      %p358 = scmp.eq.s32.totalorder %s24, 0
      %p359 = por %p357, %p358
      %p360 = scmp.ne.s32.totalorder %s352, %s354
      %p361 = scmp.eq.s32.totalorder %s29, 7
      %p362 = por %p360, %p361
      %p363 = scmp.ne.s32.totalorder %s354, %s355
      %p364 = scmp.eq.s32.totalorder %s29, 0
      %p365 = por %p363, %p364
      %p366 = scmp.ne.s32.totalorder %s354, %s355
      %p367 = scmp.eq.s32.totalorder %s30, 7
      %p368 = por %p366, %p367
      %p370 = scmp.ne.s32.totalorder %s355, %s369
      %p371 = scmp.eq.s32.totalorder %s30, 0
      %p372 = por %p370, %p371
      %s373 = ssub.s32 %s31, %s43
      %p374 = scmp.eq.s32.totalorder %s373, 0
      %s376 = sadd.s32 %s375, 1
      %s377 = scalar_select %p374, %s375, %s376
      %p380 = pneg %p374
      %p381 = scmp.eq.s32.totalorder %s24, 7
      %p382 = por %p380, %p381
      %p383 = scmp.ne.s32.totalorder %s375, %s378
      %p384 = scmp.eq.s32.totalorder %s24, 0
      %p385 = por %p383, %p384
      %p386 = scmp.ne.s32.totalorder %s375, %s378
      %p387 = scmp.eq.s32.totalorder %s29, 7
      %p388 = por %p386, %p387
      %p389 = scmp.ne.s32.totalorder %s378, %s379
      %p390 = scmp.eq.s32.totalorder %s29, 0
      %p391 = por %p389, %p390
      %p392 = scmp.ne.s32.totalorder %s378, %s379
      %p393 = scmp.eq.s32.totalorder %s30, 7
      %p394 = por %p392, %p393
      %p396 = scmp.ne.s32.totalorder %s379, %s395
      %p397 = scmp.eq.s32.totalorder %s30, 0
      %p398 = por %p396, %p397
      %p399 = scmp.le.s32.totalorder 1, %s24
      %p400 = scmp.lt.s32.totalorder %s24, 9
      %p401 = pnand %p399, %p400
      %p402 = pneg %p401
      // Predicated region
      $region9: #{_lambda_.1} parent=5 // pred_check
        _
      $region10: #{_lambda_.1} parent=5 // pred_check_branch
        %404 = sbr.rel (%p401) target = $region12
      $region11: #{_lambda_.1} parent=5 // pred_region
        %s405 = ssub.s32 %s24, 1
        // Predicated region
        $region13: #{_lambda_.1} parent=11 // pred_check
          %p406 = pneg %p113
        $region14: #{_lambda_.1} parent=11 // pred_check_branch
          %408 = sbr.rel (%p406) target = $region16
        $region15: #{_lambda_.1} parent=11 // pred_region
          _
        $region16: #{_lambda_.1} parent=11 // pred_fallthru
          _
        // Predicated region
        $region17: #{_lambda_.1} parent=11 // pred_check
          %p409 = pneg %p134
        $region18: #{_lambda_.1} parent=11 // pred_check_branch
          %411 = sbr.rel (%p409) target = $region20
        $region19: #{_lambda_.1} parent=11 // pred_region
          _
        $region20: #{_lambda_.1} parent=11 // pred_fallthru
          _
        // Predicated region
        $region21: #{_lambda_.1} parent=11 // pred_check
          %p412 = pneg %p155
        $region22: #{_lambda_.1} parent=11 // pred_check_branch
          %414 = sbr.rel (%p412) target = $region24
        $region23: #{_lambda_.1} parent=11 // pred_region
          _
        $region24: #{_lambda_.1} parent=11 // pred_fallthru
          _
        // Predicated region
        $region25: #{_lambda_.1} parent=11 // pred_check
          %p415 = pneg %p176
        $region26: #{_lambda_.1} parent=11 // pred_check_branch
          %417 = sbr.rel (%p415) target = $region28
        $region27: #{_lambda_.1} parent=11 // pred_region
          _
        $region28: #{_lambda_.1} parent=11 // pred_fallthru
          _
        // Predicated region
        $region29: #{_lambda_.1} parent=11 // pred_check
          %p418 = pneg %p197
        $region30: #{_lambda_.1} parent=11 // pred_check_branch
          %420 = sbr.rel (%p418) target = $region32
        $region31: #{_lambda_.1} parent=11 // pred_region
          _
        $region32: #{_lambda_.1} parent=11 // pred_fallthru
          _
        // Predicated region
        $region33: #{_lambda_.1} parent=11 // pred_check
          %p421 = pneg %p218
        $region34: #{_lambda_.1} parent=11 // pred_check_branch
          %423 = sbr.rel (%p421) target = $region36
        $region35: #{_lambda_.1} parent=11 // pred_region
          _
        $region36: #{_lambda_.1} parent=11 // pred_fallthru
          _
        // Predicated region
        $region37: #{_lambda_.1} parent=11 // pred_check
          %p424 = pneg %p239
        $region38: #{_lambda_.1} parent=11 // pred_check_branch
          %426 = sbr.rel (%p424) target = $region40
        $region39: #{_lambda_.1} parent=11 // pred_region
          _
        $region40: #{_lambda_.1} parent=11 // pred_fallthru
          _
        // Predicated region
        $region41: #{_lambda_.1} parent=11 // pred_check
          %p427 = pneg %p260
        $region42: #{_lambda_.1} parent=11 // pred_check_branch
          %429 = sbr.rel (%p427) target = $region44
        $region43: #{_lambda_.1} parent=11 // pred_region
          _
        $region44: #{_lambda_.1} parent=11 // pred_fallthru
          _
        // Predicated region
        $region45: #{_lambda_.1} parent=11 // pred_check
          %p430 = pneg %p281
        $region46: #{_lambda_.1} parent=11 // pred_check_branch
          %432 = sbr.rel (%p430) target = $region48
        $region47: #{_lambda_.1} parent=11 // pred_region
          _
        $region48: #{_lambda_.1} parent=11 // pred_fallthru
          _
        // Predicated region
        $region49: #{_lambda_.1} parent=11 // pred_check
          %p433 = pneg %p302
        $region50: #{_lambda_.1} parent=11 // pred_check_branch
          %435 = sbr.rel (%p433) target = $region52
        $region51: #{_lambda_.1} parent=11 // pred_region
          _
        $region52: #{_lambda_.1} parent=11 // pred_fallthru
          _
        // Predicated region
        $region53: #{_lambda_.1} parent=11 // pred_check
          %p436 = pneg %p323
        $region54: #{_lambda_.1} parent=11 // pred_check_branch
          %438 = sbr.rel (%p436) target = $region56
        $region55: #{_lambda_.1} parent=11 // pred_region
          _
        $region56: #{_lambda_.1} parent=11 // pred_fallthru
          _
        // Predicated region
        $region57: #{_lambda_.1} parent=11 // pred_check
          %p439 = pneg %p344
        $region58: #{_lambda_.1} parent=11 // pred_check_branch
          %441 = sbr.rel (%p439) target = $region60
        $region59: #{_lambda_.1} parent=11 // pred_region
          _
        $region60: #{_lambda_.1} parent=11 // pred_fallthru
          _
        // Predicated region
        $region61: #{_lambda_.1} parent=11 // pred_check
          %p442 = pneg %p365
        $region62: #{_lambda_.1} parent=11 // pred_check_branch
          %444 = sbr.rel (%p442) target = $region64
        $region63: #{_lambda_.1} parent=11 // pred_region
          _
        $region64: #{_lambda_.1} parent=11 // pred_fallthru
          _
      $region12: #{_lambda_.1} parent=5 // pred_fallthru
        _
      %p445 = scmp.lt.s32.totalorder %s24, 8
      // Predicated region
      $region65: #{_lambda_.1} parent=5 // pred_check
        %p446 = pneg %p445
      $region66: #{_lambda_.1} parent=5 // pred_check_branch
        %448 = sbr.rel (%p446) target = $region68
      $region67: #{_lambda_.1} parent=5 // pred_region
        // Predicated region
        $region69: #{_lambda_.1} parent=67 // pred_check
          %p449 = pneg %p58
        $region70: #{_lambda_.1} parent=67 // pred_check_branch
          %451 = sbr.rel (%p449) target = $region72
        $region71: #{_lambda_.1} parent=67 // pred_region
          %p452 = scmp.lt.s32.totalorder %s31, 1
          %s453 = scalar_select %p452, %s31, 1
          %p454 = scmp.lt.s32.totalorder %s32, 3
          %s455 = scalar_select %p454, %s32, 3
          %s456 = smul.addr %s453, 4
          %s457 = sadd.s32 %s455, %s456
          %s458 = smul.addr %s457, 8
          %s459 = scalar_lea.vmem %s0, %s458
        $region72: #{_lambda_.1} parent=67 // pred_fallthru
          _
        // Predicated region
        $region73: #{_lambda_.1} parent=67 // pred_check
          %p460 = pneg %p86
        $region74: #{_lambda_.1} parent=67 // pred_check_branch
          %462 = sbr.rel (%p460) target = $region76
        $region75: #{_lambda_.1} parent=67 // pred_region
          %p463 = scmp.lt.s32.totalorder %s31, 1
          %s464 = scalar_select %p463, %s31, 1
          %p465 = scmp.lt.s32.totalorder %s32, 3
          %s466 = scalar_select %p465, %s32, 3
          %s467 = smul.addr %s464, 4
          %s468 = sadd.s32 %s466, %s467
          %s469 = smul.addr %s468, 8
          %s470 = scalar_lea.vmem %s1, %s469
        $region76: #{_lambda_.1} parent=67 // pred_fallthru
          _
      $region68: #{_lambda_.1} parent=5 // pred_fallthru
        _
      %p471 = scmp.le.s32.totalorder 1, %s24
      %p472 = scmp.lt.s32.totalorder %s24, 9
      %p473 = pnand %p471, %p472
      %p474 = pneg %p473
      // Predicated region
      $region77: #{_lambda_.1} parent=5 // pred_check
        _
      $region78: #{_lambda_.1} parent=5 // pred_check_branch
        %476 = sbr.rel (%p473) target = $region80
      $region79: #{_lambda_.1} parent=5 // pred_region
        %s477 = ssub.s32 %s24, 1
        %p478 = scmp.lt.s32.totalorder %s33, 1
        %s479 = scalar_select %p478, %s33, 1
        %p480 = scmp.lt.s32.totalorder %s34, 3
        %s481 = scalar_select %p480, %s34, 3
        %s482 = smul.addr %s479, 4
        %s483 = sadd.s32 %s481, %s482
        %s484 = smul.addr %s483, 8
        %s485 = scalar_lea.vmem %s0, %s484
        %p486 = pneg %p64
        %p487 = pneg %p61
        %p488 = scmp.lt.s32.totalorder %s33, 1
        %s489 = scalar_select %p488, %s33, 1
        %p490 = scmp.lt.s32.totalorder %s34, 3
        %s491 = scalar_select %p490, %s34, 3
        %s492 = smul.addr %s489, 4
        %s493 = sadd.s32 %s491, %s492
        %s494 = smul.addr %s493, 8
        %s495 = scalar_lea.vmem %s1, %s494
        %p496 = pneg %p92
        %p497 = pneg %p89
        %p498 = pneg %p113
        %p499 = pneg %p110
        %p500 = pneg %p134
        %p501 = pneg %p131
        %p502 = pneg %p155
        %p503 = pneg %p152
        %p504 = pneg %p176
        %p505 = pneg %p173
        %p506 = pneg %p197
        %p507 = pneg %p194
        %p508 = pneg %p218
        %p509 = pneg %p215
        %p510 = pneg %p239
        %p511 = pneg %p236
        %p512 = pneg %p260
        %p513 = pneg %p257
        %p514 = pneg %p281
        %p515 = pneg %p278
        %p516 = pneg %p302
        %p517 = pneg %p299
        %p518 = pneg %p323
        %p519 = pneg %p320
        %p520 = pneg %p344
        %p521 = pneg %p341
        %p522 = pneg %p365
        %p523 = pneg %p362
        %p524 = pneg %p391
        %p525 = pneg %p388
        %s526 = sand.u32 %s378, 1
        %s527 = scalar_lea.sflag [#allocation4], %s526
        %s528 = sand.u32 %s378, 1
        %s529 = smul.addr %s528, 8
        %s530 = scalar_lea.vmem [#allocation3], %s529
        %p531 = scmp.lt.s32.totalorder %s33, 1
        %s532 = scalar_select %p531, %s33, 1
        %p533 = scmp.lt.s32.totalorder %s34, 3
        %s534 = scalar_select %p533, %s34, 3
        %s535 = smul.addr %s532, 4
        %s536 = sadd.s32 %s534, %s535
        %s537 = smul.addr %s536, 8
        %s538 = scalar_lea.vmem %s0, %s537
        %p539 = scmp.lt.s32.totalorder %s33, 1
        %s540 = scalar_select %p539, %s33, 1
        %p541 = scmp.lt.s32.totalorder %s34, 3
        %s542 = scalar_select %p541, %s34, 3
        %s543 = smul.addr %s540, 4
        %s544 = sadd.s32 %s542, %s543
        %s545 = smul.addr %s544, 8
        %s546 = scalar_lea.vmem %s1, %s545
        %p547 = scmp.eq.s32.totalorder %s34, 0
        // Predicated region
        $region81: #{_lambda_.1} parent=79 // pred_check
          %p548 = pneg %p547
        $region82: #{_lambda_.1} parent=79 // pred_check_branch
          %550 = sbr.rel (%p548) target = $region84
        $region83: #{_lambda_.1} parent=79 // pred_region
          %vm551 = vcmask 130048
          %552 = vst.msk [vmem:[#allocation2] sm:$0xff] %vm551, 0.0
          %553 = vst.msk [vmem:[#allocation2 + $0x8] sm:$0xff] %vm551, 0.0
        $region84: #{_lambda_.1} parent=79 // pred_fallthru
          _
        %v554 = vld [vmem:[%s2] sm:$0xff]
        %v555 = vld [vmem:[%s546] sm:$0xff]
        %v556 = vmul.f32 %v554, %v555
        %v557 = vld [vmem:[%s538] sm:$0xff]
        %v558 = vld [vmem:[%s3] sm:$0x3f]
        %v559 = vld [vmem:[%s3 + $0x8] sm:$0x3f]
        %v560 = vld [vmem:[%s3 + $0x10] sm:$0x3f]
        %v561 = vld [vmem:[%s3 + $0x18] sm:$0x3f]
        %v562 = vld [vmem:[%s3 + $0x20] sm:$0x3f]
        %v563 = vld [vmem:[%s3 + $0x28] sm:$0x3f]
        %v564 = vld [vmem:[%s3 + $0x30] sm:$0x3f]
        %v565 = vld [vmem:[%s3 + $0x38] sm:$0x3f]
        %v566 = vld [vmem:[%s4] sm:$0xff]
        %v567 = vld [vmem:[%s4 + $0x8] sm:$0xff]
        %v568 = vld [vmem:[%s4 + $0x10] sm:$0xff]
        %v569 = vld [vmem:[%s4 + $0x18] sm:$0xff]
        %v570 = vld [vmem:[%s4 + $0x20] sm:$0xff]
        %v571 = vld [vmem:[%s4 + $0x28] sm:$0xff]
        %v572 = vld [vmem:[%s4 + $0x30] sm:$0xff]
        %v573 = vld [vmem:[%s4 + $0x38] sm:$0xff]
        %v574 = vld [vmem:[%s4 + $0x40] sm:$0xff]
        %v575 = vld [vmem:[%s4 + $0x48] sm:$0xff]
        %v576 = vld [vmem:[%s4 + $0x50] sm:$0xff]
        %v577 = vld [vmem:[%s4 + $0x58] sm:$0xff]
        %v578 = vld [vmem:[%s4 + $0x60] sm:$0xff]
        %v579 = vld [vmem:[%s4 + $0x68] sm:$0xff]
        %v580 = vld [vmem:[%s4 + $0x70] sm:$0xff]
        %v581 = vld [vmem:[%s4 + $0x78] sm:$0xff]
        %v582 = vld [vmem:[%s4 + $0x80] sm:$0xff]
        %v583 = vld [vmem:[%s4 + $0x88] sm:$0xff]
        %v584 = vld [vmem:[%s4 + $0x90] sm:$0xff]
        %v585 = vld [vmem:[%s4 + $0x98] sm:$0xff]
        %v586 = vld [vmem:[%s4 + $0xa0] sm:$0xff]
        %v587 = vld [vmem:[%s4 + $0xa8] sm:$0xff]
        %v588 = vld [vmem:[%s4 + $0xb0] sm:$0xff]
        %v589 = vld [vmem:[%s4 + $0xb8] sm:$0xff]
        %v590 = vld [vmem:[%s4 + $0xc0] sm:$0xff]
        %v591 = vld [vmem:[%s4 + $0xc8] sm:$0xff]
        %v592 = vld [vmem:[%s4 + $0xd0] sm:$0xff]
        %v593 = vld [vmem:[%s4 + $0xd8] sm:$0xff]
        %v594 = vld [vmem:[%s4 + $0xe0] sm:$0xff]
        %v595 = vld [vmem:[%s4 + $0xe8] sm:$0xff]
        %v596 = vld [vmem:[%s4 + $0xf0] sm:$0xff]
        %v597 = vld [vmem:[%s4 + $0xf8] sm:$0xff]
        %v598 = vld [vmem:[%s4 + $0x100] sm:$0xff]
        %v599 = vld [vmem:[%s4 + $0x108] sm:$0xff]
        %v600 = vld [vmem:[%s4 + $0x110] sm:$0xff]
        %v601 = vld [vmem:[%s4 + $0x118] sm:$0xff]
        %v602 = vld [vmem:[%s4 + $0x120] sm:$0xff]
        %v603 = vld [vmem:[%s4 + $0x128] sm:$0xff]
        %v604 = vld [vmem:[%s4 + $0x130] sm:$0xff]
        %v605 = vld [vmem:[%s4 + $0x138] sm:$0xff]
        %v606 = vld [vmem:[%s4 + $0x140] sm:$0xff]
        %v607 = vld [vmem:[%s4 + $0x148] sm:$0xff]
        %v608 = vld [vmem:[%s4 + $0x150] sm:$0xff]
        %v609 = vld [vmem:[%s4 + $0x158] sm:$0xff]
        %v610 = vld [vmem:[%s4 + $0x160] sm:$0xff]
        %v611 = vld [vmem:[%s4 + $0x168] sm:$0xff]
        %v612 = vld [vmem:[%s4 + $0x170] sm:$0xff]
        %v613 = vld [vmem:[%s4 + $0x178] sm:$0xff]
        %v614 = vld [vmem:[%s5] sm:$0xff]
        %v615 = vld [vmem:[%s6] sm:$0x3f]
        %v616 = vld [vmem:[%s6 + $0x8] sm:$0x3f]
        %v617 = vld [vmem:[%s6 + $0x10] sm:$0x3f]
        %v618 = vld [vmem:[%s6 + $0x18] sm:$0x3f]
        %v619 = vld [vmem:[%s6 + $0x20] sm:$0x3f]
        %v620 = vld [vmem:[%s6 + $0x28] sm:$0x3f]
        %v621 = vld [vmem:[%s6 + $0x30] sm:$0x3f]
        %v622 = vld [vmem:[%s6 + $0x38] sm:$0x3f]
        %v623 = vld [vmem:[%s7] sm:$0xff]
        %v624 = vld [vmem:[%s7 + $0x8] sm:$0xff]
        %v625 = vld [vmem:[%s7 + $0x10] sm:$0xff]
        %v626 = vld [vmem:[%s7 + $0x18] sm:$0xff]
        %v627 = vld [vmem:[%s7 + $0x20] sm:$0xff]
        %v628 = vld [vmem:[%s7 + $0x28] sm:$0xff]
        %v629 = vld [vmem:[%s7 + $0x30] sm:$0xff]
        %v630 = vld [vmem:[%s7 + $0x38] sm:$0xff]
        %v631 = vld [vmem:[%s7 + $0x40] sm:$0xff]
        %v632 = vld [vmem:[%s7 + $0x48] sm:$0xff]
        %v633 = vld [vmem:[%s7 + $0x50] sm:$0xff]
        %v634 = vld [vmem:[%s7 + $0x58] sm:$0xff]
        %v635 = vld [vmem:[%s7 + $0x60] sm:$0xff]
        %v636 = vld [vmem:[%s7 + $0x68] sm:$0xff]
        %v637 = vld [vmem:[%s7 + $0x70] sm:$0xff]
        %v638 = vld [vmem:[%s7 + $0x78] sm:$0xff]
        %v639 = vld [vmem:[%s7 + $0x80] sm:$0xff]
        %v640 = vld [vmem:[%s7 + $0x88] sm:$0xff]
        %v641 = vld [vmem:[%s7 + $0x90] sm:$0xff]
        %v642 = vld [vmem:[%s7 + $0x98] sm:$0xff]
        %v643 = vld [vmem:[%s7 + $0xa0] sm:$0xff]
        %v644 = vld [vmem:[%s7 + $0xa8] sm:$0xff]
        %v645 = vld [vmem:[%s7 + $0xb0] sm:$0xff]
        %v646 = vld [vmem:[%s7 + $0xb8] sm:$0xff]
        %v647 = vld [vmem:[%s7 + $0xc0] sm:$0xff]
        %v648 = vld [vmem:[%s7 + $0xc8] sm:$0xff]
        %v649 = vld [vmem:[%s7 + $0xd0] sm:$0xff]
        %v650 = vld [vmem:[%s7 + $0xd8] sm:$0xff]
        %v651 = vld [vmem:[%s7 + $0xe0] sm:$0xff]
        %v652 = vld [vmem:[%s7 + $0xe8] sm:$0xff]
        %v653 = vld [vmem:[%s7 + $0xf0] sm:$0xff]
        %v654 = vld [vmem:[%s7 + $0xf8] sm:$0xff]
        %v655 = vld [vmem:[%s7 + $0x100] sm:$0xff]
        %v656 = vld [vmem:[%s7 + $0x108] sm:$0xff]
        %v657 = vld [vmem:[%s7 + $0x110] sm:$0xff]
        %v658 = vld [vmem:[%s7 + $0x118] sm:$0xff]
        %v659 = vld [vmem:[%s7 + $0x120] sm:$0xff]
        %v660 = vld [vmem:[%s7 + $0x128] sm:$0xff]
        %v661 = vld [vmem:[%s7 + $0x130] sm:$0xff]
        %v662 = vld [vmem:[%s7 + $0x138] sm:$0xff]
        %v663 = vld [vmem:[%s7 + $0x140] sm:$0xff]
        %v664 = vld [vmem:[%s7 + $0x148] sm:$0xff]
        %v665 = vld [vmem:[%s7 + $0x150] sm:$0xff]
        %v666 = vld [vmem:[%s7 + $0x158] sm:$0xff]
        %v667 = vld [vmem:[%s7 + $0x160] sm:$0xff]
        %v668 = vld [vmem:[%s7 + $0x168] sm:$0xff]
        %v669 = vld [vmem:[%s7 + $0x170] sm:$0xff]
        %v670 = vld [vmem:[%s7 + $0x178] sm:$0xff]
        %v671 = vld [vmem:[%s8] sm:$0xff]
        %v672 = vld [vmem:[#allocation2] sm:$0xff]
        %vm673 = vcmask 64512
        %v675 = vsel %vm673, %v556, 0
        %677 = vmatprep.subr.mxu0 0.0
        %678 = vmatpush1.msra.mxu0 %v557
        %679 = vmatprep.subr.mxu0 0.0
        %680 = vmatpush1.msra.mxu0 0.0
        %681 = vmatprep.subr.mxu0 0.0
        %682 = vmatpush1.msra.mxu0 0.0
        %683 = vmatprep.subr.mxu0 0.0
        %684 = vmatpush1.msra.mxu0 0.0
        %685 = vmatprep.subr.mxu0 0.0
        %686 = vmatpush1.msra.mxu0 0.0
        %687 = vmatprep.subr.mxu0 0.0
        %688 = vmatpush1.msra.mxu0 0.0
        %689 = vmatprep.subr.mxu0 0.0
        %690 = vmatpush1.msra.mxu0 0.0
        %691 = vmatprep.subr.mxu0 0.0
        %692 = vmatpush1.msra.mxu0 0.0
        %693 = vmatprep.subr.mxu0 0.0
        %694 = vmatpush1.msra.mxu0 0.0
        %695 = vmatprep.subr.mxu0 0.0
        %696 = vmatpush1.msra.mxu0 0.0
        %697 = vmatprep.subr.mxu0 0.0
        %698 = vmatpush1.msra.mxu0 0.0
        %699 = vmatprep.subr.mxu0 0.0
        %700 = vmatpush1.msra.mxu0 0.0
        %701 = vmatprep.subr.mxu0 0.0
        %702 = vmatpush1.msra.mxu0 0.0
        %703 = vmatprep.subr.mxu0 0.0
        %704 = vmatpush1.msra.mxu0 0.0
        %705 = vmatprep.subr.mxu0 0.0
        %706 = vmatpush1.msra.mxu0 0.0
        %707 = vmatprep.subr.mxu0 0.0
        %708 = vmatpush1.msra.mxu0 0.0
        %709 = vmatprep.subr.mxu0 0.0
        %710 = vmatpush1.msra.mxu0 0.0
        %711 = vmatprep.subr.mxu0 0.0
        %712 = vmatpush1.msra.mxu0 0.0
        %713 = vmatprep.subr.mxu0 0.0
        %714 = vmatpush1.msra.mxu0 0.0
        %715 = vmatprep.subr.mxu0 0.0
        %716 = vmatpush1.msra.mxu0 0.0
        %717 = vmatprep.subr.mxu0 0.0
        %718 = vmatpush1.msra.mxu0 0.0
        %719 = vmatprep.subr.mxu0 0.0
        %720 = vmatpush1.msra.mxu0 0.0
        %721 = vmatprep.subr.mxu0 0.0
        %722 = vmatpush1.msra.mxu0 0.0
        %723 = vmatprep.subr.mxu0 0.0
        %724 = vmatpush1.msra.mxu0 0.0
        %725 = vmatprep.subr.mxu0 0.0
        %726 = vmatpush1.msra.mxu0 0.0
        %727 = vmatprep.subr.mxu0 0.0
        %728 = vmatpush1.msra.mxu0 0.0
        %729 = vmatprep.subr.mxu0 0.0
        %730 = vmatpush1.msra.mxu0 0.0
        %731 = vmatprep.subr.mxu0 0.0
        %732 = vmatpush1.msra.mxu0 0.0
        %733 = vmatprep.subr.mxu0 0.0
        %734 = vmatpush1.msra.mxu0 0.0
        %735 = vmatprep.subr.mxu0 0.0
        %736 = vmatpush1.msra.mxu0 0.0
        %737 = vmatprep.subr.mxu0 0.0
        %738 = vmatpush1.msra.mxu0 0.0
        %739 = vmatprep.subr.mxu0 0.0
        %740 = vmatpush1.msra.mxu0 0.0
        %741 = vmatprep.mubr.f32.mxu0 0.0
        %742 = vmatmul.mubr.f32.gmra.mrb[0].mxu0 %v675
        %v743 = vpop.f32.mrb[0].mxu0
        %v744 = vadd.f32 0.0, %v743
        %v745 = vpop.f32.mrb[0].mxu0
        %746 = vdwg.mxu0
        %747 = vmatprep.subr.mxu0 0.0
        %748 = vmatpush1.msra.mxu0 %v744
        %749 = vmatprep.subr.mxu0 0.0
        %750 = vmatpush1.msra.mxu0 0.0
        %751 = vmatprep.subr.mxu0 0.0
        %752 = vmatpush1.msra.mxu0 0.0
        %753 = vmatprep.subr.mxu0 0.0
        %754 = vmatpush1.msra.mxu0 0.0
        %755 = vmatprep.subr.mxu0 0.0
        %756 = vmatpush1.msra.mxu0 0.0
        %757 = vmatprep.subr.mxu0 0.0
        %758 = vmatpush1.msra.mxu0 0.0
        %759 = vmatprep.subr.mxu0 0.0
        %760 = vmatpush1.msra.mxu0 0.0
        %761 = vmatprep.subr.mxu0 0.0
        %762 = vmatpush1.msra.mxu0 0.0
        %763 = vmatprep.subr.mxu0 0.0
        %764 = vmatpush1.msra.mxu0 0.0
        %765 = vmatprep.subr.mxu0 0.0
        %766 = vmatpush1.msra.mxu0 0.0
        %767 = vmatprep.subr.mxu0 0.0
        %768 = vmatpush1.msra.mxu0 0.0
        %769 = vmatprep.subr.mxu0 0.0
        %770 = vmatpush1.msra.mxu0 0.0
        %771 = vmatprep.subr.mxu0 0.0
        %772 = vmatpush1.msra.mxu0 0.0
        %773 = vmatprep.subr.mxu0 0.0
        %774 = vmatpush1.msra.mxu0 0.0
        %775 = vmatprep.subr.mxu0 0.0
        %776 = vmatpush1.msra.mxu0 0.0
        %777 = vmatprep.subr.mxu0 0.0
        %778 = vmatpush1.msra.mxu0 0.0
        %779 = vmatprep.subr.mxu0 0.0
        %780 = vmatpush1.msra.mxu0 0.0
        %781 = vmatprep.subr.mxu0 0.0
        %782 = vmatpush1.msra.mxu0 0.0
        %783 = vmatprep.subr.mxu0 0.0
        %784 = vmatpush1.msra.mxu0 0.0
        %785 = vmatprep.subr.mxu0 0.0
        %786 = vmatpush1.msra.mxu0 0.0
        %787 = vmatprep.subr.mxu0 0.0
        %788 = vmatpush1.msra.mxu0 0.0
        %789 = vmatprep.subr.mxu0 0.0
        %790 = vmatpush1.msra.mxu0 0.0
        %791 = vmatprep.subr.mxu0 0.0
        %792 = vmatpush1.msra.mxu0 0.0
        %793 = vmatprep.subr.mxu0 0.0
        %794 = vmatpush1.msra.mxu0 0.0
        %795 = vmatprep.subr.mxu0 0.0
        %796 = vmatpush1.msra.mxu0 0.0
        %797 = vmatprep.subr.mxu0 0.0
        %798 = vmatpush1.msra.mxu0 0.0
        %799 = vmatprep.subr.mxu0 0.0
        %800 = vmatpush1.msra.mxu0 0.0
        %801 = vmatprep.subr.mxu0 0.0
        %802 = vmatpush1.msra.mxu0 0.0
        %803 = vmatprep.subr.mxu0 0.0
        %804 = vmatpush1.msra.mxu0 0.0
        %805 = vmatprep.subr.mxu0 0.0
        %806 = vmatpush1.msra.mxu0 0.0
        %807 = vmatprep.subr.mxu0 0.0
        %808 = vmatpush1.msra.mxu0 0.0
        %809 = vmatprep.subr.mxu0 0.0
        %810 = vmatpush1.msra.mxu0 0.0
        %811 = vmatprep.mubr.f32.mxu0 0.0
        %812 = vmatmul.mubr.f32.gmra.mrb[0].mxu0 %v675
        %v813 = vpop.f32.mrb[0].mxu0
        %v814 = vadd.f32 0.0, %v813
        %v815 = vpop.f32.mrb[0].mxu0
        %816 = vdwg.mxu0
        %v817 = vmul.f32 %v814, 2.0
        %v818 = vsub.f32 %v817, %v557
        %820 = vrot.lane.b32.xlu0 %v744, 2
        %v821 = vpop.permute.xlu0 %820
        %824 = vrot.lane.b32.xlu0 %v818, 4
        %v825 = vpop.permute.xlu0 %824
        %vm827 = vcmask 15360
        %v828 = vsel %vm827, %v557, %v821
        %vm829 = vcmask 31744
        %v830 = vsel %vm829, %v828, %v825
        %831 = vmatprep.subr.mxu0 0.0
        %832 = vmatpush1.msra.mxu0 %v672
        %833 = vmatprep.subr.mxu0 0.0
        %834 = vmatpush1.msra.mxu0 0.0
        %835 = vmatprep.subr.mxu0 0.0
        %836 = vmatpush1.msra.mxu0 0.0
        %837 = vmatprep.subr.mxu0 0.0
        %838 = vmatpush1.msra.mxu0 0.0
        %839 = vmatprep.subr.mxu0 0.0
        %840 = vmatpush1.msra.mxu0 0.0
        %841 = vmatprep.subr.mxu0 0.0
        %842 = vmatpush1.msra.mxu0 0.0
        %843 = vmatprep.subr.mxu0 0.0
        %844 = vmatpush1.msra.mxu0 0.0
        %845 = vmatprep.subr.mxu0 0.0
        %846 = vmatpush1.msra.mxu0 0.0
        %847 = vmatprep.subr.mxu0 0.0
        %848 = vmatpush1.msra.mxu0 0.0
        %849 = vmatprep.subr.mxu0 0.0
        %850 = vmatpush1.msra.mxu0 0.0
        %851 = vmatprep.subr.mxu0 0.0
        %852 = vmatpush1.msra.mxu0 0.0
        %853 = vmatprep.subr.mxu0 0.0
        %854 = vmatpush1.msra.mxu0 0.0
        %855 = vmatprep.subr.mxu0 0.0
        %856 = vmatpush1.msra.mxu0 0.0
        %857 = vmatprep.subr.mxu0 0.0
        %858 = vmatpush1.msra.mxu0 0.0
        %859 = vmatprep.subr.mxu0 0.0
        %860 = vmatpush1.msra.mxu0 0.0
        %861 = vmatprep.subr.mxu0 0.0
        %862 = vmatpush1.msra.mxu0 0.0
        %863 = vmatprep.subr.mxu0 0.0
        %864 = vmatpush1.msra.mxu0 0.0
        %865 = vmatprep.subr.mxu0 0.0
        %866 = vmatpush1.msra.mxu0 0.0
        %867 = vmatprep.subr.mxu0 0.0
        %868 = vmatpush1.msra.mxu0 0.0
        %869 = vmatprep.subr.mxu0 0.0
        %870 = vmatpush1.msra.mxu0 0.0
        %871 = vmatprep.subr.mxu0 0.0
        %872 = vmatpush1.msra.mxu0 0.0
        %873 = vmatprep.subr.mxu0 0.0
        %874 = vmatpush1.msra.mxu0 0.0
        %875 = vmatprep.subr.mxu0 0.0
        %876 = vmatpush1.msra.mxu0 0.0
        %877 = vmatprep.subr.mxu0 0.0
        %878 = vmatpush1.msra.mxu0 0.0
        %879 = vmatprep.subr.mxu0 0.0
        %880 = vmatpush1.msra.mxu0 0.0
        %881 = vmatprep.subr.mxu0 0.0
        %882 = vmatpush1.msra.mxu0 0.0
        %883 = vmatprep.subr.mxu0 0.0
        %884 = vmatpush1.msra.mxu0 0.0
        %885 = vmatprep.subr.mxu0 0.0
        %886 = vmatpush1.msra.mxu0 0.0
        %887 = vmatprep.subr.mxu0 0.0
        %888 = vmatpush1.msra.mxu0 0.0
        %889 = vmatprep.subr.mxu0 0.0
        %890 = vmatpush1.msra.mxu0 0.0
        %891 = vmatprep.subr.mxu0 0.0
        %892 = vmatpush1.msra.mxu0 0.0
        %893 = vmatprep.subr.mxu0 0.0
        %894 = vmatpush1.msra.mxu0 0.0
        %895 = vmatprep.mubr.f32.mxu0 0.0
        %896 = vmatmul.mubr.f32.gmra.mrb[0].mxu0 %v675
        %v897 = vpop.f32.mrb[0].mxu0
        %v898 = vadd.f32 0.0, %v897
        %v899 = vpop.f32.mrb[0].mxu0
        %900 = vdwg.mxu0
        %901 = vmatprep.subr.mxu0 0.0
        %902 = vmatpush1.msra.mxu0 %v898
        %903 = vmatprep.subr.mxu0 0.0
        %904 = vmatpush1.msra.mxu0 0.0
        %905 = vmatprep.subr.mxu0 0.0
        %906 = vmatpush1.msra.mxu0 0.0
        %907 = vmatprep.subr.mxu0 0.0
        %908 = vmatpush1.msra.mxu0 0.0
        %909 = vmatprep.subr.mxu0 0.0
        %910 = vmatpush1.msra.mxu0 0.0
        %911 = vmatprep.subr.mxu0 0.0
        %912 = vmatpush1.msra.mxu0 0.0
        %913 = vmatprep.subr.mxu0 0.0
        %914 = vmatpush1.msra.mxu0 0.0
        %915 = vmatprep.subr.mxu0 0.0
        %916 = vmatpush1.msra.mxu0 0.0
        %917 = vmatprep.subr.mxu0 0.0
        %918 = vmatpush1.msra.mxu0 0.0
        %919 = vmatprep.subr.mxu0 0.0
        %920 = vmatpush1.msra.mxu0 0.0
        %921 = vmatprep.subr.mxu0 0.0
        %922 = vmatpush1.msra.mxu0 0.0
        %923 = vmatprep.subr.mxu0 0.0
        %924 = vmatpush1.msra.mxu0 0.0
        %925 = vmatprep.subr.mxu0 0.0
        %926 = vmatpush1.msra.mxu0 0.0
        %927 = vmatprep.subr.mxu0 0.0
        %928 = vmatpush1.msra.mxu0 0.0
        %929 = vmatprep.subr.mxu0 0.0
        %930 = vmatpush1.msra.mxu0 0.0
        %931 = vmatprep.subr.mxu0 0.0
        %932 = vmatpush1.msra.mxu0 0.0
        %933 = vmatprep.subr.mxu0 0.0
        %934 = vmatpush1.msra.mxu0 0.0
        %935 = vmatprep.subr.mxu0 0.0
        %936 = vmatpush1.msra.mxu0 0.0
        %937 = vmatprep.subr.mxu0 0.0
        %938 = vmatpush1.msra.mxu0 0.0
        %939 = vmatprep.subr.mxu0 0.0
        %940 = vmatpush1.msra.mxu0 0.0
        %941 = vmatprep.subr.mxu0 0.0
        %942 = vmatpush1.msra.mxu0 0.0
        %943 = vmatprep.subr.mxu0 0.0
        %944 = vmatpush1.msra.mxu0 0.0
        %945 = vmatprep.subr.mxu0 0.0
        %946 = vmatpush1.msra.mxu0 0.0
        %947 = vmatprep.subr.mxu0 0.0
        %948 = vmatpush1.msra.mxu0 0.0
        %949 = vmatprep.subr.mxu0 0.0
        %950 = vmatpush1.msra.mxu0 0.0
        %951 = vmatprep.subr.mxu0 0.0
        %952 = vmatpush1.msra.mxu0 0.0
        %953 = vmatprep.subr.mxu0 0.0
        %954 = vmatpush1.msra.mxu0 0.0
        %955 = vmatprep.subr.mxu0 0.0
        %956 = vmatpush1.msra.mxu0 0.0
        %957 = vmatprep.subr.mxu0 0.0
        %958 = vmatpush1.msra.mxu0 0.0
        %959 = vmatprep.subr.mxu0 0.0
        %960 = vmatpush1.msra.mxu0 0.0
        %961 = vmatprep.subr.mxu0 0.0
        %962 = vmatpush1.msra.mxu0 0.0
        %963 = vmatprep.subr.mxu0 0.0
        %964 = vmatpush1.msra.mxu0 0.0
        %965 = vmatprep.mubr.f32.mxu0 0.0
        %966 = vmatmul.mubr.f32.gmra.mrb[0].mxu0 %v675
        %v967 = vpop.f32.mrb[0].mxu0
        %v968 = vadd.f32 0.0, %v967
        %v969 = vpop.f32.mrb[0].mxu0
        %970 = vdwg.mxu0
        %v971 = vmul.f32 %v968, 2.0
        %v972 = vsub.f32 %v971, %v672
        %974 = vrot.lane.b32.xlu0 %v898, 16
        %v975 = vpop.permute.xlu0 %974
        %978 = vrot.lane.b32.xlu0 %v972, 32
        %v979 = vpop.permute.xlu0 %978
        %vm981 = vcmask 130048
        %v982 = vsel %vm981, %v672, %v975
        %vm983 = vcmask 261120
        %v984 = vsel %vm983, %v982, %v979
        %v985 = vcombine.high %v830, 0.0
        %v987 = vunpack.c.l.s4 1983009808
        %v988 = vunpack.c.0.s8 %v987
        %v989 = vlaneseq
        %v990 = vshrl.u32 %v989, 7
        %v991 = vsub.s32 %v988, %v990
        %v992 = vrot.slane %v830, %v991
        %v994 = vunpack.c.l.s4 1983009808
        %v995 = vunpack.c.0.s8 %v994
        %v996 = vlaneseq
        %v997 = vshrl.u32 %v996, 7
        %v998 = vsub.s32 %v995, %v997
        %v999 = vrot.slane %v985, %v998
        %v1000 = vcombine.high %v992, 0.0
        %v1002 = vunpack.c.l.s4 1934713408
        %v1003 = vunpack.c.0.s8 %v1002
        %v1004 = vlaneseq
        %v1005 = vshrl.u32 %v1004, 7
        %v1006 = vsub.s32 %v1003, %v1005
        %v1007 = vrot.slane %v992, %v1006
        %v1009 = vunpack.c.l.s4 1934713408
        %v1010 = vunpack.c.0.s8 %v1009
        %v1011 = vlaneseq
        %v1012 = vshrl.u32 %v1011, 7
        %v1013 = vsub.s32 %v1010, %v1012
        %v1014 = vrot.slane %v1000, %v1013
        %v1015 = vcombine.high %v999, 0.0
        %v1017 = vunpack.c.l.s4 1934713408
        %v1018 = vunpack.c.0.s8 %v1017
        %v1019 = vlaneseq
        %v1020 = vshrl.u32 %v1019, 7
        %v1021 = vsub.s32 %v1018, %v1020
        %v1022 = vrot.slane %v999, %v1021
        %v1024 = vunpack.c.l.s4 1934713408
        %v1025 = vunpack.c.0.s8 %v1024
        %v1026 = vlaneseq
        %v1027 = vshrl.u32 %v1026, 7
        %v1028 = vsub.s32 %v1025, %v1027
        %v1029 = vrot.slane %v1015, %v1028
        %v1030 = vcombine.high %v1007, 0.0
        %v1031 = vcombine.high %v1014, 0.0
        %v1032 = vcombine.high %v1022, 0.0
        %v1033 = vcombine.high %v1029, 0.0
        %vm1034 = vcmask 48128
        %v1036 = vsel %vm1034, %v1007, 0
        %vm1038 = vcmask 1045504
        %v1040 = vsel %vm1038, %v558, 0
        %1042 = vmatprep.subr.mxu0 0.0
        %1043 = vmatpush1.msra.mxu0 %v1040
        %1044 = vmatprep.subr.mxu0 0.0
        %1045 = vmatpush1.msra.mxu0 0.0
        %1046 = vmatprep.subr.mxu0 0.0
        %1047 = vmatpush1.msra.mxu0 0.0
        %1048 = vmatprep.subr.mxu0 0.0
        %1049 = vmatpush1.msra.mxu0 0.0
        %1050 = vmatprep.subr.mxu0 0.0
        %1051 = vmatpush1.msra.mxu0 0.0
        %1052 = vmatprep.subr.mxu0 0.0
        %1053 = vmatpush1.msra.mxu0 0.0
        %1054 = vmatprep.subr.mxu0 0.0
        %1055 = vmatpush1.msra.mxu0 0.0
        %1056 = vmatprep.subr.mxu0 0.0
        %1057 = vmatpush1.msra.mxu0 0.0
        %1058 = vmatprep.subr.mxu0 0.0
        %1059 = vmatpush1.msra.mxu0 0.0
        %1060 = vmatprep.subr.mxu0 0.0
        %1061 = vmatpush1.msra.mxu0 0.0
        %1062 = vmatprep.subr.mxu0 0.0
        %1063 = vmatpush1.msra.mxu0 0.0
        %1064 = vmatprep.subr.mxu0 0.0
        %1065 = vmatpush1.msra.mxu0 0.0
        %1066 = vmatprep.subr.mxu0 0.0
        %1067 = vmatpush1.msra.mxu0 0.0
        %1068 = vmatprep.subr.mxu0 0.0
        %1069 = vmatpush1.msra.mxu0 0.0
        %1070 = vmatprep.subr.mxu0 0.0
        %1071 = vmatpush1.msra.mxu0 0.0
        %1072 = vmatprep.subr.mxu0 0.0
        %1073 = vmatpush1.msra.mxu0 0.0
        %1074 = vmatprep.subr.mxu0 0.0
        %1075 = vmatpush1.msra.mxu0 0.0
        %1076 = vmatprep.subr.mxu0 0.0
        %1077 = vmatpush1.msra.mxu0 0.0
        %1078 = vmatprep.subr.mxu0 0.0
        %1079 = vmatpush1.msra.mxu0 0.0
        %1080 = vmatprep.subr.mxu0 0.0
        %1081 = vmatpush1.msra.mxu0 0.0
        %1082 = vmatprep.subr.mxu0 0.0
        %1083 = vmatpush1.msra.mxu0 0.0
        %1084 = vmatprep.subr.mxu0 0.0
        %1085 = vmatpush1.msra.mxu0 0.0
        %1086 = vmatprep.subr.mxu0 0.0
        %1087 = vmatpush1.msra.mxu0 0.0
        %1088 = vmatprep.subr.mxu0 0.0
        %1089 = vmatpush1.msra.mxu0 0.0
        %1090 = vmatprep.subr.mxu0 0.0
        %1091 = vmatpush1.msra.mxu0 0.0
        %1092 = vmatprep.subr.mxu0 0.0
        %1093 = vmatpush1.msra.mxu0 0.0
        %1094 = vmatprep.subr.mxu0 0.0
        %1095 = vmatpush1.msra.mxu0 0.0
        %1096 = vmatprep.subr.mxu0 0.0
        %1097 = vmatpush1.msra.mxu0 0.0
        %1098 = vmatprep.subr.mxu0 0.0
        %1099 = vmatpush1.msra.mxu0 0.0
        %1100 = vmatprep.subr.mxu0 0.0
        %1101 = vmatpush1.msra.mxu0 0.0
        %1102 = vmatprep.subr.mxu0 0.0
        %1103 = vmatpush1.msra.mxu0 0.0
        %1104 = vmatprep.subr.mxu0 0.0
        %1105 = vmatpush1.msra.mxu0 0.0
        %1106 = vmatprep.mubr.f32.mxu0 0.0
        %1107 = vmatmul.mubr.f32.gmra.mrb[0].mxu0 %v1036
        %v1108 = vpop.f32.mrb[0].mxu0
        %v1109 = vadd.f32 0.0, %v1108
        %v1110 = vpop.f32.mrb[0].mxu0
        %1111 = vdwg.mxu0
        %v1113 = vsel %vm1034, %v1030, 0
        %v1116 = vsel %vm1038, %v559, 0
        %1118 = vmatprep.subr.mxu0 0.0
        %1119 = vmatpush1.msra.mxu0 %v1116
        %1120 = vmatprep.subr.mxu0 0.0
        %1121 = vmatpush1.msra.mxu0 0.0
        %1122 = vmatprep.subr.mxu0 0.0
        %1123 = vmatpush1.msra.mxu0 0.0
        %1124 = vmatprep.subr.mxu0 0.0
        %1125 = vmatpush1.msra.mxu0 0.0
        %1126 = vmatprep.subr.mxu0 0.0
        %1127 = vmatpush1.msra.mxu0 0.0
        %1128 = vmatprep.subr.mxu0 0.0
        %1129 = vmatpush1.msra.mxu0 0.0
        %1130 = vmatprep.subr.mxu0 0.0
        %1131 = vmatpush1.msra.mxu0 0.0
        %1132 = vmatprep.subr.mxu0 0.0
        %1133 = vmatpush1.msra.mxu0 0.0
        %1134 = vmatprep.subr.mxu0 0.0
        %1135 = vmatpush1.msra.mxu0 0.0
        %1136 = vmatprep.subr.mxu0 0.0
        %1137 = vmatpush1.msra.mxu0 0.0
        %1138 = vmatprep.subr.mxu0 0.0
        %1139 = vmatpush1.msra.mxu0 0.0
        %1140 = vmatprep.subr.mxu0 0.0
        %1141 = vmatpush1.msra.mxu0 0.0
        %1142 = vmatprep.subr.mxu0 0.0
        %1143 = vmatpush1.msra.mxu0 0.0
        %1144 = vmatprep.subr.mxu0 0.0
        %1145 = vmatpush1.msra.mxu0 0.0
        %1146 = vmatprep.subr.mxu0 0.0
        %1147 = vmatpush1.msra.mxu0 0.0
        %1148 = vmatprep.subr.mxu0 0.0
        %1149 = vmatpush1.msra.mxu0 0.0
        %1150 = vmatprep.subr.mxu0 0.0
        %1151 = vmatpush1.msra.mxu0 0.0
        %1152 = vmatprep.subr.mxu0 0.0
        %1153 = vmatpush1.msra.mxu0 0.0
        %1154 = vmatprep.subr.mxu0 0.0
        %1155 = vmatpush1.msra.mxu0 0.0
        %1156 = vmatprep.subr.mxu0 0.0
        %1157 = vmatpush1.msra.mxu0 0.0
        %1158 = vmatprep.subr.mxu0 0.0
        %1159 = vmatpush1.msra.mxu0 0.0
        %1160 = vmatprep.subr.mxu0 0.0
        %1161 = vmatpush1.msra.mxu0 0.0
        %1162 = vmatprep.subr.mxu0 0.0
        %1163 = vmatpush1.msra.mxu0 0.0
        %1164 = vmatprep.subr.mxu0 0.0
        %1165 = vmatpush1.msra.mxu0 0.0
        %1166 = vmatprep.subr.mxu0 0.0
        %1167 = vmatpush1.msra.mxu0 0.0
        %1168 = vmatprep.subr.mxu0 0.0
        %1169 = vmatpush1.msra.mxu0 0.0
        %1170 = vmatprep.subr.mxu0 0.0
        %1171 = vmatpush1.msra.mxu0 0.0
        %1172 = vmatprep.subr.mxu0 0.0
        %1173 = vmatpush1.msra.mxu0 0.0
        %1174 = vmatprep.subr.mxu0 0.0
        %1175 = vmatpush1.msra.mxu0 0.0
        %1176 = vmatprep.subr.mxu0 0.0
        %1177 = vmatpush1.msra.mxu0 0.0
        %1178 = vmatprep.subr.mxu0 0.0
        %1179 = vmatpush1.msra.mxu0 0.0
        %1180 = vmatprep.subr.mxu0 0.0
        %1181 = vmatpush1.msra.mxu0 0.0
        %1182 = vmatprep.mubr.f32.mxu0 0.0
        %1183 = vmatmul.mubr.f32.gmra.mrb[0].mxu0 %v1113
        %v1184 = vpop.f32.mrb[0].mxu0
        %v1185 = vadd.f32 0.0, %v1184
        %v1186 = vpop.f32.mrb[0].mxu0
        %1187 = vdwg.mxu0
        %v1189 = vsel %vm1034, %v1014, 0
        %v1192 = vsel %vm1038, %v560, 0
        %1194 = vmatprep.subr.mxu0 0.0
        %1195 = vmatpush1.msra.mxu0 %v1192
        %1196 = vmatprep.subr.mxu0 0.0
        %1197 = vmatpush1.msra.mxu0 0.0
        %1198 = vmatprep.subr.mxu0 0.0
        %1199 = vmatpush1.msra.mxu0 0.0
        %1200 = vmatprep.subr.mxu0 0.0
        %1201 = vmatpush1.msra.mxu0 0.0
        %1202 = vmatprep.subr.mxu0 0.0
        %1203 = vmatpush1.msra.mxu0 0.0
        %1204 = vmatprep.subr.mxu0 0.0
        %1205 = vmatpush1.msra.mxu0 0.0
        %1206 = vmatprep.subr.mxu0 0.0
        %1207 = vmatpush1.msra.mxu0 0.0
        %1208 = vmatprep.subr.mxu0 0.0
        %1209 = vmatpush1.msra.mxu0 0.0
        %1210 = vmatprep.subr.mxu0 0.0
        %1211 = vmatpush1.msra.mxu0 0.0
        %1212 = vmatprep.subr.mxu0 0.0
        %1213 = vmatpush1.msra.mxu0 0.0
        %1214 = vmatprep.subr.mxu0 0.0
        %1215 = vmatpush1.msra.mxu0 0.0
        %1216 = vmatprep.subr.mxu0 0.0
        %1217 = vmatpush1.msra.mxu0 0.0
        %1218 = vmatprep.subr.mxu0 0.0
        %1219 = vmatpush1.msra.mxu0 0.0
        %1220 = vmatprep.subr.mxu0 0.0
        %1221 = vmatpush1.msra.mxu0 0.0
        %1222 = vmatprep.subr.mxu0 0.0
        %1223 = vmatpush1.msra.mxu0 0.0
        %1224 = vmatprep.subr.mxu0 0.0
        %1225 = vmatpush1.msra.mxu0 0.0
        %1226 = vmatprep.subr.mxu0 0.0
        %1227 = vmatpush1.msra.mxu0 0.0
        %1228 = vmatprep.subr.mxu0 0.0
        %1229 = vmatpush1.msra.mxu0 0.0
        %1230 = vmatprep.subr.mxu0 0.0
        %1231 = vmatpush1.msra.mxu0 0.0
        %1232 = vmatprep.subr.mxu0 0.0
        %1233 = vmatpush1.msra.mxu0 0.0
        %1234 = vmatprep.subr.mxu0 0.0
        %1235 = vmatpush1.msra.mxu0 0.0
        %1236 = vmatprep.subr.mxu0 0.0
        %1237 = vmatpush1.msra.mxu0 0.0
        %1238 = vmatprep.subr.mxu0 0.0
        %1239 = vmatpush1.msra.mxu0 0.0
        %1240 = vmatprep.subr.mxu0 0.0
        %1241 = vmatpush1.msra.mxu0 0.0
        %1242 = vmatprep.subr.mxu0 0.0
        %1243 = vmatpush1.msra.mxu0 0.0
        %1244 = vmatprep.subr.mxu0 0.0
        %1245 = vmatpush1.msra.mxu0 0.0
        %1246 = vmatprep.subr.mxu0 0.0
        %1247 = vmatpush1.msra.mxu0 0.0
        %1248 = vmatprep.subr.mxu0 0.0
        %1249 = vmatpush1.msra.mxu0 0.0
        %1250 = vmatprep.subr.mxu0 0.0
        %1251 = vmatpush1.msra.mxu0 0.0
        %1252 = vmatprep.subr.mxu0 0.0
        %1253 = vmatpush1.msra.mxu0 0.0
        %1254 = vmatprep.subr.mxu0 0.0
        %1255 = vmatpush1.msra.mxu0 0.0
        %1256 = vmatprep.subr.mxu0 0.0
        %1257 = vmatpush1.msra.mxu0 0.0
        %1258 = vmatprep.mubr.f32.mxu0 0.0
        %1259 = vmatmul.mubr.f32.gmra.mrb[0].mxu0 %v1189
        %v1260 = vpop.f32.mrb[0].mxu0
        %v1261 = vadd.f32 0.0, %v1260
        %v1262 = vpop.f32.mrb[0].mxu0
        %1263 = vdwg.mxu0
        %v1265 = vsel %vm1034, %v1031, 0
        %v1268 = vsel %vm1038, %v561, 0
        %1270 = vmatprep.subr.mxu0 0.0
        %1271 = vmatpush1.msra.mxu0 %v1268
        %1272 = vmatprep.subr.mxu0 0.0
        %1273 = vmatpush1.msra.mxu0 0.0
        %1274 = vmatprep.subr.mxu0 0.0
        %1275 = vmatpush1.msra.mxu0 0.0
        %1276 = vmatprep.subr.mxu0 0.0
        %1277 = vmatpush1.msra.mxu0 0.0
        %1278 = vmatprep.subr.mxu0 0.0
        %1279 = vmatpush1.msra.mxu0 0.0
        %1280 = vmatprep.subr.mxu0 0.0
        %1281 = vmatpush1.msra.mxu0 0.0
        %1282 = vmatprep.subr.mxu0 0.0
        %1283 = vmatpush1.msra.mxu0 0.0
        %1284 = vmatprep.subr.mxu0 0.0
        %1285 = vmatpush1.msra.mxu0 0.0
        %1286 = vmatprep.subr.mxu0 0.0
        %1287 = vmatpush1.msra.mxu0 0.0
        %1288 = vmatprep.subr.mxu0 0.0
        %1289 = vmatpush1.msra.mxu0 0.0
        %1290 = vmatprep.subr.mxu0 0.0
        %1291 = vmatpush1.msra.mxu0 0.0
        %1292 = vmatprep.subr.mxu0 0.0
        %1293 = vmatpush1.msra.mxu0 0.0
        %1294 = vmatprep.subr.mxu0 0.0
        %1295 = vmatpush1.msra.mxu0 0.0
        %1296 = vmatprep.subr.mxu0 0.0
        %1297 = vmatpush1.msra.mxu0 0.0
        %1298 = vmatprep.subr.mxu0 0.0
        %1299 = vmatpush1.msra.mxu0 0.0
        %1300 = vmatprep.subr.mxu0 0.0
        %1301 = vmatpush1.msra.mxu0 0.0
        %1302 = vmatprep.subr.mxu0 0.0
        %1303 = vmatpush1.msra.mxu0 0.0
        %1304 = vmatprep.subr.mxu0 0.0
        %1305 = vmatpush1.msra.mxu0 0.0
        %1306 = vmatprep.subr.mxu0 0.0
        %1307 = vmatpush1.msra.mxu0 0.0
        %1308 = vmatprep.subr.mxu0 0.0
        %1309 = vmatpush1.msra.mxu0 0.0
        %1310 = vmatprep.subr.mxu0 0.0
        %1311 = vmatpush1.msra.mxu0 0.0
        %1312 = vmatprep.subr.mxu0 0.0
        %1313 = vmatpush1.msra.mxu0 0.0
        %1314 = vmatprep.subr.mxu0 0.0
        %1315 = vmatpush1.msra.mxu0 0.0
        %1316 = vmatprep.subr.mxu0 0.0
        %1317 = vmatpush1.msra.mxu0 0.0
        %1318 = vmatprep.subr.mxu0 0.0
        %1319 = vmatpush1.msra.mxu0 0.0
        %1320 = vmatprep.subr.mxu0 0.0
        %1321 = vmatpush1.msra.mxu0 0.0
        %1322 = vmatprep.subr.mxu0 0.0
        %1323 = vmatpush1.msra.mxu0 0.0
        %1324 = vmatprep.subr.mxu0 0.0
        %1325 = vmatpush1.msra.mxu0 0.0
        %1326 = vmatprep.subr.mxu0 0.0
        %1327 = vmatpush1.msra.mxu0 0.0
        %1328 = vmatprep.subr.mxu0 0.0
        %1329 = vmatpush1.msra.mxu0 0.0
        %1330 = vmatprep.subr.mxu0 0.0
        %1331 = vmatpush1.msra.mxu0 0.0
        %1332 = vmatprep.subr.mxu0 0.0
        %1333 = vmatpush1.msra.mxu0 0.0
        %1334 = vmatprep.mubr.f32.mxu0 0.0
        %1335 = vmatmul.mubr.f32.gmra.mrb[0].mxu0 %v1265
        %v1336 = vpop.f32.mrb[0].mxu0
        %v1337 = vadd.f32 0.0, %v1336
        %v1338 = vpop.f32.mrb[0].mxu0
        %1339 = vdwg.mxu0
        %v1341 = vsel %vm1034, %v1022, 0
        %v1344 = vsel %vm1038, %v562, 0
        %1346 = vmatprep.subr.mxu0 0.0
        %1347 = vmatpush1.msra.mxu0 %v1344
        %1348 = vmatprep.subr.mxu0 0.0
        %1349 = vmatpush1.msra.mxu0 0.0
        %1350 = vmatprep.subr.mxu0 0.0
        %1351 = vmatpush1.msra.mxu0 0.0
        %1352 = vmatprep.subr.mxu0 0.0
        %1353 = vmatpush1.msra.mxu0 0.0
        %1354 = vmatprep.subr.mxu0 0.0
        %1355 = vmatpush1.msra.mxu0 0.0
        %1356 = vmatprep.subr.mxu0 0.0
        %1357 = vmatpush1.msra.mxu0 0.0
        %1358 = vmatprep.subr.mxu0 0.0
        %1359 = vmatpush1.msra.mxu0 0.0
        %1360 = vmatprep.subr.mxu0 0.0
        %1361 = vmatpush1.msra.mxu0 0.0
        %1362 = vmatprep.subr.mxu0 0.0
        %1363 = vmatpush1.msra.mxu0 0.0
        %1364 = vmatprep.subr.mxu0 0.0
        %1365 = vmatpush1.msra.mxu0 0.0
        %1366 = vmatprep.subr.mxu0 0.0
        %1367 = vmatpush1.msra.mxu0 0.0
        %1368 = vmatprep.subr.mxu0 0.0
        %1369 = vmatpush1.msra.mxu0 0.0
        %1370 = vmatprep.subr.mxu0 0.0
        %1371 = vmatpush1.msra.mxu0 0.0
        %1372 = vmatprep.subr.mxu0 0.0
        %1373 = vmatpush1.msra.mxu0 0.0
        %1374 = vmatprep.subr.mxu0 0.0
        %1375 = vmatpush1.msra.mxu0 0.0
        %1376 = vmatprep.subr.mxu0 0.0
        %1377 = vmatpush1.msra.mxu0 0.0
        %1378 = vmatprep.subr.mxu0 0.0
        %1379 = vmatpush1.msra.mxu0 0.0
        %1380 = vmatprep.subr.mxu0 0.0
        %1381 = vmatpush1.msra.mxu0 0.0
        %1382 = vmatprep.subr.mxu0 0.0
        %1383 = vmatpush1.msra.mxu0 0.0
        %1384 = vmatprep.subr.mxu0 0.0
        %1385 = vmatpush1.msra.mxu0 0.0
        %1386 = vmatprep.subr.mxu0 0.0
        %1387 = vmatpush1.msra.mxu0 0.0
        %1388 = vmatprep.subr.mxu0 0.0
        %1389 = vmatpush1.msra.mxu0 0.0
        %1390 = vmatprep.subr.mxu0 0.0
        %1391 = vmatpush1.msra.mxu0 0.0
        %1392 = vmatprep.subr.mxu0 0.0
        %1393 = vmatpush1.msra.mxu0 0.0
        %1394 = vmatprep.subr.mxu0 0.0
        %1395 = vmatpush1.msra.mxu0 0.0
        %1396 = vmatprep.subr.mxu0 0.0
        %1397 = vmatpush1.msra.mxu0 0.0
        %1398 = vmatprep.subr.mxu0 0.0
        %1399 = vmatpush1.msra.mxu0 0.0
        %1400 = vmatprep.subr.mxu0 0.0
        %1401 = vmatpush1.msra.mxu0 0.0
        %1402 = vmatprep.subr.mxu0 0.0
        %1403 = vmatpush1.msra.mxu0 0.0
        %1404 = vmatprep.subr.mxu0 0.0
        %1405 = vmatpush1.msra.mxu0 0.0
        %1406 = vmatprep.subr.mxu0 0.0
        %1407 = vmatpush1.msra.mxu0 0.0
        %1408 = vmatprep.subr.mxu0 0.0
        %1409 = vmatpush1.msra.mxu0 0.0
        %1410 = vmatprep.mubr.f32.mxu0 0.0
        %1411 = vmatmul.mubr.f32.gmra.mrb[0].mxu0 %v1341
        %v1412 = vpop.f32.mrb[0].mxu0
        %v1413 = vadd.f32 0.0, %v1412
        %v1414 = vpop.f32.mrb[0].mxu0
        %1415 = vdwg.mxu0
        %v1417 = vsel %vm1034, %v1032, 0
        %v1420 = vsel %vm1038, %v563, 0
        %1422 = vmatprep.subr.mxu0 0.0
        %1423 = vmatpush1.msra.mxu0 %v1420
        %1424 = vmatprep.subr.mxu0 0.0
        %1425 = vmatpush1.msra.mxu0 0.0
        %1426 = vmatprep.subr.mxu0 0.0
        %1427 = vmatpush1.msra.mxu0 0.0
        %1428 = vmatprep.subr.mxu0 0.0
        %1429 = vmatpush1.msra.mxu0 0.0
        %1430 = vmatprep.subr.mxu0 0.0
        %1431 = vmatpush1.msra.mxu0 0.0
        %1432 = vmatprep.subr.mxu0 0.0
        %1433 = vmatpush1.msra.mxu0 0.0
        %1434 = vmatprep.subr.mxu0 0.0
        %1435 = vmatpush1.msra.mxu0 0.0
        %1436 = vmatprep.subr.mxu0 0.0
        %1437 = vmatpush1.msra.mxu0 0.0
        %1438 = vmatprep.subr.mxu0 0.0
        %1439 = vmatpush1.msra.mxu0 0.0
        %1440 = vmatprep.subr.mxu0 0.0
        %1441 = vmatpush1.msra.mxu0 0.0
        %1442 = vmatprep.subr.mxu0 0.0
        %1443 = vmatpush1.msra.mxu0 0.0
        %1444 = vmatprep.subr.mxu0 0.0
        %1445 = vmatpush1.msra.mxu0 0.0
        %1446 = vmatprep.subr.mxu0 0.0
        %1447 = vmatpush1.msra.mxu0 0.0
        %1448 = vmatprep.subr.mxu0 0.0
        %1449 = vmatpush1.msra.mxu0 0.0
        %1450 = vmatprep.subr.mxu0 0.0
        %1451 = vmatpush1.msra.mxu0 0.0
        %1452 = vmatprep.subr.mxu0 0.0
        %1453 = vmatpush1.msra.mxu0 0.0
        %1454 = vmatprep.subr.mxu0 0.0
        %1455 = vmatpush1.msra.mxu0 0.0
        %1456 = vmatprep.subr.mxu0 0.0
        %1457 = vmatpush1.msra.mxu0 0.0
        %1458 = vmatprep.subr.mxu0 0.0
        %1459 = vmatpush1.msra.mxu0 0.0
        %1460 = vmatprep.subr.mxu0 0.0
        %1461 = vmatpush1.msra.mxu0 0.0
        %1462 = vmatprep.subr.mxu0 0.0
        %1463 = vmatpush1.msra.mxu0 0.0
        %1464 = vmatprep.subr.mxu0 0.0
        %1465 = vmatpush1.msra.mxu0 0.0
        %1466 = vmatprep.subr.mxu0 0.0
        %1467 = vmatpush1.msra.mxu0 0.0
        %1468 = vmatprep.subr.mxu0 0.0
        %1469 = vmatpush1.msra.mxu0 0.0
        %1470 = vmatprep.subr.mxu0 0.0
        %1471 = vmatpush1.msra.mxu0 0.0
        %1472 = vmatprep.subr.mxu0 0.0
        %1473 = vmatpush1.msra.mxu0 0.0
        %1474 = vmatprep.subr.mxu0 0.0
        %1475 = vmatpush1.msra.mxu0 0.0
        %1476 = vmatprep.subr.mxu0 0.0
        %1477 = vmatpush1.msra.mxu0 0.0
        %1478 = vmatprep.subr.mxu0 0.0
        %1479 = vmatpush1.msra.mxu0 0.0
        %1480 = vmatprep.subr.mxu0 0.0
        %1481 = vmatpush1.msra.mxu0 0.0
        %1482 = vmatprep.subr.mxu0 0.0
        %1483 = vmatpush1.msra.mxu0 0.0
        %1484 = vmatprep.subr.mxu0 0.0
        %1485 = vmatpush1.msra.mxu0 0.0
        %1486 = vmatprep.mubr.f32.mxu0 0.0
        %1487 = vmatmul.mubr.f32.gmra.mrb[0].mxu0 %v1417
        %v1488 = vpop.f32.mrb[0].mxu0
        %v1489 = vadd.f32 0.0, %v1488
        %v1490 = vpop.f32.mrb[0].mxu0
        %1491 = vdwg.mxu0
        %v1493 = vsel %vm1034, %v1029, 0
        %v1496 = vsel %vm1038, %v564, 0
        %1498 = vmatprep.subr.mxu0 0.0
        %1499 = vmatpush1.msra.mxu0 %v1496
        %1500 = vmatprep.subr.mxu0 0.0
        %1501 = vmatpush1.msra.mxu0 0.0
        %1502 = vmatprep.subr.mxu0 0.0
        %1503 = vmatpush1.msra.mxu0 0.0
        %1504 = vmatprep.subr.mxu0 0.0
        %1505 = vmatpush1.msra.mxu0 0.0
        %1506 = vmatprep.subr.mxu0 0.0
        %1507 = vmatpush1.msra.mxu0 0.0
        %1508 = vmatprep.subr.mxu0 0.0
        %1509 = vmatpush1.msra.mxu0 0.0
        %1510 = vmatprep.subr.mxu0 0.0
        %1511 = vmatpush1.msra.mxu0 0.0
        %1512 = vmatprep.subr.mxu0 0.0
        %1513 = vmatpush1.msra.mxu0 0.0
        %1514 = vmatprep.subr.mxu0 0.0
        %1515 = vmatpush1.msra.mxu0 0.0
        %1516 = vmatprep.subr.mxu0 0.0
        %1517 = vmatpush1.msra.mxu0 0.0
        %1518 = vmatprep.subr.mxu0 0.0
        %1519 = vmatpush1.msra.mxu0 0.0
        %1520 = vmatprep.subr.mxu0 0.0
        %1521 = vmatpush1.msra.mxu0 0.0
        %1522 = vmatprep.subr.mxu0 0.0
        %1523 = vmatpush1.msra.mxu0 0.0
        %1524 = vmatprep.subr.mxu0 0.0
        %1525 = vmatpush1.msra.mxu0 0.0
        %1526 = vmatprep.subr.mxu0 0.0
        %1527 = vmatpush1.msra.mxu0 0.0
        %1528 = vmatprep.subr.mxu0 0.0
        %1529 = vmatpush1.msra.mxu0 0.0
        %1530 = vmatprep.subr.mxu0 0.0
        %1531 = vmatpush1.msra.mxu0 0.0
        %1532 = vmatprep.subr.mxu0 0.0
        %1533 = vmatpush1.msra.mxu0 0.0
        %1534 = vmatprep.subr.mxu0 0.0
        %1535 = vmatpush1.msra.mxu0 0.0
        %1536 = vmatprep.subr.mxu0 0.0
        %1537 = vmatpush1.msra.mxu0 0.0
        %1538 = vmatprep.subr.mxu0 0.0
        %1539 = vmatpush1.msra.mxu0 0.0
        %1540 = vmatprep.subr.mxu0 0.0
        %1541 = vmatpush1.msra.mxu0 0.0
        %1542 = vmatprep.subr.mxu0 0.0
        %1543 = vmatpush1.msra.mxu0 0.0
        %1544 = vmatprep.subr.mxu0 0.0
        %1545 = vmatpush1.msra.mxu0 0.0
        %1546 = vmatprep.subr.mxu0 0.0
        %1547 = vmatpush1.msra.mxu0 0.0
        %1548 = vmatprep.subr.mxu0 0.0
        %1549 = vmatpush1.msra.mxu0 0.0
        %1550 = vmatprep.subr.mxu0 0.0
        %1551 = vmatpush1.msra.mxu0 0.0
        %1552 = vmatprep.subr.mxu0 0.0
        %1553 = vmatpush1.msra.mxu0 0.0
        %1554 = vmatprep.subr.mxu0 0.0
        %1555 = vmatpush1.msra.mxu0 0.0
        %1556 = vmatprep.subr.mxu0 0.0
        %1557 = vmatpush1.msra.mxu0 0.0
        %1558 = vmatprep.subr.mxu0 0.0
        %1559 = vmatpush1.msra.mxu0 0.0
        %1560 = vmatprep.subr.mxu0 0.0
        %1561 = vmatpush1.msra.mxu0 0.0
        %1562 = vmatprep.mubr.f32.mxu0 0.0
        %1563 = vmatmul.mubr.f32.gmra.mrb[0].mxu0 %v1493
        %v1564 = vpop.f32.mrb[0].mxu0
        %v1565 = vadd.f32 0.0, %v1564
        %v1566 = vpop.f32.mrb[0].mxu0
        %1567 = vdwg.mxu0
        %v1569 = vsel %vm1034, %v1033, 0
        %v1572 = vsel %vm1038, %v565, 0
        %1574 = vmatprep.subr.mxu0 0.0
        %1575 = vmatpush1.msra.mxu0 %v1572
        %1576 = vmatprep.subr.mxu0 0.0
        %1577 = vmatpush1.msra.mxu0 0.0
        %1578 = vmatprep.subr.mxu0 0.0
        %1579 = vmatpush1.msra.mxu0 0.0
        %1580 = vmatprep.subr.mxu0 0.0
        %1581 = vmatpush1.msra.mxu0 0.0
        %1582 = vmatprep.subr.mxu0 0.0
        %1583 = vmatpush1.msra.mxu0 0.0
        %1584 = vmatprep.subr.mxu0 0.0
        %1585 = vmatpush1.msra.mxu0 0.0
        %1586 = vmatprep.subr.mxu0 0.0
        %1587 = vmatpush1.msra.mxu0 0.0
        %1588 = vmatprep.subr.mxu0 0.0
        %1589 = vmatpush1.msra.mxu0 0.0
        %1590 = vmatprep.subr.mxu0 0.0
        %1591 = vmatpush1.msra.mxu0 0.0
        %1592 = vmatprep.subr.mxu0 0.0
        %1593 = vmatpush1.msra.mxu0 0.0
        %1594 = vmatprep.subr.mxu0 0.0
        %1595 = vmatpush1.msra.mxu0 0.0
        %1596 = vmatprep.subr.mxu0 0.0
        %1597 = vmatpush1.msra.mxu0 0.0
        %1598 = vmatprep.subr.mxu0 0.0
        %1599 = vmatpush1.msra.mxu0 0.0
        %1600 = vmatprep.subr.mxu0 0.0
        %1601 = vmatpush1.msra.mxu0 0.0
        %1602 = vmatprep.subr.mxu0 0.0
        %1603 = vmatpush1.msra.mxu0 0.0
        %1604 = vmatprep.subr.mxu0 0.0
        %1605 = vmatpush1.msra.mxu0 0.0
        %1606 = vmatprep.subr.mxu0 0.0
        %1607 = vmatpush1.msra.mxu0 0.0
        %1608 = vmatprep.subr.mxu0 0.0
        %1609 = vmatpush1.msra.mxu0 0.0
        %1610 = vmatprep.subr.mxu0 0.0
        %1611 = vmatpush1.msra.mxu0 0.0
        %1612 = vmatprep.subr.mxu0 0.0
        %1613 = vmatpush1.msra.mxu0 0.0
        %1614 = vmatprep.subr.mxu0 0.0
        %1615 = vmatpush1.msra.mxu0 0.0
        %1616 = vmatprep.subr.mxu0 0.0
        %1617 = vmatpush1.msra.mxu0 0.0
        %1618 = vmatprep.subr.mxu0 0.0
        %1619 = vmatpush1.msra.mxu0 0.0
        %1620 = vmatprep.subr.mxu0 0.0
        %1621 = vmatpush1.msra.mxu0 0.0
        %1622 = vmatprep.subr.mxu0 0.0
        %1623 = vmatpush1.msra.mxu0 0.0
        %1624 = vmatprep.subr.mxu0 0.0
        %1625 = vmatpush1.msra.mxu0 0.0
        %1626 = vmatprep.subr.mxu0 0.0
        %1627 = vmatpush1.msra.mxu0 0.0
        %1628 = vmatprep.subr.mxu0 0.0
        %1629 = vmatpush1.msra.mxu0 0.0
        %1630 = vmatprep.subr.mxu0 0.0
        %1631 = vmatpush1.msra.mxu0 0.0
        %1632 = vmatprep.subr.mxu0 0.0
        %1633 = vmatpush1.msra.mxu0 0.0
        %1634 = vmatprep.subr.mxu0 0.0
        %1635 = vmatpush1.msra.mxu0 0.0
        %1636 = vmatprep.subr.mxu0 0.0
        %1637 = vmatpush1.msra.mxu0 0.0
        %1638 = vmatprep.mubr.f32.mxu0 0.0
        %1639 = vmatmul.mubr.f32.gmra.mrb[0].mxu0 %v1569
        %v1640 = vpop.f32.mrb[0].mxu0
        %v1641 = vadd.f32 0.0, %v1640
        %v1642 = vpop.f32.mrb[0].mxu0
        %1643 = vdwg.mxu0
        %v1644 = vcombine.low %v1109, %v1261
        %v1646 = vunpack.c.l.s4 1983009808
        %v1647 = vunpack.c.0.s8 %v1646
        %v1648 = vlaneseq
        %v1649 = vshrl.u32 %v1648, 7
        %v1650 = vsub.s32 %v1647, %v1649
        %v1651 = vrot.slane %v1644, %v1650
        %v1652 = vcombine.low %v1185, %v1337
        %v1654 = vunpack.c.l.s4 1983009808
        %v1655 = vunpack.c.0.s8 %v1654
        %v1656 = vlaneseq
        %v1657 = vshrl.u32 %v1656, 7
        %v1658 = vsub.s32 %v1655, %v1657
        %v1659 = vrot.slane %v1652, %v1658
        %v1660 = vcombine.low %v1413, %v1565
        %v1662 = vunpack.c.l.s4 1983009808
        %v1663 = vunpack.c.0.s8 %v1662
        %v1664 = vlaneseq
        %v1665 = vshrl.u32 %v1664, 7
        %v1666 = vsub.s32 %v1663, %v1665
        %v1667 = vrot.slane %v1660, %v1666
        %v1668 = vcombine.low %v1489, %v1641
        %v1670 = vunpack.c.l.s4 1983009808
        %v1671 = vunpack.c.0.s8 %v1670
        %v1672 = vlaneseq
        %v1673 = vshrl.u32 %v1672, 7
        %v1674 = vsub.s32 %v1671, %v1673
        %v1675 = vrot.slane %v1668, %v1674
        %v1676 = vcombine.low %v1651, %v1659
        %v1678 = vunpack.c.l.s4 1934713408
        %v1679 = vunpack.c.0.s8 %v1678
        %v1680 = vlaneseq
        %v1681 = vshrl.u32 %v1680, 7
        %v1682 = vsub.s32 %v1679, %v1681
        %v1683 = vrot.slane %v1676, %v1682
        %v1684 = vcombine.low %v1667, %v1675
        %v1686 = vunpack.c.l.s4 1934713408
        %v1687 = vunpack.c.0.s8 %v1686
        %v1688 = vlaneseq
        %v1689 = vshrl.u32 %v1688, 7
        %v1690 = vsub.s32 %v1687, %v1689
        %v1691 = vrot.slane %v1684, %v1690
        %v1692 = vcombine.low %v1683, %v1691
        %v1693 = vcombine.high %v984, 0.0
        %v1695 = vunpack.c.l.s4 1983009808
        %v1696 = vunpack.c.0.s8 %v1695
        %v1697 = vlaneseq
        %v1698 = vshrl.u32 %v1697, 7
        %v1699 = vsub.s32 %v1696, %v1698
        %v1700 = vrot.slane %v984, %v1699
        %v1702 = vunpack.c.l.s4 1983009808
        %v1703 = vunpack.c.0.s8 %v1702
        %v1704 = vlaneseq
        %v1705 = vshrl.u32 %v1704, 7
        %v1706 = vsub.s32 %v1703, %v1705
        %v1707 = vrot.slane %v1693, %v1706
        %v1708 = vcombine.high %v1700, 0.0
        %v1710 = vunpack.c.l.s4 1934713408
        %v1711 = vunpack.c.0.s8 %v1710
        %v1712 = vlaneseq
        %v1713 = vshrl.u32 %v1712, 7
        %v1714 = vsub.s32 %v1711, %v1713
        %v1715 = vrot.slane %v1700, %v1714
        %v1717 = vunpack.c.l.s4 1934713408
        %v1718 = vunpack.c.0.s8 %v1717
        %v1719 = vlaneseq
        %v1720 = vshrl.u32 %v1719, 7
        %v1721 = vsub.s32 %v1718, %v1720
        %v1722 = vrot.slane %v1708, %v1721
        %v1723 = vcombine.high %v1707, 0.0
        %v1725 = vunpack.c.l.s4 1934713408
        %v1726 = vunpack.c.0.s8 %v1725
        %v1727 = vlaneseq
        %v1728 = vshrl.u32 %v1727, 7
        %v1729 = vsub.s32 %v1726, %v1728
        %v1730 = vrot.slane %v1707, %v1729
        %v1732 = vunpack.c.l.s4 1934713408
        %v1733 = vunpack.c.0.s8 %v1732
        %v1734 = vlaneseq
        %v1735 = vshrl.u32 %v1734, 7
        %v1736 = vsub.s32 %v1733, %v1735
        %v1737 = vrot.slane %v1723, %v1736
        %v1738 = vcombine.high %v1715, 0.0
        %v1739 = vcombine.high %v1722, 0.0
        %v1740 = vcombine.high %v1730, 0.0
        %v1741 = vcombine.high %v1737, 0.0
        %vm1742 = vcmask 392192
        %v1744 = vsel %vm1742, %v1715, 0
        %1746 = vmatprep.subr.mxu0 0.0
        %1747 = vmatpush1.msra.mxu0 %v566
        %1748 = vmatprep.subr.mxu0 0.0
        %1749 = vmatpush1.msra.mxu0 %v567
        %1750 = vmatprep.subr.mxu0 0.0
        %1751 = vmatpush1.msra.mxu0 %v568
        %1752 = vmatprep.subr.mxu0 0.0
        %1753 = vmatpush1.msra.mxu0 %v569
        %1754 = vmatprep.subr.mxu0 0.0
        %1755 = vmatpush1.msra.mxu0 %v570
        %1756 = vmatprep.subr.mxu0 0.0
        %1757 = vmatpush1.msra.mxu0 %v571
        %1758 = vmatprep.subr.mxu0 0.0
        %1759 = vmatpush1.msra.mxu0 0.0
        %1760 = vmatprep.subr.mxu0 0.0
        %1761 = vmatpush1.msra.mxu0 0.0
        %1762 = vmatprep.subr.mxu0 0.0
        %1763 = vmatpush1.msra.mxu0 0.0
        %1764 = vmatprep.subr.mxu0 0.0
        %1765 = vmatpush1.msra.mxu0 0.0
        %1766 = vmatprep.subr.mxu0 0.0
        %1767 = vmatpush1.msra.mxu0 0.0
        %1768 = vmatprep.subr.mxu0 0.0
        %1769 = vmatpush1.msra.mxu0 0.0
        %1770 = vmatprep.subr.mxu0 0.0
        %1771 = vmatpush1.msra.mxu0 0.0
        %1772 = vmatprep.subr.mxu0 0.0
        %1773 = vmatpush1.msra.mxu0 0.0
        %1774 = vmatprep.subr.mxu0 0.0
        %1775 = vmatpush1.msra.mxu0 0.0
        %1776 = vmatprep.subr.mxu0 0.0
        %1777 = vmatpush1.msra.mxu0 0.0
        %1778 = vmatprep.subr.mxu0 0.0
        %1779 = vmatpush1.msra.mxu0 0.0
        %1780 = vmatprep.subr.mxu0 0.0
        %1781 = vmatpush1.msra.mxu0 0.0
        %1782 = vmatprep.subr.mxu0 0.0
        %1783 = vmatpush1.msra.mxu0 0.0
        %1784 = vmatprep.subr.mxu0 0.0
        %1785 = vmatpush1.msra.mxu0 0.0
        %1786 = vmatprep.subr.mxu0 0.0
        %1787 = vmatpush1.msra.mxu0 0.0
        %1788 = vmatprep.subr.mxu0 0.0
        %1789 = vmatpush1.msra.mxu0 0.0
        %1790 = vmatprep.subr.mxu0 0.0
        %1791 = vmatpush1.msra.mxu0 0.0
        %1792 = vmatprep.subr.mxu0 0.0
        %1793 = vmatpush1.msra.mxu0 0.0
        %1794 = vmatprep.subr.mxu0 0.0
        %1795 = vmatpush1.msra.mxu0 0.0
        %1796 = vmatprep.subr.mxu0 0.0
        %1797 = vmatpush1.msra.mxu0 0.0
        %1798 = vmatprep.subr.mxu0 0.0
        %1799 = vmatpush1.msra.mxu0 0.0
        %1800 = vmatprep.subr.mxu0 0.0
        %1801 = vmatpush1.msra.mxu0 0.0
        %1802 = vmatprep.subr.mxu0 0.0
        %1803 = vmatpush1.msra.mxu0 0.0
        %1804 = vmatprep.subr.mxu0 0.0
        %1805 = vmatpush1.msra.mxu0 0.0
        %1806 = vmatprep.subr.mxu0 0.0
        %1807 = vmatpush1.msra.mxu0 0.0
        %1808 = vmatprep.subr.mxu0 0.0
        %1809 = vmatpush1.msra.mxu0 0.0
        %1810 = vmatprep.mubr.f32.mxu0 0.0
        %1811 = vmatmul.mubr.f32.gmra.mrb[0].mxu0 %v1744
        %v1812 = vpop.f32.mrb[0].mxu0
        %v1813 = vadd.f32 0.0, %v1812
        %v1814 = vpop.f32.mrb[0].mxu0
        %1815 = vdwg.mxu0
        %v1817 = vsel %vm1742, %v1738, 0
        %1819 = vmatprep.subr.mxu0 0.0
        %1820 = vmatpush1.msra.mxu0 %v572
        %1821 = vmatprep.subr.mxu0 0.0
        %1822 = vmatpush1.msra.mxu0 %v573
        %1823 = vmatprep.subr.mxu0 0.0
        %1824 = vmatpush1.msra.mxu0 %v574
        %1825 = vmatprep.subr.mxu0 0.0
        %1826 = vmatpush1.msra.mxu0 %v575
        %1827 = vmatprep.subr.mxu0 0.0
        %1828 = vmatpush1.msra.mxu0 %v576
        %1829 = vmatprep.subr.mxu0 0.0
        %1830 = vmatpush1.msra.mxu0 %v577
        %1831 = vmatprep.subr.mxu0 0.0
        %1832 = vmatpush1.msra.mxu0 0.0
        %1833 = vmatprep.subr.mxu0 0.0
        %1834 = vmatpush1.msra.mxu0 0.0
        %1835 = vmatprep.subr.mxu0 0.0
        %1836 = vmatpush1.msra.mxu0 0.0
        %1837 = vmatprep.subr.mxu0 0.0
        %1838 = vmatpush1.msra.mxu0 0.0
        %1839 = vmatprep.subr.mxu0 0.0
        %1840 = vmatpush1.msra.mxu0 0.0
        %1841 = vmatprep.subr.mxu0 0.0
        %1842 = vmatpush1.msra.mxu0 0.0
        %1843 = vmatprep.subr.mxu0 0.0
        %1844 = vmatpush1.msra.mxu0 0.0
        %1845 = vmatprep.subr.mxu0 0.0
        %1846 = vmatpush1.msra.mxu0 0.0
        %1847 = vmatprep.subr.mxu0 0.0
        %1848 = vmatpush1.msra.mxu0 0.0
        %1849 = vmatprep.subr.mxu0 0.0
        %1850 = vmatpush1.msra.mxu0 0.0
        %1851 = vmatprep.subr.mxu0 0.0
        %1852 = vmatpush1.msra.mxu0 0.0
        %1853 = vmatprep.subr.mxu0 0.0
        %1854 = vmatpush1.msra.mxu0 0.0
        %1855 = vmatprep.subr.mxu0 0.0
        %1856 = vmatpush1.msra.mxu0 0.0
        %1857 = vmatprep.subr.mxu0 0.0
        %1858 = vmatpush1.msra.mxu0 0.0
        %1859 = vmatprep.subr.mxu0 0.0
        %1860 = vmatpush1.msra.mxu0 0.0
        %1861 = vmatprep.subr.mxu0 0.0
        %1862 = vmatpush1.msra.mxu0 0.0
        %1863 = vmatprep.subr.mxu0 0.0
        %1864 = vmatpush1.msra.mxu0 0.0
        %1865 = vmatprep.subr.mxu0 0.0
        %1866 = vmatpush1.msra.mxu0 0.0
        %1867 = vmatprep.subr.mxu0 0.0
        %1868 = vmatpush1.msra.mxu0 0.0
        %1869 = vmatprep.subr.mxu0 0.0
        %1870 = vmatpush1.msra.mxu0 0.0
        %1871 = vmatprep.subr.mxu0 0.0
        %1872 = vmatpush1.msra.mxu0 0.0
        %1873 = vmatprep.subr.mxu0 0.0
        %1874 = vmatpush1.msra.mxu0 0.0
        %1875 = vmatprep.subr.mxu0 0.0
        %1876 = vmatpush1.msra.mxu0 0.0
        %1877 = vmatprep.subr.mxu0 0.0
        %1878 = vmatpush1.msra.mxu0 0.0
        %1879 = vmatprep.subr.mxu0 0.0
        %1880 = vmatpush1.msra.mxu0 0.0
        %1881 = vmatprep.subr.mxu0 0.0
        %1882 = vmatpush1.msra.mxu0 0.0
        %1883 = vmatprep.mubr.f32.mxu0 0.0
        %1884 = vmatmul.mubr.f32.gmra.mrb[0].mxu0 %v1817
        %v1885 = vpop.f32.mrb[0].mxu0
        %v1886 = vadd.f32 0.0, %v1885
        %v1887 = vpop.f32.mrb[0].mxu0
        %1888 = vdwg.mxu0
        %v1890 = vsel %vm1742, %v1722, 0
        %1892 = vmatprep.subr.mxu0 0.0
        %1893 = vmatpush1.msra.mxu0 %v578
        %1894 = vmatprep.subr.mxu0 0.0
        %1895 = vmatpush1.msra.mxu0 %v579
        %1896 = vmatprep.subr.mxu0 0.0
        %1897 = vmatpush1.msra.mxu0 %v580
        %1898 = vmatprep.subr.mxu0 0.0
        %1899 = vmatpush1.msra.mxu0 %v581
        %1900 = vmatprep.subr.mxu0 0.0
        %1901 = vmatpush1.msra.mxu0 %v582
        %1902 = vmatprep.subr.mxu0 0.0
        %1903 = vmatpush1.msra.mxu0 %v583
        %1904 = vmatprep.subr.mxu0 0.0
        %1905 = vmatpush1.msra.mxu0 0.0
        %1906 = vmatprep.subr.mxu0 0.0
        %1907 = vmatpush1.msra.mxu0 0.0
        %1908 = vmatprep.subr.mxu0 0.0
        %1909 = vmatpush1.msra.mxu0 0.0
        %1910 = vmatprep.subr.mxu0 0.0
        %1911 = vmatpush1.msra.mxu0 0.0
        %1912 = vmatprep.subr.mxu0 0.0
        %1913 = vmatpush1.msra.mxu0 0.0
        %1914 = vmatprep.subr.mxu0 0.0
        %1915 = vmatpush1.msra.mxu0 0.0
        %1916 = vmatprep.subr.mxu0 0.0
        %1917 = vmatpush1.msra.mxu0 0.0
        %1918 = vmatprep.subr.mxu0 0.0
        %1919 = vmatpush1.msra.mxu0 0.0
        %1920 = vmatprep.subr.mxu0 0.0
        %1921 = vmatpush1.msra.mxu0 0.0
        %1922 = vmatprep.subr.mxu0 0.0
        %1923 = vmatpush1.msra.mxu0 0.0
        %1924 = vmatprep.subr.mxu0 0.0
        %1925 = vmatpush1.msra.mxu0 0.0
        %1926 = vmatprep.subr.mxu0 0.0
        %1927 = vmatpush1.msra.mxu0 0.0
        %1928 = vmatprep.subr.mxu0 0.0
        %1929 = vmatpush1.msra.mxu0 0.0
        %1930 = vmatprep.subr.mxu0 0.0
        %1931 = vmatpush1.msra.mxu0 0.0
        %1932 = vmatprep.subr.mxu0 0.0
        %1933 = vmatpush1.msra.mxu0 0.0
        %1934 = vmatprep.subr.mxu0 0.0
        %1935 = vmatpush1.msra.mxu0 0.0
        %1936 = vmatprep.subr.mxu0 0.0
        %1937 = vmatpush1.msra.mxu0 0.0
        %1938 = vmatprep.subr.mxu0 0.0
        %1939 = vmatpush1.msra.mxu0 0.0
        %1940 = vmatprep.subr.mxu0 0.0
        %1941 = vmatpush1.msra.mxu0 0.0
        %1942 = vmatprep.subr.mxu0 0.0
        %1943 = vmatpush1.msra.mxu0 0.0
        %1944 = vmatprep.subr.mxu0 0.0
        %1945 = vmatpush1.msra.mxu0 0.0
        %1946 = vmatprep.subr.mxu0 0.0
        %1947 = vmatpush1.msra.mxu0 0.0
        %1948 = vmatprep.subr.mxu0 0.0
        %1949 = vmatpush1.msra.mxu0 0.0
        %1950 = vmatprep.subr.mxu0 0.0
        %1951 = vmatpush1.msra.mxu0 0.0
        %1952 = vmatprep.subr.mxu0 0.0
        %1953 = vmatpush1.msra.mxu0 0.0
        %1954 = vmatprep.subr.mxu0 0.0
        %1955 = vmatpush1.msra.mxu0 0.0
        %1956 = vmatprep.mubr.f32.mxu0 0.0
        %1957 = vmatmul.mubr.f32.gmra.mrb[0].mxu0 %v1890
        %v1958 = vpop.f32.mrb[0].mxu0
        %v1959 = vadd.f32 0.0, %v1958
        %v1960 = vpop.f32.mrb[0].mxu0
        %1961 = vdwg.mxu0
        %v1963 = vsel %vm1742, %v1739, 0
        %1965 = vmatprep.subr.mxu0 0.0
        %1966 = vmatpush1.msra.mxu0 %v584
        %1967 = vmatprep.subr.mxu0 0.0
        %1968 = vmatpush1.msra.mxu0 %v585
        %1969 = vmatprep.subr.mxu0 0.0
        %1970 = vmatpush1.msra.mxu0 %v586
        %1971 = vmatprep.subr.mxu0 0.0
        %1972 = vmatpush1.msra.mxu0 %v587
        %1973 = vmatprep.subr.mxu0 0.0
        %1974 = vmatpush1.msra.mxu0 %v588
        %1975 = vmatprep.subr.mxu0 0.0
        %1976 = vmatpush1.msra.mxu0 %v589
        %1977 = vmatprep.subr.mxu0 0.0
        %1978 = vmatpush1.msra.mxu0 0.0
        %1979 = vmatprep.subr.mxu0 0.0
        %1980 = vmatpush1.msra.mxu0 0.0
        %1981 = vmatprep.subr.mxu0 0.0
        %1982 = vmatpush1.msra.mxu0 0.0
        %1983 = vmatprep.subr.mxu0 0.0
        %1984 = vmatpush1.msra.mxu0 0.0
        %1985 = vmatprep.subr.mxu0 0.0
        %1986 = vmatpush1.msra.mxu0 0.0
        %1987 = vmatprep.subr.mxu0 0.0
        %1988 = vmatpush1.msra.mxu0 0.0
        %1989 = vmatprep.subr.mxu0 0.0
        %1990 = vmatpush1.msra.mxu0 0.0
        %1991 = vmatprep.subr.mxu0 0.0
        %1992 = vmatpush1.msra.mxu0 0.0
        %1993 = vmatprep.subr.mxu0 0.0
        %1994 = vmatpush1.msra.mxu0 0.0
        %1995 = vmatprep.subr.mxu0 0.0
        %1996 = vmatpush1.msra.mxu0 0.0
        %1997 = vmatprep.subr.mxu0 0.0
        %1998 = vmatpush1.msra.mxu0 0.0
        %1999 = vmatprep.subr.mxu0 0.0
        %2000 = vmatpush1.msra.mxu0 0.0
        %2001 = vmatprep.subr.mxu0 0.0
        %2002 = vmatpush1.msra.mxu0 0.0
        %2003 = vmatprep.subr.mxu0 0.0
        %2004 = vmatpush1.msra.mxu0 0.0
        %2005 = vmatprep.subr.mxu0 0.0
        %2006 = vmatpush1.msra.mxu0 0.0
        %2007 = vmatprep.subr.mxu0 0.0
        %2008 = vmatpush1.msra.mxu0 0.0
        %2009 = vmatprep.subr.mxu0 0.0
        %2010 = vmatpush1.msra.mxu0 0.0
        %2011 = vmatprep.subr.mxu0 0.0
        %2012 = vmatpush1.msra.mxu0 0.0
        %2013 = vmatprep.subr.mxu0 0.0
        %2014 = vmatpush1.msra.mxu0 0.0
        %2015 = vmatprep.subr.mxu0 0.0
        %2016 = vmatpush1.msra.mxu0 0.0
        %2017 = vmatprep.subr.mxu0 0.0
        %2018 = vmatpush1.msra.mxu0 0.0
        %2019 = vmatprep.subr.mxu0 0.0
        %2020 = vmatpush1.msra.mxu0 0.0
        %2021 = vmatprep.subr.mxu0 0.0
        %2022 = vmatpush1.msra.mxu0 0.0
        %2023 = vmatprep.subr.mxu0 0.0
        %2024 = vmatpush1.msra.mxu0 0.0
        %2025 = vmatprep.subr.mxu0 0.0
        %2026 = vmatpush1.msra.mxu0 0.0
        %2027 = vmatprep.subr.mxu0 0.0
        %2028 = vmatpush1.msra.mxu0 0.0
        %2029 = vmatprep.mubr.f32.mxu0 0.0
        %2030 = vmatmul.mubr.f32.gmra.mrb[0].mxu0 %v1963
        %v2031 = vpop.f32.mrb[0].mxu0
        %v2032 = vadd.f32 0.0, %v2031
        %v2033 = vpop.f32.mrb[0].mxu0
        %2034 = vdwg.mxu0
        %v2036 = vsel %vm1742, %v1730, 0
        %2038 = vmatprep.subr.mxu0 0.0
        %2039 = vmatpush1.msra.mxu0 %v590
        %2040 = vmatprep.subr.mxu0 0.0
        %2041 = vmatpush1.msra.mxu0 %v591
        %2042 = vmatprep.subr.mxu0 0.0
        %2043 = vmatpush1.msra.mxu0 %v592
        %2044 = vmatprep.subr.mxu0 0.0
        %2045 = vmatpush1.msra.mxu0 %v593
        %2046 = vmatprep.subr.mxu0 0.0
        %2047 = vmatpush1.msra.mxu0 %v594
        %2048 = vmatprep.subr.mxu0 0.0
        %2049 = vmatpush1.msra.mxu0 %v595
        %2050 = vmatprep.subr.mxu0 0.0
        %2051 = vmatpush1.msra.mxu0 0.0
        %2052 = vmatprep.subr.mxu0 0.0
        %2053 = vmatpush1.msra.mxu0 0.0
        %2054 = vmatprep.subr.mxu0 0.0
        %2055 = vmatpush1.msra.mxu0 0.0
        %2056 = vmatprep.subr.mxu0 0.0
        %2057 = vmatpush1.msra.mxu0 0.0
        %2058 = vmatprep.subr.mxu0 0.0
        %2059 = vmatpush1.msra.mxu0 0.0
        %2060 = vmatprep.subr.mxu0 0.0
        %2061 = vmatpush1.msra.mxu0 0.0
        %2062 = vmatprep.subr.mxu0 0.0
        %2063 = vmatpush1.msra.mxu0 0.0
        %2064 = vmatprep.subr.mxu0 0.0
        %2065 = vmatpush1.msra.mxu0 0.0
        %2066 = vmatprep.subr.mxu0 0.0
        %2067 = vmatpush1.msra.mxu0 0.0
        %2068 = vmatprep.subr.mxu0 0.0
        %2069 = vmatpush1.msra.mxu0 0.0
        %2070 = vmatprep.subr.mxu0 0.0
        %2071 = vmatpush1.msra.mxu0 0.0
        %2072 = vmatprep.subr.mxu0 0.0
        %2073 = vmatpush1.msra.mxu0 0.0
        %2074 = vmatprep.subr.mxu0 0.0
        %2075 = vmatpush1.msra.mxu0 0.0
        %2076 = vmatprep.subr.mxu0 0.0
        %2077 = vmatpush1.msra.mxu0 0.0
        %2078 = vmatprep.subr.mxu0 0.0
        %2079 = vmatpush1.msra.mxu0 0.0
        %2080 = vmatprep.subr.mxu0 0.0
        %2081 = vmatpush1.msra.mxu0 0.0
        %2082 = vmatprep.subr.mxu0 0.0
        %2083 = vmatpush1.msra.mxu0 0.0
        %2084 = vmatprep.subr.mxu0 0.0
        %2085 = vmatpush1.msra.mxu0 0.0
        %2086 = vmatprep.subr.mxu0 0.0
        %2087 = vmatpush1.msra.mxu0 0.0
        %2088 = vmatprep.subr.mxu0 0.0
        %2089 = vmatpush1.msra.mxu0 0.0
        %2090 = vmatprep.subr.mxu0 0.0
        %2091 = vmatpush1.msra.mxu0 0.0
        %2092 = vmatprep.subr.mxu0 0.0
        %2093 = vmatpush1.msra.mxu0 0.0
        %2094 = vmatprep.subr.mxu0 0.0
        %2095 = vmatpush1.msra.mxu0 0.0
        %2096 = vmatprep.subr.mxu0 0.0
        %2097 = vmatpush1.msra.mxu0 0.0
        %2098 = vmatprep.subr.mxu0 0.0
        %2099 = vmatpush1.msra.mxu0 0.0
        %2100 = vmatprep.subr.mxu0 0.0
        %2101 = vmatpush1.msra.mxu0 0.0
        %2102 = vmatprep.mubr.f32.mxu0 0.0
        %2103 = vmatmul.mubr.f32.gmra.mrb[0].mxu0 %v2036
        %v2104 = vpop.f32.mrb[0].mxu0
        %v2105 = vadd.f32 0.0, %v2104
        %v2106 = vpop.f32.mrb[0].mxu0
        %2107 = vdwg.mxu0
        %v2109 = vsel %vm1742, %v1740, 0
        %2111 = vmatprep.subr.mxu0 0.0
        %2112 = vmatpush1.msra.mxu0 %v596
        %2113 = vmatprep.subr.mxu0 0.0
        %2114 = vmatpush1.msra.mxu0 %v597
        %2115 = vmatprep.subr.mxu0 0.0
        %2116 = vmatpush1.msra.mxu0 %v598
        %2117 = vmatprep.subr.mxu0 0.0
        %2118 = vmatpush1.msra.mxu0 %v599
        %2119 = vmatprep.subr.mxu0 0.0
        %2120 = vmatpush1.msra.mxu0 %v600
        %2121 = vmatprep.subr.mxu0 0.0
        %2122 = vmatpush1.msra.mxu0 %v601
        %2123 = vmatprep.subr.mxu0 0.0
        %2124 = vmatpush1.msra.mxu0 0.0
        %2125 = vmatprep.subr.mxu0 0.0
        %2126 = vmatpush1.msra.mxu0 0.0
        %2127 = vmatprep.subr.mxu0 0.0
        %2128 = vmatpush1.msra.mxu0 0.0
        %2129 = vmatprep.subr.mxu0 0.0
        %2130 = vmatpush1.msra.mxu0 0.0
        %2131 = vmatprep.subr.mxu0 0.0
        %2132 = vmatpush1.msra.mxu0 0.0
        %2133 = vmatprep.subr.mxu0 0.0
        %2134 = vmatpush1.msra.mxu0 0.0
        %2135 = vmatprep.subr.mxu0 0.0
        %2136 = vmatpush1.msra.mxu0 0.0
        %2137 = vmatprep.subr.mxu0 0.0
        %2138 = vmatpush1.msra.mxu0 0.0
        %2139 = vmatprep.subr.mxu0 0.0
        %2140 = vmatpush1.msra.mxu0 0.0
        %2141 = vmatprep.subr.mxu0 0.0
        %2142 = vmatpush1.msra.mxu0 0.0
        %2143 = vmatprep.subr.mxu0 0.0
        %2144 = vmatpush1.msra.mxu0 0.0
        %2145 = vmatprep.subr.mxu0 0.0
        %2146 = vmatpush1.msra.mxu0 0.0
        %2147 = vmatprep.subr.mxu0 0.0
        %2148 = vmatpush1.msra.mxu0 0.0
        %2149 = vmatprep.subr.mxu0 0.0
        %2150 = vmatpush1.msra.mxu0 0.0
        %2151 = vmatprep.subr.mxu0 0.0
        %2152 = vmatpush1.msra.mxu0 0.0
        %2153 = vmatprep.subr.mxu0 0.0
        %2154 = vmatpush1.msra.mxu0 0.0
        %2155 = vmatprep.subr.mxu0 0.0
        %2156 = vmatpush1.msra.mxu0 0.0
        %2157 = vmatprep.subr.mxu0 0.0
        %2158 = vmatpush1.msra.mxu0 0.0
        %2159 = vmatprep.subr.mxu0 0.0
        %2160 = vmatpush1.msra.mxu0 0.0
        %2161 = vmatprep.subr.mxu0 0.0
        %2162 = vmatpush1.msra.mxu0 0.0
        %2163 = vmatprep.subr.mxu0 0.0
        %2164 = vmatpush1.msra.mxu0 0.0
        %2165 = vmatprep.subr.mxu0 0.0
        %2166 = vmatpush1.msra.mxu0 0.0
        %2167 = vmatprep.subr.mxu0 0.0
        %2168 = vmatpush1.msra.mxu0 0.0
        %2169 = vmatprep.subr.mxu0 0.0
        %2170 = vmatpush1.msra.mxu0 0.0
        %2171 = vmatprep.subr.mxu0 0.0
        %2172 = vmatpush1.msra.mxu0 0.0
        %2173 = vmatprep.subr.mxu0 0.0
        %2174 = vmatpush1.msra.mxu0 0.0
        %2175 = vmatprep.mubr.f32.mxu0 0.0
        %2176 = vmatmul.mubr.f32.gmra.mrb[0].mxu0 %v2109
        %v2177 = vpop.f32.mrb[0].mxu0
        %v2178 = vadd.f32 0.0, %v2177
        %v2179 = vpop.f32.mrb[0].mxu0
        %2180 = vdwg.mxu0
        %v2182 = vsel %vm1742, %v1737, 0
        %2184 = vmatprep.subr.mxu0 0.0
        %2185 = vmatpush1.msra.mxu0 %v602
        %2186 = vmatprep.subr.mxu0 0.0
        %2187 = vmatpush1.msra.mxu0 %v603
        %2188 = vmatprep.subr.mxu0 0.0
        %2189 = vmatpush1.msra.mxu0 %v604
        %2190 = vmatprep.subr.mxu0 0.0
        %2191 = vmatpush1.msra.mxu0 %v605
        %2192 = vmatprep.subr.mxu0 0.0
        %2193 = vmatpush1.msra.mxu0 %v606
        %2194 = vmatprep.subr.mxu0 0.0
        %2195 = vmatpush1.msra.mxu0 %v607
        %2196 = vmatprep.subr.mxu0 0.0
        %2197 = vmatpush1.msra.mxu0 0.0
        %2198 = vmatprep.subr.mxu0 0.0
        %2199 = vmatpush1.msra.mxu0 0.0
        %2200 = vmatprep.subr.mxu0 0.0
        %2201 = vmatpush1.msra.mxu0 0.0
        %2202 = vmatprep.subr.mxu0 0.0
        %2203 = vmatpush1.msra.mxu0 0.0
        %2204 = vmatprep.subr.mxu0 0.0
        %2205 = vmatpush1.msra.mxu0 0.0
        %2206 = vmatprep.subr.mxu0 0.0
        %2207 = vmatpush1.msra.mxu0 0.0
        %2208 = vmatprep.subr.mxu0 0.0
        %2209 = vmatpush1.msra.mxu0 0.0
        %2210 = vmatprep.subr.mxu0 0.0
        %2211 = vmatpush1.msra.mxu0 0.0
        %2212 = vmatprep.subr.mxu0 0.0
        %2213 = vmatpush1.msra.mxu0 0.0
        %2214 = vmatprep.subr.mxu0 0.0
        %2215 = vmatpush1.msra.mxu0 0.0
        %2216 = vmatprep.subr.mxu0 0.0
        %2217 = vmatpush1.msra.mxu0 0.0
        %2218 = vmatprep.subr.mxu0 0.0
        %2219 = vmatpush1.msra.mxu0 0.0
        %2220 = vmatprep.subr.mxu0 0.0
        %2221 = vmatpush1.msra.mxu0 0.0
        %2222 = vmatprep.subr.mxu0 0.0
        %2223 = vmatpush1.msra.mxu0 0.0
        %2224 = vmatprep.subr.mxu0 0.0
        %2225 = vmatpush1.msra.mxu0 0.0
        %2226 = vmatprep.subr.mxu0 0.0
        %2227 = vmatpush1.msra.mxu0 0.0
        %2228 = vmatprep.subr.mxu0 0.0
        %2229 = vmatpush1.msra.mxu0 0.0
        %2230 = vmatprep.subr.mxu0 0.0
        %2231 = vmatpush1.msra.mxu0 0.0
        %2232 = vmatprep.subr.mxu0 0.0
        %2233 = vmatpush1.msra.mxu0 0.0
        %2234 = vmatprep.subr.mxu0 0.0
        %2235 = vmatpush1.msra.mxu0 0.0
        %2236 = vmatprep.subr.mxu0 0.0
        %2237 = vmatpush1.msra.mxu0 0.0
        %2238 = vmatprep.subr.mxu0 0.0
        %2239 = vmatpush1.msra.mxu0 0.0
        %2240 = vmatprep.subr.mxu0 0.0
        %2241 = vmatpush1.msra.mxu0 0.0
        %2242 = vmatprep.subr.mxu0 0.0
        %2243 = vmatpush1.msra.mxu0 0.0
        %2244 = vmatprep.subr.mxu0 0.0
        %2245 = vmatpush1.msra.mxu0 0.0
        %2246 = vmatprep.subr.mxu0 0.0
        %2247 = vmatpush1.msra.mxu0 0.0
        %2248 = vmatprep.mubr.f32.mxu0 0.0
        %2249 = vmatmul.mubr.f32.gmra.mrb[0].mxu0 %v2182
        %v2250 = vpop.f32.mrb[0].mxu0
        %v2251 = vadd.f32 0.0, %v2250
        %v2252 = vpop.f32.mrb[0].mxu0
        %2253 = vdwg.mxu0
        %v2255 = vsel %vm1742, %v1741, 0
        %2257 = vmatprep.subr.mxu0 0.0
        %2258 = vmatpush1.msra.mxu0 %v608
        %2259 = vmatprep.subr.mxu0 0.0
        %2260 = vmatpush1.msra.mxu0 %v609
        %2261 = vmatprep.subr.mxu0 0.0
        %2262 = vmatpush1.msra.mxu0 %v610
        %2263 = vmatprep.subr.mxu0 0.0
        %2264 = vmatpush1.msra.mxu0 %v611
        %2265 = vmatprep.subr.mxu0 0.0
        %2266 = vmatpush1.msra.mxu0 %v612
        %2267 = vmatprep.subr.mxu0 0.0
        %2268 = vmatpush1.msra.mxu0 %v613
        %2269 = vmatprep.subr.mxu0 0.0
        %2270 = vmatpush1.msra.mxu0 0.0
        %2271 = vmatprep.subr.mxu0 0.0
        %2272 = vmatpush1.msra.mxu0 0.0
        %2273 = vmatprep.subr.mxu0 0.0
        %2274 = vmatpush1.msra.mxu0 0.0
        %2275 = vmatprep.subr.mxu0 0.0
        %2276 = vmatpush1.msra.mxu0 0.0
        %2277 = vmatprep.subr.mxu0 0.0
        %2278 = vmatpush1.msra.mxu0 0.0
        %2279 = vmatprep.subr.mxu0 0.0
        %2280 = vmatpush1.msra.mxu0 0.0
        %2281 = vmatprep.subr.mxu0 0.0
        %2282 = vmatpush1.msra.mxu0 0.0
        %2283 = vmatprep.subr.mxu0 0.0
        %2284 = vmatpush1.msra.mxu0 0.0
        %2285 = vmatprep.subr.mxu0 0.0
        %2286 = vmatpush1.msra.mxu0 0.0
        %2287 = vmatprep.subr.mxu0 0.0
        %2288 = vmatpush1.msra.mxu0 0.0
        %2289 = vmatprep.subr.mxu0 0.0
        %2290 = vmatpush1.msra.mxu0 0.0
        %2291 = vmatprep.subr.mxu0 0.0
        %2292 = vmatpush1.msra.mxu0 0.0
        %2293 = vmatprep.subr.mxu0 0.0
        %2294 = vmatpush1.msra.mxu0 0.0
        %2295 = vmatprep.subr.mxu0 0.0
        %2296 = vmatpush1.msra.mxu0 0.0
        %2297 = vmatprep.subr.mxu0 0.0
        %2298 = vmatpush1.msra.mxu0 0.0
        %2299 = vmatprep.subr.mxu0 0.0
        %2300 = vmatpush1.msra.mxu0 0.0
        %2301 = vmatprep.subr.mxu0 0.0
        %2302 = vmatpush1.msra.mxu0 0.0
        %2303 = vmatprep.subr.mxu0 0.0
        %2304 = vmatpush1.msra.mxu0 0.0
        %2305 = vmatprep.subr.mxu0 0.0
        %2306 = vmatpush1.msra.mxu0 0.0
        %2307 = vmatprep.subr.mxu0 0.0
        %2308 = vmatpush1.msra.mxu0 0.0
        %2309 = vmatprep.subr.mxu0 0.0
        %2310 = vmatpush1.msra.mxu0 0.0
        %2311 = vmatprep.subr.mxu0 0.0
        %2312 = vmatpush1.msra.mxu0 0.0
        %2313 = vmatprep.subr.mxu0 0.0
        %2314 = vmatpush1.msra.mxu0 0.0
        %2315 = vmatprep.subr.mxu0 0.0
        %2316 = vmatpush1.msra.mxu0 0.0
        %2317 = vmatprep.subr.mxu0 0.0
        %2318 = vmatpush1.msra.mxu0 0.0
        %2319 = vmatprep.subr.mxu0 0.0
        %2320 = vmatpush1.msra.mxu0 0.0
        %2321 = vmatprep.mubr.f32.mxu0 0.0
        %2322 = vmatmul.mubr.f32.gmra.mrb[0].mxu0 %v2255
        %v2323 = vpop.f32.mrb[0].mxu0
        %v2324 = vadd.f32 0.0, %v2323
        %v2325 = vpop.f32.mrb[0].mxu0
        %2326 = vdwg.mxu0
        %v2327 = vcombine.low %v1813, %v1959
        %v2329 = vunpack.c.l.s4 1983009808
        %v2330 = vunpack.c.0.s8 %v2329
        %v2331 = vlaneseq
        %v2332 = vshrl.u32 %v2331, 7
        %v2333 = vsub.s32 %v2330, %v2332
        %v2334 = vrot.slane %v2327, %v2333
        %v2335 = vcombine.low %v1886, %v2032
        %v2337 = vunpack.c.l.s4 1983009808
        %v2338 = vunpack.c.0.s8 %v2337
        %v2339 = vlaneseq
        %v2340 = vshrl.u32 %v2339, 7
        %v2341 = vsub.s32 %v2338, %v2340
        %v2342 = vrot.slane %v2335, %v2341
        %v2343 = vcombine.low %v2105, %v2251
        %v2345 = vunpack.c.l.s4 1983009808
        %v2346 = vunpack.c.0.s8 %v2345
        %v2347 = vlaneseq
        %v2348 = vshrl.u32 %v2347, 7
        %v2349 = vsub.s32 %v2346, %v2348
        %v2350 = vrot.slane %v2343, %v2349
        %v2351 = vcombine.low %v2178, %v2324
        %v2353 = vunpack.c.l.s4 1983009808
        %v2354 = vunpack.c.0.s8 %v2353
        %v2355 = vlaneseq
        %v2356 = vshrl.u32 %v2355, 7
        %v2357 = vsub.s32 %v2354, %v2356
        %v2358 = vrot.slane %v2351, %v2357
        %v2359 = vcombine.low %v2334, %v2342
        %v2361 = vunpack.c.l.s4 1934713408
        %v2362 = vunpack.c.0.s8 %v2361
        %v2363 = vlaneseq
        %v2364 = vshrl.u32 %v2363, 7
        %v2365 = vsub.s32 %v2362, %v2364
        %v2366 = vrot.slane %v2359, %v2365
        %v2367 = vcombine.low %v2350, %v2358
        %v2369 = vunpack.c.l.s4 1934713408
        %v2370 = vunpack.c.0.s8 %v2369
        %v2371 = vlaneseq
        %v2372 = vshrl.u32 %v2371, 7
        %v2373 = vsub.s32 %v2370, %v2372
        %v2374 = vrot.slane %v2367, %v2373
        %v2375 = vcombine.low %v2366, %v2374
        %v2376 = vadd.f32 %v1692, %v2375
        %v2377 = vadd.f32 %v2376, %v614
        %v2378 = vxor.u32 %v2377, 2147483648
        %v2379 = vmul.f32 %v2378, 1.442695
        %v2380 = vpow.pop %v2379
        %v2381 = vadd.f32 %v2380, 1.0
        %v2382 = vrcp.pop %v2381
        %v2383 = vmul.f32 1.0, %v2382
        %v2384 = vmul.f32 %v2383, %v672
        %2385 = vmatprep.subr.mxu0 0.0
        %2386 = vmatpush1.msra.mxu0 %v2384
        %2387 = vmatprep.subr.mxu0 0.0
        %2388 = vmatpush1.msra.mxu0 0.0
        %2389 = vmatprep.subr.mxu0 0.0
        %2390 = vmatpush1.msra.mxu0 0.0
        %2391 = vmatprep.subr.mxu0 0.0
        %2392 = vmatpush1.msra.mxu0 0.0
        %2393 = vmatprep.subr.mxu0 0.0
        %2394 = vmatpush1.msra.mxu0 0.0
        %2395 = vmatprep.subr.mxu0 0.0
        %2396 = vmatpush1.msra.mxu0 0.0
        %2397 = vmatprep.subr.mxu0 0.0
        %2398 = vmatpush1.msra.mxu0 0.0
        %2399 = vmatprep.subr.mxu0 0.0
        %2400 = vmatpush1.msra.mxu0 0.0
        %2401 = vmatprep.subr.mxu0 0.0
        %2402 = vmatpush1.msra.mxu0 0.0
        %2403 = vmatprep.subr.mxu0 0.0
        %2404 = vmatpush1.msra.mxu0 0.0
        %2405 = vmatprep.subr.mxu0 0.0
        %2406 = vmatpush1.msra.mxu0 0.0
        %2407 = vmatprep.subr.mxu0 0.0
        %2408 = vmatpush1.msra.mxu0 0.0
        %2409 = vmatprep.subr.mxu0 0.0
        %2410 = vmatpush1.msra.mxu0 0.0
        %2411 = vmatprep.subr.mxu0 0.0
        %2412 = vmatpush1.msra.mxu0 0.0
        %2413 = vmatprep.subr.mxu0 0.0
        %2414 = vmatpush1.msra.mxu0 0.0
        %2415 = vmatprep.subr.mxu0 0.0
        %2416 = vmatpush1.msra.mxu0 0.0
        %2417 = vmatprep.subr.mxu0 0.0
        %2418 = vmatpush1.msra.mxu0 0.0
        %2419 = vmatprep.subr.mxu0 0.0
        %2420 = vmatpush1.msra.mxu0 0.0
        %2421 = vmatprep.subr.mxu0 0.0
        %2422 = vmatpush1.msra.mxu0 0.0
        %2423 = vmatprep.subr.mxu0 0.0
        %2424 = vmatpush1.msra.mxu0 0.0
        %2425 = vmatprep.subr.mxu0 0.0
        %2426 = vmatpush1.msra.mxu0 0.0
        %2427 = vmatprep.subr.mxu0 0.0
        %2428 = vmatpush1.msra.mxu0 0.0
        %2429 = vmatprep.subr.mxu0 0.0
        %2430 = vmatpush1.msra.mxu0 0.0
        %2431 = vmatprep.subr.mxu0 0.0
        %2432 = vmatpush1.msra.mxu0 0.0
        %2433 = vmatprep.subr.mxu0 0.0
        %2434 = vmatpush1.msra.mxu0 0.0
        %2435 = vmatprep.subr.mxu0 0.0
        %2436 = vmatpush1.msra.mxu0 0.0
        %2437 = vmatprep.subr.mxu0 0.0
        %2438 = vmatpush1.msra.mxu0 0.0
        %2439 = vmatprep.subr.mxu0 0.0
        %2440 = vmatpush1.msra.mxu0 0.0
        %2441 = vmatprep.subr.mxu0 0.0
        %2442 = vmatpush1.msra.mxu0 0.0
        %2443 = vmatprep.subr.mxu0 0.0
        %2444 = vmatpush1.msra.mxu0 0.0
        %2445 = vmatprep.subr.mxu0 0.0
        %2446 = vmatpush1.msra.mxu0 0.0
        %2447 = vmatprep.subr.mxu0 0.0
        %2448 = vmatpush1.msra.mxu0 0.0
        %2449 = vmatprep.mubr.f32.mxu0 0.0
        %2450 = vmatmul.mubr.f32.gmra.mrb[0].mxu0 %v675
        %v2451 = vpop.f32.mrb[0].mxu0
        %v2452 = vadd.f32 0.0, %v2451
        %v2453 = vpop.f32.mrb[0].mxu0
        %2454 = vdwg.mxu0
        %2455 = vmatprep.subr.mxu0 0.0
        %2456 = vmatpush1.msra.mxu0 %v2452
        %2457 = vmatprep.subr.mxu0 0.0
        %2458 = vmatpush1.msra.mxu0 0.0
        %2459 = vmatprep.subr.mxu0 0.0
        %2460 = vmatpush1.msra.mxu0 0.0
        %2461 = vmatprep.subr.mxu0 0.0
        %2462 = vmatpush1.msra.mxu0 0.0
        %2463 = vmatprep.subr.mxu0 0.0
        %2464 = vmatpush1.msra.mxu0 0.0
        %2465 = vmatprep.subr.mxu0 0.0
        %2466 = vmatpush1.msra.mxu0 0.0
        %2467 = vmatprep.subr.mxu0 0.0
        %2468 = vmatpush1.msra.mxu0 0.0
        %2469 = vmatprep.subr.mxu0 0.0
        %2470 = vmatpush1.msra.mxu0 0.0
        %2471 = vmatprep.subr.mxu0 0.0
        %2472 = vmatpush1.msra.mxu0 0.0
        %2473 = vmatprep.subr.mxu0 0.0
        %2474 = vmatpush1.msra.mxu0 0.0
        %2475 = vmatprep.subr.mxu0 0.0
        %2476 = vmatpush1.msra.mxu0 0.0
        %2477 = vmatprep.subr.mxu0 0.0
        %2478 = vmatpush1.msra.mxu0 0.0
        %2479 = vmatprep.subr.mxu0 0.0
        %2480 = vmatpush1.msra.mxu0 0.0
        %2481 = vmatprep.subr.mxu0 0.0
        %2482 = vmatpush1.msra.mxu0 0.0
        %2483 = vmatprep.subr.mxu0 0.0
        %2484 = vmatpush1.msra.mxu0 0.0
        %2485 = vmatprep.subr.mxu0 0.0
        %2486 = vmatpush1.msra.mxu0 0.0
        %2487 = vmatprep.subr.mxu0 0.0
        %2488 = vmatpush1.msra.mxu0 0.0
        %2489 = vmatprep.subr.mxu0 0.0
        %2490 = vmatpush1.msra.mxu0 0.0
        %2491 = vmatprep.subr.mxu0 0.0
        %2492 = vmatpush1.msra.mxu0 0.0
        %2493 = vmatprep.subr.mxu0 0.0
        %2494 = vmatpush1.msra.mxu0 0.0
        %2495 = vmatprep.subr.mxu0 0.0
        %2496 = vmatpush1.msra.mxu0 0.0
        %2497 = vmatprep.subr.mxu0 0.0
        %2498 = vmatpush1.msra.mxu0 0.0
        %2499 = vmatprep.subr.mxu0 0.0
        %2500 = vmatpush1.msra.mxu0 0.0
        %2501 = vmatprep.subr.mxu0 0.0
        %2502 = vmatpush1.msra.mxu0 0.0
        %2503 = vmatprep.subr.mxu0 0.0
        %2504 = vmatpush1.msra.mxu0 0.0
        %2505 = vmatprep.subr.mxu0 0.0
        %2506 = vmatpush1.msra.mxu0 0.0
        %2507 = vmatprep.subr.mxu0 0.0
        %2508 = vmatpush1.msra.mxu0 0.0
        %2509 = vmatprep.subr.mxu0 0.0
        %2510 = vmatpush1.msra.mxu0 0.0
        %2511 = vmatprep.subr.mxu0 0.0
        %2512 = vmatpush1.msra.mxu0 0.0
        %2513 = vmatprep.subr.mxu0 0.0
        %2514 = vmatpush1.msra.mxu0 0.0
        %2515 = vmatprep.subr.mxu0 0.0
        %2516 = vmatpush1.msra.mxu0 0.0
        %2517 = vmatprep.subr.mxu0 0.0
        %2518 = vmatpush1.msra.mxu0 0.0
        %2519 = vmatprep.mubr.f32.mxu0 0.0
        %2520 = vmatmul.mubr.f32.gmra.mrb[0].mxu0 %v675
        %v2521 = vpop.f32.mrb[0].mxu0
        %v2522 = vadd.f32 0.0, %v2521
        %v2523 = vpop.f32.mrb[0].mxu0
        %2524 = vdwg.mxu0
        %v2525 = vmul.f32 %v2522, 2.0
        %v2526 = vsub.f32 %v2525, %v2384
        %2528 = vrot.lane.b32.xlu0 %v2452, 16
        %v2529 = vpop.permute.xlu0 %2528
        %2532 = vrot.lane.b32.xlu0 %v2526, 32
        %v2533 = vpop.permute.xlu0 %2532
        %v2535 = vsel %vm981, %v2384, %v2529
        %v2536 = vsel %vm983, %v2535, %v2533
        %v2538 = vsel %vm1038, %v615, 0
        %2540 = vmatprep.subr.mxu0 0.0
        %2541 = vmatpush1.msra.mxu0 %v2538
        %2542 = vmatprep.subr.mxu0 0.0
        %2543 = vmatpush1.msra.mxu0 0.0
        %2544 = vmatprep.subr.mxu0 0.0
        %2545 = vmatpush1.msra.mxu0 0.0
        %2546 = vmatprep.subr.mxu0 0.0
        %2547 = vmatpush1.msra.mxu0 0.0
        %2548 = vmatprep.subr.mxu0 0.0
        %2549 = vmatpush1.msra.mxu0 0.0
        %2550 = vmatprep.subr.mxu0 0.0
        %2551 = vmatpush1.msra.mxu0 0.0
        %2552 = vmatprep.subr.mxu0 0.0
        %2553 = vmatpush1.msra.mxu0 0.0
        %2554 = vmatprep.subr.mxu0 0.0
        %2555 = vmatpush1.msra.mxu0 0.0
        %2556 = vmatprep.subr.mxu0 0.0
        %2557 = vmatpush1.msra.mxu0 0.0
        %2558 = vmatprep.subr.mxu0 0.0
        %2559 = vmatpush1.msra.mxu0 0.0
        %2560 = vmatprep.subr.mxu0 0.0
        %2561 = vmatpush1.msra.mxu0 0.0
        %2562 = vmatprep.subr.mxu0 0.0
        %2563 = vmatpush1.msra.mxu0 0.0
        %2564 = vmatprep.subr.mxu0 0.0
        %2565 = vmatpush1.msra.mxu0 0.0
        %2566 = vmatprep.subr.mxu0 0.0
        %2567 = vmatpush1.msra.mxu0 0.0
        %2568 = vmatprep.subr.mxu0 0.0
        %2569 = vmatpush1.msra.mxu0 0.0
        %2570 = vmatprep.subr.mxu0 0.0
        %2571 = vmatpush1.msra.mxu0 0.0
        %2572 = vmatprep.subr.mxu0 0.0
        %2573 = vmatpush1.msra.mxu0 0.0
        %2574 = vmatprep.subr.mxu0 0.0
        %2575 = vmatpush1.msra.mxu0 0.0
        %2576 = vmatprep.subr.mxu0 0.0
        %2577 = vmatpush1.msra.mxu0 0.0
        %2578 = vmatprep.subr.mxu0 0.0
        %2579 = vmatpush1.msra.mxu0 0.0
        %2580 = vmatprep.subr.mxu0 0.0
        %2581 = vmatpush1.msra.mxu0 0.0
        %2582 = vmatprep.subr.mxu0 0.0
        %2583 = vmatpush1.msra.mxu0 0.0
        %2584 = vmatprep.subr.mxu0 0.0
        %2585 = vmatpush1.msra.mxu0 0.0
        %2586 = vmatprep.subr.mxu0 0.0
        %2587 = vmatpush1.msra.mxu0 0.0
        %2588 = vmatprep.subr.mxu0 0.0
        %2589 = vmatpush1.msra.mxu0 0.0
        %2590 = vmatprep.subr.mxu0 0.0
        %2591 = vmatpush1.msra.mxu0 0.0
        %2592 = vmatprep.subr.mxu0 0.0
        %2593 = vmatpush1.msra.mxu0 0.0
        %2594 = vmatprep.subr.mxu0 0.0
        %2595 = vmatpush1.msra.mxu0 0.0
        %2596 = vmatprep.subr.mxu0 0.0
        %2597 = vmatpush1.msra.mxu0 0.0
        %2598 = vmatprep.subr.mxu0 0.0
        %2599 = vmatpush1.msra.mxu0 0.0
        %2600 = vmatprep.subr.mxu0 0.0
        %2601 = vmatpush1.msra.mxu0 0.0
        %2602 = vmatprep.subr.mxu0 0.0
        %2603 = vmatpush1.msra.mxu0 0.0
        %2604 = vmatprep.mubr.f32.mxu0 0.0
        %2605 = vmatmul.mubr.f32.gmra.mrb[0].mxu0 %v1036
        %v2606 = vpop.f32.mrb[0].mxu0
        %v2607 = vadd.f32 0.0, %v2606
        %v2608 = vpop.f32.mrb[0].mxu0
        %2609 = vdwg.mxu0
        %v2611 = vsel %vm1038, %v616, 0
        %2613 = vmatprep.subr.mxu0 0.0
        %2614 = vmatpush1.msra.mxu0 %v2611
        %2615 = vmatprep.subr.mxu0 0.0
        %2616 = vmatpush1.msra.mxu0 0.0
        %2617 = vmatprep.subr.mxu0 0.0
        %2618 = vmatpush1.msra.mxu0 0.0
        %2619 = vmatprep.subr.mxu0 0.0
        %2620 = vmatpush1.msra.mxu0 0.0
        %2621 = vmatprep.subr.mxu0 0.0
        %2622 = vmatpush1.msra.mxu0 0.0
        %2623 = vmatprep.subr.mxu0 0.0
        %2624 = vmatpush1.msra.mxu0 0.0
        %2625 = vmatprep.subr.mxu0 0.0
        %2626 = vmatpush1.msra.mxu0 0.0
        %2627 = vmatprep.subr.mxu0 0.0
        %2628 = vmatpush1.msra.mxu0 0.0
        %2629 = vmatprep.subr.mxu0 0.0
        %2630 = vmatpush1.msra.mxu0 0.0
        %2631 = vmatprep.subr.mxu0 0.0
        %2632 = vmatpush1.msra.mxu0 0.0
        %2633 = vmatprep.subr.mxu0 0.0
        %2634 = vmatpush1.msra.mxu0 0.0
        %2635 = vmatprep.subr.mxu0 0.0
        %2636 = vmatpush1.msra.mxu0 0.0
        %2637 = vmatprep.subr.mxu0 0.0
        %2638 = vmatpush1.msra.mxu0 0.0
        %2639 = vmatprep.subr.mxu0 0.0
        %2640 = vmatpush1.msra.mxu0 0.0
        %2641 = vmatprep.subr.mxu0 0.0
        %2642 = vmatpush1.msra.mxu0 0.0
        %2643 = vmatprep.subr.mxu0 0.0
        %2644 = vmatpush1.msra.mxu0 0.0
        %2645 = vmatprep.subr.mxu0 0.0
        %2646 = vmatpush1.msra.mxu0 0.0
        %2647 = vmatprep.subr.mxu0 0.0
        %2648 = vmatpush1.msra.mxu0 0.0
        %2649 = vmatprep.subr.mxu0 0.0
        %2650 = vmatpush1.msra.mxu0 0.0
        %2651 = vmatprep.subr.mxu0 0.0
        %2652 = vmatpush1.msra.mxu0 0.0
        %2653 = vmatprep.subr.mxu0 0.0
        %2654 = vmatpush1.msra.mxu0 0.0
        %2655 = vmatprep.subr.mxu0 0.0
        %2656 = vmatpush1.msra.mxu0 0.0
        %2657 = vmatprep.subr.mxu0 0.0
        %2658 = vmatpush1.msra.mxu0 0.0
        %2659 = vmatprep.subr.mxu0 0.0
        %2660 = vmatpush1.msra.mxu0 0.0
        %2661 = vmatprep.subr.mxu0 0.0
        %2662 = vmatpush1.msra.mxu0 0.0
        %2663 = vmatprep.subr.mxu0 0.0
        %2664 = vmatpush1.msra.mxu0 0.0
        %2665 = vmatprep.subr.mxu0 0.0
        %2666 = vmatpush1.msra.mxu0 0.0
        %2667 = vmatprep.subr.mxu0 0.0
        %2668 = vmatpush1.msra.mxu0 0.0
        %2669 = vmatprep.subr.mxu0 0.0
        %2670 = vmatpush1.msra.mxu0 0.0
        %2671 = vmatprep.subr.mxu0 0.0
        %2672 = vmatpush1.msra.mxu0 0.0
        %2673 = vmatprep.subr.mxu0 0.0
        %2674 = vmatpush1.msra.mxu0 0.0
        %2675 = vmatprep.subr.mxu0 0.0
        %2676 = vmatpush1.msra.mxu0 0.0
        %2677 = vmatprep.mubr.f32.mxu0 0.0
        %2678 = vmatmul.mubr.f32.gmra.mrb[0].mxu0 %v1113
        %v2679 = vpop.f32.mrb[0].mxu0
        %v2680 = vadd.f32 0.0, %v2679
        %v2681 = vpop.f32.mrb[0].mxu0
        %2682 = vdwg.mxu0
        %v2684 = vsel %vm1038, %v617, 0
        %2686 = vmatprep.subr.mxu0 0.0
        %2687 = vmatpush1.msra.mxu0 %v2684
        %2688 = vmatprep.subr.mxu0 0.0
        %2689 = vmatpush1.msra.mxu0 0.0
        %2690 = vmatprep.subr.mxu0 0.0
        %2691 = vmatpush1.msra.mxu0 0.0
        %2692 = vmatprep.subr.mxu0 0.0
        %2693 = vmatpush1.msra.mxu0 0.0
        %2694 = vmatprep.subr.mxu0 0.0
        %2695 = vmatpush1.msra.mxu0 0.0
        %2696 = vmatprep.subr.mxu0 0.0
        %2697 = vmatpush1.msra.mxu0 0.0
        %2698 = vmatprep.subr.mxu0 0.0
        %2699 = vmatpush1.msra.mxu0 0.0
        %2700 = vmatprep.subr.mxu0 0.0
        %2701 = vmatpush1.msra.mxu0 0.0
        %2702 = vmatprep.subr.mxu0 0.0
        %2703 = vmatpush1.msra.mxu0 0.0
        %2704 = vmatprep.subr.mxu0 0.0
        %2705 = vmatpush1.msra.mxu0 0.0
        %2706 = vmatprep.subr.mxu0 0.0
        %2707 = vmatpush1.msra.mxu0 0.0
        %2708 = vmatprep.subr.mxu0 0.0
        %2709 = vmatpush1.msra.mxu0 0.0
        %2710 = vmatprep.subr.mxu0 0.0
        %2711 = vmatpush1.msra.mxu0 0.0
        %2712 = vmatprep.subr.mxu0 0.0
        %2713 = vmatpush1.msra.mxu0 0.0
        %2714 = vmatprep.subr.mxu0 0.0
        %2715 = vmatpush1.msra.mxu0 0.0
        %2716 = vmatprep.subr.mxu0 0.0
        %2717 = vmatpush1.msra.mxu0 0.0
        %2718 = vmatprep.subr.mxu0 0.0
        %2719 = vmatpush1.msra.mxu0 0.0
        %2720 = vmatprep.subr.mxu0 0.0
        %2721 = vmatpush1.msra.mxu0 0.0
        %2722 = vmatprep.subr.mxu0 0.0
        %2723 = vmatpush1.msra.mxu0 0.0
        %2724 = vmatprep.subr.mxu0 0.0
        %2725 = vmatpush1.msra.mxu0 0.0
        %2726 = vmatprep.subr.mxu0 0.0
        %2727 = vmatpush1.msra.mxu0 0.0
        %2728 = vmatprep.subr.mxu0 0.0
        %2729 = vmatpush1.msra.mxu0 0.0
        %2730 = vmatprep.subr.mxu0 0.0
        %2731 = vmatpush1.msra.mxu0 0.0
        %2732 = vmatprep.subr.mxu0 0.0
        %2733 = vmatpush1.msra.mxu0 0.0
        %2734 = vmatprep.subr.mxu0 0.0
        %2735 = vmatpush1.msra.mxu0 0.0
        %2736 = vmatprep.subr.mxu0 0.0
        %2737 = vmatpush1.msra.mxu0 0.0
        %2738 = vmatprep.subr.mxu0 0.0
        %2739 = vmatpush1.msra.mxu0 0.0
        %2740 = vmatprep.subr.mxu0 0.0
        %2741 = vmatpush1.msra.mxu0 0.0
        %2742 = vmatprep.subr.mxu0 0.0
        %2743 = vmatpush1.msra.mxu0 0.0
        %2744 = vmatprep.subr.mxu0 0.0
        %2745 = vmatpush1.msra.mxu0 0.0
        %2746 = vmatprep.subr.mxu0 0.0
        %2747 = vmatpush1.msra.mxu0 0.0
        %2748 = vmatprep.subr.mxu0 0.0
        %2749 = vmatpush1.msra.mxu0 0.0
        %2750 = vmatprep.mubr.f32.mxu0 0.0
        %2751 = vmatmul.mubr.f32.gmra.mrb[0].mxu0 %v1189
        %v2752 = vpop.f32.mrb[0].mxu0
        %v2753 = vadd.f32 0.0, %v2752
        %v2754 = vpop.f32.mrb[0].mxu0
        %2755 = vdwg.mxu0
        %v2757 = vsel %vm1038, %v618, 0
        %2759 = vmatprep.subr.mxu0 0.0
        %2760 = vmatpush1.msra.mxu0 %v2757
        %2761 = vmatprep.subr.mxu0 0.0
        %2762 = vmatpush1.msra.mxu0 0.0
        %2763 = vmatprep.subr.mxu0 0.0
        %2764 = vmatpush1.msra.mxu0 0.0
        %2765 = vmatprep.subr.mxu0 0.0
        %2766 = vmatpush1.msra.mxu0 0.0
        %2767 = vmatprep.subr.mxu0 0.0
        %2768 = vmatpush1.msra.mxu0 0.0
        %2769 = vmatprep.subr.mxu0 0.0
        %2770 = vmatpush1.msra.mxu0 0.0
        %2771 = vmatprep.subr.mxu0 0.0
        %2772 = vmatpush1.msra.mxu0 0.0
        %2773 = vmatprep.subr.mxu0 0.0
        %2774 = vmatpush1.msra.mxu0 0.0
        %2775 = vmatprep.subr.mxu0 0.0
        %2776 = vmatpush1.msra.mxu0 0.0
        %2777 = vmatprep.subr.mxu0 0.0
        %2778 = vmatpush1.msra.mxu0 0.0
        %2779 = vmatprep.subr.mxu0 0.0
        %2780 = vmatpush1.msra.mxu0 0.0
        %2781 = vmatprep.subr.mxu0 0.0
        %2782 = vmatpush1.msra.mxu0 0.0
        %2783 = vmatprep.subr.mxu0 0.0
        %2784 = vmatpush1.msra.mxu0 0.0
        %2785 = vmatprep.subr.mxu0 0.0
        %2786 = vmatpush1.msra.mxu0 0.0
        %2787 = vmatprep.subr.mxu0 0.0
        %2788 = vmatpush1.msra.mxu0 0.0
        %2789 = vmatprep.subr.mxu0 0.0
        %2790 = vmatpush1.msra.mxu0 0.0
        %2791 = vmatprep.subr.mxu0 0.0
        %2792 = vmatpush1.msra.mxu0 0.0
        %2793 = vmatprep.subr.mxu0 0.0
        %2794 = vmatpush1.msra.mxu0 0.0
        %2795 = vmatprep.subr.mxu0 0.0
        %2796 = vmatpush1.msra.mxu0 0.0
        %2797 = vmatprep.subr.mxu0 0.0
        %2798 = vmatpush1.msra.mxu0 0.0
        %2799 = vmatprep.subr.mxu0 0.0
        %2800 = vmatpush1.msra.mxu0 0.0
        %2801 = vmatprep.subr.mxu0 0.0
        %2802 = vmatpush1.msra.mxu0 0.0
        %2803 = vmatprep.subr.mxu0 0.0
        %2804 = vmatpush1.msra.mxu0 0.0
        %2805 = vmatprep.subr.mxu0 0.0
        %2806 = vmatpush1.msra.mxu0 0.0
        %2807 = vmatprep.subr.mxu0 0.0
        %2808 = vmatpush1.msra.mxu0 0.0
        %2809 = vmatprep.subr.mxu0 0.0
        %2810 = vmatpush1.msra.mxu0 0.0
        %2811 = vmatprep.subr.mxu0 0.0
        %2812 = vmatpush1.msra.mxu0 0.0
        %2813 = vmatprep.subr.mxu0 0.0
        %2814 = vmatpush1.msra.mxu0 0.0
        %2815 = vmatprep.subr.mxu0 0.0
        %2816 = vmatpush1.msra.mxu0 0.0
        %2817 = vmatprep.subr.mxu0 0.0
        %2818 = vmatpush1.msra.mxu0 0.0
        %2819 = vmatprep.subr.mxu0 0.0
        %2820 = vmatpush1.msra.mxu0 0.0
        %2821 = vmatprep.subr.mxu0 0.0
        %2822 = vmatpush1.msra.mxu0 0.0
        %2823 = vmatprep.mubr.f32.mxu0 0.0
        %2824 = vmatmul.mubr.f32.gmra.mrb[0].mxu0 %v1265
        %v2825 = vpop.f32.mrb[0].mxu0
        %v2826 = vadd.f32 0.0, %v2825
        %v2827 = vpop.f32.mrb[0].mxu0
        %2828 = vdwg.mxu0
        %v2830 = vsel %vm1038, %v619, 0
        %2832 = vmatprep.subr.mxu0 0.0
        %2833 = vmatpush1.msra.mxu0 %v2830
        %2834 = vmatprep.subr.mxu0 0.0
        %2835 = vmatpush1.msra.mxu0 0.0
        %2836 = vmatprep.subr.mxu0 0.0
        %2837 = vmatpush1.msra.mxu0 0.0
        %2838 = vmatprep.subr.mxu0 0.0
        %2839 = vmatpush1.msra.mxu0 0.0
        %2840 = vmatprep.subr.mxu0 0.0
        %2841 = vmatpush1.msra.mxu0 0.0
        %2842 = vmatprep.subr.mxu0 0.0
        %2843 = vmatpush1.msra.mxu0 0.0
        %2844 = vmatprep.subr.mxu0 0.0
        %2845 = vmatpush1.msra.mxu0 0.0
        %2846 = vmatprep.subr.mxu0 0.0
        %2847 = vmatpush1.msra.mxu0 0.0
        %2848 = vmatprep.subr.mxu0 0.0
        %2849 = vmatpush1.msra.mxu0 0.0
        %2850 = vmatprep.subr.mxu0 0.0
        %2851 = vmatpush1.msra.mxu0 0.0
        %2852 = vmatprep.subr.mxu0 0.0
        %2853 = vmatpush1.msra.mxu0 0.0
        %2854 = vmatprep.subr.mxu0 0.0
        %2855 = vmatpush1.msra.mxu0 0.0
        %2856 = vmatprep.subr.mxu0 0.0
        %2857 = vmatpush1.msra.mxu0 0.0
        %2858 = vmatprep.subr.mxu0 0.0
        %2859 = vmatpush1.msra.mxu0 0.0
        %2860 = vmatprep.subr.mxu0 0.0
        %2861 = vmatpush1.msra.mxu0 0.0
        %2862 = vmatprep.subr.mxu0 0.0
        %2863 = vmatpush1.msra.mxu0 0.0
        %2864 = vmatprep.subr.mxu0 0.0
        %2865 = vmatpush1.msra.mxu0 0.0
        %2866 = vmatprep.subr.mxu0 0.0
        %2867 = vmatpush1.msra.mxu0 0.0
        %2868 = vmatprep.subr.mxu0 0.0
        %2869 = vmatpush1.msra.mxu0 0.0
        %2870 = vmatprep.subr.mxu0 0.0
        %2871 = vmatpush1.msra.mxu0 0.0
        %2872 = vmatprep.subr.mxu0 0.0
        %2873 = vmatpush1.msra.mxu0 0.0
        %2874 = vmatprep.subr.mxu0 0.0
        %2875 = vmatpush1.msra.mxu0 0.0
        %2876 = vmatprep.subr.mxu0 0.0
        %2877 = vmatpush1.msra.mxu0 0.0
        %2878 = vmatprep.subr.mxu0 0.0
        %2879 = vmatpush1.msra.mxu0 0.0
        %2880 = vmatprep.subr.mxu0 0.0
        %2881 = vmatpush1.msra.mxu0 0.0
        %2882 = vmatprep.subr.mxu0 0.0
        %2883 = vmatpush1.msra.mxu0 0.0
        %2884 = vmatprep.subr.mxu0 0.0
        %2885 = vmatpush1.msra.mxu0 0.0
        %2886 = vmatprep.subr.mxu0 0.0
        %2887 = vmatpush1.msra.mxu0 0.0
        %2888 = vmatprep.subr.mxu0 0.0
        %2889 = vmatpush1.msra.mxu0 0.0
        %2890 = vmatprep.subr.mxu0 0.0
        %2891 = vmatpush1.msra.mxu0 0.0
        %2892 = vmatprep.subr.mxu0 0.0
        %2893 = vmatpush1.msra.mxu0 0.0
        %2894 = vmatprep.subr.mxu0 0.0
        %2895 = vmatpush1.msra.mxu0 0.0
        %2896 = vmatprep.mubr.f32.mxu0 0.0
        %2897 = vmatmul.mubr.f32.gmra.mrb[0].mxu0 %v1341
        %v2898 = vpop.f32.mrb[0].mxu0
        %v2899 = vadd.f32 0.0, %v2898
        %v2900 = vpop.f32.mrb[0].mxu0
        %2901 = vdwg.mxu0
        %v2903 = vsel %vm1038, %v620, 0
        %2905 = vmatprep.subr.mxu0 0.0
        %2906 = vmatpush1.msra.mxu0 %v2903
        %2907 = vmatprep.subr.mxu0 0.0
        %2908 = vmatpush1.msra.mxu0 0.0
        %2909 = vmatprep.subr.mxu0 0.0
        %2910 = vmatpush1.msra.mxu0 0.0
        %2911 = vmatprep.subr.mxu0 0.0
        %2912 = vmatpush1.msra.mxu0 0.0
        %2913 = vmatprep.subr.mxu0 0.0
        %2914 = vmatpush1.msra.mxu0 0.0
        %2915 = vmatprep.subr.mxu0 0.0
        %2916 = vmatpush1.msra.mxu0 0.0
        %2917 = vmatprep.subr.mxu0 0.0
        %2918 = vmatpush1.msra.mxu0 0.0
        %2919 = vmatprep.subr.mxu0 0.0
        %2920 = vmatpush1.msra.mxu0 0.0
        %2921 = vmatprep.subr.mxu0 0.0
        %2922 = vmatpush1.msra.mxu0 0.0
        %2923 = vmatprep.subr.mxu0 0.0
        %2924 = vmatpush1.msra.mxu0 0.0
        %2925 = vmatprep.subr.mxu0 0.0
        %2926 = vmatpush1.msra.mxu0 0.0
        %2927 = vmatprep.subr.mxu0 0.0
        %2928 = vmatpush1.msra.mxu0 0.0
        %2929 = vmatprep.subr.mxu0 0.0
        %2930 = vmatpush1.msra.mxu0 0.0
        %2931 = vmatprep.subr.mxu0 0.0
        %2932 = vmatpush1.msra.mxu0 0.0
        %2933 = vmatprep.subr.mxu0 0.0
        %2934 = vmatpush1.msra.mxu0 0.0
        %2935 = vmatprep.subr.mxu0 0.0
        %2936 = vmatpush1.msra.mxu0 0.0
        %2937 = vmatprep.subr.mxu0 0.0
        %2938 = vmatpush1.msra.mxu0 0.0
        %2939 = vmatprep.subr.mxu0 0.0
        %2940 = vmatpush1.msra.mxu0 0.0
        %2941 = vmatprep.subr.mxu0 0.0
        %2942 = vmatpush1.msra.mxu0 0.0
        %2943 = vmatprep.subr.mxu0 0.0
        %2944 = vmatpush1.msra.mxu0 0.0
        %2945 = vmatprep.subr.mxu0 0.0
        %2946 = vmatpush1.msra.mxu0 0.0
        %2947 = vmatprep.subr.mxu0 0.0
        %2948 = vmatpush1.msra.mxu0 0.0
        %2949 = vmatprep.subr.mxu0 0.0
        %2950 = vmatpush1.msra.mxu0 0.0
        %2951 = vmatprep.subr.mxu0 0.0
        %2952 = vmatpush1.msra.mxu0 0.0
        %2953 = vmatprep.subr.mxu0 0.0
        %2954 = vmatpush1.msra.mxu0 0.0
        %2955 = vmatprep.subr.mxu0 0.0
        %2956 = vmatpush1.msra.mxu0 0.0
        %2957 = vmatprep.subr.mxu0 0.0
        %2958 = vmatpush1.msra.mxu0 0.0
        %2959 = vmatprep.subr.mxu0 0.0
        %2960 = vmatpush1.msra.mxu0 0.0
        %2961 = vmatprep.subr.mxu0 0.0
        %2962 = vmatpush1.msra.mxu0 0.0
        %2963 = vmatprep.subr.mxu0 0.0
        %2964 = vmatpush1.msra.mxu0 0.0
        %2965 = vmatprep.subr.mxu0 0.0
        %2966 = vmatpush1.msra.mxu0 0.0
        %2967 = vmatprep.subr.mxu0 0.0
        %2968 = vmatpush1.msra.mxu0 0.0
        %2969 = vmatprep.mubr.f32.mxu0 0.0
        %2970 = vmatmul.mubr.f32.gmra.mrb[0].mxu0 %v1417
        %v2971 = vpop.f32.mrb[0].mxu0
        %v2972 = vadd.f32 0.0, %v2971
        %v2973 = vpop.f32.mrb[0].mxu0
        %2974 = vdwg.mxu0
        %v2976 = vsel %vm1038, %v621, 0
        %2978 = vmatprep.subr.mxu0 0.0
        %2979 = vmatpush1.msra.mxu0 %v2976
        %2980 = vmatprep.subr.mxu0 0.0
        %2981 = vmatpush1.msra.mxu0 0.0
        %2982 = vmatprep.subr.mxu0 0.0
        %2983 = vmatpush1.msra.mxu0 0.0
        %2984 = vmatprep.subr.mxu0 0.0
        %2985 = vmatpush1.msra.mxu0 0.0
        %2986 = vmatprep.subr.mxu0 0.0
        %2987 = vmatpush1.msra.mxu0 0.0
        %2988 = vmatprep.subr.mxu0 0.0
        %2989 = vmatpush1.msra.mxu0 0.0
        %2990 = vmatprep.subr.mxu0 0.0
        %2991 = vmatpush1.msra.mxu0 0.0
        %2992 = vmatprep.subr.mxu0 0.0
        %2993 = vmatpush1.msra.mxu0 0.0
        %2994 = vmatprep.subr.mxu0 0.0
        %2995 = vmatpush1.msra.mxu0 0.0
        %2996 = vmatprep.subr.mxu0 0.0
        %2997 = vmatpush1.msra.mxu0 0.0
        %2998 = vmatprep.subr.mxu0 0.0
        %2999 = vmatpush1.msra.mxu0 0.0
        %3000 = vmatprep.subr.mxu0 0.0
        %3001 = vmatpush1.msra.mxu0 0.0
        %3002 = vmatprep.subr.mxu0 0.0
        %3003 = vmatpush1.msra.mxu0 0.0
        %3004 = vmatprep.subr.mxu0 0.0
        %3005 = vmatpush1.msra.mxu0 0.0
        %3006 = vmatprep.subr.mxu0 0.0
        %3007 = vmatpush1.msra.mxu0 0.0
        %3008 = vmatprep.subr.mxu0 0.0
        %3009 = vmatpush1.msra.mxu0 0.0
        %3010 = vmatprep.subr.mxu0 0.0
        %3011 = vmatpush1.msra.mxu0 0.0
        %3012 = vmatprep.subr.mxu0 0.0
        %3013 = vmatpush1.msra.mxu0 0.0
        %3014 = vmatprep.subr.mxu0 0.0
        %3015 = vmatpush1.msra.mxu0 0.0
        %3016 = vmatprep.subr.mxu0 0.0
        %3017 = vmatpush1.msra.mxu0 0.0
        %3018 = vmatprep.subr.mxu0 0.0
        %3019 = vmatpush1.msra.mxu0 0.0
        %3020 = vmatprep.subr.mxu0 0.0
        %3021 = vmatpush1.msra.mxu0 0.0
        %3022 = vmatprep.subr.mxu0 0.0
        %3023 = vmatpush1.msra.mxu0 0.0
        %3024 = vmatprep.subr.mxu0 0.0
        %3025 = vmatpush1.msra.mxu0 0.0
        %3026 = vmatprep.subr.mxu0 0.0
        %3027 = vmatpush1.msra.mxu0 0.0
        %3028 = vmatprep.subr.mxu0 0.0
        %3029 = vmatpush1.msra.mxu0 0.0
        %3030 = vmatprep.subr.mxu0 0.0
        %3031 = vmatpush1.msra.mxu0 0.0
        %3032 = vmatprep.subr.mxu0 0.0
        %3033 = vmatpush1.msra.mxu0 0.0
        %3034 = vmatprep.subr.mxu0 0.0
        %3035 = vmatpush1.msra.mxu0 0.0
        %3036 = vmatprep.subr.mxu0 0.0
        %3037 = vmatpush1.msra.mxu0 0.0
        %3038 = vmatprep.subr.mxu0 0.0
        %3039 = vmatpush1.msra.mxu0 0.0
        %3040 = vmatprep.subr.mxu0 0.0
        %3041 = vmatpush1.msra.mxu0 0.0
        %3042 = vmatprep.mubr.f32.mxu0 0.0
        %3043 = vmatmul.mubr.f32.gmra.mrb[0].mxu0 %v1493
        %v3044 = vpop.f32.mrb[0].mxu0
        %v3045 = vadd.f32 0.0, %v3044
        %v3046 = vpop.f32.mrb[0].mxu0
        %3047 = vdwg.mxu0
        %v3049 = vsel %vm1038, %v622, 0
        %3051 = vmatprep.subr.mxu0 0.0
        %3052 = vmatpush1.msra.mxu0 %v3049
        %3053 = vmatprep.subr.mxu0 0.0
        %3054 = vmatpush1.msra.mxu0 0.0
        %3055 = vmatprep.subr.mxu0 0.0
        %3056 = vmatpush1.msra.mxu0 0.0
        %3057 = vmatprep.subr.mxu0 0.0
        %3058 = vmatpush1.msra.mxu0 0.0
        %3059 = vmatprep.subr.mxu0 0.0
        %3060 = vmatpush1.msra.mxu0 0.0
        %3061 = vmatprep.subr.mxu0 0.0
        %3062 = vmatpush1.msra.mxu0 0.0
        %3063 = vmatprep.subr.mxu0 0.0
        %3064 = vmatpush1.msra.mxu0 0.0
        %3065 = vmatprep.subr.mxu0 0.0
        %3066 = vmatpush1.msra.mxu0 0.0
        %3067 = vmatprep.subr.mxu0 0.0
        %3068 = vmatpush1.msra.mxu0 0.0
        %3069 = vmatprep.subr.mxu0 0.0
        %3070 = vmatpush1.msra.mxu0 0.0
        %3071 = vmatprep.subr.mxu0 0.0
        %3072 = vmatpush1.msra.mxu0 0.0
        %3073 = vmatprep.subr.mxu0 0.0
        %3074 = vmatpush1.msra.mxu0 0.0
        %3075 = vmatprep.subr.mxu0 0.0
        %3076 = vmatpush1.msra.mxu0 0.0
        %3077 = vmatprep.subr.mxu0 0.0
        %3078 = vmatpush1.msra.mxu0 0.0
        %3079 = vmatprep.subr.mxu0 0.0
        %3080 = vmatpush1.msra.mxu0 0.0
        %3081 = vmatprep.subr.mxu0 0.0
        %3082 = vmatpush1.msra.mxu0 0.0
        %3083 = vmatprep.subr.mxu0 0.0
        %3084 = vmatpush1.msra.mxu0 0.0
        %3085 = vmatprep.subr.mxu0 0.0
        %3086 = vmatpush1.msra.mxu0 0.0
        %3087 = vmatprep.subr.mxu0 0.0
        %3088 = vmatpush1.msra.mxu0 0.0
        %3089 = vmatprep.subr.mxu0 0.0
        %3090 = vmatpush1.msra.mxu0 0.0
        %3091 = vmatprep.subr.mxu0 0.0
        %3092 = vmatpush1.msra.mxu0 0.0
        %3093 = vmatprep.subr.mxu0 0.0
        %3094 = vmatpush1.msra.mxu0 0.0
        %3095 = vmatprep.subr.mxu0 0.0
        %3096 = vmatpush1.msra.mxu0 0.0
        %3097 = vmatprep.subr.mxu0 0.0
        %3098 = vmatpush1.msra.mxu0 0.0
        %3099 = vmatprep.subr.mxu0 0.0
        %3100 = vmatpush1.msra.mxu0 0.0
        %3101 = vmatprep.subr.mxu0 0.0
        %3102 = vmatpush1.msra.mxu0 0.0
        %3103 = vmatprep.subr.mxu0 0.0
        %3104 = vmatpush1.msra.mxu0 0.0
        %3105 = vmatprep.subr.mxu0 0.0
        %3106 = vmatpush1.msra.mxu0 0.0
        %3107 = vmatprep.subr.mxu0 0.0
        %3108 = vmatpush1.msra.mxu0 0.0
        %3109 = vmatprep.subr.mxu0 0.0
        %3110 = vmatpush1.msra.mxu0 0.0
        %3111 = vmatprep.subr.mxu0 0.0
        %3112 = vmatpush1.msra.mxu0 0.0
        %3113 = vmatprep.subr.mxu0 0.0
        %3114 = vmatpush1.msra.mxu0 0.0
        %3115 = vmatprep.mubr.f32.mxu0 0.0
        %3116 = vmatmul.mubr.f32.gmra.mrb[0].mxu0 %v1569
        %v3117 = vpop.f32.mrb[0].mxu0
        %v3118 = vadd.f32 0.0, %v3117
        %v3119 = vpop.f32.mrb[0].mxu0
        %3120 = vdwg.mxu0
        %v3121 = vcombine.low %v2607, %v2753
        %v3123 = vunpack.c.l.s4 1983009808
        %v3124 = vunpack.c.0.s8 %v3123
        %v3125 = vlaneseq
        %v3126 = vshrl.u32 %v3125, 7
        %v3127 = vsub.s32 %v3124, %v3126
        %v3128 = vrot.slane %v3121, %v3127
        %v3129 = vcombine.low %v2680, %v2826
        %v3131 = vunpack.c.l.s4 1983009808
        %v3132 = vunpack.c.0.s8 %v3131
        %v3133 = vlaneseq
        %v3134 = vshrl.u32 %v3133, 7
        %v3135 = vsub.s32 %v3132, %v3134
        %v3136 = vrot.slane %v3129, %v3135
        %v3137 = vcombine.low %v2899, %v3045
        %v3139 = vunpack.c.l.s4 1983009808
        %v3140 = vunpack.c.0.s8 %v3139
        %v3141 = vlaneseq
        %v3142 = vshrl.u32 %v3141, 7
        %v3143 = vsub.s32 %v3140, %v3142
        %v3144 = vrot.slane %v3137, %v3143
        %v3145 = vcombine.low %v2972, %v3118
        %v3147 = vunpack.c.l.s4 1983009808
        %v3148 = vunpack.c.0.s8 %v3147
        %v3149 = vlaneseq
        %v3150 = vshrl.u32 %v3149, 7
        %v3151 = vsub.s32 %v3148, %v3150
        %v3152 = vrot.slane %v3145, %v3151
        %v3153 = vcombine.low %v3128, %v3136
        %v3155 = vunpack.c.l.s4 1934713408
        %v3156 = vunpack.c.0.s8 %v3155
        %v3157 = vlaneseq
        %v3158 = vshrl.u32 %v3157, 7
        %v3159 = vsub.s32 %v3156, %v3158
        %v3160 = vrot.slane %v3153, %v3159
        %v3161 = vcombine.low %v3144, %v3152
        %v3163 = vunpack.c.l.s4 1934713408
        %v3164 = vunpack.c.0.s8 %v3163
        %v3165 = vlaneseq
        %v3166 = vshrl.u32 %v3165, 7
        %v3167 = vsub.s32 %v3164, %v3166
        %v3168 = vrot.slane %v3161, %v3167
        %v3169 = vcombine.low %v3160, %v3168
        %v3170 = vcombine.high %v2536, 0.0
        %v3172 = vunpack.c.l.s4 1983009808
        %v3173 = vunpack.c.0.s8 %v3172
        %v3174 = vlaneseq
        %v3175 = vshrl.u32 %v3174, 7
        %v3176 = vsub.s32 %v3173, %v3175
        %v3177 = vrot.slane %v2536, %v3176
        %v3179 = vunpack.c.l.s4 1983009808
        %v3180 = vunpack.c.0.s8 %v3179
        %v3181 = vlaneseq
        %v3182 = vshrl.u32 %v3181, 7
        %v3183 = vsub.s32 %v3180, %v3182
        %v3184 = vrot.slane %v3170, %v3183
        %v3185 = vcombine.high %v3177, 0.0
        %v3187 = vunpack.c.l.s4 1934713408
        %v3188 = vunpack.c.0.s8 %v3187
        %v3189 = vlaneseq
        %v3190 = vshrl.u32 %v3189, 7
        %v3191 = vsub.s32 %v3188, %v3190
        %v3192 = vrot.slane %v3177, %v3191
        %v3194 = vunpack.c.l.s4 1934713408
        %v3195 = vunpack.c.0.s8 %v3194
        %v3196 = vlaneseq
        %v3197 = vshrl.u32 %v3196, 7
        %v3198 = vsub.s32 %v3195, %v3197
        %v3199 = vrot.slane %v3185, %v3198
        %v3200 = vcombine.high %v3184, 0.0
        %v3202 = vunpack.c.l.s4 1934713408
        %v3203 = vunpack.c.0.s8 %v3202
        %v3204 = vlaneseq
        %v3205 = vshrl.u32 %v3204, 7
        %v3206 = vsub.s32 %v3203, %v3205
        %v3207 = vrot.slane %v3184, %v3206
        %v3209 = vunpack.c.l.s4 1934713408
        %v3210 = vunpack.c.0.s8 %v3209
        %v3211 = vlaneseq
        %v3212 = vshrl.u32 %v3211, 7
        %v3213 = vsub.s32 %v3210, %v3212
        %v3214 = vrot.slane %v3200, %v3213
        %v3215 = vcombine.high %v3192, 0.0
        %v3216 = vcombine.high %v3199, 0.0
        %v3217 = vcombine.high %v3207, 0.0
        %v3218 = vcombine.high %v3214, 0.0
        %v3220 = vsel %vm1742, %v3192, 0
        %3222 = vmatprep.subr.mxu0 0.0
        %3223 = vmatpush1.msra.mxu0 %v623
        %3224 = vmatprep.subr.mxu0 0.0
        %3225 = vmatpush1.msra.mxu0 %v624
        %3226 = vmatprep.subr.mxu0 0.0
        %3227 = vmatpush1.msra.mxu0 %v625
        %3228 = vmatprep.subr.mxu0 0.0
        %3229 = vmatpush1.msra.mxu0 %v626
        %3230 = vmatprep.subr.mxu0 0.0
        %3231 = vmatpush1.msra.mxu0 %v627
        %3232 = vmatprep.subr.mxu0 0.0
        %3233 = vmatpush1.msra.mxu0 %v628
        %3234 = vmatprep.subr.mxu0 0.0
        %3235 = vmatpush1.msra.mxu0 0.0
        %3236 = vmatprep.subr.mxu0 0.0
        %3237 = vmatpush1.msra.mxu0 0.0
        %3238 = vmatprep.subr.mxu0 0.0
        %3239 = vmatpush1.msra.mxu0 0.0
        %3240 = vmatprep.subr.mxu0 0.0
        %3241 = vmatpush1.msra.mxu0 0.0
        %3242 = vmatprep.subr.mxu0 0.0
        %3243 = vmatpush1.msra.mxu0 0.0
        %3244 = vmatprep.subr.mxu0 0.0
        %3245 = vmatpush1.msra.mxu0 0.0
        %3246 = vmatprep.subr.mxu0 0.0
        %3247 = vmatpush1.msra.mxu0 0.0
        %3248 = vmatprep.subr.mxu0 0.0
        %3249 = vmatpush1.msra.mxu0 0.0
        %3250 = vmatprep.subr.mxu0 0.0
        %3251 = vmatpush1.msra.mxu0 0.0
        %3252 = vmatprep.subr.mxu0 0.0
        %3253 = vmatpush1.msra.mxu0 0.0
        %3254 = vmatprep.subr.mxu0 0.0
        %3255 = vmatpush1.msra.mxu0 0.0
        %3256 = vmatprep.subr.mxu0 0.0
        %3257 = vmatpush1.msra.mxu0 0.0
        %3258 = vmatprep.subr.mxu0 0.0
        %3259 = vmatpush1.msra.mxu0 0.0
        %3260 = vmatprep.subr.mxu0 0.0
        %3261 = vmatpush1.msra.mxu0 0.0
        %3262 = vmatprep.subr.mxu0 0.0
        %3263 = vmatpush1.msra.mxu0 0.0
        %3264 = vmatprep.subr.mxu0 0.0
        %3265 = vmatpush1.msra.mxu0 0.0
        %3266 = vmatprep.subr.mxu0 0.0
        %3267 = vmatpush1.msra.mxu0 0.0
        %3268 = vmatprep.subr.mxu0 0.0
        %3269 = vmatpush1.msra.mxu0 0.0
        %3270 = vmatprep.subr.mxu0 0.0
        %3271 = vmatpush1.msra.mxu0 0.0
        %3272 = vmatprep.subr.mxu0 0.0
        %3273 = vmatpush1.msra.mxu0 0.0
        %3274 = vmatprep.subr.mxu0 0.0
        %3275 = vmatpush1.msra.mxu0 0.0
        %3276 = vmatprep.subr.mxu0 0.0
        %3277 = vmatpush1.msra.mxu0 0.0
        %3278 = vmatprep.subr.mxu0 0.0
        %3279 = vmatpush1.msra.mxu0 0.0
        %3280 = vmatprep.subr.mxu0 0.0
        %3281 = vmatpush1.msra.mxu0 0.0
        %3282 = vmatprep.subr.mxu0 0.0
        %3283 = vmatpush1.msra.mxu0 0.0
        %3284 = vmatprep.subr.mxu0 0.0
        %3285 = vmatpush1.msra.mxu0 0.0
        %3286 = vmatprep.mubr.f32.mxu0 0.0
        %3287 = vmatmul.mubr.f32.gmra.mrb[0].mxu0 %v3220
        %v3288 = vpop.f32.mrb[0].mxu0
        %v3289 = vadd.f32 0.0, %v3288
        %v3290 = vpop.f32.mrb[0].mxu0
        %3291 = vdwg.mxu0
        %v3293 = vsel %vm1742, %v3215, 0
        %3295 = vmatprep.subr.mxu0 0.0
        %3296 = vmatpush1.msra.mxu0 %v629
        %3297 = vmatprep.subr.mxu0 0.0
        %3298 = vmatpush1.msra.mxu0 %v630
        %3299 = vmatprep.subr.mxu0 0.0
        %3300 = vmatpush1.msra.mxu0 %v631
        %3301 = vmatprep.subr.mxu0 0.0
        %3302 = vmatpush1.msra.mxu0 %v632
        %3303 = vmatprep.subr.mxu0 0.0
        %3304 = vmatpush1.msra.mxu0 %v633
        %3305 = vmatprep.subr.mxu0 0.0
        %3306 = vmatpush1.msra.mxu0 %v634
        %3307 = vmatprep.subr.mxu0 0.0
        %3308 = vmatpush1.msra.mxu0 0.0
        %3309 = vmatprep.subr.mxu0 0.0
        %3310 = vmatpush1.msra.mxu0 0.0
        %3311 = vmatprep.subr.mxu0 0.0
        %3312 = vmatpush1.msra.mxu0 0.0
        %3313 = vmatprep.subr.mxu0 0.0
        %3314 = vmatpush1.msra.mxu0 0.0
        %3315 = vmatprep.subr.mxu0 0.0
        %3316 = vmatpush1.msra.mxu0 0.0
        %3317 = vmatprep.subr.mxu0 0.0
        %3318 = vmatpush1.msra.mxu0 0.0
        %3319 = vmatprep.subr.mxu0 0.0
        %3320 = vmatpush1.msra.mxu0 0.0
        %3321 = vmatprep.subr.mxu0 0.0
        %3322 = vmatpush1.msra.mxu0 0.0
        %3323 = vmatprep.subr.mxu0 0.0
        %3324 = vmatpush1.msra.mxu0 0.0
        %3325 = vmatprep.subr.mxu0 0.0
        %3326 = vmatpush1.msra.mxu0 0.0
        %3327 = vmatprep.subr.mxu0 0.0
        %3328 = vmatpush1.msra.mxu0 0.0
        %3329 = vmatprep.subr.mxu0 0.0
        %3330 = vmatpush1.msra.mxu0 0.0
        %3331 = vmatprep.subr.mxu0 0.0
        %3332 = vmatpush1.msra.mxu0 0.0
        %3333 = vmatprep.subr.mxu0 0.0
        %3334 = vmatpush1.msra.mxu0 0.0
        %3335 = vmatprep.subr.mxu0 0.0
        %3336 = vmatpush1.msra.mxu0 0.0
        %3337 = vmatprep.subr.mxu0 0.0
        %3338 = vmatpush1.msra.mxu0 0.0
        %3339 = vmatprep.subr.mxu0 0.0
        %3340 = vmatpush1.msra.mxu0 0.0
        %3341 = vmatprep.subr.mxu0 0.0
        %3342 = vmatpush1.msra.mxu0 0.0
        %3343 = vmatprep.subr.mxu0 0.0
        %3344 = vmatpush1.msra.mxu0 0.0
        %3345 = vmatprep.subr.mxu0 0.0
        %3346 = vmatpush1.msra.mxu0 0.0
        %3347 = vmatprep.subr.mxu0 0.0
        %3348 = vmatpush1.msra.mxu0 0.0
        %3349 = vmatprep.subr.mxu0 0.0
        %3350 = vmatpush1.msra.mxu0 0.0
        %3351 = vmatprep.subr.mxu0 0.0
        %3352 = vmatpush1.msra.mxu0 0.0
        %3353 = vmatprep.subr.mxu0 0.0
        %3354 = vmatpush1.msra.mxu0 0.0
        %3355 = vmatprep.subr.mxu0 0.0
        %3356 = vmatpush1.msra.mxu0 0.0
        %3357 = vmatprep.subr.mxu0 0.0
        %3358 = vmatpush1.msra.mxu0 0.0
        %3359 = vmatprep.mubr.f32.mxu0 0.0
        %3360 = vmatmul.mubr.f32.gmra.mrb[0].mxu0 %v3293
        %v3361 = vpop.f32.mrb[0].mxu0
        %v3362 = vadd.f32 0.0, %v3361
        %v3363 = vpop.f32.mrb[0].mxu0
        %3364 = vdwg.mxu0
        %v3366 = vsel %vm1742, %v3199, 0
        %3368 = vmatprep.subr.mxu0 0.0
        %3369 = vmatpush1.msra.mxu0 %v635
        %3370 = vmatprep.subr.mxu0 0.0
        %3371 = vmatpush1.msra.mxu0 %v636
        %3372 = vmatprep.subr.mxu0 0.0
        %3373 = vmatpush1.msra.mxu0 %v637
        %3374 = vmatprep.subr.mxu0 0.0
        %3375 = vmatpush1.msra.mxu0 %v638
        %3376 = vmatprep.subr.mxu0 0.0
        %3377 = vmatpush1.msra.mxu0 %v639
        %3378 = vmatprep.subr.mxu0 0.0
        %3379 = vmatpush1.msra.mxu0 %v640
        %3380 = vmatprep.subr.mxu0 0.0
        %3381 = vmatpush1.msra.mxu0 0.0
        %3382 = vmatprep.subr.mxu0 0.0
        %3383 = vmatpush1.msra.mxu0 0.0
        %3384 = vmatprep.subr.mxu0 0.0
        %3385 = vmatpush1.msra.mxu0 0.0
        %3386 = vmatprep.subr.mxu0 0.0
        %3387 = vmatpush1.msra.mxu0 0.0
        %3388 = vmatprep.subr.mxu0 0.0
        %3389 = vmatpush1.msra.mxu0 0.0
        %3390 = vmatprep.subr.mxu0 0.0
        %3391 = vmatpush1.msra.mxu0 0.0
        %3392 = vmatprep.subr.mxu0 0.0
        %3393 = vmatpush1.msra.mxu0 0.0
        %3394 = vmatprep.subr.mxu0 0.0
        %3395 = vmatpush1.msra.mxu0 0.0
        %3396 = vmatprep.subr.mxu0 0.0
        %3397 = vmatpush1.msra.mxu0 0.0
        %3398 = vmatprep.subr.mxu0 0.0
        %3399 = vmatpush1.msra.mxu0 0.0
        %3400 = vmatprep.subr.mxu0 0.0
        %3401 = vmatpush1.msra.mxu0 0.0
        %3402 = vmatprep.subr.mxu0 0.0
        %3403 = vmatpush1.msra.mxu0 0.0
        %3404 = vmatprep.subr.mxu0 0.0
        %3405 = vmatpush1.msra.mxu0 0.0
        %3406 = vmatprep.subr.mxu0 0.0
        %3407 = vmatpush1.msra.mxu0 0.0
        %3408 = vmatprep.subr.mxu0 0.0
        %3409 = vmatpush1.msra.mxu0 0.0
        %3410 = vmatprep.subr.mxu0 0.0
        %3411 = vmatpush1.msra.mxu0 0.0
        %3412 = vmatprep.subr.mxu0 0.0
        %3413 = vmatpush1.msra.mxu0 0.0
        %3414 = vmatprep.subr.mxu0 0.0
        %3415 = vmatpush1.msra.mxu0 0.0
        %3416 = vmatprep.subr.mxu0 0.0
        %3417 = vmatpush1.msra.mxu0 0.0
        %3418 = vmatprep.subr.mxu0 0.0
        %3419 = vmatpush1.msra.mxu0 0.0
        %3420 = vmatprep.subr.mxu0 0.0
        %3421 = vmatpush1.msra.mxu0 0.0
        %3422 = vmatprep.subr.mxu0 0.0
        %3423 = vmatpush1.msra.mxu0 0.0
        %3424 = vmatprep.subr.mxu0 0.0
        %3425 = vmatpush1.msra.mxu0 0.0
        %3426 = vmatprep.subr.mxu0 0.0
        %3427 = vmatpush1.msra.mxu0 0.0
        %3428 = vmatprep.subr.mxu0 0.0
        %3429 = vmatpush1.msra.mxu0 0.0
        %3430 = vmatprep.subr.mxu0 0.0
        %3431 = vmatpush1.msra.mxu0 0.0
        %3432 = vmatprep.mubr.f32.mxu0 0.0
        %3433 = vmatmul.mubr.f32.gmra.mrb[0].mxu0 %v3366
        %v3434 = vpop.f32.mrb[0].mxu0
        %v3435 = vadd.f32 0.0, %v3434
        %v3436 = vpop.f32.mrb[0].mxu0
        %3437 = vdwg.mxu0
        %v3439 = vsel %vm1742, %v3216, 0
        %3441 = vmatprep.subr.mxu0 0.0
        %3442 = vmatpush1.msra.mxu0 %v641
        %3443 = vmatprep.subr.mxu0 0.0
        %3444 = vmatpush1.msra.mxu0 %v642
        %3445 = vmatprep.subr.mxu0 0.0
        %3446 = vmatpush1.msra.mxu0 %v643
        %3447 = vmatprep.subr.mxu0 0.0
        %3448 = vmatpush1.msra.mxu0 %v644
        %3449 = vmatprep.subr.mxu0 0.0
        %3450 = vmatpush1.msra.mxu0 %v645
        %3451 = vmatprep.subr.mxu0 0.0
        %3452 = vmatpush1.msra.mxu0 %v646
        %3453 = vmatprep.subr.mxu0 0.0
        %3454 = vmatpush1.msra.mxu0 0.0
        %3455 = vmatprep.subr.mxu0 0.0
        %3456 = vmatpush1.msra.mxu0 0.0
        %3457 = vmatprep.subr.mxu0 0.0
        %3458 = vmatpush1.msra.mxu0 0.0
        %3459 = vmatprep.subr.mxu0 0.0
        %3460 = vmatpush1.msra.mxu0 0.0
        %3461 = vmatprep.subr.mxu0 0.0
        %3462 = vmatpush1.msra.mxu0 0.0
        %3463 = vmatprep.subr.mxu0 0.0
        %3464 = vmatpush1.msra.mxu0 0.0
        %3465 = vmatprep.subr.mxu0 0.0
        %3466 = vmatpush1.msra.mxu0 0.0
        %3467 = vmatprep.subr.mxu0 0.0
        %3468 = vmatpush1.msra.mxu0 0.0
        %3469 = vmatprep.subr.mxu0 0.0
        %3470 = vmatpush1.msra.mxu0 0.0
        %3471 = vmatprep.subr.mxu0 0.0
        %3472 = vmatpush1.msra.mxu0 0.0
        %3473 = vmatprep.subr.mxu0 0.0
        %3474 = vmatpush1.msra.mxu0 0.0
        %3475 = vmatprep.subr.mxu0 0.0
        %3476 = vmatpush1.msra.mxu0 0.0
        %3477 = vmatprep.subr.mxu0 0.0
        %3478 = vmatpush1.msra.mxu0 0.0
        %3479 = vmatprep.subr.mxu0 0.0
        %3480 = vmatpush1.msra.mxu0 0.0
        %3481 = vmatprep.subr.mxu0 0.0
        %3482 = vmatpush1.msra.mxu0 0.0
        %3483 = vmatprep.subr.mxu0 0.0
        %3484 = vmatpush1.msra.mxu0 0.0
        %3485 = vmatprep.subr.mxu0 0.0
        %3486 = vmatpush1.msra.mxu0 0.0
        %3487 = vmatprep.subr.mxu0 0.0
        %3488 = vmatpush1.msra.mxu0 0.0
        %3489 = vmatprep.subr.mxu0 0.0
        %3490 = vmatpush1.msra.mxu0 0.0
        %3491 = vmatprep.subr.mxu0 0.0
        %3492 = vmatpush1.msra.mxu0 0.0
        %3493 = vmatprep.subr.mxu0 0.0
        %3494 = vmatpush1.msra.mxu0 0.0
        %3495 = vmatprep.subr.mxu0 0.0
        %3496 = vmatpush1.msra.mxu0 0.0
        %3497 = vmatprep.subr.mxu0 0.0
        %3498 = vmatpush1.msra.mxu0 0.0
        %3499 = vmatprep.subr.mxu0 0.0
        %3500 = vmatpush1.msra.mxu0 0.0
        %3501 = vmatprep.subr.mxu0 0.0
        %3502 = vmatpush1.msra.mxu0 0.0
        %3503 = vmatprep.subr.mxu0 0.0
        %3504 = vmatpush1.msra.mxu0 0.0
        %3505 = vmatprep.mubr.f32.mxu0 0.0
        %3506 = vmatmul.mubr.f32.gmra.mrb[0].mxu0 %v3439
        %v3507 = vpop.f32.mrb[0].mxu0
        %v3508 = vadd.f32 0.0, %v3507
        %v3509 = vpop.f32.mrb[0].mxu0
        %3510 = vdwg.mxu0
        %v3512 = vsel %vm1742, %v3207, 0
        %3514 = vmatprep.subr.mxu0 0.0
        %3515 = vmatpush1.msra.mxu0 %v647
        %3516 = vmatprep.subr.mxu0 0.0
        %3517 = vmatpush1.msra.mxu0 %v648
        %3518 = vmatprep.subr.mxu0 0.0
        %3519 = vmatpush1.msra.mxu0 %v649
        %3520 = vmatprep.subr.mxu0 0.0
        %3521 = vmatpush1.msra.mxu0 %v650
        %3522 = vmatprep.subr.mxu0 0.0
        %3523 = vmatpush1.msra.mxu0 %v651
        %3524 = vmatprep.subr.mxu0 0.0
        %3525 = vmatpush1.msra.mxu0 %v652
        %3526 = vmatprep.subr.mxu0 0.0
        %3527 = vmatpush1.msra.mxu0 0.0
        %3528 = vmatprep.subr.mxu0 0.0
        %3529 = vmatpush1.msra.mxu0 0.0
        %3530 = vmatprep.subr.mxu0 0.0
        %3531 = vmatpush1.msra.mxu0 0.0
        %3532 = vmatprep.subr.mxu0 0.0
        %3533 = vmatpush1.msra.mxu0 0.0
        %3534 = vmatprep.subr.mxu0 0.0
        %3535 = vmatpush1.msra.mxu0 0.0
        %3536 = vmatprep.subr.mxu0 0.0
        %3537 = vmatpush1.msra.mxu0 0.0
        %3538 = vmatprep.subr.mxu0 0.0
        %3539 = vmatpush1.msra.mxu0 0.0
        %3540 = vmatprep.subr.mxu0 0.0
        %3541 = vmatpush1.msra.mxu0 0.0
        %3542 = vmatprep.subr.mxu0 0.0
        %3543 = vmatpush1.msra.mxu0 0.0
        %3544 = vmatprep.subr.mxu0 0.0
        %3545 = vmatpush1.msra.mxu0 0.0
        %3546 = vmatprep.subr.mxu0 0.0
        %3547 = vmatpush1.msra.mxu0 0.0
        %3548 = vmatprep.subr.mxu0 0.0
        %3549 = vmatpush1.msra.mxu0 0.0
        %3550 = vmatprep.subr.mxu0 0.0
        %3551 = vmatpush1.msra.mxu0 0.0
        %3552 = vmatprep.subr.mxu0 0.0
        %3553 = vmatpush1.msra.mxu0 0.0
        %3554 = vmatprep.subr.mxu0 0.0
        %3555 = vmatpush1.msra.mxu0 0.0
        %3556 = vmatprep.subr.mxu0 0.0
        %3557 = vmatpush1.msra.mxu0 0.0
        %3558 = vmatprep.subr.mxu0 0.0
        %3559 = vmatpush1.msra.mxu0 0.0
        %3560 = vmatprep.subr.mxu0 0.0
        %3561 = vmatpush1.msra.mxu0 0.0
        %3562 = vmatprep.subr.mxu0 0.0
        %3563 = vmatpush1.msra.mxu0 0.0
        %3564 = vmatprep.subr.mxu0 0.0
        %3565 = vmatpush1.msra.mxu0 0.0
        %3566 = vmatprep.subr.mxu0 0.0
        %3567 = vmatpush1.msra.mxu0 0.0
        %3568 = vmatprep.subr.mxu0 0.0
        %3569 = vmatpush1.msra.mxu0 0.0
        %3570 = vmatprep.subr.mxu0 0.0
        %3571 = vmatpush1.msra.mxu0 0.0
        %3572 = vmatprep.subr.mxu0 0.0
        %3573 = vmatpush1.msra.mxu0 0.0
        %3574 = vmatprep.subr.mxu0 0.0
        %3575 = vmatpush1.msra.mxu0 0.0
        %3576 = vmatprep.subr.mxu0 0.0
        %3577 = vmatpush1.msra.mxu0 0.0
        %3578 = vmatprep.mubr.f32.mxu0 0.0
        %3579 = vmatmul.mubr.f32.gmra.mrb[0].mxu0 %v3512
        %v3580 = vpop.f32.mrb[0].mxu0
        %v3581 = vadd.f32 0.0, %v3580
        %v3582 = vpop.f32.mrb[0].mxu0
        %3583 = vdwg.mxu0
        %v3585 = vsel %vm1742, %v3217, 0
        %3587 = vmatprep.subr.mxu0 0.0
        %3588 = vmatpush1.msra.mxu0 %v653
        %3589 = vmatprep.subr.mxu0 0.0
        %3590 = vmatpush1.msra.mxu0 %v654
        %3591 = vmatprep.subr.mxu0 0.0
        %3592 = vmatpush1.msra.mxu0 %v655
        %3593 = vmatprep.subr.mxu0 0.0
        %3594 = vmatpush1.msra.mxu0 %v656
        %3595 = vmatprep.subr.mxu0 0.0
        %3596 = vmatpush1.msra.mxu0 %v657
        %3597 = vmatprep.subr.mxu0 0.0
        %3598 = vmatpush1.msra.mxu0 %v658
        %3599 = vmatprep.subr.mxu0 0.0
        %3600 = vmatpush1.msra.mxu0 0.0
        %3601 = vmatprep.subr.mxu0 0.0
        %3602 = vmatpush1.msra.mxu0 0.0
        %3603 = vmatprep.subr.mxu0 0.0
        %3604 = vmatpush1.msra.mxu0 0.0
        %3605 = vmatprep.subr.mxu0 0.0
        %3606 = vmatpush1.msra.mxu0 0.0
        %3607 = vmatprep.subr.mxu0 0.0
        %3608 = vmatpush1.msra.mxu0 0.0
        %3609 = vmatprep.subr.mxu0 0.0
        %3610 = vmatpush1.msra.mxu0 0.0
        %3611 = vmatprep.subr.mxu0 0.0
        %3612 = vmatpush1.msra.mxu0 0.0
        %3613 = vmatprep.subr.mxu0 0.0
        %3614 = vmatpush1.msra.mxu0 0.0
        %3615 = vmatprep.subr.mxu0 0.0
        %3616 = vmatpush1.msra.mxu0 0.0
        %3617 = vmatprep.subr.mxu0 0.0
        %3618 = vmatpush1.msra.mxu0 0.0
        %3619 = vmatprep.subr.mxu0 0.0
        %3620 = vmatpush1.msra.mxu0 0.0
        %3621 = vmatprep.subr.mxu0 0.0
        %3622 = vmatpush1.msra.mxu0 0.0
        %3623 = vmatprep.subr.mxu0 0.0
        %3624 = vmatpush1.msra.mxu0 0.0
        %3625 = vmatprep.subr.mxu0 0.0
        %3626 = vmatpush1.msra.mxu0 0.0
        %3627 = vmatprep.subr.mxu0 0.0
        %3628 = vmatpush1.msra.mxu0 0.0
        %3629 = vmatprep.subr.mxu0 0.0
        %3630 = vmatpush1.msra.mxu0 0.0
        %3631 = vmatprep.subr.mxu0 0.0
        %3632 = vmatpush1.msra.mxu0 0.0
        %3633 = vmatprep.subr.mxu0 0.0
        %3634 = vmatpush1.msra.mxu0 0.0
        %3635 = vmatprep.subr.mxu0 0.0
        %3636 = vmatpush1.msra.mxu0 0.0
        %3637 = vmatprep.subr.mxu0 0.0
        %3638 = vmatpush1.msra.mxu0 0.0
        %3639 = vmatprep.subr.mxu0 0.0
        %3640 = vmatpush1.msra.mxu0 0.0
        %3641 = vmatprep.subr.mxu0 0.0
        %3642 = vmatpush1.msra.mxu0 0.0
        %3643 = vmatprep.subr.mxu0 0.0
        %3644 = vmatpush1.msra.mxu0 0.0
        %3645 = vmatprep.subr.mxu0 0.0
        %3646 = vmatpush1.msra.mxu0 0.0
        %3647 = vmatprep.subr.mxu0 0.0
        %3648 = vmatpush1.msra.mxu0 0.0
        %3649 = vmatprep.subr.mxu0 0.0
        %3650 = vmatpush1.msra.mxu0 0.0
        %3651 = vmatprep.mubr.f32.mxu0 0.0
        %3652 = vmatmul.mubr.f32.gmra.mrb[0].mxu0 %v3585
        %v3653 = vpop.f32.mrb[0].mxu0
        %v3654 = vadd.f32 0.0, %v3653
        %v3655 = vpop.f32.mrb[0].mxu0
        %3656 = vdwg.mxu0
        %v3658 = vsel %vm1742, %v3214, 0
        %3660 = vmatprep.subr.mxu0 0.0
        %3661 = vmatpush1.msra.mxu0 %v659
        %3662 = vmatprep.subr.mxu0 0.0
        %3663 = vmatpush1.msra.mxu0 %v660
        %3664 = vmatprep.subr.mxu0 0.0
        %3665 = vmatpush1.msra.mxu0 %v661
        %3666 = vmatprep.subr.mxu0 0.0
        %3667 = vmatpush1.msra.mxu0 %v662
        %3668 = vmatprep.subr.mxu0 0.0
        %3669 = vmatpush1.msra.mxu0 %v663
        %3670 = vmatprep.subr.mxu0 0.0
        %3671 = vmatpush1.msra.mxu0 %v664
        %3672 = vmatprep.subr.mxu0 0.0
        %3673 = vmatpush1.msra.mxu0 0.0
        %3674 = vmatprep.subr.mxu0 0.0
        %3675 = vmatpush1.msra.mxu0 0.0
        %3676 = vmatprep.subr.mxu0 0.0
        %3677 = vmatpush1.msra.mxu0 0.0
        %3678 = vmatprep.subr.mxu0 0.0
        %3679 = vmatpush1.msra.mxu0 0.0
        %3680 = vmatprep.subr.mxu0 0.0
        %3681 = vmatpush1.msra.mxu0 0.0
        %3682 = vmatprep.subr.mxu0 0.0
        %3683 = vmatpush1.msra.mxu0 0.0
        %3684 = vmatprep.subr.mxu0 0.0
        %3685 = vmatpush1.msra.mxu0 0.0
        %3686 = vmatprep.subr.mxu0 0.0
        %3687 = vmatpush1.msra.mxu0 0.0
        %3688 = vmatprep.subr.mxu0 0.0
        %3689 = vmatpush1.msra.mxu0 0.0
        %3690 = vmatprep.subr.mxu0 0.0
        %3691 = vmatpush1.msra.mxu0 0.0
        %3692 = vmatprep.subr.mxu0 0.0
        %3693 = vmatpush1.msra.mxu0 0.0
        %3694 = vmatprep.subr.mxu0 0.0
        %3695 = vmatpush1.msra.mxu0 0.0
        %3696 = vmatprep.subr.mxu0 0.0
        %3697 = vmatpush1.msra.mxu0 0.0
        %3698 = vmatprep.subr.mxu0 0.0
        %3699 = vmatpush1.msra.mxu0 0.0
        %3700 = vmatprep.subr.mxu0 0.0
        %3701 = vmatpush1.msra.mxu0 0.0
        %3702 = vmatprep.subr.mxu0 0.0
        %3703 = vmatpush1.msra.mxu0 0.0
        %3704 = vmatprep.subr.mxu0 0.0
        %3705 = vmatpush1.msra.mxu0 0.0
        %3706 = vmatprep.subr.mxu0 0.0
        %3707 = vmatpush1.msra.mxu0 0.0
        %3708 = vmatprep.subr.mxu0 0.0
        %3709 = vmatpush1.msra.mxu0 0.0
        %3710 = vmatprep.subr.mxu0 0.0
        %3711 = vmatpush1.msra.mxu0 0.0
        %3712 = vmatprep.subr.mxu0 0.0
        %3713 = vmatpush1.msra.mxu0 0.0
        %3714 = vmatprep.subr.mxu0 0.0
        %3715 = vmatpush1.msra.mxu0 0.0
        %3716 = vmatprep.subr.mxu0 0.0
        %3717 = vmatpush1.msra.mxu0 0.0
        %3718 = vmatprep.subr.mxu0 0.0
        %3719 = vmatpush1.msra.mxu0 0.0
        %3720 = vmatprep.subr.mxu0 0.0
        %3721 = vmatpush1.msra.mxu0 0.0
        %3722 = vmatprep.subr.mxu0 0.0
        %3723 = vmatpush1.msra.mxu0 0.0
        %3724 = vmatprep.mubr.f32.mxu0 0.0
        %3725 = vmatmul.mubr.f32.gmra.mrb[0].mxu0 %v3658
        %v3726 = vpop.f32.mrb[0].mxu0
        %v3727 = vadd.f32 0.0, %v3726
        %v3728 = vpop.f32.mrb[0].mxu0
        %3729 = vdwg.mxu0
        %v3731 = vsel %vm1742, %v3218, 0
        %3733 = vmatprep.subr.mxu0 0.0
        %3734 = vmatpush1.msra.mxu0 %v665
        %3735 = vmatprep.subr.mxu0 0.0
        %3736 = vmatpush1.msra.mxu0 %v666
        %3737 = vmatprep.subr.mxu0 0.0
        %3738 = vmatpush1.msra.mxu0 %v667
        %3739 = vmatprep.subr.mxu0 0.0
        %3740 = vmatpush1.msra.mxu0 %v668
        %3741 = vmatprep.subr.mxu0 0.0
        %3742 = vmatpush1.msra.mxu0 %v669
        %3743 = vmatprep.subr.mxu0 0.0
        %3744 = vmatpush1.msra.mxu0 %v670
        %3745 = vmatprep.subr.mxu0 0.0
        %3746 = vmatpush1.msra.mxu0 0.0
        %3747 = vmatprep.subr.mxu0 0.0
        %3748 = vmatpush1.msra.mxu0 0.0
        %3749 = vmatprep.subr.mxu0 0.0
        %3750 = vmatpush1.msra.mxu0 0.0
        %3751 = vmatprep.subr.mxu0 0.0
        %3752 = vmatpush1.msra.mxu0 0.0
        %3753 = vmatprep.subr.mxu0 0.0
        %3754 = vmatpush1.msra.mxu0 0.0
        %3755 = vmatprep.subr.mxu0 0.0
        %3756 = vmatpush1.msra.mxu0 0.0
        %3757 = vmatprep.subr.mxu0 0.0
        %3758 = vmatpush1.msra.mxu0 0.0
        %3759 = vmatprep.subr.mxu0 0.0
        %3760 = vmatpush1.msra.mxu0 0.0
        %3761 = vmatprep.subr.mxu0 0.0
        %3762 = vmatpush1.msra.mxu0 0.0
        %3763 = vmatprep.subr.mxu0 0.0
        %3764 = vmatpush1.msra.mxu0 0.0
        %3765 = vmatprep.subr.mxu0 0.0
        %3766 = vmatpush1.msra.mxu0 0.0
        %3767 = vmatprep.subr.mxu0 0.0
        %3768 = vmatpush1.msra.mxu0 0.0
        %3769 = vmatprep.subr.mxu0 0.0
        %3770 = vmatpush1.msra.mxu0 0.0
        %3771 = vmatprep.subr.mxu0 0.0
        %3772 = vmatpush1.msra.mxu0 0.0
        %3773 = vmatprep.subr.mxu0 0.0
        %3774 = vmatpush1.msra.mxu0 0.0
        %3775 = vmatprep.subr.mxu0 0.0
        %3776 = vmatpush1.msra.mxu0 0.0
        %3777 = vmatprep.subr.mxu0 0.0
        %3778 = vmatpush1.msra.mxu0 0.0
        %3779 = vmatprep.subr.mxu0 0.0
        %3780 = vmatpush1.msra.mxu0 0.0
        %3781 = vmatprep.subr.mxu0 0.0
        %3782 = vmatpush1.msra.mxu0 0.0
        %3783 = vmatprep.subr.mxu0 0.0
        %3784 = vmatpush1.msra.mxu0 0.0
        %3785 = vmatprep.subr.mxu0 0.0
        %3786 = vmatpush1.msra.mxu0 0.0
        %3787 = vmatprep.subr.mxu0 0.0
        %3788 = vmatpush1.msra.mxu0 0.0
        %3789 = vmatprep.subr.mxu0 0.0
        %3790 = vmatpush1.msra.mxu0 0.0
        %3791 = vmatprep.subr.mxu0 0.0
        %3792 = vmatpush1.msra.mxu0 0.0
        %3793 = vmatprep.subr.mxu0 0.0
        %3794 = vmatpush1.msra.mxu0 0.0
        %3795 = vmatprep.subr.mxu0 0.0
        %3796 = vmatpush1.msra.mxu0 0.0
        %3797 = vmatprep.mubr.f32.mxu0 0.0
        %3798 = vmatmul.mubr.f32.gmra.mrb[0].mxu0 %v3731
        %v3799 = vpop.f32.mrb[0].mxu0
        %v3800 = vadd.f32 0.0, %v3799
        %v3801 = vpop.f32.mrb[0].mxu0
        %3802 = vdwg.mxu0
        %v3803 = vcombine.low %v3289, %v3435
        %v3805 = vunpack.c.l.s4 1983009808
        %v3806 = vunpack.c.0.s8 %v3805
        %v3807 = vlaneseq
        %v3808 = vshrl.u32 %v3807, 7
        %v3809 = vsub.s32 %v3806, %v3808
        %v3810 = vrot.slane %v3803, %v3809
        %v3811 = vcombine.low %v3362, %v3508
        %v3813 = vunpack.c.l.s4 1983009808
        %v3814 = vunpack.c.0.s8 %v3813
        %v3815 = vlaneseq
        %v3816 = vshrl.u32 %v3815, 7
        %v3817 = vsub.s32 %v3814, %v3816
        %v3818 = vrot.slane %v3811, %v3817
        %v3819 = vcombine.low %v3581, %v3727
        %v3821 = vunpack.c.l.s4 1983009808
        %v3822 = vunpack.c.0.s8 %v3821
        %v3823 = vlaneseq
        %v3824 = vshrl.u32 %v3823, 7
        %v3825 = vsub.s32 %v3822, %v3824
        %v3826 = vrot.slane %v3819, %v3825
        %v3827 = vcombine.low %v3654, %v3800
        %v3829 = vunpack.c.l.s4 1983009808
        %v3830 = vunpack.c.0.s8 %v3829
        %v3831 = vlaneseq
        %v3832 = vshrl.u32 %v3831, 7
        %v3833 = vsub.s32 %v3830, %v3832
        %v3834 = vrot.slane %v3827, %v3833
        %v3835 = vcombine.low %v3810, %v3818
        %v3837 = vunpack.c.l.s4 1934713408
        %v3838 = vunpack.c.0.s8 %v3837
        %v3839 = vlaneseq
        %v3840 = vshrl.u32 %v3839, 7
        %v3841 = vsub.s32 %v3838, %v3840
        %v3842 = vrot.slane %v3835, %v3841
        %v3843 = vcombine.low %v3826, %v3834
        %v3845 = vunpack.c.l.s4 1934713408
        %v3846 = vunpack.c.0.s8 %v3845
        %v3847 = vlaneseq
        %v3848 = vshrl.u32 %v3847, 7
        %v3849 = vsub.s32 %v3846, %v3848
        %v3850 = vrot.slane %v3843, %v3849
        %v3851 = vcombine.low %v3842, %v3850
        %v3852 = vadd.f32 %v3169, %v3851
        %v3853 = vadd.f32 %v3852, %v671
        %v3854 = vtanh.pop %v3853
        %3856 = vrot.lane.b32.xlu0 %v672, 16
        %v3857 = vpop.permute.xlu0 %3856
        %v3859 = vmul.f32 %v2383, %v3857
        %v3860 = vsub.f32 1.0, %v2383
        %3862 = vrot.lane.b32.xlu0 %v3854, 16
        %v3863 = vpop.permute.xlu0 %3862
        %v3865 = vmul.f32 %v3860, %v3863
        %v3866 = vadd.f32 %v3859, %v3865
        %3868 = vrot.lane.b32.xlu0 %v3866, 112
        %v3869 = vpop.permute.xlu0 %3868
        %3871 = vst.msk [vmem:[#allocation2] sm:$0xff] %vm981, %v3869
        %v3872 = vld [vmem:[%s9] sm:$0xff]
        %v3873 = vld [vmem:[%s9 + $0x8] sm:$0xff]
        %v3874 = vld [vmem:[%s9 + $0x10] sm:$0xff]
        %v3875 = vld [vmem:[%s9 + $0x18] sm:$0xff]
        %v3876 = vld [vmem:[%s9 + $0x20] sm:$0xff]
        %v3877 = vld [vmem:[%s9 + $0x28] sm:$0xff]
        %v3878 = vld [vmem:[%s9 + $0x30] sm:$0xff]
        %v3879 = vld [vmem:[%s9 + $0x38] sm:$0xff]
        %v3880 = vld [vmem:[%s9 + $0x40] sm:$0xff]
        %v3881 = vld [vmem:[%s9 + $0x48] sm:$0xff]
        %v3882 = vld [vmem:[%s9 + $0x50] sm:$0xff]
        %v3883 = vld [vmem:[%s9 + $0x58] sm:$0xff]
        %v3884 = vld [vmem:[%s9 + $0x60] sm:$0xff]
        %v3885 = vld [vmem:[%s9 + $0x68] sm:$0xff]
        %v3886 = vld [vmem:[%s9 + $0x70] sm:$0xff]
        %v3887 = vld [vmem:[%s9 + $0x78] sm:$0xff]
        %v3888 = vld [vmem:[%s9 + $0x80] sm:$0xff]
        %v3889 = vld [vmem:[%s9 + $0x88] sm:$0xff]
        %v3890 = vld [vmem:[%s9 + $0x90] sm:$0xff]
        %v3891 = vld [vmem:[%s9 + $0x98] sm:$0xff]
        %v3892 = vld [vmem:[%s9 + $0xa0] sm:$0xff]
        %v3893 = vld [vmem:[%s9 + $0xa8] sm:$0xff]
        %v3894 = vld [vmem:[%s9 + $0xb0] sm:$0xff]
        %v3895 = vld [vmem:[%s9 + $0xb8] sm:$0xff]
        %v3896 = vld [vmem:[%s9 + $0xc0] sm:$0xff]
        %v3897 = vld [vmem:[%s9 + $0xc8] sm:$0xff]
        %v3898 = vld [vmem:[%s9 + $0xd0] sm:$0xff]
        %v3899 = vld [vmem:[%s9 + $0xd8] sm:$0xff]
        %v3900 = vld [vmem:[%s9 + $0xe0] sm:$0xff]
        %v3901 = vld [vmem:[%s9 + $0xe8] sm:$0xff]
        %v3902 = vld [vmem:[%s9 + $0xf0] sm:$0xff]
        %v3903 = vld [vmem:[%s9 + $0xf8] sm:$0xff]
        %v3904 = vld [vmem:[%s9 + $0x100] sm:$0xff]
        %v3905 = vld [vmem:[%s9 + $0x108] sm:$0xff]
        %v3906 = vld [vmem:[%s9 + $0x110] sm:$0xff]
        %v3907 = vld [vmem:[%s9 + $0x118] sm:$0xff]
        %v3908 = vld [vmem:[%s9 + $0x120] sm:$0xff]
        %v3909 = vld [vmem:[%s9 + $0x128] sm:$0xff]
        %v3910 = vld [vmem:[%s9 + $0x130] sm:$0xff]
        %v3911 = vld [vmem:[%s9 + $0x138] sm:$0xff]
        %v3912 = vld [vmem:[%s9 + $0x140] sm:$0xff]
        %v3913 = vld [vmem:[%s9 + $0x148] sm:$0xff]
        %v3914 = vld [vmem:[%s9 + $0x150] sm:$0xff]
        %v3915 = vld [vmem:[%s9 + $0x158] sm:$0xff]
        %v3916 = vld [vmem:[%s9 + $0x160] sm:$0xff]
        %v3917 = vld [vmem:[%s9 + $0x168] sm:$0xff]
        %v3918 = vld [vmem:[%s9 + $0x170] sm:$0xff]
        %v3919 = vld [vmem:[%s9 + $0x178] sm:$0xff]
        %v3920 = vld [vmem:[%s10] sm:$0xff]
        %v3921 = vld [vmem:[%s10 + $0x8] sm:$0xff]
        %v3922 = vld [vmem:[%s10 + $0x10] sm:$0xff]
        %v3923 = vld [vmem:[%s10 + $0x18] sm:$0xff]
        %v3924 = vld [vmem:[%s10 + $0x20] sm:$0xff]
        %v3925 = vld [vmem:[%s10 + $0x28] sm:$0xff]
        %v3926 = vld [vmem:[%s10 + $0x30] sm:$0xff]
        %v3927 = vld [vmem:[%s10 + $0x38] sm:$0xff]
        %v3928 = vld [vmem:[%s10 + $0x40] sm:$0xff]
        %v3929 = vld [vmem:[%s10 + $0x48] sm:$0xff]
        %v3930 = vld [vmem:[%s10 + $0x50] sm:$0xff]
        %v3931 = vld [vmem:[%s10 + $0x58] sm:$0xff]
        %v3932 = vld [vmem:[%s10 + $0x60] sm:$0xff]
        %v3933 = vld [vmem:[%s10 + $0x68] sm:$0xff]
        %v3934 = vld [vmem:[%s10 + $0x70] sm:$0xff]
        %v3935 = vld [vmem:[%s10 + $0x78] sm:$0xff]
        %v3936 = vld [vmem:[%s10 + $0x80] sm:$0xff]
        %v3937 = vld [vmem:[%s10 + $0x88] sm:$0xff]
        %v3938 = vld [vmem:[%s10 + $0x90] sm:$0xff]
        %v3939 = vld [vmem:[%s10 + $0x98] sm:$0xff]
        %v3940 = vld [vmem:[%s10 + $0xa0] sm:$0xff]
        %v3941 = vld [vmem:[%s10 + $0xa8] sm:$0xff]
        %v3942 = vld [vmem:[%s10 + $0xb0] sm:$0xff]
        %v3943 = vld [vmem:[%s10 + $0xb8] sm:$0xff]
        %v3944 = vld [vmem:[%s10 + $0xc0] sm:$0xff]
        %v3945 = vld [vmem:[%s10 + $0xc8] sm:$0xff]
        %v3946 = vld [vmem:[%s10 + $0xd0] sm:$0xff]
        %v3947 = vld [vmem:[%s10 + $0xd8] sm:$0xff]
        %v3948 = vld [vmem:[%s10 + $0xe0] sm:$0xff]
        %v3949 = vld [vmem:[%s10 + $0xe8] sm:$0xff]
        %v3950 = vld [vmem:[%s10 + $0xf0] sm:$0xff]
        %v3951 = vld [vmem:[%s10 + $0xf8] sm:$0xff]
        %v3952 = vld [vmem:[%s10 + $0x100] sm:$0xff]
        %v3953 = vld [vmem:[%s10 + $0x108] sm:$0xff]
        %v3954 = vld [vmem:[%s10 + $0x110] sm:$0xff]
        %v3955 = vld [vmem:[%s10 + $0x118] sm:$0xff]
        %v3956 = vld [vmem:[%s10 + $0x120] sm:$0xff]
        %v3957 = vld [vmem:[%s10 + $0x128] sm:$0xff]
        %v3958 = vld [vmem:[%s10 + $0x130] sm:$0xff]
        %v3959 = vld [vmem:[%s10 + $0x138] sm:$0xff]
        %v3960 = vld [vmem:[%s10 + $0x140] sm:$0xff]
        %v3961 = vld [vmem:[%s10 + $0x148] sm:$0xff]
        %v3962 = vld [vmem:[%s10 + $0x150] sm:$0xff]
        %v3963 = vld [vmem:[%s10 + $0x158] sm:$0xff]
        %v3964 = vld [vmem:[%s10 + $0x160] sm:$0xff]
        %v3965 = vld [vmem:[%s10 + $0x168] sm:$0xff]
        %v3966 = vld [vmem:[%s10 + $0x170] sm:$0xff]
        %v3967 = vld [vmem:[%s10 + $0x178] sm:$0xff]
        %v3968 = vld [vmem:[%s11] sm:$0xff]
        %v3969 = vld [vmem:[%s12] sm:$0xff]
        %v3970 = vld [vmem:[%s12 + $0x8] sm:$0xff]
        %v3971 = vld [vmem:[%s12 + $0x10] sm:$0xff]
        %v3972 = vld [vmem:[%s12 + $0x18] sm:$0xff]
        %v3973 = vld [vmem:[%s12 + $0x20] sm:$0xff]
        %v3974 = vld [vmem:[%s12 + $0x28] sm:$0xff]
        %v3975 = vld [vmem:[%s12 + $0x30] sm:$0xff]
        %v3976 = vld [vmem:[%s12 + $0x38] sm:$0xff]
        %v3977 = vld [vmem:[%s12 + $0x40] sm:$0xff]
        %v3978 = vld [vmem:[%s12 + $0x48] sm:$0xff]
        %v3979 = vld [vmem:[%s12 + $0x50] sm:$0xff]
        %v3980 = vld [vmem:[%s12 + $0x58] sm:$0xff]
        %v3981 = vld [vmem:[%s12 + $0x60] sm:$0xff]
        %v3982 = vld [vmem:[%s12 + $0x68] sm:$0xff]
        %v3983 = vld [vmem:[%s12 + $0x70] sm:$0xff]
        %v3984 = vld [vmem:[%s12 + $0x78] sm:$0xff]
        %v3985 = vld [vmem:[%s12 + $0x80] sm:$0xff]
        %v3986 = vld [vmem:[%s12 + $0x88] sm:$0xff]
        %v3987 = vld [vmem:[%s12 + $0x90] sm:$0xff]
        %v3988 = vld [vmem:[%s12 + $0x98] sm:$0xff]
        %v3989 = vld [vmem:[%s12 + $0xa0] sm:$0xff]
        %v3990 = vld [vmem:[%s12 + $0xa8] sm:$0xff]
        %v3991 = vld [vmem:[%s12 + $0xb0] sm:$0xff]
        %v3992 = vld [vmem:[%s12 + $0xb8] sm:$0xff]
        %v3993 = vld [vmem:[%s12 + $0xc0] sm:$0xff]
        %v3994 = vld [vmem:[%s12 + $0xc8] sm:$0xff]
        %v3995 = vld [vmem:[%s12 + $0xd0] sm:$0xff]
        %v3996 = vld [vmem:[%s12 + $0xd8] sm:$0xff]
        %v3997 = vld [vmem:[%s12 + $0xe0] sm:$0xff]
        %v3998 = vld [vmem:[%s12 + $0xe8] sm:$0xff]
        %v3999 = vld [vmem:[%s12 + $0xf0] sm:$0xff]
        %v4000 = vld [vmem:[%s12 + $0xf8] sm:$0xff]
        %v4001 = vld [vmem:[%s12 + $0x100] sm:$0xff]
        %v4002 = vld [vmem:[%s12 + $0x108] sm:$0xff]
        %v4003 = vld [vmem:[%s12 + $0x110] sm:$0xff]
        %v4004 = vld [vmem:[%s12 + $0x118] sm:$0xff]
        %v4005 = vld [vmem:[%s12 + $0x120] sm:$0xff]
        %v4006 = vld [vmem:[%s12 + $0x128] sm:$0xff]
        %v4007 = vld [vmem:[%s12 + $0x130] sm:$0xff]
        %v4008 = vld [vmem:[%s12 + $0x138] sm:$0xff]
        %v4009 = vld [vmem:[%s12 + $0x140] sm:$0xff]
        %v4010 = vld [vmem:[%s12 + $0x148] sm:$0xff]
        %v4011 = vld [vmem:[%s12 + $0x150] sm:$0xff]
        %v4012 = vld [vmem:[%s12 + $0x158] sm:$0xff]
        %v4013 = vld [vmem:[%s12 + $0x160] sm:$0xff]
        %v4014 = vld [vmem:[%s12 + $0x168] sm:$0xff]
        %v4015 = vld [vmem:[%s12 + $0x170] sm:$0xff]
        %v4016 = vld [vmem:[%s12 + $0x178] sm:$0xff]
        %v4017 = vld [vmem:[%s13] sm:$0xff]
        %v4018 = vld [vmem:[%s13 + $0x8] sm:$0xff]
        %v4019 = vld [vmem:[%s13 + $0x10] sm:$0xff]
        %v4020 = vld [vmem:[%s13 + $0x18] sm:$0xff]
        %v4021 = vld [vmem:[%s13 + $0x20] sm:$0xff]
        %v4022 = vld [vmem:[%s13 + $0x28] sm:$0xff]
        %v4023 = vld [vmem:[%s13 + $0x30] sm:$0xff]
        %v4024 = vld [vmem:[%s13 + $0x38] sm:$0xff]
        %v4025 = vld [vmem:[%s13 + $0x40] sm:$0xff]
        %v4026 = vld [vmem:[%s13 + $0x48] sm:$0xff]
        %v4027 = vld [vmem:[%s13 + $0x50] sm:$0xff]
        %v4028 = vld [vmem:[%s13 + $0x58] sm:$0xff]
        %v4029 = vld [vmem:[%s13 + $0x60] sm:$0xff]
        %v4030 = vld [vmem:[%s13 + $0x68] sm:$0xff]
        %v4031 = vld [vmem:[%s13 + $0x70] sm:$0xff]
        %v4032 = vld [vmem:[%s13 + $0x78] sm:$0xff]
        %v4033 = vld [vmem:[%s13 + $0x80] sm:$0xff]
        %v4034 = vld [vmem:[%s13 + $0x88] sm:$0xff]
        %v4035 = vld [vmem:[%s13 + $0x90] sm:$0xff]
        %v4036 = vld [vmem:[%s13 + $0x98] sm:$0xff]
        %v4037 = vld [vmem:[%s13 + $0xa0] sm:$0xff]
        %v4038 = vld [vmem:[%s13 + $0xa8] sm:$0xff]
        %v4039 = vld [vmem:[%s13 + $0xb0] sm:$0xff]
        %v4040 = vld [vmem:[%s13 + $0xb8] sm:$0xff]
        %v4041 = vld [vmem:[%s13 + $0xc0] sm:$0xff]
        %v4042 = vld [vmem:[%s13 + $0xc8] sm:$0xff]
        %v4043 = vld [vmem:[%s13 + $0xd0] sm:$0xff]
        %v4044 = vld [vmem:[%s13 + $0xd8] sm:$0xff]
        %v4045 = vld [vmem:[%s13 + $0xe0] sm:$0xff]
        %v4046 = vld [vmem:[%s13 + $0xe8] sm:$0xff]
        %v4047 = vld [vmem:[%s13 + $0xf0] sm:$0xff]
        %v4048 = vld [vmem:[%s13 + $0xf8] sm:$0xff]
        %v4049 = vld [vmem:[%s13 + $0x100] sm:$0xff]
        %v4050 = vld [vmem:[%s13 + $0x108] sm:$0xff]
        %v4051 = vld [vmem:[%s13 + $0x110] sm:$0xff]
        %v4052 = vld [vmem:[%s13 + $0x118] sm:$0xff]
        %v4053 = vld [vmem:[%s13 + $0x120] sm:$0xff]
        %v4054 = vld [vmem:[%s13 + $0x128] sm:$0xff]
        %v4055 = vld [vmem:[%s13 + $0x130] sm:$0xff]
        %v4056 = vld [vmem:[%s13 + $0x138] sm:$0xff]
        %v4057 = vld [vmem:[%s13 + $0x140] sm:$0xff]
        %v4058 = vld [vmem:[%s13 + $0x148] sm:$0xff]
        %v4059 = vld [vmem:[%s13 + $0x150] sm:$0xff]
        %v4060 = vld [vmem:[%s13 + $0x158] sm:$0xff]
        %v4061 = vld [vmem:[%s13 + $0x160] sm:$0xff]
        %v4062 = vld [vmem:[%s13 + $0x168] sm:$0xff]
        %v4063 = vld [vmem:[%s13 + $0x170] sm:$0xff]
        %v4064 = vld [vmem:[%s13 + $0x178] sm:$0xff]
        %v4065 = vld [vmem:[%s14] sm:$0xff]
        %s4066 = scalar_lea.vmem [#allocation2], 8
        %v4067 = vld [vmem:[%s4066] sm:$0xff]
        %4068 = vmatprep.subr.mxu0 0.0
        %4069 = vmatpush1.msra.mxu0 %v3869
        %4070 = vmatprep.subr.mxu0 0.0
        %4071 = vmatpush1.msra.mxu0 0.0
        %4072 = vmatprep.subr.mxu0 0.0
        %4073 = vmatpush1.msra.mxu0 0.0
        %4074 = vmatprep.subr.mxu0 0.0
        %4075 = vmatpush1.msra.mxu0 0.0
        %4076 = vmatprep.subr.mxu0 0.0
        %4077 = vmatpush1.msra.mxu0 0.0
        %4078 = vmatprep.subr.mxu0 0.0
        %4079 = vmatpush1.msra.mxu0 0.0
        %4080 = vmatprep.subr.mxu0 0.0
        %4081 = vmatpush1.msra.mxu0 0.0
        %4082 = vmatprep.subr.mxu0 0.0
        %4083 = vmatpush1.msra.mxu0 0.0
        %4084 = vmatprep.subr.mxu0 0.0
        %4085 = vmatpush1.msra.mxu0 0.0
        %4086 = vmatprep.subr.mxu0 0.0
        %4087 = vmatpush1.msra.mxu0 0.0
        %4088 = vmatprep.subr.mxu0 0.0
        %4089 = vmatpush1.msra.mxu0 0.0
        %4090 = vmatprep.subr.mxu0 0.0
        %4091 = vmatpush1.msra.mxu0 0.0
        %4092 = vmatprep.subr.mxu0 0.0
        %4093 = vmatpush1.msra.mxu0 0.0
        %4094 = vmatprep.subr.mxu0 0.0
        %4095 = vmatpush1.msra.mxu0 0.0
        %4096 = vmatprep.subr.mxu0 0.0
        %4097 = vmatpush1.msra.mxu0 0.0
        %4098 = vmatprep.subr.mxu0 0.0
        %4099 = vmatpush1.msra.mxu0 0.0
        %4100 = vmatprep.subr.mxu0 0.0
        %4101 = vmatpush1.msra.mxu0 0.0
        %4102 = vmatprep.subr.mxu0 0.0
        %4103 = vmatpush1.msra.mxu0 0.0
        %4104 = vmatprep.subr.mxu0 0.0
        %4105 = vmatpush1.msra.mxu0 0.0
        %4106 = vmatprep.subr.mxu0 0.0
        %4107 = vmatpush1.msra.mxu0 0.0
        %4108 = vmatprep.subr.mxu0 0.0
        %4109 = vmatpush1.msra.mxu0 0.0
        %4110 = vmatprep.subr.mxu0 0.0
        %4111 = vmatpush1.msra.mxu0 0.0
        %4112 = vmatprep.subr.mxu0 0.0
        %4113 = vmatpush1.msra.mxu0 0.0
        %4114 = vmatprep.subr.mxu0 0.0
        %4115 = vmatpush1.msra.mxu0 0.0
        %4116 = vmatprep.subr.mxu0 0.0
        %4117 = vmatpush1.msra.mxu0 0.0
        %4118 = vmatprep.subr.mxu0 0.0
        %4119 = vmatpush1.msra.mxu0 0.0
        %4120 = vmatprep.subr.mxu0 0.0
        %4121 = vmatpush1.msra.mxu0 0.0
        %4122 = vmatprep.subr.mxu0 0.0
        %4123 = vmatpush1.msra.mxu0 0.0
        %4124 = vmatprep.subr.mxu0 0.0
        %4125 = vmatpush1.msra.mxu0 0.0
        %4126 = vmatprep.subr.mxu0 0.0
        %4127 = vmatpush1.msra.mxu0 0.0
        %4128 = vmatprep.subr.mxu0 0.0
        %4129 = vmatpush1.msra.mxu0 0.0
        %4130 = vmatprep.subr.mxu0 0.0
        %4131 = vmatpush1.msra.mxu0 0.0
        %4132 = vmatprep.mubr.f32.mxu0 0.0
        %4133 = vmatmul.mubr.f32.gmra.mrb[0].mxu0 %v675
        %v4134 = vpop.f32.mrb[0].mxu0
        %v4135 = vadd.f32 0.0, %v4134
        %v4136 = vpop.f32.mrb[0].mxu0
        %4137 = vdwg.mxu0
        %4138 = vmatprep.subr.mxu0 0.0
        %4139 = vmatpush1.msra.mxu0 %v4135
        %4140 = vmatprep.subr.mxu0 0.0
        %4141 = vmatpush1.msra.mxu0 0.0
        %4142 = vmatprep.subr.mxu0 0.0
        %4143 = vmatpush1.msra.mxu0 0.0
        %4144 = vmatprep.subr.mxu0 0.0
        %4145 = vmatpush1.msra.mxu0 0.0
        %4146 = vmatprep.subr.mxu0 0.0
        %4147 = vmatpush1.msra.mxu0 0.0
        %4148 = vmatprep.subr.mxu0 0.0
        %4149 = vmatpush1.msra.mxu0 0.0
        %4150 = vmatprep.subr.mxu0 0.0
        %4151 = vmatpush1.msra.mxu0 0.0
        %4152 = vmatprep.subr.mxu0 0.0
        %4153 = vmatpush1.msra.mxu0 0.0
        %4154 = vmatprep.subr.mxu0 0.0
        %4155 = vmatpush1.msra.mxu0 0.0
        %4156 = vmatprep.subr.mxu0 0.0
        %4157 = vmatpush1.msra.mxu0 0.0
        %4158 = vmatprep.subr.mxu0 0.0
        %4159 = vmatpush1.msra.mxu0 0.0
        %4160 = vmatprep.subr.mxu0 0.0
        %4161 = vmatpush1.msra.mxu0 0.0
        %4162 = vmatprep.subr.mxu0 0.0
        %4163 = vmatpush1.msra.mxu0 0.0
        %4164 = vmatprep.subr.mxu0 0.0
        %4165 = vmatpush1.msra.mxu0 0.0
        %4166 = vmatprep.subr.mxu0 0.0
        %4167 = vmatpush1.msra.mxu0 0.0
        %4168 = vmatprep.subr.mxu0 0.0
        %4169 = vmatpush1.msra.mxu0 0.0
        %4170 = vmatprep.subr.mxu0 0.0
        %4171 = vmatpush1.msra.mxu0 0.0
        %4172 = vmatprep.subr.mxu0 0.0
        %4173 = vmatpush1.msra.mxu0 0.0
        %4174 = vmatprep.subr.mxu0 0.0
        %4175 = vmatpush1.msra.mxu0 0.0
        %4176 = vmatprep.subr.mxu0 0.0
        %4177 = vmatpush1.msra.mxu0 0.0
        %4178 = vmatprep.subr.mxu0 0.0
        %4179 = vmatpush1.msra.mxu0 0.0
        %4180 = vmatprep.subr.mxu0 0.0
        %4181 = vmatpush1.msra.mxu0 0.0
        %4182 = vmatprep.subr.mxu0 0.0
        %4183 = vmatpush1.msra.mxu0 0.0
        %4184 = vmatprep.subr.mxu0 0.0
        %4185 = vmatpush1.msra.mxu0 0.0
        %4186 = vmatprep.subr.mxu0 0.0
        %4187 = vmatpush1.msra.mxu0 0.0
        %4188 = vmatprep.subr.mxu0 0.0
        %4189 = vmatpush1.msra.mxu0 0.0
        %4190 = vmatprep.subr.mxu0 0.0
        %4191 = vmatpush1.msra.mxu0 0.0
        %4192 = vmatprep.subr.mxu0 0.0
        %4193 = vmatpush1.msra.mxu0 0.0
        %4194 = vmatprep.subr.mxu0 0.0
        %4195 = vmatpush1.msra.mxu0 0.0
        %4196 = vmatprep.subr.mxu0 0.0
        %4197 = vmatpush1.msra.mxu0 0.0
        %4198 = vmatprep.subr.mxu0 0.0
        %4199 = vmatpush1.msra.mxu0 0.0
        %4200 = vmatprep.subr.mxu0 0.0
        %4201 = vmatpush1.msra.mxu0 0.0
        %4202 = vmatprep.mubr.f32.mxu0 0.0
        %4203 = vmatmul.mubr.f32.gmra.mrb[0].mxu0 %v675
        %v4204 = vpop.f32.mrb[0].mxu0
        %v4205 = vadd.f32 0.0, %v4204
        %v4206 = vpop.f32.mrb[0].mxu0
        %4207 = vdwg.mxu0
        %v4208 = vmul.f32 %v4205, 2.0
        %v4209 = vsub.f32 %v4208, %v3869
        %4211 = vrot.lane.b32.xlu0 %v4135, 16
        %v4212 = vpop.permute.xlu0 %4211
        %4215 = vrot.lane.b32.xlu0 %v4209, 32
        %v4216 = vpop.permute.xlu0 %4215
        %v4218 = vsel %vm981, %v3869, %v4212
        %v4219 = vsel %vm983, %v4218, %v4216
        %4220 = vmatprep.subr.mxu0 0.0
        %4221 = vmatpush1.msra.mxu0 %v4067
        %4222 = vmatprep.subr.mxu0 0.0
        %4223 = vmatpush1.msra.mxu0 0.0
        %4224 = vmatprep.subr.mxu0 0.0
        %4225 = vmatpush1.msra.mxu0 0.0
        %4226 = vmatprep.subr.mxu0 0.0
        %4227 = vmatpush1.msra.mxu0 0.0
        %4228 = vmatprep.subr.mxu0 0.0
        %4229 = vmatpush1.msra.mxu0 0.0
        %4230 = vmatprep.subr.mxu0 0.0
        %4231 = vmatpush1.msra.mxu0 0.0
        %4232 = vmatprep.subr.mxu0 0.0
        %4233 = vmatpush1.msra.mxu0 0.0
        %4234 = vmatprep.subr.mxu0 0.0
        %4235 = vmatpush1.msra.mxu0 0.0
        %4236 = vmatprep.subr.mxu0 0.0
        %4237 = vmatpush1.msra.mxu0 0.0
        %4238 = vmatprep.subr.mxu0 0.0
        %4239 = vmatpush1.msra.mxu0 0.0
        %4240 = vmatprep.subr.mxu0 0.0
        %4241 = vmatpush1.msra.mxu0 0.0
        %4242 = vmatprep.subr.mxu0 0.0
        %4243 = vmatpush1.msra.mxu0 0.0
        %4244 = vmatprep.subr.mxu0 0.0
        %4245 = vmatpush1.msra.mxu0 0.0
        %4246 = vmatprep.subr.mxu0 0.0
        %4247 = vmatpush1.msra.mxu0 0.0
        %4248 = vmatprep.subr.mxu0 0.0
        %4249 = vmatpush1.msra.mxu0 0.0
        %4250 = vmatprep.subr.mxu0 0.0
        %4251 = vmatpush1.msra.mxu0 0.0
        %4252 = vmatprep.subr.mxu0 0.0
        %4253 = vmatpush1.msra.mxu0 0.0
        %4254 = vmatprep.subr.mxu0 0.0
        %4255 = vmatpush1.msra.mxu0 0.0
        %4256 = vmatprep.subr.mxu0 0.0
        %4257 = vmatpush1.msra.mxu0 0.0
        %4258 = vmatprep.subr.mxu0 0.0
        %4259 = vmatpush1.msra.mxu0 0.0
        %4260 = vmatprep.subr.mxu0 0.0
        %4261 = vmatpush1.msra.mxu0 0.0
        %4262 = vmatprep.subr.mxu0 0.0
        %4263 = vmatpush1.msra.mxu0 0.0
        %4264 = vmatprep.subr.mxu0 0.0
        %4265 = vmatpush1.msra.mxu0 0.0
        %4266 = vmatprep.subr.mxu0 0.0
        %4267 = vmatpush1.msra.mxu0 0.0
        %4268 = vmatprep.subr.mxu0 0.0
        %4269 = vmatpush1.msra.mxu0 0.0
        %4270 = vmatprep.subr.mxu0 0.0
        %4271 = vmatpush1.msra.mxu0 0.0
        %4272 = vmatprep.subr.mxu0 0.0
        %4273 = vmatpush1.msra.mxu0 0.0
        %4274 = vmatprep.subr.mxu0 0.0
        %4275 = vmatpush1.msra.mxu0 0.0
        %4276 = vmatprep.subr.mxu0 0.0
        %4277 = vmatpush1.msra.mxu0 0.0
        %4278 = vmatprep.subr.mxu0 0.0
        %4279 = vmatpush1.msra.mxu0 0.0
        %4280 = vmatprep.subr.mxu0 0.0
        %4281 = vmatpush1.msra.mxu0 0.0
        %4282 = vmatprep.subr.mxu0 0.0
        %4283 = vmatpush1.msra.mxu0 0.0
        %4284 = vmatprep.mubr.f32.mxu0 0.0
        %4285 = vmatmul.mubr.f32.gmra.mrb[0].mxu0 %v675
        %v4286 = vpop.f32.mrb[0].mxu0
        %v4287 = vadd.f32 0.0, %v4286
        %v4288 = vpop.f32.mrb[0].mxu0
        %4289 = vdwg.mxu0
        %4290 = vmatprep.subr.mxu0 0.0
        %4291 = vmatpush1.msra.mxu0 %v4287
        %4292 = vmatprep.subr.mxu0 0.0
        %4293 = vmatpush1.msra.mxu0 0.0
        %4294 = vmatprep.subr.mxu0 0.0
        %4295 = vmatpush1.msra.mxu0 0.0
        %4296 = vmatprep.subr.mxu0 0.0
        %4297 = vmatpush1.msra.mxu0 0.0
        %4298 = vmatprep.subr.mxu0 0.0
        %4299 = vmatpush1.msra.mxu0 0.0
        %4300 = vmatprep.subr.mxu0 0.0
        %4301 = vmatpush1.msra.mxu0 0.0
        %4302 = vmatprep.subr.mxu0 0.0
        %4303 = vmatpush1.msra.mxu0 0.0
        %4304 = vmatprep.subr.mxu0 0.0
        %4305 = vmatpush1.msra.mxu0 0.0
        %4306 = vmatprep.subr.mxu0 0.0
        %4307 = vmatpush1.msra.mxu0 0.0
        %4308 = vmatprep.subr.mxu0 0.0
        %4309 = vmatpush1.msra.mxu0 0.0
        %4310 = vmatprep.subr.mxu0 0.0
        %4311 = vmatpush1.msra.mxu0 0.0
        %4312 = vmatprep.subr.mxu0 0.0
        %4313 = vmatpush1.msra.mxu0 0.0
        %4314 = vmatprep.subr.mxu0 0.0
        %4315 = vmatpush1.msra.mxu0 0.0
        %4316 = vmatprep.subr.mxu0 0.0
        %4317 = vmatpush1.msra.mxu0 0.0
        %4318 = vmatprep.subr.mxu0 0.0
        %4319 = vmatpush1.msra.mxu0 0.0
        %4320 = vmatprep.subr.mxu0 0.0
        %4321 = vmatpush1.msra.mxu0 0.0
        %4322 = vmatprep.subr.mxu0 0.0
        %4323 = vmatpush1.msra.mxu0 0.0
        %4324 = vmatprep.subr.mxu0 0.0
        %4325 = vmatpush1.msra.mxu0 0.0
        %4326 = vmatprep.subr.mxu0 0.0
        %4327 = vmatpush1.msra.mxu0 0.0
        %4328 = vmatprep.subr.mxu0 0.0
        %4329 = vmatpush1.msra.mxu0 0.0
        %4330 = vmatprep.subr.mxu0 0.0
        %4331 = vmatpush1.msra.mxu0 0.0
        %4332 = vmatprep.subr.mxu0 0.0
        %4333 = vmatpush1.msra.mxu0 0.0
        %4334 = vmatprep.subr.mxu0 0.0
        %4335 = vmatpush1.msra.mxu0 0.0
        %4336 = vmatprep.subr.mxu0 0.0
        %4337 = vmatpush1.msra.mxu0 0.0
        %4338 = vmatprep.subr.mxu0 0.0
        %4339 = vmatpush1.msra.mxu0 0.0
        %4340 = vmatprep.subr.mxu0 0.0
        %4341 = vmatpush1.msra.mxu0 0.0
        %4342 = vmatprep.subr.mxu0 0.0
        %4343 = vmatpush1.msra.mxu0 0.0
        %4344 = vmatprep.subr.mxu0 0.0
        %4345 = vmatpush1.msra.mxu0 0.0
        %4346 = vmatprep.subr.mxu0 0.0
        %4347 = vmatpush1.msra.mxu0 0.0
        %4348 = vmatprep.subr.mxu0 0.0
        %4349 = vmatpush1.msra.mxu0 0.0
        %4350 = vmatprep.subr.mxu0 0.0
        %4351 = vmatpush1.msra.mxu0 0.0
        %4352 = vmatprep.subr.mxu0 0.0
        %4353 = vmatpush1.msra.mxu0 0.0
        %4354 = vmatprep.mubr.f32.mxu0 0.0
        %4355 = vmatmul.mubr.f32.gmra.mrb[0].mxu0 %v675
        %v4356 = vpop.f32.mrb[0].mxu0
        %v4357 = vadd.f32 0.0, %v4356
        %v4358 = vpop.f32.mrb[0].mxu0
        %4359 = vdwg.mxu0
        %v4360 = vmul.f32 %v4357, 2.0
        %v4361 = vsub.f32 %v4360, %v4067
        %4363 = vrot.lane.b32.xlu0 %v4287, 16
        %v4364 = vpop.permute.xlu0 %4363
        %4367 = vrot.lane.b32.xlu0 %v4361, 32
        %v4368 = vpop.permute.xlu0 %4367
        %v4370 = vsel %vm981, %v4067, %v4364
        %v4371 = vsel %vm983, %v4370, %v4368
        %v4372 = vcombine.high %v4219, 0.0
        %v4374 = vunpack.c.l.s4 1983009808
        %v4375 = vunpack.c.0.s8 %v4374
        %v4376 = vlaneseq
        %v4377 = vshrl.u32 %v4376, 7
        %v4378 = vsub.s32 %v4375, %v4377
        %v4379 = vrot.slane %v4219, %v4378
        %v4381 = vunpack.c.l.s4 1983009808
        %v4382 = vunpack.c.0.s8 %v4381
        %v4383 = vlaneseq
        %v4384 = vshrl.u32 %v4383, 7
        %v4385 = vsub.s32 %v4382, %v4384
        %v4386 = vrot.slane %v4372, %v4385
        %v4387 = vcombine.high %v4379, 0.0
        %v4389 = vunpack.c.l.s4 1934713408
        %v4390 = vunpack.c.0.s8 %v4389
        %v4391 = vlaneseq
        %v4392 = vshrl.u32 %v4391, 7
        %v4393 = vsub.s32 %v4390, %v4392
        %v4394 = vrot.slane %v4379, %v4393
        %v4396 = vunpack.c.l.s4 1934713408
        %v4397 = vunpack.c.0.s8 %v4396
        %v4398 = vlaneseq
        %v4399 = vshrl.u32 %v4398, 7
        %v4400 = vsub.s32 %v4397, %v4399
        %v4401 = vrot.slane %v4387, %v4400
        %v4402 = vcombine.high %v4386, 0.0
        %v4404 = vunpack.c.l.s4 1934713408
        %v4405 = vunpack.c.0.s8 %v4404
        %v4406 = vlaneseq
        %v4407 = vshrl.u32 %v4406, 7
        %v4408 = vsub.s32 %v4405, %v4407
        %v4409 = vrot.slane %v4386, %v4408
        %v4411 = vunpack.c.l.s4 1934713408
        %v4412 = vunpack.c.0.s8 %v4411
        %v4413 = vlaneseq
        %v4414 = vshrl.u32 %v4413, 7
        %v4415 = vsub.s32 %v4412, %v4414
        %v4416 = vrot.slane %v4402, %v4415
        %v4417 = vcombine.high %v4394, 0.0
        %v4418 = vcombine.high %v4401, 0.0
        %v4419 = vcombine.high %v4409, 0.0
        %v4420 = vcombine.high %v4416, 0.0
        %v4422 = vsel %vm1742, %v4394, 0
        %4424 = vmatprep.subr.mxu0 0.0
        %4425 = vmatpush1.msra.mxu0 %v3872
        %4426 = vmatprep.subr.mxu0 0.0
        %4427 = vmatpush1.msra.mxu0 %v3873
        %4428 = vmatprep.subr.mxu0 0.0
        %4429 = vmatpush1.msra.mxu0 %v3874
        %4430 = vmatprep.subr.mxu0 0.0
        %4431 = vmatpush1.msra.mxu0 %v3875
        %4432 = vmatprep.subr.mxu0 0.0
        %4433 = vmatpush1.msra.mxu0 %v3876
        %4434 = vmatprep.subr.mxu0 0.0
        %4435 = vmatpush1.msra.mxu0 %v3877
        %4436 = vmatprep.subr.mxu0 0.0
        %4437 = vmatpush1.msra.mxu0 0.0
        %4438 = vmatprep.subr.mxu0 0.0
        %4439 = vmatpush1.msra.mxu0 0.0
        %4440 = vmatprep.subr.mxu0 0.0
        %4441 = vmatpush1.msra.mxu0 0.0
        %4442 = vmatprep.subr.mxu0 0.0
        %4443 = vmatpush1.msra.mxu0 0.0
        %4444 = vmatprep.subr.mxu0 0.0
        %4445 = vmatpush1.msra.mxu0 0.0
        %4446 = vmatprep.subr.mxu0 0.0
        %4447 = vmatpush1.msra.mxu0 0.0
        %4448 = vmatprep.subr.mxu0 0.0
        %4449 = vmatpush1.msra.mxu0 0.0
        %4450 = vmatprep.subr.mxu0 0.0
        %4451 = vmatpush1.msra.mxu0 0.0
        %4452 = vmatprep.subr.mxu0 0.0
        %4453 = vmatpush1.msra.mxu0 0.0
        %4454 = vmatprep.subr.mxu0 0.0
        %4455 = vmatpush1.msra.mxu0 0.0
        %4456 = vmatprep.subr.mxu0 0.0
        %4457 = vmatpush1.msra.mxu0 0.0
        %4458 = vmatprep.subr.mxu0 0.0
        %4459 = vmatpush1.msra.mxu0 0.0
        %4460 = vmatprep.subr.mxu0 0.0
        %4461 = vmatpush1.msra.mxu0 0.0
        %4462 = vmatprep.subr.mxu0 0.0
        %4463 = vmatpush1.msra.mxu0 0.0
        %4464 = vmatprep.subr.mxu0 0.0
        %4465 = vmatpush1.msra.mxu0 0.0
        %4466 = vmatprep.subr.mxu0 0.0
        %4467 = vmatpush1.msra.mxu0 0.0
        %4468 = vmatprep.subr.mxu0 0.0
        %4469 = vmatpush1.msra.mxu0 0.0
        %4470 = vmatprep.subr.mxu0 0.0
        %4471 = vmatpush1.msra.mxu0 0.0
        %4472 = vmatprep.subr.mxu0 0.0
        %4473 = vmatpush1.msra.mxu0 0.0
        %4474 = vmatprep.subr.mxu0 0.0
        %4475 = vmatpush1.msra.mxu0 0.0
        %4476 = vmatprep.subr.mxu0 0.0
        %4477 = vmatpush1.msra.mxu0 0.0
        %4478 = vmatprep.subr.mxu0 0.0
        %4479 = vmatpush1.msra.mxu0 0.0
        %4480 = vmatprep.subr.mxu0 0.0
        %4481 = vmatpush1.msra.mxu0 0.0
        %4482 = vmatprep.subr.mxu0 0.0
        %4483 = vmatpush1.msra.mxu0 0.0
        %4484 = vmatprep.subr.mxu0 0.0
        %4485 = vmatpush1.msra.mxu0 0.0
        %4486 = vmatprep.subr.mxu0 0.0
        %4487 = vmatpush1.msra.mxu0 0.0
        %4488 = vmatprep.mubr.f32.mxu0 0.0
        %4489 = vmatmul.mubr.f32.gmra.mrb[0].mxu0 %v4422
        %v4490 = vpop.f32.mrb[0].mxu0
        %v4491 = vadd.f32 0.0, %v4490
        %v4492 = vpop.f32.mrb[0].mxu0
        %4493 = vdwg.mxu0
        %v4495 = vsel %vm1742, %v4417, 0
        %4497 = vmatprep.subr.mxu0 0.0
        %4498 = vmatpush1.msra.mxu0 %v3878
        %4499 = vmatprep.subr.mxu0 0.0
        %4500 = vmatpush1.msra.mxu0 %v3879
        %4501 = vmatprep.subr.mxu0 0.0
        %4502 = vmatpush1.msra.mxu0 %v3880
        %4503 = vmatprep.subr.mxu0 0.0
        %4504 = vmatpush1.msra.mxu0 %v3881
        %4505 = vmatprep.subr.mxu0 0.0
        %4506 = vmatpush1.msra.mxu0 %v3882
        %4507 = vmatprep.subr.mxu0 0.0
        %4508 = vmatpush1.msra.mxu0 %v3883
        %4509 = vmatprep.subr.mxu0 0.0
        %4510 = vmatpush1.msra.mxu0 0.0
        %4511 = vmatprep.subr.mxu0 0.0
        %4512 = vmatpush1.msra.mxu0 0.0
        %4513 = vmatprep.subr.mxu0 0.0
        %4514 = vmatpush1.msra.mxu0 0.0
        %4515 = vmatprep.subr.mxu0 0.0
        %4516 = vmatpush1.msra.mxu0 0.0
        %4517 = vmatprep.subr.mxu0 0.0
        %4518 = vmatpush1.msra.mxu0 0.0
        %4519 = vmatprep.subr.mxu0 0.0
        %4520 = vmatpush1.msra.mxu0 0.0
        %4521 = vmatprep.subr.mxu0 0.0
        %4522 = vmatpush1.msra.mxu0 0.0
        %4523 = vmatprep.subr.mxu0 0.0
        %4524 = vmatpush1.msra.mxu0 0.0
        %4525 = vmatprep.subr.mxu0 0.0
        %4526 = vmatpush1.msra.mxu0 0.0
        %4527 = vmatprep.subr.mxu0 0.0
        %4528 = vmatpush1.msra.mxu0 0.0
        %4529 = vmatprep.subr.mxu0 0.0
        %4530 = vmatpush1.msra.mxu0 0.0
        %4531 = vmatprep.subr.mxu0 0.0
        %4532 = vmatpush1.msra.mxu0 0.0
        %4533 = vmatprep.subr.mxu0 0.0
        %4534 = vmatpush1.msra.mxu0 0.0
        %4535 = vmatprep.subr.mxu0 0.0
        %4536 = vmatpush1.msra.mxu0 0.0
        %4537 = vmatprep.subr.mxu0 0.0
        %4538 = vmatpush1.msra.mxu0 0.0
        %4539 = vmatprep.subr.mxu0 0.0
        %4540 = vmatpush1.msra.mxu0 0.0
        %4541 = vmatprep.subr.mxu0 0.0
        %4542 = vmatpush1.msra.mxu0 0.0
        %4543 = vmatprep.subr.mxu0 0.0
        %4544 = vmatpush1.msra.mxu0 0.0
        %4545 = vmatprep.subr.mxu0 0.0
        %4546 = vmatpush1.msra.mxu0 0.0
        %4547 = vmatprep.subr.mxu0 0.0
        %4548 = vmatpush1.msra.mxu0 0.0
        %4549 = vmatprep.subr.mxu0 0.0
        %4550 = vmatpush1.msra.mxu0 0.0
        %4551 = vmatprep.subr.mxu0 0.0
        %4552 = vmatpush1.msra.mxu0 0.0
        %4553 = vmatprep.subr.mxu0 0.0
        %4554 = vmatpush1.msra.mxu0 0.0
        %4555 = vmatprep.subr.mxu0 0.0
        %4556 = vmatpush1.msra.mxu0 0.0
        %4557 = vmatprep.subr.mxu0 0.0
        %4558 = vmatpush1.msra.mxu0 0.0
        %4559 = vmatprep.subr.mxu0 0.0
        %4560 = vmatpush1.msra.mxu0 0.0
        %4561 = vmatprep.mubr.f32.mxu0 0.0
        %4562 = vmatmul.mubr.f32.gmra.mrb[0].mxu0 %v4495
        %v4563 = vpop.f32.mrb[0].mxu0
        %v4564 = vadd.f32 0.0, %v4563
        %v4565 = vpop.f32.mrb[0].mxu0
        %4566 = vdwg.mxu0
        %v4568 = vsel %vm1742, %v4401, 0
        %4570 = vmatprep.subr.mxu0 0.0
        %4571 = vmatpush1.msra.mxu0 %v3884
        %4572 = vmatprep.subr.mxu0 0.0
        %4573 = vmatpush1.msra.mxu0 %v3885
        %4574 = vmatprep.subr.mxu0 0.0
        %4575 = vmatpush1.msra.mxu0 %v3886
        %4576 = vmatprep.subr.mxu0 0.0
        %4577 = vmatpush1.msra.mxu0 %v3887
        %4578 = vmatprep.subr.mxu0 0.0
        %4579 = vmatpush1.msra.mxu0 %v3888
        %4580 = vmatprep.subr.mxu0 0.0
        %4581 = vmatpush1.msra.mxu0 %v3889
        %4582 = vmatprep.subr.mxu0 0.0
        %4583 = vmatpush1.msra.mxu0 0.0
        %4584 = vmatprep.subr.mxu0 0.0
        %4585 = vmatpush1.msra.mxu0 0.0
        %4586 = vmatprep.subr.mxu0 0.0
        %4587 = vmatpush1.msra.mxu0 0.0
        %4588 = vmatprep.subr.mxu0 0.0
        %4589 = vmatpush1.msra.mxu0 0.0
        %4590 = vmatprep.subr.mxu0 0.0
        %4591 = vmatpush1.msra.mxu0 0.0
        %4592 = vmatprep.subr.mxu0 0.0
        %4593 = vmatpush1.msra.mxu0 0.0
        %4594 = vmatprep.subr.mxu0 0.0
        %4595 = vmatpush1.msra.mxu0 0.0
        %4596 = vmatprep.subr.mxu0 0.0
        %4597 = vmatpush1.msra.mxu0 0.0
        %4598 = vmatprep.subr.mxu0 0.0
        %4599 = vmatpush1.msra.mxu0 0.0
        %4600 = vmatprep.subr.mxu0 0.0
        %4601 = vmatpush1.msra.mxu0 0.0
        %4602 = vmatprep.subr.mxu0 0.0
        %4603 = vmatpush1.msra.mxu0 0.0
        %4604 = vmatprep.subr.mxu0 0.0
        %4605 = vmatpush1.msra.mxu0 0.0
        %4606 = vmatprep.subr.mxu0 0.0
        %4607 = vmatpush1.msra.mxu0 0.0
        %4608 = vmatprep.subr.mxu0 0.0
        %4609 = vmatpush1.msra.mxu0 0.0
        %4610 = vmatprep.subr.mxu0 0.0
        %4611 = vmatpush1.msra.mxu0 0.0
        %4612 = vmatprep.subr.mxu0 0.0
        %4613 = vmatpush1.msra.mxu0 0.0
        %4614 = vmatprep.subr.mxu0 0.0
        %4615 = vmatpush1.msra.mxu0 0.0
        %4616 = vmatprep.subr.mxu0 0.0
        %4617 = vmatpush1.msra.mxu0 0.0
        %4618 = vmatprep.subr.mxu0 0.0
        %4619 = vmatpush1.msra.mxu0 0.0
        %4620 = vmatprep.subr.mxu0 0.0
        %4621 = vmatpush1.msra.mxu0 0.0
        %4622 = vmatprep.subr.mxu0 0.0
        %4623 = vmatpush1.msra.mxu0 0.0
        %4624 = vmatprep.subr.mxu0 0.0
        %4625 = vmatpush1.msra.mxu0 0.0
        %4626 = vmatprep.subr.mxu0 0.0
        %4627 = vmatpush1.msra.mxu0 0.0
        %4628 = vmatprep.subr.mxu0 0.0
        %4629 = vmatpush1.msra.mxu0 0.0
        %4630 = vmatprep.subr.mxu0 0.0
        %4631 = vmatpush1.msra.mxu0 0.0
        %4632 = vmatprep.subr.mxu0 0.0
        %4633 = vmatpush1.msra.mxu0 0.0
        %4634 = vmatprep.mubr.f32.mxu0 0.0
        %4635 = vmatmul.mubr.f32.gmra.mrb[0].mxu0 %v4568
        %v4636 = vpop.f32.mrb[0].mxu0
        %v4637 = vadd.f32 0.0, %v4636
        %v4638 = vpop.f32.mrb[0].mxu0
        %4639 = vdwg.mxu0
        %v4641 = vsel %vm1742, %v4418, 0
        %4643 = vmatprep.subr.mxu0 0.0
        %4644 = vmatpush1.msra.mxu0 %v3890
        %4645 = vmatprep.subr.mxu0 0.0
        %4646 = vmatpush1.msra.mxu0 %v3891
        %4647 = vmatprep.subr.mxu0 0.0
        %4648 = vmatpush1.msra.mxu0 %v3892
        %4649 = vmatprep.subr.mxu0 0.0
        %4650 = vmatpush1.msra.mxu0 %v3893
        %4651 = vmatprep.subr.mxu0 0.0
        %4652 = vmatpush1.msra.mxu0 %v3894
        %4653 = vmatprep.subr.mxu0 0.0
        %4654 = vmatpush1.msra.mxu0 %v3895
        %4655 = vmatprep.subr.mxu0 0.0
        %4656 = vmatpush1.msra.mxu0 0.0
        %4657 = vmatprep.subr.mxu0 0.0
        %4658 = vmatpush1.msra.mxu0 0.0
        %4659 = vmatprep.subr.mxu0 0.0
        %4660 = vmatpush1.msra.mxu0 0.0
        %4661 = vmatprep.subr.mxu0 0.0
        %4662 = vmatpush1.msra.mxu0 0.0
        %4663 = vmatprep.subr.mxu0 0.0
        %4664 = vmatpush1.msra.mxu0 0.0
        %4665 = vmatprep.subr.mxu0 0.0
        %4666 = vmatpush1.msra.mxu0 0.0
        %4667 = vmatprep.subr.mxu0 0.0
        %4668 = vmatpush1.msra.mxu0 0.0
        %4669 = vmatprep.subr.mxu0 0.0
        %4670 = vmatpush1.msra.mxu0 0.0
        %4671 = vmatprep.subr.mxu0 0.0
        %4672 = vmatpush1.msra.mxu0 0.0
        %4673 = vmatprep.subr.mxu0 0.0
        %4674 = vmatpush1.msra.mxu0 0.0
        %4675 = vmatprep.subr.mxu0 0.0
        %4676 = vmatpush1.msra.mxu0 0.0
        %4677 = vmatprep.subr.mxu0 0.0
        %4678 = vmatpush1.msra.mxu0 0.0
        %4679 = vmatprep.subr.mxu0 0.0
        %4680 = vmatpush1.msra.mxu0 0.0
        %4681 = vmatprep.subr.mxu0 0.0
        %4682 = vmatpush1.msra.mxu0 0.0
        %4683 = vmatprep.subr.mxu0 0.0
        %4684 = vmatpush1.msra.mxu0 0.0
        %4685 = vmatprep.subr.mxu0 0.0
        %4686 = vmatpush1.msra.mxu0 0.0
        %4687 = vmatprep.subr.mxu0 0.0
        %4688 = vmatpush1.msra.mxu0 0.0
        %4689 = vmatprep.subr.mxu0 0.0
        %4690 = vmatpush1.msra.mxu0 0.0
        %4691 = vmatprep.subr.mxu0 0.0
        %4692 = vmatpush1.msra.mxu0 0.0
        %4693 = vmatprep.subr.mxu0 0.0
        %4694 = vmatpush1.msra.mxu0 0.0
        %4695 = vmatprep.subr.mxu0 0.0
        %4696 = vmatpush1.msra.mxu0 0.0
        %4697 = vmatprep.subr.mxu0 0.0
        %4698 = vmatpush1.msra.mxu0 0.0
        %4699 = vmatprep.subr.mxu0 0.0
        %4700 = vmatpush1.msra.mxu0 0.0
        %4701 = vmatprep.subr.mxu0 0.0
        %4702 = vmatpush1.msra.mxu0 0.0
        %4703 = vmatprep.subr.mxu0 0.0
        %4704 = vmatpush1.msra.mxu0 0.0
        %4705 = vmatprep.subr.mxu0 0.0
        %4706 = vmatpush1.msra.mxu0 0.0
        %4707 = vmatprep.mubr.f32.mxu0 0.0
        %4708 = vmatmul.mubr.f32.gmra.mrb[0].mxu0 %v4641
        %v4709 = vpop.f32.mrb[0].mxu0
        %v4710 = vadd.f32 0.0, %v4709
        %v4711 = vpop.f32.mrb[0].mxu0
        %4712 = vdwg.mxu0
        %v4714 = vsel %vm1742, %v4409, 0
        %4716 = vmatprep.subr.mxu0 0.0
        %4717 = vmatpush1.msra.mxu0 %v3896
        %4718 = vmatprep.subr.mxu0 0.0
        %4719 = vmatpush1.msra.mxu0 %v3897
        %4720 = vmatprep.subr.mxu0 0.0
        %4721 = vmatpush1.msra.mxu0 %v3898
        %4722 = vmatprep.subr.mxu0 0.0
        %4723 = vmatpush1.msra.mxu0 %v3899
        %4724 = vmatprep.subr.mxu0 0.0
        %4725 = vmatpush1.msra.mxu0 %v3900
        %4726 = vmatprep.subr.mxu0 0.0
        %4727 = vmatpush1.msra.mxu0 %v3901
        %4728 = vmatprep.subr.mxu0 0.0
        %4729 = vmatpush1.msra.mxu0 0.0
        %4730 = vmatprep.subr.mxu0 0.0
        %4731 = vmatpush1.msra.mxu0 0.0
        %4732 = vmatprep.subr.mxu0 0.0
        %4733 = vmatpush1.msra.mxu0 0.0
        %4734 = vmatprep.subr.mxu0 0.0
        %4735 = vmatpush1.msra.mxu0 0.0
        %4736 = vmatprep.subr.mxu0 0.0
        %4737 = vmatpush1.msra.mxu0 0.0
        %4738 = vmatprep.subr.mxu0 0.0
        %4739 = vmatpush1.msra.mxu0 0.0
        %4740 = vmatprep.subr.mxu0 0.0
        %4741 = vmatpush1.msra.mxu0 0.0
        %4742 = vmatprep.subr.mxu0 0.0
        %4743 = vmatpush1.msra.mxu0 0.0
        %4744 = vmatprep.subr.mxu0 0.0
        %4745 = vmatpush1.msra.mxu0 0.0
        %4746 = vmatprep.subr.mxu0 0.0
        %4747 = vmatpush1.msra.mxu0 0.0
        %4748 = vmatprep.subr.mxu0 0.0
        %4749 = vmatpush1.msra.mxu0 0.0
        %4750 = vmatprep.subr.mxu0 0.0
        %4751 = vmatpush1.msra.mxu0 0.0
        %4752 = vmatprep.subr.mxu0 0.0
        %4753 = vmatpush1.msra.mxu0 0.0
        %4754 = vmatprep.subr.mxu0 0.0
        %4755 = vmatpush1.msra.mxu0 0.0
        %4756 = vmatprep.subr.mxu0 0.0
        %4757 = vmatpush1.msra.mxu0 0.0
        %4758 = vmatprep.subr.mxu0 0.0
        %4759 = vmatpush1.msra.mxu0 0.0
        %4760 = vmatprep.subr.mxu0 0.0
        %4761 = vmatpush1.msra.mxu0 0.0
        %4762 = vmatprep.subr.mxu0 0.0
        %4763 = vmatpush1.msra.mxu0 0.0
        %4764 = vmatprep.subr.mxu0 0.0
        %4765 = vmatpush1.msra.mxu0 0.0
        %4766 = vmatprep.subr.mxu0 0.0
        %4767 = vmatpush1.msra.mxu0 0.0
        %4768 = vmatprep.subr.mxu0 0.0
        %4769 = vmatpush1.msra.mxu0 0.0
        %4770 = vmatprep.subr.mxu0 0.0
        %4771 = vmatpush1.msra.mxu0 0.0
        %4772 = vmatprep.subr.mxu0 0.0
        %4773 = vmatpush1.msra.mxu0 0.0
        %4774 = vmatprep.subr.mxu0 0.0
        %4775 = vmatpush1.msra.mxu0 0.0
        %4776 = vmatprep.subr.mxu0 0.0
        %4777 = vmatpush1.msra.mxu0 0.0
        %4778 = vmatprep.subr.mxu0 0.0
        %4779 = vmatpush1.msra.mxu0 0.0
        %4780 = vmatprep.mubr.f32.mxu0 0.0
        %4781 = vmatmul.mubr.f32.gmra.mrb[0].mxu0 %v4714
        %v4782 = vpop.f32.mrb[0].mxu0
        %v4783 = vadd.f32 0.0, %v4782
        %v4784 = vpop.f32.mrb[0].mxu0
        %4785 = vdwg.mxu0
        %v4787 = vsel %vm1742, %v4419, 0
        %4789 = vmatprep.subr.mxu0 0.0
        %4790 = vmatpush1.msra.mxu0 %v3902
        %4791 = vmatprep.subr.mxu0 0.0
        %4792 = vmatpush1.msra.mxu0 %v3903
        %4793 = vmatprep.subr.mxu0 0.0
        %4794 = vmatpush1.msra.mxu0 %v3904
        %4795 = vmatprep.subr.mxu0 0.0
        %4796 = vmatpush1.msra.mxu0 %v3905
        %4797 = vmatprep.subr.mxu0 0.0
        %4798 = vmatpush1.msra.mxu0 %v3906
        %4799 = vmatprep.subr.mxu0 0.0
        %4800 = vmatpush1.msra.mxu0 %v3907
        %4801 = vmatprep.subr.mxu0 0.0
        %4802 = vmatpush1.msra.mxu0 0.0
        %4803 = vmatprep.subr.mxu0 0.0
        %4804 = vmatpush1.msra.mxu0 0.0
        %4805 = vmatprep.subr.mxu0 0.0
        %4806 = vmatpush1.msra.mxu0 0.0
        %4807 = vmatprep.subr.mxu0 0.0
        %4808 = vmatpush1.msra.mxu0 0.0
        %4809 = vmatprep.subr.mxu0 0.0
        %4810 = vmatpush1.msra.mxu0 0.0
        %4811 = vmatprep.subr.mxu0 0.0
        %4812 = vmatpush1.msra.mxu0 0.0
        %4813 = vmatprep.subr.mxu0 0.0
        %4814 = vmatpush1.msra.mxu0 0.0
        %4815 = vmatprep.subr.mxu0 0.0
        %4816 = vmatpush1.msra.mxu0 0.0
        %4817 = vmatprep.subr.mxu0 0.0
        %4818 = vmatpush1.msra.mxu0 0.0
        %4819 = vmatprep.subr.mxu0 0.0
        %4820 = vmatpush1.msra.mxu0 0.0
        %4821 = vmatprep.subr.mxu0 0.0
        %4822 = vmatpush1.msra.mxu0 0.0
        %4823 = vmatprep.subr.mxu0 0.0
        %4824 = vmatpush1.msra.mxu0 0.0
        %4825 = vmatprep.subr.mxu0 0.0
        %4826 = vmatpush1.msra.mxu0 0.0
        %4827 = vmatprep.subr.mxu0 0.0
        %4828 = vmatpush1.msra.mxu0 0.0
        %4829 = vmatprep.subr.mxu0 0.0
        %4830 = vmatpush1.msra.mxu0 0.0
        %4831 = vmatprep.subr.mxu0 0.0
        %4832 = vmatpush1.msra.mxu0 0.0
        %4833 = vmatprep.subr.mxu0 0.0
        %4834 = vmatpush1.msra.mxu0 0.0
        %4835 = vmatprep.subr.mxu0 0.0
        %4836 = vmatpush1.msra.mxu0 0.0
        %4837 = vmatprep.subr.mxu0 0.0
        %4838 = vmatpush1.msra.mxu0 0.0
        %4839 = vmatprep.subr.mxu0 0.0
        %4840 = vmatpush1.msra.mxu0 0.0
        %4841 = vmatprep.subr.mxu0 0.0
        %4842 = vmatpush1.msra.mxu0 0.0
        %4843 = vmatprep.subr.mxu0 0.0
        %4844 = vmatpush1.msra.mxu0 0.0
        %4845 = vmatprep.subr.mxu0 0.0
        %4846 = vmatpush1.msra.mxu0 0.0
        %4847 = vmatprep.subr.mxu0 0.0
        %4848 = vmatpush1.msra.mxu0 0.0
        %4849 = vmatprep.subr.mxu0 0.0
        %4850 = vmatpush1.msra.mxu0 0.0
        %4851 = vmatprep.subr.mxu0 0.0
        %4852 = vmatpush1.msra.mxu0 0.0
        %4853 = vmatprep.mubr.f32.mxu0 0.0
        %4854 = vmatmul.mubr.f32.gmra.mrb[0].mxu0 %v4787
        %v4855 = vpop.f32.mrb[0].mxu0
        %v4856 = vadd.f32 0.0, %v4855
        %v4857 = vpop.f32.mrb[0].mxu0
        %4858 = vdwg.mxu0
        %v4860 = vsel %vm1742, %v4416, 0
        %4862 = vmatprep.subr.mxu0 0.0
        %4863 = vmatpush1.msra.mxu0 %v3908
        %4864 = vmatprep.subr.mxu0 0.0
        %4865 = vmatpush1.msra.mxu0 %v3909
        %4866 = vmatprep.subr.mxu0 0.0
        %4867 = vmatpush1.msra.mxu0 %v3910
        %4868 = vmatprep.subr.mxu0 0.0
        %4869 = vmatpush1.msra.mxu0 %v3911
        %4870 = vmatprep.subr.mxu0 0.0
        %4871 = vmatpush1.msra.mxu0 %v3912
        %4872 = vmatprep.subr.mxu0 0.0
        %4873 = vmatpush1.msra.mxu0 %v3913
        %4874 = vmatprep.subr.mxu0 0.0
        %4875 = vmatpush1.msra.mxu0 0.0
        %4876 = vmatprep.subr.mxu0 0.0
        %4877 = vmatpush1.msra.mxu0 0.0
        %4878 = vmatprep.subr.mxu0 0.0
        %4879 = vmatpush1.msra.mxu0 0.0
        %4880 = vmatprep.subr.mxu0 0.0
        %4881 = vmatpush1.msra.mxu0 0.0
        %4882 = vmatprep.subr.mxu0 0.0
        %4883 = vmatpush1.msra.mxu0 0.0
        %4884 = vmatprep.subr.mxu0 0.0
        %4885 = vmatpush1.msra.mxu0 0.0
        %4886 = vmatprep.subr.mxu0 0.0
        %4887 = vmatpush1.msra.mxu0 0.0
        %4888 = vmatprep.subr.mxu0 0.0
        %4889 = vmatpush1.msra.mxu0 0.0
        %4890 = vmatprep.subr.mxu0 0.0
        %4891 = vmatpush1.msra.mxu0 0.0
        %4892 = vmatprep.subr.mxu0 0.0
        %4893 = vmatpush1.msra.mxu0 0.0
        %4894 = vmatprep.subr.mxu0 0.0
        %4895 = vmatpush1.msra.mxu0 0.0
        %4896 = vmatprep.subr.mxu0 0.0
        %4897 = vmatpush1.msra.mxu0 0.0
        %4898 = vmatprep.subr.mxu0 0.0
        %4899 = vmatpush1.msra.mxu0 0.0
        %4900 = vmatprep.subr.mxu0 0.0
        %4901 = vmatpush1.msra.mxu0 0.0
        %4902 = vmatprep.subr.mxu0 0.0
        %4903 = vmatpush1.msra.mxu0 0.0
        %4904 = vmatprep.subr.mxu0 0.0
        %4905 = vmatpush1.msra.mxu0 0.0
        %4906 = vmatprep.subr.mxu0 0.0
        %4907 = vmatpush1.msra.mxu0 0.0
        %4908 = vmatprep.subr.mxu0 0.0
        %4909 = vmatpush1.msra.mxu0 0.0
        %4910 = vmatprep.subr.mxu0 0.0
        %4911 = vmatpush1.msra.mxu0 0.0
        %4912 = vmatprep.subr.mxu0 0.0
        %4913 = vmatpush1.msra.mxu0 0.0
        %4914 = vmatprep.subr.mxu0 0.0
        %4915 = vmatpush1.msra.mxu0 0.0
        %4916 = vmatprep.subr.mxu0 0.0
        %4917 = vmatpush1.msra.mxu0 0.0
        %4918 = vmatprep.subr.mxu0 0.0
        %4919 = vmatpush1.msra.mxu0 0.0
        %4920 = vmatprep.subr.mxu0 0.0
        %4921 = vmatpush1.msra.mxu0 0.0
        %4922 = vmatprep.subr.mxu0 0.0
        %4923 = vmatpush1.msra.mxu0 0.0
        %4924 = vmatprep.subr.mxu0 0.0
        %4925 = vmatpush1.msra.mxu0 0.0
        %4926 = vmatprep.mubr.f32.mxu0 0.0
        %4927 = vmatmul.mubr.f32.gmra.mrb[0].mxu0 %v4860
        %v4928 = vpop.f32.mrb[0].mxu0
        %v4929 = vadd.f32 0.0, %v4928
        %v4930 = vpop.f32.mrb[0].mxu0
        %4931 = vdwg.mxu0
        %v4933 = vsel %vm1742, %v4420, 0
        %4935 = vmatprep.subr.mxu0 0.0
        %4936 = vmatpush1.msra.mxu0 %v3914
        %4937 = vmatprep.subr.mxu0 0.0
        %4938 = vmatpush1.msra.mxu0 %v3915
        %4939 = vmatprep.subr.mxu0 0.0
        %4940 = vmatpush1.msra.mxu0 %v3916
        %4941 = vmatprep.subr.mxu0 0.0
        %4942 = vmatpush1.msra.mxu0 %v3917
        %4943 = vmatprep.subr.mxu0 0.0
        %4944 = vmatpush1.msra.mxu0 %v3918
        %4945 = vmatprep.subr.mxu0 0.0
        %4946 = vmatpush1.msra.mxu0 %v3919
        %4947 = vmatprep.subr.mxu0 0.0
        %4948 = vmatpush1.msra.mxu0 0.0
        %4949 = vmatprep.subr.mxu0 0.0
        %4950 = vmatpush1.msra.mxu0 0.0
        %4951 = vmatprep.subr.mxu0 0.0
        %4952 = vmatpush1.msra.mxu0 0.0
        %4953 = vmatprep.subr.mxu0 0.0
        %4954 = vmatpush1.msra.mxu0 0.0
        %4955 = vmatprep.subr.mxu0 0.0
        %4956 = vmatpush1.msra.mxu0 0.0
        %4957 = vmatprep.subr.mxu0 0.0
        %4958 = vmatpush1.msra.mxu0 0.0
        %4959 = vmatprep.subr.mxu0 0.0
        %4960 = vmatpush1.msra.mxu0 0.0
        %4961 = vmatprep.subr.mxu0 0.0
        %4962 = vmatpush1.msra.mxu0 0.0
        %4963 = vmatprep.subr.mxu0 0.0
        %4964 = vmatpush1.msra.mxu0 0.0
        %4965 = vmatprep.subr.mxu0 0.0
        %4966 = vmatpush1.msra.mxu0 0.0
        %4967 = vmatprep.subr.mxu0 0.0
        %4968 = vmatpush1.msra.mxu0 0.0
        %4969 = vmatprep.subr.mxu0 0.0
        %4970 = vmatpush1.msra.mxu0 0.0
        %4971 = vmatprep.subr.mxu0 0.0
        %4972 = vmatpush1.msra.mxu0 0.0
        %4973 = vmatprep.subr.mxu0 0.0
        %4974 = vmatpush1.msra.mxu0 0.0
        %4975 = vmatprep.subr.mxu0 0.0
        %4976 = vmatpush1.msra.mxu0 0.0
        %4977 = vmatprep.subr.mxu0 0.0
        %4978 = vmatpush1.msra.mxu0 0.0
        %4979 = vmatprep.subr.mxu0 0.0
        %4980 = vmatpush1.msra.mxu0 0.0
        %4981 = vmatprep.subr.mxu0 0.0
        %4982 = vmatpush1.msra.mxu0 0.0
        %4983 = vmatprep.subr.mxu0 0.0
        %4984 = vmatpush1.msra.mxu0 0.0
        %4985 = vmatprep.subr.mxu0 0.0
        %4986 = vmatpush1.msra.mxu0 0.0
        %4987 = vmatprep.subr.mxu0 0.0
        %4988 = vmatpush1.msra.mxu0 0.0
        %4989 = vmatprep.subr.mxu0 0.0
        %4990 = vmatpush1.msra.mxu0 0.0
        %4991 = vmatprep.subr.mxu0 0.0
        %4992 = vmatpush1.msra.mxu0 0.0
        %4993 = vmatprep.subr.mxu0 0.0
        %4994 = vmatpush1.msra.mxu0 0.0
        %4995 = vmatprep.subr.mxu0 0.0
        %4996 = vmatpush1.msra.mxu0 0.0
        %4997 = vmatprep.subr.mxu0 0.0
        %4998 = vmatpush1.msra.mxu0 0.0
        %4999 = vmatprep.mubr.f32.mxu0 0.0
        %5000 = vmatmul.mubr.f32.gmra.mrb[0].mxu0 %v4933
        %v5001 = vpop.f32.mrb[0].mxu0
        %v5002 = vadd.f32 0.0, %v5001
        %v5003 = vpop.f32.mrb[0].mxu0
        %5004 = vdwg.mxu0
        %v5005 = vcombine.low %v4491, %v4637
        %v5007 = vunpack.c.l.s4 1983009808
        %v5008 = vunpack.c.0.s8 %v5007
        %v5009 = vlaneseq
        %v5010 = vshrl.u32 %v5009, 7
        %v5011 = vsub.s32 %v5008, %v5010
        %v5012 = vrot.slane %v5005, %v5011
        %v5013 = vcombine.low %v4564, %v4710
        %v5015 = vunpack.c.l.s4 1983009808
        %v5016 = vunpack.c.0.s8 %v5015
        %v5017 = vlaneseq
        %v5018 = vshrl.u32 %v5017, 7
        %v5019 = vsub.s32 %v5016, %v5018
        %v5020 = vrot.slane %v5013, %v5019
        %v5021 = vcombine.low %v4783, %v4929
        %v5023 = vunpack.c.l.s4 1983009808
        %v5024 = vunpack.c.0.s8 %v5023
        %v5025 = vlaneseq
        %v5026 = vshrl.u32 %v5025, 7
        %v5027 = vsub.s32 %v5024, %v5026
        %v5028 = vrot.slane %v5021, %v5027
        %v5029 = vcombine.low %v4856, %v5002
        %v5031 = vunpack.c.l.s4 1983009808
        %v5032 = vunpack.c.0.s8 %v5031
        %v5033 = vlaneseq
        %v5034 = vshrl.u32 %v5033, 7
        %v5035 = vsub.s32 %v5032, %v5034
        %v5036 = vrot.slane %v5029, %v5035
        %v5037 = vcombine.low %v5012, %v5020
        %v5039 = vunpack.c.l.s4 1934713408
        %v5040 = vunpack.c.0.s8 %v5039
        %v5041 = vlaneseq
        %v5042 = vshrl.u32 %v5041, 7
        %v5043 = vsub.s32 %v5040, %v5042
        %v5044 = vrot.slane %v5037, %v5043
        %v5045 = vcombine.low %v5028, %v5036
        %v5047 = vunpack.c.l.s4 1934713408
        %v5048 = vunpack.c.0.s8 %v5047
        %v5049 = vlaneseq
        %v5050 = vshrl.u32 %v5049, 7
        %v5051 = vsub.s32 %v5048, %v5050
        %v5052 = vrot.slane %v5045, %v5051
        %v5053 = vcombine.low %v5044, %v5052
        %v5054 = vcombine.high %v4371, 0.0
        %v5056 = vunpack.c.l.s4 1983009808
        %v5057 = vunpack.c.0.s8 %v5056
        %v5058 = vlaneseq
        %v5059 = vshrl.u32 %v5058, 7
        %v5060 = vsub.s32 %v5057, %v5059
        %v5061 = vrot.slane %v4371, %v5060
        %v5063 = vunpack.c.l.s4 1983009808
        %v5064 = vunpack.c.0.s8 %v5063
        %v5065 = vlaneseq
        %v5066 = vshrl.u32 %v5065, 7
        %v5067 = vsub.s32 %v5064, %v5066
        %v5068 = vrot.slane %v5054, %v5067
        %v5069 = vcombine.high %v5061, 0.0
        %v5071 = vunpack.c.l.s4 1934713408
        %v5072 = vunpack.c.0.s8 %v5071
        %v5073 = vlaneseq
        %v5074 = vshrl.u32 %v5073, 7
        %v5075 = vsub.s32 %v5072, %v5074
        %v5076 = vrot.slane %v5061, %v5075
        %v5078 = vunpack.c.l.s4 1934713408
        %v5079 = vunpack.c.0.s8 %v5078
        %v5080 = vlaneseq
        %v5081 = vshrl.u32 %v5080, 7
        %v5082 = vsub.s32 %v5079, %v5081
        %v5083 = vrot.slane %v5069, %v5082
        %v5084 = vcombine.high %v5068, 0.0
        %v5086 = vunpack.c.l.s4 1934713408
        %v5087 = vunpack.c.0.s8 %v5086
        %v5088 = vlaneseq
        %v5089 = vshrl.u32 %v5088, 7
        %v5090 = vsub.s32 %v5087, %v5089
        %v5091 = vrot.slane %v5068, %v5090
        %v5093 = vunpack.c.l.s4 1934713408
        %v5094 = vunpack.c.0.s8 %v5093
        %v5095 = vlaneseq
        %v5096 = vshrl.u32 %v5095, 7
        %v5097 = vsub.s32 %v5094, %v5096
        %v5098 = vrot.slane %v5084, %v5097
        %v5099 = vcombine.high %v5076, 0.0
        %v5100 = vcombine.high %v5083, 0.0
        %v5101 = vcombine.high %v5091, 0.0
        %v5102 = vcombine.high %v5098, 0.0
        %v5104 = vsel %vm1742, %v5076, 0
        %5106 = vmatprep.subr.mxu0 0.0
        %5107 = vmatpush1.msra.mxu0 %v3920
        %5108 = vmatprep.subr.mxu0 0.0
        %5109 = vmatpush1.msra.mxu0 %v3921
        %5110 = vmatprep.subr.mxu0 0.0
        %5111 = vmatpush1.msra.mxu0 %v3922
        %5112 = vmatprep.subr.mxu0 0.0
        %5113 = vmatpush1.msra.mxu0 %v3923
        %5114 = vmatprep.subr.mxu0 0.0
        %5115 = vmatpush1.msra.mxu0 %v3924
        %5116 = vmatprep.subr.mxu0 0.0
        %5117 = vmatpush1.msra.mxu0 %v3925
        %5118 = vmatprep.subr.mxu0 0.0
        %5119 = vmatpush1.msra.mxu0 0.0
        %5120 = vmatprep.subr.mxu0 0.0
        %5121 = vmatpush1.msra.mxu0 0.0
        %5122 = vmatprep.subr.mxu0 0.0
        %5123 = vmatpush1.msra.mxu0 0.0
        %5124 = vmatprep.subr.mxu0 0.0
        %5125 = vmatpush1.msra.mxu0 0.0
        %5126 = vmatprep.subr.mxu0 0.0
        %5127 = vmatpush1.msra.mxu0 0.0
        %5128 = vmatprep.subr.mxu0 0.0
        %5129 = vmatpush1.msra.mxu0 0.0
        %5130 = vmatprep.subr.mxu0 0.0
        %5131 = vmatpush1.msra.mxu0 0.0
        %5132 = vmatprep.subr.mxu0 0.0
        %5133 = vmatpush1.msra.mxu0 0.0
        %5134 = vmatprep.subr.mxu0 0.0
        %5135 = vmatpush1.msra.mxu0 0.0
        %5136 = vmatprep.subr.mxu0 0.0
        %5137 = vmatpush1.msra.mxu0 0.0
        %5138 = vmatprep.subr.mxu0 0.0
        %5139 = vmatpush1.msra.mxu0 0.0
        %5140 = vmatprep.subr.mxu0 0.0
        %5141 = vmatpush1.msra.mxu0 0.0
        %5142 = vmatprep.subr.mxu0 0.0
        %5143 = vmatpush1.msra.mxu0 0.0
        %5144 = vmatprep.subr.mxu0 0.0
        %5145 = vmatpush1.msra.mxu0 0.0
        %5146 = vmatprep.subr.mxu0 0.0
        %5147 = vmatpush1.msra.mxu0 0.0
        %5148 = vmatprep.subr.mxu0 0.0
        %5149 = vmatpush1.msra.mxu0 0.0
        %5150 = vmatprep.subr.mxu0 0.0
        %5151 = vmatpush1.msra.mxu0 0.0
        %5152 = vmatprep.subr.mxu0 0.0
        %5153 = vmatpush1.msra.mxu0 0.0
        %5154 = vmatprep.subr.mxu0 0.0
        %5155 = vmatpush1.msra.mxu0 0.0
        %5156 = vmatprep.subr.mxu0 0.0
        %5157 = vmatpush1.msra.mxu0 0.0
        %5158 = vmatprep.subr.mxu0 0.0
        %5159 = vmatpush1.msra.mxu0 0.0
        %5160 = vmatprep.subr.mxu0 0.0
        %5161 = vmatpush1.msra.mxu0 0.0
        %5162 = vmatprep.subr.mxu0 0.0
        %5163 = vmatpush1.msra.mxu0 0.0
        %5164 = vmatprep.subr.mxu0 0.0
        %5165 = vmatpush1.msra.mxu0 0.0
        %5166 = vmatprep.subr.mxu0 0.0
        %5167 = vmatpush1.msra.mxu0 0.0
        %5168 = vmatprep.subr.mxu0 0.0
        %5169 = vmatpush1.msra.mxu0 0.0
        %5170 = vmatprep.mubr.f32.mxu0 0.0
        %5171 = vmatmul.mubr.f32.gmra.mrb[0].mxu0 %v5104
        %v5172 = vpop.f32.mrb[0].mxu0
        %v5173 = vadd.f32 0.0, %v5172
        %v5174 = vpop.f32.mrb[0].mxu0
        %5175 = vdwg.mxu0
        %v5177 = vsel %vm1742, %v5099, 0
        %5179 = vmatprep.subr.mxu0 0.0
        %5180 = vmatpush1.msra.mxu0 %v3926
        %5181 = vmatprep.subr.mxu0 0.0
        %5182 = vmatpush1.msra.mxu0 %v3927
        %5183 = vmatprep.subr.mxu0 0.0
        %5184 = vmatpush1.msra.mxu0 %v3928
        %5185 = vmatprep.subr.mxu0 0.0
        %5186 = vmatpush1.msra.mxu0 %v3929
        %5187 = vmatprep.subr.mxu0 0.0
        %5188 = vmatpush1.msra.mxu0 %v3930
        %5189 = vmatprep.subr.mxu0 0.0
        %5190 = vmatpush1.msra.mxu0 %v3931
        %5191 = vmatprep.subr.mxu0 0.0
        %5192 = vmatpush1.msra.mxu0 0.0
        %5193 = vmatprep.subr.mxu0 0.0
        %5194 = vmatpush1.msra.mxu0 0.0
        %5195 = vmatprep.subr.mxu0 0.0
        %5196 = vmatpush1.msra.mxu0 0.0
        %5197 = vmatprep.subr.mxu0 0.0
        %5198 = vmatpush1.msra.mxu0 0.0
        %5199 = vmatprep.subr.mxu0 0.0
        %5200 = vmatpush1.msra.mxu0 0.0
        %5201 = vmatprep.subr.mxu0 0.0
        %5202 = vmatpush1.msra.mxu0 0.0
        %5203 = vmatprep.subr.mxu0 0.0
        %5204 = vmatpush1.msra.mxu0 0.0
        %5205 = vmatprep.subr.mxu0 0.0
        %5206 = vmatpush1.msra.mxu0 0.0
        %5207 = vmatprep.subr.mxu0 0.0
        %5208 = vmatpush1.msra.mxu0 0.0
        %5209 = vmatprep.subr.mxu0 0.0
        %5210 = vmatpush1.msra.mxu0 0.0
        %5211 = vmatprep.subr.mxu0 0.0
        %5212 = vmatpush1.msra.mxu0 0.0
        %5213 = vmatprep.subr.mxu0 0.0
        %5214 = vmatpush1.msra.mxu0 0.0
        %5215 = vmatprep.subr.mxu0 0.0
        %5216 = vmatpush1.msra.mxu0 0.0
        %5217 = vmatprep.subr.mxu0 0.0
        %5218 = vmatpush1.msra.mxu0 0.0
        %5219 = vmatprep.subr.mxu0 0.0
        %5220 = vmatpush1.msra.mxu0 0.0
        %5221 = vmatprep.subr.mxu0 0.0
        %5222 = vmatpush1.msra.mxu0 0.0
        %5223 = vmatprep.subr.mxu0 0.0
        %5224 = vmatpush1.msra.mxu0 0.0
        %5225 = vmatprep.subr.mxu0 0.0
        %5226 = vmatpush1.msra.mxu0 0.0
        %5227 = vmatprep.subr.mxu0 0.0
        %5228 = vmatpush1.msra.mxu0 0.0
        %5229 = vmatprep.subr.mxu0 0.0
        %5230 = vmatpush1.msra.mxu0 0.0
        %5231 = vmatprep.subr.mxu0 0.0
        %5232 = vmatpush1.msra.mxu0 0.0
        %5233 = vmatprep.subr.mxu0 0.0
        %5234 = vmatpush1.msra.mxu0 0.0
        %5235 = vmatprep.subr.mxu0 0.0
        %5236 = vmatpush1.msra.mxu0 0.0
        %5237 = vmatprep.subr.mxu0 0.0
        %5238 = vmatpush1.msra.mxu0 0.0
        %5239 = vmatprep.subr.mxu0 0.0
        %5240 = vmatpush1.msra.mxu0 0.0
        %5241 = vmatprep.subr.mxu0 0.0
        %5242 = vmatpush1.msra.mxu0 0.0
        %5243 = vmatprep.mubr.f32.mxu0 0.0
        %5244 = vmatmul.mubr.f32.gmra.mrb[0].mxu0 %v5177
        %v5245 = vpop.f32.mrb[0].mxu0
        %v5246 = vadd.f32 0.0, %v5245
        %v5247 = vpop.f32.mrb[0].mxu0
        %5248 = vdwg.mxu0
        %v5250 = vsel %vm1742, %v5083, 0
        %5252 = vmatprep.subr.mxu0 0.0
        %5253 = vmatpush1.msra.mxu0 %v3932
        %5254 = vmatprep.subr.mxu0 0.0
        %5255 = vmatpush1.msra.mxu0 %v3933
        %5256 = vmatprep.subr.mxu0 0.0
        %5257 = vmatpush1.msra.mxu0 %v3934
        %5258 = vmatprep.subr.mxu0 0.0
        %5259 = vmatpush1.msra.mxu0 %v3935
        %5260 = vmatprep.subr.mxu0 0.0
        %5261 = vmatpush1.msra.mxu0 %v3936
        %5262 = vmatprep.subr.mxu0 0.0
        %5263 = vmatpush1.msra.mxu0 %v3937
        %5264 = vmatprep.subr.mxu0 0.0
        %5265 = vmatpush1.msra.mxu0 0.0
        %5266 = vmatprep.subr.mxu0 0.0
        %5267 = vmatpush1.msra.mxu0 0.0
        %5268 = vmatprep.subr.mxu0 0.0
        %5269 = vmatpush1.msra.mxu0 0.0
        %5270 = vmatprep.subr.mxu0 0.0
        %5271 = vmatpush1.msra.mxu0 0.0
        %5272 = vmatprep.subr.mxu0 0.0
        %5273 = vmatpush1.msra.mxu0 0.0
        %5274 = vmatprep.subr.mxu0 0.0
        %5275 = vmatpush1.msra.mxu0 0.0
        %5276 = vmatprep.subr.mxu0 0.0
        %5277 = vmatpush1.msra.mxu0 0.0
        %5278 = vmatprep.subr.mxu0 0.0
        %5279 = vmatpush1.msra.mxu0 0.0
        %5280 = vmatprep.subr.mxu0 0.0
        %5281 = vmatpush1.msra.mxu0 0.0
        %5282 = vmatprep.subr.mxu0 0.0
        %5283 = vmatpush1.msra.mxu0 0.0
        %5284 = vmatprep.subr.mxu0 0.0
        %5285 = vmatpush1.msra.mxu0 0.0
        %5286 = vmatprep.subr.mxu0 0.0
        %5287 = vmatpush1.msra.mxu0 0.0
        %5288 = vmatprep.subr.mxu0 0.0
        %5289 = vmatpush1.msra.mxu0 0.0
        %5290 = vmatprep.subr.mxu0 0.0
        %5291 = vmatpush1.msra.mxu0 0.0
        %5292 = vmatprep.subr.mxu0 0.0
        %5293 = vmatpush1.msra.mxu0 0.0
        %5294 = vmatprep.subr.mxu0 0.0
        %5295 = vmatpush1.msra.mxu0 0.0
        %5296 = vmatprep.subr.mxu0 0.0
        %5297 = vmatpush1.msra.mxu0 0.0
        %5298 = vmatprep.subr.mxu0 0.0
        %5299 = vmatpush1.msra.mxu0 0.0
        %5300 = vmatprep.subr.mxu0 0.0
        %5301 = vmatpush1.msra.mxu0 0.0
        %5302 = vmatprep.subr.mxu0 0.0
        %5303 = vmatpush1.msra.mxu0 0.0
        %5304 = vmatprep.subr.mxu0 0.0
        %5305 = vmatpush1.msra.mxu0 0.0
        %5306 = vmatprep.subr.mxu0 0.0
        %5307 = vmatpush1.msra.mxu0 0.0
        %5308 = vmatprep.subr.mxu0 0.0
        %5309 = vmatpush1.msra.mxu0 0.0
        %5310 = vmatprep.subr.mxu0 0.0
        %5311 = vmatpush1.msra.mxu0 0.0
        %5312 = vmatprep.subr.mxu0 0.0
        %5313 = vmatpush1.msra.mxu0 0.0
        %5314 = vmatprep.subr.mxu0 0.0
        %5315 = vmatpush1.msra.mxu0 0.0
        %5316 = vmatprep.mubr.f32.mxu0 0.0
        %5317 = vmatmul.mubr.f32.gmra.mrb[0].mxu0 %v5250
        %v5318 = vpop.f32.mrb[0].mxu0
        %v5319 = vadd.f32 0.0, %v5318
        %v5320 = vpop.f32.mrb[0].mxu0
        %5321 = vdwg.mxu0
        %v5323 = vsel %vm1742, %v5100, 0
        %5325 = vmatprep.subr.mxu0 0.0
        %5326 = vmatpush1.msra.mxu0 %v3938
        %5327 = vmatprep.subr.mxu0 0.0
        %5328 = vmatpush1.msra.mxu0 %v3939
        %5329 = vmatprep.subr.mxu0 0.0
        %5330 = vmatpush1.msra.mxu0 %v3940
        %5331 = vmatprep.subr.mxu0 0.0
        %5332 = vmatpush1.msra.mxu0 %v3941
        %5333 = vmatprep.subr.mxu0 0.0
        %5334 = vmatpush1.msra.mxu0 %v3942
        %5335 = vmatprep.subr.mxu0 0.0
        %5336 = vmatpush1.msra.mxu0 %v3943
        %5337 = vmatprep.subr.mxu0 0.0
        %5338 = vmatpush1.msra.mxu0 0.0
        %5339 = vmatprep.subr.mxu0 0.0
        %5340 = vmatpush1.msra.mxu0 0.0
        %5341 = vmatprep.subr.mxu0 0.0
        %5342 = vmatpush1.msra.mxu0 0.0
        %5343 = vmatprep.subr.mxu0 0.0
        %5344 = vmatpush1.msra.mxu0 0.0
        %5345 = vmatprep.subr.mxu0 0.0
        %5346 = vmatpush1.msra.mxu0 0.0
        %5347 = vmatprep.subr.mxu0 0.0
        %5348 = vmatpush1.msra.mxu0 0.0
        %5349 = vmatprep.subr.mxu0 0.0
        %5350 = vmatpush1.msra.mxu0 0.0
        %5351 = vmatprep.subr.mxu0 0.0
        %5352 = vmatpush1.msra.mxu0 0.0
        %5353 = vmatprep.subr.mxu0 0.0
        %5354 = vmatpush1.msra.mxu0 0.0
        %5355 = vmatprep.subr.mxu0 0.0
        %5356 = vmatpush1.msra.mxu0 0.0
        %5357 = vmatprep.subr.mxu0 0.0
        %5358 = vmatpush1.msra.mxu0 0.0
        %5359 = vmatprep.subr.mxu0 0.0
        %5360 = vmatpush1.msra.mxu0 0.0
        %5361 = vmatprep.subr.mxu0 0.0
        %5362 = vmatpush1.msra.mxu0 0.0
        %5363 = vmatprep.subr.mxu0 0.0
        %5364 = vmatpush1.msra.mxu0 0.0
        %5365 = vmatprep.subr.mxu0 0.0
        %5366 = vmatpush1.msra.mxu0 0.0
        %5367 = vmatprep.subr.mxu0 0.0
        %5368 = vmatpush1.msra.mxu0 0.0
        %5369 = vmatprep.subr.mxu0 0.0
        %5370 = vmatpush1.msra.mxu0 0.0
        %5371 = vmatprep.subr.mxu0 0.0
        %5372 = vmatpush1.msra.mxu0 0.0
        %5373 = vmatprep.subr.mxu0 0.0
        %5374 = vmatpush1.msra.mxu0 0.0
        %5375 = vmatprep.subr.mxu0 0.0
        %5376 = vmatpush1.msra.mxu0 0.0
        %5377 = vmatprep.subr.mxu0 0.0
        %5378 = vmatpush1.msra.mxu0 0.0
        %5379 = vmatprep.subr.mxu0 0.0
        %5380 = vmatpush1.msra.mxu0 0.0
        %5381 = vmatprep.subr.mxu0 0.0
        %5382 = vmatpush1.msra.mxu0 0.0
        %5383 = vmatprep.subr.mxu0 0.0
        %5384 = vmatpush1.msra.mxu0 0.0
        %5385 = vmatprep.subr.mxu0 0.0
        %5386 = vmatpush1.msra.mxu0 0.0
        %5387 = vmatprep.subr.mxu0 0.0
        %5388 = vmatpush1.msra.mxu0 0.0
        %5389 = vmatprep.mubr.f32.mxu0 0.0
        %5390 = vmatmul.mubr.f32.gmra.mrb[0].mxu0 %v5323
        %v5391 = vpop.f32.mrb[0].mxu0
        %v5392 = vadd.f32 0.0, %v5391
        %v5393 = vpop.f32.mrb[0].mxu0
        %5394 = vdwg.mxu0
        %v5396 = vsel %vm1742, %v5091, 0
        %5398 = vmatprep.subr.mxu0 0.0
        %5399 = vmatpush1.msra.mxu0 %v3944
        %5400 = vmatprep.subr.mxu0 0.0
        %5401 = vmatpush1.msra.mxu0 %v3945
        %5402 = vmatprep.subr.mxu0 0.0
        %5403 = vmatpush1.msra.mxu0 %v3946
        %5404 = vmatprep.subr.mxu0 0.0
        %5405 = vmatpush1.msra.mxu0 %v3947
        %5406 = vmatprep.subr.mxu0 0.0
        %5407 = vmatpush1.msra.mxu0 %v3948
        %5408 = vmatprep.subr.mxu0 0.0
        %5409 = vmatpush1.msra.mxu0 %v3949
        %5410 = vmatprep.subr.mxu0 0.0
        %5411 = vmatpush1.msra.mxu0 0.0
        %5412 = vmatprep.subr.mxu0 0.0
        %5413 = vmatpush1.msra.mxu0 0.0
        %5414 = vmatprep.subr.mxu0 0.0
        %5415 = vmatpush1.msra.mxu0 0.0
        %5416 = vmatprep.subr.mxu0 0.0
        %5417 = vmatpush1.msra.mxu0 0.0
        %5418 = vmatprep.subr.mxu0 0.0
        %5419 = vmatpush1.msra.mxu0 0.0
        %5420 = vmatprep.subr.mxu0 0.0
        %5421 = vmatpush1.msra.mxu0 0.0
        %5422 = vmatprep.subr.mxu0 0.0
        %5423 = vmatpush1.msra.mxu0 0.0
        %5424 = vmatprep.subr.mxu0 0.0
        %5425 = vmatpush1.msra.mxu0 0.0
        %5426 = vmatprep.subr.mxu0 0.0
        %5427 = vmatpush1.msra.mxu0 0.0
        %5428 = vmatprep.subr.mxu0 0.0
        %5429 = vmatpush1.msra.mxu0 0.0
        %5430 = vmatprep.subr.mxu0 0.0
        %5431 = vmatpush1.msra.mxu0 0.0
        %5432 = vmatprep.subr.mxu0 0.0
        %5433 = vmatpush1.msra.mxu0 0.0
        %5434 = vmatprep.subr.mxu0 0.0
        %5435 = vmatpush1.msra.mxu0 0.0
        %5436 = vmatprep.subr.mxu0 0.0
        %5437 = vmatpush1.msra.mxu0 0.0
        %5438 = vmatprep.subr.mxu0 0.0
        %5439 = vmatpush1.msra.mxu0 0.0
        %5440 = vmatprep.subr.mxu0 0.0
        %5441 = vmatpush1.msra.mxu0 0.0
        %5442 = vmatprep.subr.mxu0 0.0
        %5443 = vmatpush1.msra.mxu0 0.0
        %5444 = vmatprep.subr.mxu0 0.0
        %5445 = vmatpush1.msra.mxu0 0.0
        %5446 = vmatprep.subr.mxu0 0.0
        %5447 = vmatpush1.msra.mxu0 0.0
        %5448 = vmatprep.subr.mxu0 0.0
        %5449 = vmatpush1.msra.mxu0 0.0
        %5450 = vmatprep.subr.mxu0 0.0
        %5451 = vmatpush1.msra.mxu0 0.0
        %5452 = vmatprep.subr.mxu0 0.0
        %5453 = vmatpush1.msra.mxu0 0.0
        %5454 = vmatprep.subr.mxu0 0.0
        %5455 = vmatpush1.msra.mxu0 0.0
        %5456 = vmatprep.subr.mxu0 0.0
        %5457 = vmatpush1.msra.mxu0 0.0
        %5458 = vmatprep.subr.mxu0 0.0
        %5459 = vmatpush1.msra.mxu0 0.0
        %5460 = vmatprep.subr.mxu0 0.0
        %5461 = vmatpush1.msra.mxu0 0.0
        %5462 = vmatprep.mubr.f32.mxu0 0.0
        %5463 = vmatmul.mubr.f32.gmra.mrb[0].mxu0 %v5396
        %v5464 = vpop.f32.mrb[0].mxu0
        %v5465 = vadd.f32 0.0, %v5464
        %v5466 = vpop.f32.mrb[0].mxu0
        %5467 = vdwg.mxu0
        %v5469 = vsel %vm1742, %v5101, 0
        %5471 = vmatprep.subr.mxu0 0.0
        %5472 = vmatpush1.msra.mxu0 %v3950
        %5473 = vmatprep.subr.mxu0 0.0
        %5474 = vmatpush1.msra.mxu0 %v3951
        %5475 = vmatprep.subr.mxu0 0.0
        %5476 = vmatpush1.msra.mxu0 %v3952
        %5477 = vmatprep.subr.mxu0 0.0
        %5478 = vmatpush1.msra.mxu0 %v3953
        %5479 = vmatprep.subr.mxu0 0.0
        %5480 = vmatpush1.msra.mxu0 %v3954
        %5481 = vmatprep.subr.mxu0 0.0
        %5482 = vmatpush1.msra.mxu0 %v3955
        %5483 = vmatprep.subr.mxu0 0.0
        %5484 = vmatpush1.msra.mxu0 0.0
        %5485 = vmatprep.subr.mxu0 0.0
        %5486 = vmatpush1.msra.mxu0 0.0
        %5487 = vmatprep.subr.mxu0 0.0
        %5488 = vmatpush1.msra.mxu0 0.0
        %5489 = vmatprep.subr.mxu0 0.0
        %5490 = vmatpush1.msra.mxu0 0.0
        %5491 = vmatprep.subr.mxu0 0.0
        %5492 = vmatpush1.msra.mxu0 0.0
        %5493 = vmatprep.subr.mxu0 0.0
        %5494 = vmatpush1.msra.mxu0 0.0
        %5495 = vmatprep.subr.mxu0 0.0
        %5496 = vmatpush1.msra.mxu0 0.0
        %5497 = vmatprep.subr.mxu0 0.0
        %5498 = vmatpush1.msra.mxu0 0.0
        %5499 = vmatprep.subr.mxu0 0.0
        %5500 = vmatpush1.msra.mxu0 0.0
        %5501 = vmatprep.subr.mxu0 0.0
        %5502 = vmatpush1.msra.mxu0 0.0
        %5503 = vmatprep.subr.mxu0 0.0
        %5504 = vmatpush1.msra.mxu0 0.0
        %5505 = vmatprep.subr.mxu0 0.0
        %5506 = vmatpush1.msra.mxu0 0.0
        %5507 = vmatprep.subr.mxu0 0.0
        %5508 = vmatpush1.msra.mxu0 0.0
        %5509 = vmatprep.subr.mxu0 0.0
        %5510 = vmatpush1.msra.mxu0 0.0
        %5511 = vmatprep.subr.mxu0 0.0
        %5512 = vmatpush1.msra.mxu0 0.0
        %5513 = vmatprep.subr.mxu0 0.0
        %5514 = vmatpush1.msra.mxu0 0.0
        %5515 = vmatprep.subr.mxu0 0.0
        %5516 = vmatpush1.msra.mxu0 0.0
        %5517 = vmatprep.subr.mxu0 0.0
        %5518 = vmatpush1.msra.mxu0 0.0
        %5519 = vmatprep.subr.mxu0 0.0
        %5520 = vmatpush1.msra.mxu0 0.0
        %5521 = vmatprep.subr.mxu0 0.0
        %5522 = vmatpush1.msra.mxu0 0.0
        %5523 = vmatprep.subr.mxu0 0.0
        %5524 = vmatpush1.msra.mxu0 0.0
        %5525 = vmatprep.subr.mxu0 0.0
        %5526 = vmatpush1.msra.mxu0 0.0
        %5527 = vmatprep.subr.mxu0 0.0
        %5528 = vmatpush1.msra.mxu0 0.0
        %5529 = vmatprep.subr.mxu0 0.0
        %5530 = vmatpush1.msra.mxu0 0.0
        %5531 = vmatprep.subr.mxu0 0.0
        %5532 = vmatpush1.msra.mxu0 0.0
        %5533 = vmatprep.subr.mxu0 0.0
        %5534 = vmatpush1.msra.mxu0 0.0
        %5535 = vmatprep.mubr.f32.mxu0 0.0
        %5536 = vmatmul.mubr.f32.gmra.mrb[0].mxu0 %v5469
        %v5537 = vpop.f32.mrb[0].mxu0
        %v5538 = vadd.f32 0.0, %v5537
        %v5539 = vpop.f32.mrb[0].mxu0
        %5540 = vdwg.mxu0
        %v5542 = vsel %vm1742, %v5098, 0
        %5544 = vmatprep.subr.mxu0 0.0
        %5545 = vmatpush1.msra.mxu0 %v3956
        %5546 = vmatprep.subr.mxu0 0.0
        %5547 = vmatpush1.msra.mxu0 %v3957
        %5548 = vmatprep.subr.mxu0 0.0
        %5549 = vmatpush1.msra.mxu0 %v3958
        %5550 = vmatprep.subr.mxu0 0.0
        %5551 = vmatpush1.msra.mxu0 %v3959
        %5552 = vmatprep.subr.mxu0 0.0
        %5553 = vmatpush1.msra.mxu0 %v3960
        %5554 = vmatprep.subr.mxu0 0.0
        %5555 = vmatpush1.msra.mxu0 %v3961
        %5556 = vmatprep.subr.mxu0 0.0
        %5557 = vmatpush1.msra.mxu0 0.0
        %5558 = vmatprep.subr.mxu0 0.0
        %5559 = vmatpush1.msra.mxu0 0.0
        %5560 = vmatprep.subr.mxu0 0.0
        %5561 = vmatpush1.msra.mxu0 0.0
        %5562 = vmatprep.subr.mxu0 0.0
        %5563 = vmatpush1.msra.mxu0 0.0
        %5564 = vmatprep.subr.mxu0 0.0
        %5565 = vmatpush1.msra.mxu0 0.0
        %5566 = vmatprep.subr.mxu0 0.0
        %5567 = vmatpush1.msra.mxu0 0.0
        %5568 = vmatprep.subr.mxu0 0.0
        %5569 = vmatpush1.msra.mxu0 0.0
        %5570 = vmatprep.subr.mxu0 0.0
        %5571 = vmatpush1.msra.mxu0 0.0
        %5572 = vmatprep.subr.mxu0 0.0
        %5573 = vmatpush1.msra.mxu0 0.0
        %5574 = vmatprep.subr.mxu0 0.0
        %5575 = vmatpush1.msra.mxu0 0.0
        %5576 = vmatprep.subr.mxu0 0.0
        %5577 = vmatpush1.msra.mxu0 0.0
        %5578 = vmatprep.subr.mxu0 0.0
        %5579 = vmatpush1.msra.mxu0 0.0
        %5580 = vmatprep.subr.mxu0 0.0
        %5581 = vmatpush1.msra.mxu0 0.0
        %5582 = vmatprep.subr.mxu0 0.0
        %5583 = vmatpush1.msra.mxu0 0.0
        %5584 = vmatprep.subr.mxu0 0.0
        %5585 = vmatpush1.msra.mxu0 0.0
        %5586 = vmatprep.subr.mxu0 0.0
        %5587 = vmatpush1.msra.mxu0 0.0
        %5588 = vmatprep.subr.mxu0 0.0
        %5589 = vmatpush1.msra.mxu0 0.0
        %5590 = vmatprep.subr.mxu0 0.0
        %5591 = vmatpush1.msra.mxu0 0.0
        %5592 = vmatprep.subr.mxu0 0.0
        %5593 = vmatpush1.msra.mxu0 0.0
        %5594 = vmatprep.subr.mxu0 0.0
        %5595 = vmatpush1.msra.mxu0 0.0
        %5596 = vmatprep.subr.mxu0 0.0
        %5597 = vmatpush1.msra.mxu0 0.0
        %5598 = vmatprep.subr.mxu0 0.0
        %5599 = vmatpush1.msra.mxu0 0.0
        %5600 = vmatprep.subr.mxu0 0.0
        %5601 = vmatpush1.msra.mxu0 0.0
        %5602 = vmatprep.subr.mxu0 0.0
        %5603 = vmatpush1.msra.mxu0 0.0
        %5604 = vmatprep.subr.mxu0 0.0
        %5605 = vmatpush1.msra.mxu0 0.0
        %5606 = vmatprep.subr.mxu0 0.0
        %5607 = vmatpush1.msra.mxu0 0.0
        %5608 = vmatprep.mubr.f32.mxu0 0.0
        %5609 = vmatmul.mubr.f32.gmra.mrb[0].mxu0 %v5542
        %v5610 = vpop.f32.mrb[0].mxu0
        %v5611 = vadd.f32 0.0, %v5610
        %v5612 = vpop.f32.mrb[0].mxu0
        %5613 = vdwg.mxu0
        %v5615 = vsel %vm1742, %v5102, 0
        %5617 = vmatprep.subr.mxu0 0.0
        %5618 = vmatpush1.msra.mxu0 %v3962
        %5619 = vmatprep.subr.mxu0 0.0
        %5620 = vmatpush1.msra.mxu0 %v3963
        %5621 = vmatprep.subr.mxu0 0.0
        %5622 = vmatpush1.msra.mxu0 %v3964
        %5623 = vmatprep.subr.mxu0 0.0
        %5624 = vmatpush1.msra.mxu0 %v3965
        %5625 = vmatprep.subr.mxu0 0.0
        %5626 = vmatpush1.msra.mxu0 %v3966
        %5627 = vmatprep.subr.mxu0 0.0
        %5628 = vmatpush1.msra.mxu0 %v3967
        %5629 = vmatprep.subr.mxu0 0.0
        %5630 = vmatpush1.msra.mxu0 0.0
        %5631 = vmatprep.subr.mxu0 0.0
        %5632 = vmatpush1.msra.mxu0 0.0
        %5633 = vmatprep.subr.mxu0 0.0
        %5634 = vmatpush1.msra.mxu0 0.0
        %5635 = vmatprep.subr.mxu0 0.0
        %5636 = vmatpush1.msra.mxu0 0.0
        %5637 = vmatprep.subr.mxu0 0.0
        %5638 = vmatpush1.msra.mxu0 0.0
        %5639 = vmatprep.subr.mxu0 0.0
        %5640 = vmatpush1.msra.mxu0 0.0
        %5641 = vmatprep.subr.mxu0 0.0
        %5642 = vmatpush1.msra.mxu0 0.0
        %5643 = vmatprep.subr.mxu0 0.0
        %5644 = vmatpush1.msra.mxu0 0.0
        %5645 = vmatprep.subr.mxu0 0.0
        %5646 = vmatpush1.msra.mxu0 0.0
        %5647 = vmatprep.subr.mxu0 0.0
        %5648 = vmatpush1.msra.mxu0 0.0
        %5649 = vmatprep.subr.mxu0 0.0
        %5650 = vmatpush1.msra.mxu0 0.0
        %5651 = vmatprep.subr.mxu0 0.0
        %5652 = vmatpush1.msra.mxu0 0.0
        %5653 = vmatprep.subr.mxu0 0.0
        %5654 = vmatpush1.msra.mxu0 0.0
        %5655 = vmatprep.subr.mxu0 0.0
        %5656 = vmatpush1.msra.mxu0 0.0
        %5657 = vmatprep.subr.mxu0 0.0
        %5658 = vmatpush1.msra.mxu0 0.0
        %5659 = vmatprep.subr.mxu0 0.0
        %5660 = vmatpush1.msra.mxu0 0.0
        %5661 = vmatprep.subr.mxu0 0.0
        %5662 = vmatpush1.msra.mxu0 0.0
        %5663 = vmatprep.subr.mxu0 0.0
        %5664 = vmatpush1.msra.mxu0 0.0
        %5665 = vmatprep.subr.mxu0 0.0
        %5666 = vmatpush1.msra.mxu0 0.0
        %5667 = vmatprep.subr.mxu0 0.0
        %5668 = vmatpush1.msra.mxu0 0.0
        %5669 = vmatprep.subr.mxu0 0.0
        %5670 = vmatpush1.msra.mxu0 0.0
        %5671 = vmatprep.subr.mxu0 0.0
        %5672 = vmatpush1.msra.mxu0 0.0
        %5673 = vmatprep.subr.mxu0 0.0
        %5674 = vmatpush1.msra.mxu0 0.0
        %5675 = vmatprep.subr.mxu0 0.0
        %5676 = vmatpush1.msra.mxu0 0.0
        %5677 = vmatprep.subr.mxu0 0.0
        %5678 = vmatpush1.msra.mxu0 0.0
        %5679 = vmatprep.subr.mxu0 0.0
        %5680 = vmatpush1.msra.mxu0 0.0
        %5681 = vmatprep.mubr.f32.mxu0 0.0
        %5682 = vmatmul.mubr.f32.gmra.mrb[0].mxu0 %v5615
        %v5683 = vpop.f32.mrb[0].mxu0
        %v5684 = vadd.f32 0.0, %v5683
        %v5685 = vpop.f32.mrb[0].mxu0
        %5686 = vdwg.mxu0
        %v5687 = vcombine.low %v5173, %v5319
        %v5689 = vunpack.c.l.s4 1983009808
        %v5690 = vunpack.c.0.s8 %v5689
        %v5691 = vlaneseq
        %v5692 = vshrl.u32 %v5691, 7
        %v5693 = vsub.s32 %v5690, %v5692
        %v5694 = vrot.slane %v5687, %v5693
        %v5695 = vcombine.low %v5246, %v5392
        %v5697 = vunpack.c.l.s4 1983009808
        %v5698 = vunpack.c.0.s8 %v5697
        %v5699 = vlaneseq
        %v5700 = vshrl.u32 %v5699, 7
        %v5701 = vsub.s32 %v5698, %v5700
        %v5702 = vrot.slane %v5695, %v5701
        %v5703 = vcombine.low %v5465, %v5611
        %v5705 = vunpack.c.l.s4 1983009808
        %v5706 = vunpack.c.0.s8 %v5705
        %v5707 = vlaneseq
        %v5708 = vshrl.u32 %v5707, 7
        %v5709 = vsub.s32 %v5706, %v5708
        %v5710 = vrot.slane %v5703, %v5709
        %v5711 = vcombine.low %v5538, %v5684
        %v5713 = vunpack.c.l.s4 1983009808
        %v5714 = vunpack.c.0.s8 %v5713
        %v5715 = vlaneseq
        %v5716 = vshrl.u32 %v5715, 7
        %v5717 = vsub.s32 %v5714, %v5716
        %v5718 = vrot.slane %v5711, %v5717
        %v5719 = vcombine.low %v5694, %v5702
        %v5721 = vunpack.c.l.s4 1934713408
        %v5722 = vunpack.c.0.s8 %v5721
        %v5723 = vlaneseq
        %v5724 = vshrl.u32 %v5723, 7
        %v5725 = vsub.s32 %v5722, %v5724
        %v5726 = vrot.slane %v5719, %v5725
        %v5727 = vcombine.low %v5710, %v5718
        %v5729 = vunpack.c.l.s4 1934713408
        %v5730 = vunpack.c.0.s8 %v5729
        %v5731 = vlaneseq
        %v5732 = vshrl.u32 %v5731, 7
        %v5733 = vsub.s32 %v5730, %v5732
        %v5734 = vrot.slane %v5727, %v5733
        %v5735 = vcombine.low %v5726, %v5734
        %v5736 = vadd.f32 %v5053, %v5735
        %v5737 = vadd.f32 %v5736, %v3968
        %v5738 = vxor.u32 %v5737, 2147483648
        %v5739 = vmul.f32 %v5738, 1.442695
        %v5740 = vpow.pop %v5739
        %v5741 = vadd.f32 %v5740, 1.0
        %v5742 = vrcp.pop %v5741
        %v5743 = vmul.f32 1.0, %v5742
        %v5744 = vmul.f32 %v5743, %v4067
        %5745 = vmatprep.subr.mxu0 0.0
        %5746 = vmatpush1.msra.mxu0 %v5744
        %5747 = vmatprep.subr.mxu0 0.0
        %5748 = vmatpush1.msra.mxu0 0.0
        %5749 = vmatprep.subr.mxu0 0.0
        %5750 = vmatpush1.msra.mxu0 0.0
        %5751 = vmatprep.subr.mxu0 0.0
        %5752 = vmatpush1.msra.mxu0 0.0
        %5753 = vmatprep.subr.mxu0 0.0
        %5754 = vmatpush1.msra.mxu0 0.0
        %5755 = vmatprep.subr.mxu0 0.0
        %5756 = vmatpush1.msra.mxu0 0.0
        %5757 = vmatprep.subr.mxu0 0.0
        %5758 = vmatpush1.msra.mxu0 0.0
        %5759 = vmatprep.subr.mxu0 0.0
        %5760 = vmatpush1.msra.mxu0 0.0
        %5761 = vmatprep.subr.mxu0 0.0
        %5762 = vmatpush1.msra.mxu0 0.0
        %5763 = vmatprep.subr.mxu0 0.0
        %5764 = vmatpush1.msra.mxu0 0.0
        %5765 = vmatprep.subr.mxu0 0.0
        %5766 = vmatpush1.msra.mxu0 0.0
        %5767 = vmatprep.subr.mxu0 0.0
        %5768 = vmatpush1.msra.mxu0 0.0
        %5769 = vmatprep.subr.mxu0 0.0
        %5770 = vmatpush1.msra.mxu0 0.0
        %5771 = vmatprep.subr.mxu0 0.0
        %5772 = vmatpush1.msra.mxu0 0.0
        %5773 = vmatprep.subr.mxu0 0.0
        %5774 = vmatpush1.msra.mxu0 0.0
        %5775 = vmatprep.subr.mxu0 0.0
        %5776 = vmatpush1.msra.mxu0 0.0
        %5777 = vmatprep.subr.mxu0 0.0
        %5778 = vmatpush1.msra.mxu0 0.0
        %5779 = vmatprep.subr.mxu0 0.0
        %5780 = vmatpush1.msra.mxu0 0.0
        %5781 = vmatprep.subr.mxu0 0.0
        %5782 = vmatpush1.msra.mxu0 0.0
        %5783 = vmatprep.subr.mxu0 0.0
        %5784 = vmatpush1.msra.mxu0 0.0
        %5785 = vmatprep.subr.mxu0 0.0
        %5786 = vmatpush1.msra.mxu0 0.0
        %5787 = vmatprep.subr.mxu0 0.0
        %5788 = vmatpush1.msra.mxu0 0.0
        %5789 = vmatprep.subr.mxu0 0.0
        %5790 = vmatpush1.msra.mxu0 0.0
        %5791 = vmatprep.subr.mxu0 0.0
        %5792 = vmatpush1.msra.mxu0 0.0
        %5793 = vmatprep.subr.mxu0 0.0
        %5794 = vmatpush1.msra.mxu0 0.0
        %5795 = vmatprep.subr.mxu0 0.0
        %5796 = vmatpush1.msra.mxu0 0.0
        %5797 = vmatprep.subr.mxu0 0.0
        %5798 = vmatpush1.msra.mxu0 0.0
        %5799 = vmatprep.subr.mxu0 0.0
        %5800 = vmatpush1.msra.mxu0 0.0
        %5801 = vmatprep.subr.mxu0 0.0
        %5802 = vmatpush1.msra.mxu0 0.0
        %5803 = vmatprep.subr.mxu0 0.0
        %5804 = vmatpush1.msra.mxu0 0.0
        %5805 = vmatprep.subr.mxu0 0.0
        %5806 = vmatpush1.msra.mxu0 0.0
        %5807 = vmatprep.subr.mxu0 0.0
        %5808 = vmatpush1.msra.mxu0 0.0
        %5809 = vmatprep.mubr.f32.mxu0 0.0
        %5810 = vmatmul.mubr.f32.gmra.mrb[0].mxu0 %v675
        %v5811 = vpop.f32.mrb[0].mxu0
        %v5812 = vadd.f32 0.0, %v5811
        %v5813 = vpop.f32.mrb[0].mxu0
        %5814 = vdwg.mxu0
        %5815 = vmatprep.subr.mxu0 0.0
        %5816 = vmatpush1.msra.mxu0 %v5812
        %5817 = vmatprep.subr.mxu0 0.0
        %5818 = vmatpush1.msra.mxu0 0.0
        %5819 = vmatprep.subr.mxu0 0.0
        %5820 = vmatpush1.msra.mxu0 0.0
        %5821 = vmatprep.subr.mxu0 0.0
        %5822 = vmatpush1.msra.mxu0 0.0
        %5823 = vmatprep.subr.mxu0 0.0
        %5824 = vmatpush1.msra.mxu0 0.0
        %5825 = vmatprep.subr.mxu0 0.0
        %5826 = vmatpush1.msra.mxu0 0.0
        %5827 = vmatprep.subr.mxu0 0.0
        %5828 = vmatpush1.msra.mxu0 0.0
        %5829 = vmatprep.subr.mxu0 0.0
        %5830 = vmatpush1.msra.mxu0 0.0
        %5831 = vmatprep.subr.mxu0 0.0
        %5832 = vmatpush1.msra.mxu0 0.0
        %5833 = vmatprep.subr.mxu0 0.0
        %5834 = vmatpush1.msra.mxu0 0.0
        %5835 = vmatprep.subr.mxu0 0.0
        %5836 = vmatpush1.msra.mxu0 0.0
        %5837 = vmatprep.subr.mxu0 0.0
        %5838 = vmatpush1.msra.mxu0 0.0
        %5839 = vmatprep.subr.mxu0 0.0
        %5840 = vmatpush1.msra.mxu0 0.0
        %5841 = vmatprep.subr.mxu0 0.0
        %5842 = vmatpush1.msra.mxu0 0.0
        %5843 = vmatprep.subr.mxu0 0.0
        %5844 = vmatpush1.msra.mxu0 0.0
        %5845 = vmatprep.subr.mxu0 0.0
        %5846 = vmatpush1.msra.mxu0 0.0
        %5847 = vmatprep.subr.mxu0 0.0
        %5848 = vmatpush1.msra.mxu0 0.0
        %5849 = vmatprep.subr.mxu0 0.0
        %5850 = vmatpush1.msra.mxu0 0.0
        %5851 = vmatprep.subr.mxu0 0.0
        %5852 = vmatpush1.msra.mxu0 0.0
        %5853 = vmatprep.subr.mxu0 0.0
        %5854 = vmatpush1.msra.mxu0 0.0
        %5855 = vmatprep.subr.mxu0 0.0
        %5856 = vmatpush1.msra.mxu0 0.0
        %5857 = vmatprep.subr.mxu0 0.0
        %5858 = vmatpush1.msra.mxu0 0.0
        %5859 = vmatprep.subr.mxu0 0.0
        %5860 = vmatpush1.msra.mxu0 0.0
        %5861 = vmatprep.subr.mxu0 0.0
        %5862 = vmatpush1.msra.mxu0 0.0
        %5863 = vmatprep.subr.mxu0 0.0
        %5864 = vmatpush1.msra.mxu0 0.0
        %5865 = vmatprep.subr.mxu0 0.0
        %5866 = vmatpush1.msra.mxu0 0.0
        %5867 = vmatprep.subr.mxu0 0.0
        %5868 = vmatpush1.msra.mxu0 0.0
        %5869 = vmatprep.subr.mxu0 0.0
        %5870 = vmatpush1.msra.mxu0 0.0
        %5871 = vmatprep.subr.mxu0 0.0
        %5872 = vmatpush1.msra.mxu0 0.0
        %5873 = vmatprep.subr.mxu0 0.0
        %5874 = vmatpush1.msra.mxu0 0.0
        %5875 = vmatprep.subr.mxu0 0.0
        %5876 = vmatpush1.msra.mxu0 0.0
        %5877 = vmatprep.subr.mxu0 0.0
        %5878 = vmatpush1.msra.mxu0 0.0
        %5879 = vmatprep.mubr.f32.mxu0 0.0
        %5880 = vmatmul.mubr.f32.gmra.mrb[0].mxu0 %v675
        %v5881 = vpop.f32.mrb[0].mxu0
        %v5882 = vadd.f32 0.0, %v5881
        %v5883 = vpop.f32.mrb[0].mxu0
        %5884 = vdwg.mxu0
        %v5885 = vmul.f32 %v5882, 2.0
        %v5886 = vsub.f32 %v5885, %v5744
        %5888 = vrot.lane.b32.xlu0 %v5812, 16
        %v5889 = vpop.permute.xlu0 %5888
        %5892 = vrot.lane.b32.xlu0 %v5886, 32
        %v5893 = vpop.permute.xlu0 %5892
        %v5895 = vsel %vm981, %v5744, %v5889
        %v5896 = vsel %vm983, %v5895, %v5893
        %5897 = vmatprep.subr.mxu0 0.0
        %5898 = vmatpush1.msra.mxu0 %v3969
        %5899 = vmatprep.subr.mxu0 0.0
        %5900 = vmatpush1.msra.mxu0 %v3970
        %5901 = vmatprep.subr.mxu0 0.0
        %5902 = vmatpush1.msra.mxu0 %v3971
        %5903 = vmatprep.subr.mxu0 0.0
        %5904 = vmatpush1.msra.mxu0 %v3972
        %5905 = vmatprep.subr.mxu0 0.0
        %5906 = vmatpush1.msra.mxu0 %v3973
        %5907 = vmatprep.subr.mxu0 0.0
        %5908 = vmatpush1.msra.mxu0 %v3974
        %5909 = vmatprep.subr.mxu0 0.0
        %5910 = vmatpush1.msra.mxu0 0.0
        %5911 = vmatprep.subr.mxu0 0.0
        %5912 = vmatpush1.msra.mxu0 0.0
        %5913 = vmatprep.subr.mxu0 0.0
        %5914 = vmatpush1.msra.mxu0 0.0
        %5915 = vmatprep.subr.mxu0 0.0
        %5916 = vmatpush1.msra.mxu0 0.0
        %5917 = vmatprep.subr.mxu0 0.0
        %5918 = vmatpush1.msra.mxu0 0.0
        %5919 = vmatprep.subr.mxu0 0.0
        %5920 = vmatpush1.msra.mxu0 0.0
        %5921 = vmatprep.subr.mxu0 0.0
        %5922 = vmatpush1.msra.mxu0 0.0
        %5923 = vmatprep.subr.mxu0 0.0
        %5924 = vmatpush1.msra.mxu0 0.0
        %5925 = vmatprep.subr.mxu0 0.0
        %5926 = vmatpush1.msra.mxu0 0.0
        %5927 = vmatprep.subr.mxu0 0.0
        %5928 = vmatpush1.msra.mxu0 0.0
        %5929 = vmatprep.subr.mxu0 0.0
        %5930 = vmatpush1.msra.mxu0 0.0
        %5931 = vmatprep.subr.mxu0 0.0
        %5932 = vmatpush1.msra.mxu0 0.0
        %5933 = vmatprep.subr.mxu0 0.0
        %5934 = vmatpush1.msra.mxu0 0.0
        %5935 = vmatprep.subr.mxu0 0.0
        %5936 = vmatpush1.msra.mxu0 0.0
        %5937 = vmatprep.subr.mxu0 0.0
        %5938 = vmatpush1.msra.mxu0 0.0
        %5939 = vmatprep.subr.mxu0 0.0
        %5940 = vmatpush1.msra.mxu0 0.0
        %5941 = vmatprep.subr.mxu0 0.0
        %5942 = vmatpush1.msra.mxu0 0.0
        %5943 = vmatprep.subr.mxu0 0.0
        %5944 = vmatpush1.msra.mxu0 0.0
        %5945 = vmatprep.subr.mxu0 0.0
        %5946 = vmatpush1.msra.mxu0 0.0
        %5947 = vmatprep.subr.mxu0 0.0
        %5948 = vmatpush1.msra.mxu0 0.0
        %5949 = vmatprep.subr.mxu0 0.0
        %5950 = vmatpush1.msra.mxu0 0.0
        %5951 = vmatprep.subr.mxu0 0.0
        %5952 = vmatpush1.msra.mxu0 0.0
        %5953 = vmatprep.subr.mxu0 0.0
        %5954 = vmatpush1.msra.mxu0 0.0
        %5955 = vmatprep.subr.mxu0 0.0
        %5956 = vmatpush1.msra.mxu0 0.0
        %5957 = vmatprep.subr.mxu0 0.0
        %5958 = vmatpush1.msra.mxu0 0.0
        %5959 = vmatprep.subr.mxu0 0.0
        %5960 = vmatpush1.msra.mxu0 0.0
        %5961 = vmatprep.mubr.f32.mxu0 0.0
        %5962 = vmatmul.mubr.f32.gmra.mrb[0].mxu0 %v4422
        %v5963 = vpop.f32.mrb[0].mxu0
        %v5964 = vadd.f32 0.0, %v5963
        %v5965 = vpop.f32.mrb[0].mxu0
        %5966 = vdwg.mxu0
        %5967 = vmatprep.subr.mxu0 0.0
        %5968 = vmatpush1.msra.mxu0 %v3975
        %5969 = vmatprep.subr.mxu0 0.0
        %5970 = vmatpush1.msra.mxu0 %v3976
        %5971 = vmatprep.subr.mxu0 0.0
        %5972 = vmatpush1.msra.mxu0 %v3977
        %5973 = vmatprep.subr.mxu0 0.0
        %5974 = vmatpush1.msra.mxu0 %v3978
        %5975 = vmatprep.subr.mxu0 0.0
        %5976 = vmatpush1.msra.mxu0 %v3979
        %5977 = vmatprep.subr.mxu0 0.0
        %5978 = vmatpush1.msra.mxu0 %v3980
        %5979 = vmatprep.subr.mxu0 0.0
        %5980 = vmatpush1.msra.mxu0 0.0
        %5981 = vmatprep.subr.mxu0 0.0
        %5982 = vmatpush1.msra.mxu0 0.0
        %5983 = vmatprep.subr.mxu0 0.0
        %5984 = vmatpush1.msra.mxu0 0.0
        %5985 = vmatprep.subr.mxu0 0.0
        %5986 = vmatpush1.msra.mxu0 0.0
        %5987 = vmatprep.subr.mxu0 0.0
        %5988 = vmatpush1.msra.mxu0 0.0
        %5989 = vmatprep.subr.mxu0 0.0
        %5990 = vmatpush1.msra.mxu0 0.0
        %5991 = vmatprep.subr.mxu0 0.0
        %5992 = vmatpush1.msra.mxu0 0.0
        %5993 = vmatprep.subr.mxu0 0.0
        %5994 = vmatpush1.msra.mxu0 0.0
        %5995 = vmatprep.subr.mxu0 0.0
        %5996 = vmatpush1.msra.mxu0 0.0
        %5997 = vmatprep.subr.mxu0 0.0
        %5998 = vmatpush1.msra.mxu0 0.0
        %5999 = vmatprep.subr.mxu0 0.0
        %6000 = vmatpush1.msra.mxu0 0.0
        %6001 = vmatprep.subr.mxu0 0.0
        %6002 = vmatpush1.msra.mxu0 0.0
        %6003 = vmatprep.subr.mxu0 0.0
        %6004 = vmatpush1.msra.mxu0 0.0
        %6005 = vmatprep.subr.mxu0 0.0
        %6006 = vmatpush1.msra.mxu0 0.0
        %6007 = vmatprep.subr.mxu0 0.0
        %6008 = vmatpush1.msra.mxu0 0.0
        %6009 = vmatprep.subr.mxu0 0.0
        %6010 = vmatpush1.msra.mxu0 0.0
        %6011 = vmatprep.subr.mxu0 0.0
        %6012 = vmatpush1.msra.mxu0 0.0
        %6013 = vmatprep.subr.mxu0 0.0
        %6014 = vmatpush1.msra.mxu0 0.0
        %6015 = vmatprep.subr.mxu0 0.0
        %6016 = vmatpush1.msra.mxu0 0.0
        %6017 = vmatprep.subr.mxu0 0.0
        %6018 = vmatpush1.msra.mxu0 0.0
        %6019 = vmatprep.subr.mxu0 0.0
        %6020 = vmatpush1.msra.mxu0 0.0
        %6021 = vmatprep.subr.mxu0 0.0
        %6022 = vmatpush1.msra.mxu0 0.0
        %6023 = vmatprep.subr.mxu0 0.0
        %6024 = vmatpush1.msra.mxu0 0.0
        %6025 = vmatprep.subr.mxu0 0.0
        %6026 = vmatpush1.msra.mxu0 0.0
        %6027 = vmatprep.subr.mxu0 0.0
        %6028 = vmatpush1.msra.mxu0 0.0
        %6029 = vmatprep.subr.mxu0 0.0
        %6030 = vmatpush1.msra.mxu0 0.0
        %6031 = vmatprep.mubr.f32.mxu0 0.0
        %6032 = vmatmul.mubr.f32.gmra.mrb[0].mxu0 %v4495
        %v6033 = vpop.f32.mrb[0].mxu0
        %v6034 = vadd.f32 0.0, %v6033
        %v6035 = vpop.f32.mrb[0].mxu0
        %6036 = vdwg.mxu0
        %6037 = vmatprep.subr.mxu0 0.0
        %6038 = vmatpush1.msra.mxu0 %v3981
        %6039 = vmatprep.subr.mxu0 0.0
        %6040 = vmatpush1.msra.mxu0 %v3982
        %6041 = vmatprep.subr.mxu0 0.0
        %6042 = vmatpush1.msra.mxu0 %v3983
        %6043 = vmatprep.subr.mxu0 0.0
        %6044 = vmatpush1.msra.mxu0 %v3984
        %6045 = vmatprep.subr.mxu0 0.0
        %6046 = vmatpush1.msra.mxu0 %v3985
        %6047 = vmatprep.subr.mxu0 0.0
        %6048 = vmatpush1.msra.mxu0 %v3986
        %6049 = vmatprep.subr.mxu0 0.0
        %6050 = vmatpush1.msra.mxu0 0.0
        %6051 = vmatprep.subr.mxu0 0.0
        %6052 = vmatpush1.msra.mxu0 0.0
        %6053 = vmatprep.subr.mxu0 0.0
        %6054 = vmatpush1.msra.mxu0 0.0
        %6055 = vmatprep.subr.mxu0 0.0
        %6056 = vmatpush1.msra.mxu0 0.0
        %6057 = vmatprep.subr.mxu0 0.0
        %6058 = vmatpush1.msra.mxu0 0.0
        %6059 = vmatprep.subr.mxu0 0.0
        %6060 = vmatpush1.msra.mxu0 0.0
        %6061 = vmatprep.subr.mxu0 0.0
        %6062 = vmatpush1.msra.mxu0 0.0
        %6063 = vmatprep.subr.mxu0 0.0
        %6064 = vmatpush1.msra.mxu0 0.0
        %6065 = vmatprep.subr.mxu0 0.0
        %6066 = vmatpush1.msra.mxu0 0.0
        %6067 = vmatprep.subr.mxu0 0.0
        %6068 = vmatpush1.msra.mxu0 0.0
        %6069 = vmatprep.subr.mxu0 0.0
        %6070 = vmatpush1.msra.mxu0 0.0
        %6071 = vmatprep.subr.mxu0 0.0
        %6072 = vmatpush1.msra.mxu0 0.0
        %6073 = vmatprep.subr.mxu0 0.0
        %6074 = vmatpush1.msra.mxu0 0.0
        %6075 = vmatprep.subr.mxu0 0.0
        %6076 = vmatpush1.msra.mxu0 0.0
        %6077 = vmatprep.subr.mxu0 0.0
        %6078 = vmatpush1.msra.mxu0 0.0
        %6079 = vmatprep.subr.mxu0 0.0
        %6080 = vmatpush1.msra.mxu0 0.0
        %6081 = vmatprep.subr.mxu0 0.0
        %6082 = vmatpush1.msra.mxu0 0.0
        %6083 = vmatprep.subr.mxu0 0.0
        %6084 = vmatpush1.msra.mxu0 0.0
        %6085 = vmatprep.subr.mxu0 0.0
        %6086 = vmatpush1.msra.mxu0 0.0
        %6087 = vmatprep.subr.mxu0 0.0
        %6088 = vmatpush1.msra.mxu0 0.0
        %6089 = vmatprep.subr.mxu0 0.0
        %6090 = vmatpush1.msra.mxu0 0.0
        %6091 = vmatprep.subr.mxu0 0.0
        %6092 = vmatpush1.msra.mxu0 0.0
        %6093 = vmatprep.subr.mxu0 0.0
        %6094 = vmatpush1.msra.mxu0 0.0
        %6095 = vmatprep.subr.mxu0 0.0
        %6096 = vmatpush1.msra.mxu0 0.0
        %6097 = vmatprep.subr.mxu0 0.0
        %6098 = vmatpush1.msra.mxu0 0.0
        %6099 = vmatprep.subr.mxu0 0.0
        %6100 = vmatpush1.msra.mxu0 0.0
        %6101 = vmatprep.mubr.f32.mxu0 0.0
        %6102 = vmatmul.mubr.f32.gmra.mrb[0].mxu0 %v4568
        %v6103 = vpop.f32.mrb[0].mxu0
        %v6104 = vadd.f32 0.0, %v6103
        %v6105 = vpop.f32.mrb[0].mxu0
        %6106 = vdwg.mxu0
        %6107 = vmatprep.subr.mxu0 0.0
        %6108 = vmatpush1.msra.mxu0 %v3987
        %6109 = vmatprep.subr.mxu0 0.0
        %6110 = vmatpush1.msra.mxu0 %v3988
        %6111 = vmatprep.subr.mxu0 0.0
        %6112 = vmatpush1.msra.mxu0 %v3989
        %6113 = vmatprep.subr.mxu0 0.0
        %6114 = vmatpush1.msra.mxu0 %v3990
        %6115 = vmatprep.subr.mxu0 0.0
        %6116 = vmatpush1.msra.mxu0 %v3991
        %6117 = vmatprep.subr.mxu0 0.0
        %6118 = vmatpush1.msra.mxu0 %v3992
        %6119 = vmatprep.subr.mxu0 0.0
        %6120 = vmatpush1.msra.mxu0 0.0
        %6121 = vmatprep.subr.mxu0 0.0
        %6122 = vmatpush1.msra.mxu0 0.0
        %6123 = vmatprep.subr.mxu0 0.0
        %6124 = vmatpush1.msra.mxu0 0.0
        %6125 = vmatprep.subr.mxu0 0.0
        %6126 = vmatpush1.msra.mxu0 0.0
        %6127 = vmatprep.subr.mxu0 0.0
        %6128 = vmatpush1.msra.mxu0 0.0
        %6129 = vmatprep.subr.mxu0 0.0
        %6130 = vmatpush1.msra.mxu0 0.0
        %6131 = vmatprep.subr.mxu0 0.0
        %6132 = vmatpush1.msra.mxu0 0.0
        %6133 = vmatprep.subr.mxu0 0.0
        %6134 = vmatpush1.msra.mxu0 0.0
        %6135 = vmatprep.subr.mxu0 0.0
        %6136 = vmatpush1.msra.mxu0 0.0
        %6137 = vmatprep.subr.mxu0 0.0
        %6138 = vmatpush1.msra.mxu0 0.0
        %6139 = vmatprep.subr.mxu0 0.0
        %6140 = vmatpush1.msra.mxu0 0.0
        %6141 = vmatprep.subr.mxu0 0.0
        %6142 = vmatpush1.msra.mxu0 0.0
        %6143 = vmatprep.subr.mxu0 0.0
        %6144 = vmatpush1.msra.mxu0 0.0
        %6145 = vmatprep.subr.mxu0 0.0
        %6146 = vmatpush1.msra.mxu0 0.0
        %6147 = vmatprep.subr.mxu0 0.0
        %6148 = vmatpush1.msra.mxu0 0.0
        %6149 = vmatprep.subr.mxu0 0.0
        %6150 = vmatpush1.msra.mxu0 0.0
        %6151 = vmatprep.subr.mxu0 0.0
        %6152 = vmatpush1.msra.mxu0 0.0
        %6153 = vmatprep.subr.mxu0 0.0
        %6154 = vmatpush1.msra.mxu0 0.0
        %6155 = vmatprep.subr.mxu0 0.0
        %6156 = vmatpush1.msra.mxu0 0.0
        %6157 = vmatprep.subr.mxu0 0.0
        %6158 = vmatpush1.msra.mxu0 0.0
        %6159 = vmatprep.subr.mxu0 0.0
        %6160 = vmatpush1.msra.mxu0 0.0
        %6161 = vmatprep.subr.mxu0 0.0
        %6162 = vmatpush1.msra.mxu0 0.0
        %6163 = vmatprep.subr.mxu0 0.0
        %6164 = vmatpush1.msra.mxu0 0.0
        %6165 = vmatprep.subr.mxu0 0.0
        %6166 = vmatpush1.msra.mxu0 0.0
        %6167 = vmatprep.subr.mxu0 0.0
        %6168 = vmatpush1.msra.mxu0 0.0
        %6169 = vmatprep.subr.mxu0 0.0
        %6170 = vmatpush1.msra.mxu0 0.0
        %6171 = vmatprep.mubr.f32.mxu0 0.0
        %6172 = vmatmul.mubr.f32.gmra.mrb[0].mxu0 %v4641
        %v6173 = vpop.f32.mrb[0].mxu0
        %v6174 = vadd.f32 0.0, %v6173
        %v6175 = vpop.f32.mrb[0].mxu0
        %6176 = vdwg.mxu0
        %6177 = vmatprep.subr.mxu0 0.0
        %6178 = vmatpush1.msra.mxu0 %v3993
        %6179 = vmatprep.subr.mxu0 0.0
        %6180 = vmatpush1.msra.mxu0 %v3994
        %6181 = vmatprep.subr.mxu0 0.0
        %6182 = vmatpush1.msra.mxu0 %v3995
        %6183 = vmatprep.subr.mxu0 0.0
        %6184 = vmatpush1.msra.mxu0 %v3996
        %6185 = vmatprep.subr.mxu0 0.0
        %6186 = vmatpush1.msra.mxu0 %v3997
        %6187 = vmatprep.subr.mxu0 0.0
        %6188 = vmatpush1.msra.mxu0 %v3998
        %6189 = vmatprep.subr.mxu0 0.0
        %6190 = vmatpush1.msra.mxu0 0.0
        %6191 = vmatprep.subr.mxu0 0.0
        %6192 = vmatpush1.msra.mxu0 0.0
        %6193 = vmatprep.subr.mxu0 0.0
        %6194 = vmatpush1.msra.mxu0 0.0
        %6195 = vmatprep.subr.mxu0 0.0
        %6196 = vmatpush1.msra.mxu0 0.0
        %6197 = vmatprep.subr.mxu0 0.0
        %6198 = vmatpush1.msra.mxu0 0.0
        %6199 = vmatprep.subr.mxu0 0.0
        %6200 = vmatpush1.msra.mxu0 0.0
        %6201 = vmatprep.subr.mxu0 0.0
        %6202 = vmatpush1.msra.mxu0 0.0
        %6203 = vmatprep.subr.mxu0 0.0
        %6204 = vmatpush1.msra.mxu0 0.0
        %6205 = vmatprep.subr.mxu0 0.0
        %6206 = vmatpush1.msra.mxu0 0.0
        %6207 = vmatprep.subr.mxu0 0.0
        %6208 = vmatpush1.msra.mxu0 0.0
        %6209 = vmatprep.subr.mxu0 0.0
        %6210 = vmatpush1.msra.mxu0 0.0
        %6211 = vmatprep.subr.mxu0 0.0
        %6212 = vmatpush1.msra.mxu0 0.0
        %6213 = vmatprep.subr.mxu0 0.0
        %6214 = vmatpush1.msra.mxu0 0.0
        %6215 = vmatprep.subr.mxu0 0.0
        %6216 = vmatpush1.msra.mxu0 0.0
        %6217 = vmatprep.subr.mxu0 0.0
        %6218 = vmatpush1.msra.mxu0 0.0
        %6219 = vmatprep.subr.mxu0 0.0
        %6220 = vmatpush1.msra.mxu0 0.0
        %6221 = vmatprep.subr.mxu0 0.0
        %6222 = vmatpush1.msra.mxu0 0.0
        %6223 = vmatprep.subr.mxu0 0.0
        %6224 = vmatpush1.msra.mxu0 0.0
        %6225 = vmatprep.subr.mxu0 0.0
        %6226 = vmatpush1.msra.mxu0 0.0
        %6227 = vmatprep.subr.mxu0 0.0
        %6228 = vmatpush1.msra.mxu0 0.0
        %6229 = vmatprep.subr.mxu0 0.0
        %6230 = vmatpush1.msra.mxu0 0.0
        %6231 = vmatprep.subr.mxu0 0.0
        %6232 = vmatpush1.msra.mxu0 0.0
        %6233 = vmatprep.subr.mxu0 0.0
        %6234 = vmatpush1.msra.mxu0 0.0
        %6235 = vmatprep.subr.mxu0 0.0
        %6236 = vmatpush1.msra.mxu0 0.0
        %6237 = vmatprep.subr.mxu0 0.0
        %6238 = vmatpush1.msra.mxu0 0.0
        %6239 = vmatprep.subr.mxu0 0.0
        %6240 = vmatpush1.msra.mxu0 0.0
        %6241 = vmatprep.mubr.f32.mxu0 0.0
        %6242 = vmatmul.mubr.f32.gmra.mrb[0].mxu0 %v4714
        %v6243 = vpop.f32.mrb[0].mxu0
        %v6244 = vadd.f32 0.0, %v6243
        %v6245 = vpop.f32.mrb[0].mxu0
        %6246 = vdwg.mxu0
        %6247 = vmatprep.subr.mxu0 0.0
        %6248 = vmatpush1.msra.mxu0 %v3999
        %6249 = vmatprep.subr.mxu0 0.0
        %6250 = vmatpush1.msra.mxu0 %v4000
        %6251 = vmatprep.subr.mxu0 0.0
        %6252 = vmatpush1.msra.mxu0 %v4001
        %6253 = vmatprep.subr.mxu0 0.0
        %6254 = vmatpush1.msra.mxu0 %v4002
        %6255 = vmatprep.subr.mxu0 0.0
        %6256 = vmatpush1.msra.mxu0 %v4003
        %6257 = vmatprep.subr.mxu0 0.0
        %6258 = vmatpush1.msra.mxu0 %v4004
        %6259 = vmatprep.subr.mxu0 0.0
        %6260 = vmatpush1.msra.mxu0 0.0
        %6261 = vmatprep.subr.mxu0 0.0
        %6262 = vmatpush1.msra.mxu0 0.0
        %6263 = vmatprep.subr.mxu0 0.0
        %6264 = vmatpush1.msra.mxu0 0.0
        %6265 = vmatprep.subr.mxu0 0.0
        %6266 = vmatpush1.msra.mxu0 0.0
        %6267 = vmatprep.subr.mxu0 0.0
        %6268 = vmatpush1.msra.mxu0 0.0
        %6269 = vmatprep.subr.mxu0 0.0
        %6270 = vmatpush1.msra.mxu0 0.0
        %6271 = vmatprep.subr.mxu0 0.0
        %6272 = vmatpush1.msra.mxu0 0.0
        %6273 = vmatprep.subr.mxu0 0.0
        %6274 = vmatpush1.msra.mxu0 0.0
        %6275 = vmatprep.subr.mxu0 0.0
        %6276 = vmatpush1.msra.mxu0 0.0
        %6277 = vmatprep.subr.mxu0 0.0
        %6278 = vmatpush1.msra.mxu0 0.0
        %6279 = vmatprep.subr.mxu0 0.0
        %6280 = vmatpush1.msra.mxu0 0.0
        %6281 = vmatprep.subr.mxu0 0.0
        %6282 = vmatpush1.msra.mxu0 0.0
        %6283 = vmatprep.subr.mxu0 0.0
        %6284 = vmatpush1.msra.mxu0 0.0
        %6285 = vmatprep.subr.mxu0 0.0
        %6286 = vmatpush1.msra.mxu0 0.0
        %6287 = vmatprep.subr.mxu0 0.0
        %6288 = vmatpush1.msra.mxu0 0.0
        %6289 = vmatprep.subr.mxu0 0.0
        %6290 = vmatpush1.msra.mxu0 0.0
        %6291 = vmatprep.subr.mxu0 0.0
        %6292 = vmatpush1.msra.mxu0 0.0
        %6293 = vmatprep.subr.mxu0 0.0
        %6294 = vmatpush1.msra.mxu0 0.0
        %6295 = vmatprep.subr.mxu0 0.0
        %6296 = vmatpush1.msra.mxu0 0.0
        %6297 = vmatprep.subr.mxu0 0.0
        %6298 = vmatpush1.msra.mxu0 0.0
        %6299 = vmatprep.subr.mxu0 0.0
        %6300 = vmatpush1.msra.mxu0 0.0
        %6301 = vmatprep.subr.mxu0 0.0
        %6302 = vmatpush1.msra.mxu0 0.0
        %6303 = vmatprep.subr.mxu0 0.0
        %6304 = vmatpush1.msra.mxu0 0.0
        %6305 = vmatprep.subr.mxu0 0.0
        %6306 = vmatpush1.msra.mxu0 0.0
        %6307 = vmatprep.subr.mxu0 0.0
        %6308 = vmatpush1.msra.mxu0 0.0
        %6309 = vmatprep.subr.mxu0 0.0
        %6310 = vmatpush1.msra.mxu0 0.0
        %6311 = vmatprep.mubr.f32.mxu0 0.0
        %6312 = vmatmul.mubr.f32.gmra.mrb[0].mxu0 %v4787
        %v6313 = vpop.f32.mrb[0].mxu0
        %v6314 = vadd.f32 0.0, %v6313
        %v6315 = vpop.f32.mrb[0].mxu0
        %6316 = vdwg.mxu0
        %6317 = vmatprep.subr.mxu0 0.0
        %6318 = vmatpush1.msra.mxu0 %v4005
        %6319 = vmatprep.subr.mxu0 0.0
        %6320 = vmatpush1.msra.mxu0 %v4006
        %6321 = vmatprep.subr.mxu0 0.0
        %6322 = vmatpush1.msra.mxu0 %v4007
        %6323 = vmatprep.subr.mxu0 0.0
        %6324 = vmatpush1.msra.mxu0 %v4008
        %6325 = vmatprep.subr.mxu0 0.0
        %6326 = vmatpush1.msra.mxu0 %v4009
        %6327 = vmatprep.subr.mxu0 0.0
        %6328 = vmatpush1.msra.mxu0 %v4010
        %6329 = vmatprep.subr.mxu0 0.0
        %6330 = vmatpush1.msra.mxu0 0.0
        %6331 = vmatprep.subr.mxu0 0.0
        %6332 = vmatpush1.msra.mxu0 0.0
        %6333 = vmatprep.subr.mxu0 0.0
        %6334 = vmatpush1.msra.mxu0 0.0
        %6335 = vmatprep.subr.mxu0 0.0
        %6336 = vmatpush1.msra.mxu0 0.0
        %6337 = vmatprep.subr.mxu0 0.0
        %6338 = vmatpush1.msra.mxu0 0.0
        %6339 = vmatprep.subr.mxu0 0.0
        %6340 = vmatpush1.msra.mxu0 0.0
        %6341 = vmatprep.subr.mxu0 0.0
        %6342 = vmatpush1.msra.mxu0 0.0
        %6343 = vmatprep.subr.mxu0 0.0
        %6344 = vmatpush1.msra.mxu0 0.0
        %6345 = vmatprep.subr.mxu0 0.0
        %6346 = vmatpush1.msra.mxu0 0.0
        %6347 = vmatprep.subr.mxu0 0.0
        %6348 = vmatpush1.msra.mxu0 0.0
        %6349 = vmatprep.subr.mxu0 0.0
        %6350 = vmatpush1.msra.mxu0 0.0
        %6351 = vmatprep.subr.mxu0 0.0
        %6352 = vmatpush1.msra.mxu0 0.0
        %6353 = vmatprep.subr.mxu0 0.0
        %6354 = vmatpush1.msra.mxu0 0.0
        %6355 = vmatprep.subr.mxu0 0.0
        %6356 = vmatpush1.msra.mxu0 0.0
        %6357 = vmatprep.subr.mxu0 0.0
        %6358 = vmatpush1.msra.mxu0 0.0
        %6359 = vmatprep.subr.mxu0 0.0
        %6360 = vmatpush1.msra.mxu0 0.0
        %6361 = vmatprep.subr.mxu0 0.0
        %6362 = vmatpush1.msra.mxu0 0.0
        %6363 = vmatprep.subr.mxu0 0.0
        %6364 = vmatpush1.msra.mxu0 0.0
        %6365 = vmatprep.subr.mxu0 0.0
        %6366 = vmatpush1.msra.mxu0 0.0
        %6367 = vmatprep.subr.mxu0 0.0
        %6368 = vmatpush1.msra.mxu0 0.0
        %6369 = vmatprep.subr.mxu0 0.0
        %6370 = vmatpush1.msra.mxu0 0.0
        %6371 = vmatprep.subr.mxu0 0.0
        %6372 = vmatpush1.msra.mxu0 0.0
        %6373 = vmatprep.subr.mxu0 0.0
        %6374 = vmatpush1.msra.mxu0 0.0
        %6375 = vmatprep.subr.mxu0 0.0
        %6376 = vmatpush1.msra.mxu0 0.0
        %6377 = vmatprep.subr.mxu0 0.0
        %6378 = vmatpush1.msra.mxu0 0.0
        %6379 = vmatprep.subr.mxu0 0.0
        %6380 = vmatpush1.msra.mxu0 0.0
        %6381 = vmatprep.mubr.f32.mxu0 0.0
        %6382 = vmatmul.mubr.f32.gmra.mrb[0].mxu0 %v4860
        %v6383 = vpop.f32.mrb[0].mxu0
        %v6384 = vadd.f32 0.0, %v6383
        %v6385 = vpop.f32.mrb[0].mxu0
        %6386 = vdwg.mxu0
        %6387 = vmatprep.subr.mxu0 0.0
        %6388 = vmatpush1.msra.mxu0 %v4011
        %6389 = vmatprep.subr.mxu0 0.0
        %6390 = vmatpush1.msra.mxu0 %v4012
        %6391 = vmatprep.subr.mxu0 0.0
        %6392 = vmatpush1.msra.mxu0 %v4013
        %6393 = vmatprep.subr.mxu0 0.0
        %6394 = vmatpush1.msra.mxu0 %v4014
        %6395 = vmatprep.subr.mxu0 0.0
        %6396 = vmatpush1.msra.mxu0 %v4015
        %6397 = vmatprep.subr.mxu0 0.0
        %6398 = vmatpush1.msra.mxu0 %v4016
        %6399 = vmatprep.subr.mxu0 0.0
        %6400 = vmatpush1.msra.mxu0 0.0
        %6401 = vmatprep.subr.mxu0 0.0
        %6402 = vmatpush1.msra.mxu0 0.0
        %6403 = vmatprep.subr.mxu0 0.0
        %6404 = vmatpush1.msra.mxu0 0.0
        %6405 = vmatprep.subr.mxu0 0.0
        %6406 = vmatpush1.msra.mxu0 0.0
        %6407 = vmatprep.subr.mxu0 0.0
        %6408 = vmatpush1.msra.mxu0 0.0
        %6409 = vmatprep.subr.mxu0 0.0
        %6410 = vmatpush1.msra.mxu0 0.0
        %6411 = vmatprep.subr.mxu0 0.0
        %6412 = vmatpush1.msra.mxu0 0.0
        %6413 = vmatprep.subr.mxu0 0.0
        %6414 = vmatpush1.msra.mxu0 0.0
        %6415 = vmatprep.subr.mxu0 0.0
        %6416 = vmatpush1.msra.mxu0 0.0
        %6417 = vmatprep.subr.mxu0 0.0
        %6418 = vmatpush1.msra.mxu0 0.0
        %6419 = vmatprep.subr.mxu0 0.0
        %6420 = vmatpush1.msra.mxu0 0.0
        %6421 = vmatprep.subr.mxu0 0.0
        %6422 = vmatpush1.msra.mxu0 0.0
        %6423 = vmatprep.subr.mxu0 0.0
        %6424 = vmatpush1.msra.mxu0 0.0
        %6425 = vmatprep.subr.mxu0 0.0
        %6426 = vmatpush1.msra.mxu0 0.0
        %6427 = vmatprep.subr.mxu0 0.0
        %6428 = vmatpush1.msra.mxu0 0.0
        %6429 = vmatprep.subr.mxu0 0.0
        %6430 = vmatpush1.msra.mxu0 0.0
        %6431 = vmatprep.subr.mxu0 0.0
        %6432 = vmatpush1.msra.mxu0 0.0
        %6433 = vmatprep.subr.mxu0 0.0
        %6434 = vmatpush1.msra.mxu0 0.0
        %6435 = vmatprep.subr.mxu0 0.0
        %6436 = vmatpush1.msra.mxu0 0.0
        %6437 = vmatprep.subr.mxu0 0.0
        %6438 = vmatpush1.msra.mxu0 0.0
        %6439 = vmatprep.subr.mxu0 0.0
        %6440 = vmatpush1.msra.mxu0 0.0
        %6441 = vmatprep.subr.mxu0 0.0
        %6442 = vmatpush1.msra.mxu0 0.0
        %6443 = vmatprep.subr.mxu0 0.0
        %6444 = vmatpush1.msra.mxu0 0.0
        %6445 = vmatprep.subr.mxu0 0.0
        %6446 = vmatpush1.msra.mxu0 0.0
        %6447 = vmatprep.subr.mxu0 0.0
        %6448 = vmatpush1.msra.mxu0 0.0
        %6449 = vmatprep.subr.mxu0 0.0
        %6450 = vmatpush1.msra.mxu0 0.0
        %6451 = vmatprep.mubr.f32.mxu0 0.0
        %6452 = vmatmul.mubr.f32.gmra.mrb[0].mxu0 %v4933
        %v6453 = vpop.f32.mrb[0].mxu0
        %v6454 = vadd.f32 0.0, %v6453
        %v6455 = vpop.f32.mrb[0].mxu0
        %6456 = vdwg.mxu0
        %v6457 = vcombine.low %v5964, %v6104
        %v6459 = vunpack.c.l.s4 1983009808
        %v6460 = vunpack.c.0.s8 %v6459
        %v6461 = vlaneseq
        %v6462 = vshrl.u32 %v6461, 7
        %v6463 = vsub.s32 %v6460, %v6462
        %v6464 = vrot.slane %v6457, %v6463
        %v6465 = vcombine.low %v6034, %v6174
        %v6467 = vunpack.c.l.s4 1983009808
        %v6468 = vunpack.c.0.s8 %v6467
        %v6469 = vlaneseq
        %v6470 = vshrl.u32 %v6469, 7
        %v6471 = vsub.s32 %v6468, %v6470
        %v6472 = vrot.slane %v6465, %v6471
        %v6473 = vcombine.low %v6244, %v6384
        %v6475 = vunpack.c.l.s4 1983009808
        %v6476 = vunpack.c.0.s8 %v6475
        %v6477 = vlaneseq
        %v6478 = vshrl.u32 %v6477, 7
        %v6479 = vsub.s32 %v6476, %v6478
        %v6480 = vrot.slane %v6473, %v6479
        %v6481 = vcombine.low %v6314, %v6454
        %v6483 = vunpack.c.l.s4 1983009808
        %v6484 = vunpack.c.0.s8 %v6483
        %v6485 = vlaneseq
        %v6486 = vshrl.u32 %v6485, 7
        %v6487 = vsub.s32 %v6484, %v6486
        %v6488 = vrot.slane %v6481, %v6487
        %v6489 = vcombine.low %v6464, %v6472
        %v6491 = vunpack.c.l.s4 1934713408
        %v6492 = vunpack.c.0.s8 %v6491
        %v6493 = vlaneseq
        %v6494 = vshrl.u32 %v6493, 7
        %v6495 = vsub.s32 %v6492, %v6494
        %v6496 = vrot.slane %v6489, %v6495
        %v6497 = vcombine.low %v6480, %v6488
        %v6499 = vunpack.c.l.s4 1934713408
        %v6500 = vunpack.c.0.s8 %v6499
        %v6501 = vlaneseq
        %v6502 = vshrl.u32 %v6501, 7
        %v6503 = vsub.s32 %v6500, %v6502
        %v6504 = vrot.slane %v6497, %v6503
        %v6505 = vcombine.low %v6496, %v6504
        %v6506 = vcombine.high %v5896, 0.0
        %v6508 = vunpack.c.l.s4 1983009808
        %v6509 = vunpack.c.0.s8 %v6508
        %v6510 = vlaneseq
        %v6511 = vshrl.u32 %v6510, 7
        %v6512 = vsub.s32 %v6509, %v6511
        %v6513 = vrot.slane %v5896, %v6512
        %v6515 = vunpack.c.l.s4 1983009808
        %v6516 = vunpack.c.0.s8 %v6515
        %v6517 = vlaneseq
        %v6518 = vshrl.u32 %v6517, 7
        %v6519 = vsub.s32 %v6516, %v6518
        %v6520 = vrot.slane %v6506, %v6519
        %v6521 = vcombine.high %v6513, 0.0
        %v6523 = vunpack.c.l.s4 1934713408
        %v6524 = vunpack.c.0.s8 %v6523
        %v6525 = vlaneseq
        %v6526 = vshrl.u32 %v6525, 7
        %v6527 = vsub.s32 %v6524, %v6526
        %v6528 = vrot.slane %v6513, %v6527
        %v6530 = vunpack.c.l.s4 1934713408
        %v6531 = vunpack.c.0.s8 %v6530
        %v6532 = vlaneseq
        %v6533 = vshrl.u32 %v6532, 7
        %v6534 = vsub.s32 %v6531, %v6533
        %v6535 = vrot.slane %v6521, %v6534
        %v6536 = vcombine.high %v6520, 0.0
        %v6538 = vunpack.c.l.s4 1934713408
        %v6539 = vunpack.c.0.s8 %v6538
        %v6540 = vlaneseq
        %v6541 = vshrl.u32 %v6540, 7
        %v6542 = vsub.s32 %v6539, %v6541
        %v6543 = vrot.slane %v6520, %v6542
        %v6545 = vunpack.c.l.s4 1934713408
        %v6546 = vunpack.c.0.s8 %v6545
        %v6547 = vlaneseq
        %v6548 = vshrl.u32 %v6547, 7
        %v6549 = vsub.s32 %v6546, %v6548
        %v6550 = vrot.slane %v6536, %v6549
        %v6551 = vcombine.high %v6528, 0.0
        %v6552 = vcombine.high %v6535, 0.0
        %v6553 = vcombine.high %v6543, 0.0
        %v6554 = vcombine.high %v6550, 0.0
        %v6556 = vsel %vm1742, %v6528, 0
        %6558 = vmatprep.subr.mxu0 0.0
        %6559 = vmatpush1.msra.mxu0 %v4017
        %6560 = vmatprep.subr.mxu0 0.0
        %6561 = vmatpush1.msra.mxu0 %v4018
        %6562 = vmatprep.subr.mxu0 0.0
        %6563 = vmatpush1.msra.mxu0 %v4019
        %6564 = vmatprep.subr.mxu0 0.0
        %6565 = vmatpush1.msra.mxu0 %v4020
        %6566 = vmatprep.subr.mxu0 0.0
        %6567 = vmatpush1.msra.mxu0 %v4021
        %6568 = vmatprep.subr.mxu0 0.0
        %6569 = vmatpush1.msra.mxu0 %v4022
        %6570 = vmatprep.subr.mxu0 0.0
        %6571 = vmatpush1.msra.mxu0 0.0
        %6572 = vmatprep.subr.mxu0 0.0
        %6573 = vmatpush1.msra.mxu0 0.0
        %6574 = vmatprep.subr.mxu0 0.0
        %6575 = vmatpush1.msra.mxu0 0.0
        %6576 = vmatprep.subr.mxu0 0.0
        %6577 = vmatpush1.msra.mxu0 0.0
        %6578 = vmatprep.subr.mxu0 0.0
        %6579 = vmatpush1.msra.mxu0 0.0
        %6580 = vmatprep.subr.mxu0 0.0
        %6581 = vmatpush1.msra.mxu0 0.0
        %6582 = vmatprep.subr.mxu0 0.0
        %6583 = vmatpush1.msra.mxu0 0.0
        %6584 = vmatprep.subr.mxu0 0.0
        %6585 = vmatpush1.msra.mxu0 0.0
        %6586 = vmatprep.subr.mxu0 0.0
        %6587 = vmatpush1.msra.mxu0 0.0
        %6588 = vmatprep.subr.mxu0 0.0
        %6589 = vmatpush1.msra.mxu0 0.0
        %6590 = vmatprep.subr.mxu0 0.0
        %6591 = vmatpush1.msra.mxu0 0.0
        %6592 = vmatprep.subr.mxu0 0.0
        %6593 = vmatpush1.msra.mxu0 0.0
        %6594 = vmatprep.subr.mxu0 0.0
        %6595 = vmatpush1.msra.mxu0 0.0
        %6596 = vmatprep.subr.mxu0 0.0
        %6597 = vmatpush1.msra.mxu0 0.0
        %6598 = vmatprep.subr.mxu0 0.0
        %6599 = vmatpush1.msra.mxu0 0.0
        %6600 = vmatprep.subr.mxu0 0.0
        %6601 = vmatpush1.msra.mxu0 0.0
        %6602 = vmatprep.subr.mxu0 0.0
        %6603 = vmatpush1.msra.mxu0 0.0
        %6604 = vmatprep.subr.mxu0 0.0
        %6605 = vmatpush1.msra.mxu0 0.0
        %6606 = vmatprep.subr.mxu0 0.0
        %6607 = vmatpush1.msra.mxu0 0.0
        %6608 = vmatprep.subr.mxu0 0.0
        %6609 = vmatpush1.msra.mxu0 0.0
        %6610 = vmatprep.subr.mxu0 0.0
        %6611 = vmatpush1.msra.mxu0 0.0
        %6612 = vmatprep.subr.mxu0 0.0
        %6613 = vmatpush1.msra.mxu0 0.0
        %6614 = vmatprep.subr.mxu0 0.0
        %6615 = vmatpush1.msra.mxu0 0.0
        %6616 = vmatprep.subr.mxu0 0.0
        %6617 = vmatpush1.msra.mxu0 0.0
        %6618 = vmatprep.subr.mxu0 0.0
        %6619 = vmatpush1.msra.mxu0 0.0
        %6620 = vmatprep.subr.mxu0 0.0
        %6621 = vmatpush1.msra.mxu0 0.0
        %6622 = vmatprep.mubr.f32.mxu0 0.0
        %6623 = vmatmul.mubr.f32.gmra.mrb[0].mxu0 %v6556
        %v6624 = vpop.f32.mrb[0].mxu0
        %v6625 = vadd.f32 0.0, %v6624
        %v6626 = vpop.f32.mrb[0].mxu0
        %6627 = vdwg.mxu0
        %v6629 = vsel %vm1742, %v6551, 0
        %6631 = vmatprep.subr.mxu0 0.0
        %6632 = vmatpush1.msra.mxu0 %v4023
        %6633 = vmatprep.subr.mxu0 0.0
        %6634 = vmatpush1.msra.mxu0 %v4024
        %6635 = vmatprep.subr.mxu0 0.0
        %6636 = vmatpush1.msra.mxu0 %v4025
        %6637 = vmatprep.subr.mxu0 0.0
        %6638 = vmatpush1.msra.mxu0 %v4026
        %6639 = vmatprep.subr.mxu0 0.0
        %6640 = vmatpush1.msra.mxu0 %v4027
        %6641 = vmatprep.subr.mxu0 0.0
        %6642 = vmatpush1.msra.mxu0 %v4028
        %6643 = vmatprep.subr.mxu0 0.0
        %6644 = vmatpush1.msra.mxu0 0.0
        %6645 = vmatprep.subr.mxu0 0.0
        %6646 = vmatpush1.msra.mxu0 0.0
        %6647 = vmatprep.subr.mxu0 0.0
        %6648 = vmatpush1.msra.mxu0 0.0
        %6649 = vmatprep.subr.mxu0 0.0
        %6650 = vmatpush1.msra.mxu0 0.0
        %6651 = vmatprep.subr.mxu0 0.0
        %6652 = vmatpush1.msra.mxu0 0.0
        %6653 = vmatprep.subr.mxu0 0.0
        %6654 = vmatpush1.msra.mxu0 0.0
        %6655 = vmatprep.subr.mxu0 0.0
        %6656 = vmatpush1.msra.mxu0 0.0
        %6657 = vmatprep.subr.mxu0 0.0
        %6658 = vmatpush1.msra.mxu0 0.0
        %6659 = vmatprep.subr.mxu0 0.0
        %6660 = vmatpush1.msra.mxu0 0.0
        %6661 = vmatprep.subr.mxu0 0.0
        %6662 = vmatpush1.msra.mxu0 0.0
        %6663 = vmatprep.subr.mxu0 0.0
        %6664 = vmatpush1.msra.mxu0 0.0
        %6665 = vmatprep.subr.mxu0 0.0
        %6666 = vmatpush1.msra.mxu0 0.0
        %6667 = vmatprep.subr.mxu0 0.0
        %6668 = vmatpush1.msra.mxu0 0.0
        %6669 = vmatprep.subr.mxu0 0.0
        %6670 = vmatpush1.msra.mxu0 0.0
        %6671 = vmatprep.subr.mxu0 0.0
        %6672 = vmatpush1.msra.mxu0 0.0
        %6673 = vmatprep.subr.mxu0 0.0
        %6674 = vmatpush1.msra.mxu0 0.0
        %6675 = vmatprep.subr.mxu0 0.0
        %6676 = vmatpush1.msra.mxu0 0.0
        %6677 = vmatprep.subr.mxu0 0.0
        %6678 = vmatpush1.msra.mxu0 0.0
        %6679 = vmatprep.subr.mxu0 0.0
        %6680 = vmatpush1.msra.mxu0 0.0
        %6681 = vmatprep.subr.mxu0 0.0
        %6682 = vmatpush1.msra.mxu0 0.0
        %6683 = vmatprep.subr.mxu0 0.0
        %6684 = vmatpush1.msra.mxu0 0.0
        %6685 = vmatprep.subr.mxu0 0.0
        %6686 = vmatpush1.msra.mxu0 0.0
        %6687 = vmatprep.subr.mxu0 0.0
        %6688 = vmatpush1.msra.mxu0 0.0
        %6689 = vmatprep.subr.mxu0 0.0
        %6690 = vmatpush1.msra.mxu0 0.0
        %6691 = vmatprep.subr.mxu0 0.0
        %6692 = vmatpush1.msra.mxu0 0.0
        %6693 = vmatprep.subr.mxu0 0.0
        %6694 = vmatpush1.msra.mxu0 0.0
        %6695 = vmatprep.mubr.f32.mxu0 0.0
        %6696 = vmatmul.mubr.f32.gmra.mrb[0].mxu0 %v6629
        %v6697 = vpop.f32.mrb[0].mxu0
        %v6698 = vadd.f32 0.0, %v6697
        %v6699 = vpop.f32.mrb[0].mxu0
        %6700 = vdwg.mxu0
        %v6702 = vsel %vm1742, %v6535, 0
        %6704 = vmatprep.subr.mxu0 0.0
        %6705 = vmatpush1.msra.mxu0 %v4029
        %6706 = vmatprep.subr.mxu0 0.0
        %6707 = vmatpush1.msra.mxu0 %v4030
        %6708 = vmatprep.subr.mxu0 0.0
        %6709 = vmatpush1.msra.mxu0 %v4031
        %6710 = vmatprep.subr.mxu0 0.0
        %6711 = vmatpush1.msra.mxu0 %v4032
        %6712 = vmatprep.subr.mxu0 0.0
        %6713 = vmatpush1.msra.mxu0 %v4033
        %6714 = vmatprep.subr.mxu0 0.0
        %6715 = vmatpush1.msra.mxu0 %v4034
        %6716 = vmatprep.subr.mxu0 0.0
        %6717 = vmatpush1.msra.mxu0 0.0
        %6718 = vmatprep.subr.mxu0 0.0
        %6719 = vmatpush1.msra.mxu0 0.0
        %6720 = vmatprep.subr.mxu0 0.0
        %6721 = vmatpush1.msra.mxu0 0.0
        %6722 = vmatprep.subr.mxu0 0.0
        %6723 = vmatpush1.msra.mxu0 0.0
        %6724 = vmatprep.subr.mxu0 0.0
        %6725 = vmatpush1.msra.mxu0 0.0
        %6726 = vmatprep.subr.mxu0 0.0
        %6727 = vmatpush1.msra.mxu0 0.0
        %6728 = vmatprep.subr.mxu0 0.0
        %6729 = vmatpush1.msra.mxu0 0.0
        %6730 = vmatprep.subr.mxu0 0.0
        %6731 = vmatpush1.msra.mxu0 0.0
        %6732 = vmatprep.subr.mxu0 0.0
        %6733 = vmatpush1.msra.mxu0 0.0
        %6734 = vmatprep.subr.mxu0 0.0
        %6735 = vmatpush1.msra.mxu0 0.0
        %6736 = vmatprep.subr.mxu0 0.0
        %6737 = vmatpush1.msra.mxu0 0.0
        %6738 = vmatprep.subr.mxu0 0.0
        %6739 = vmatpush1.msra.mxu0 0.0
        %6740 = vmatprep.subr.mxu0 0.0
        %6741 = vmatpush1.msra.mxu0 0.0
        %6742 = vmatprep.subr.mxu0 0.0
        %6743 = vmatpush1.msra.mxu0 0.0
        %6744 = vmatprep.subr.mxu0 0.0
        %6745 = vmatpush1.msra.mxu0 0.0
        %6746 = vmatprep.subr.mxu0 0.0
        %6747 = vmatpush1.msra.mxu0 0.0
        %6748 = vmatprep.subr.mxu0 0.0
        %6749 = vmatpush1.msra.mxu0 0.0
        %6750 = vmatprep.subr.mxu0 0.0
        %6751 = vmatpush1.msra.mxu0 0.0
        %6752 = vmatprep.subr.mxu0 0.0
        %6753 = vmatpush1.msra.mxu0 0.0
        %6754 = vmatprep.subr.mxu0 0.0
        %6755 = vmatpush1.msra.mxu0 0.0
        %6756 = vmatprep.subr.mxu0 0.0
        %6757 = vmatpush1.msra.mxu0 0.0
        %6758 = vmatprep.subr.mxu0 0.0
        %6759 = vmatpush1.msra.mxu0 0.0
        %6760 = vmatprep.subr.mxu0 0.0
        %6761 = vmatpush1.msra.mxu0 0.0
        %6762 = vmatprep.subr.mxu0 0.0
        %6763 = vmatpush1.msra.mxu0 0.0
        %6764 = vmatprep.subr.mxu0 0.0
        %6765 = vmatpush1.msra.mxu0 0.0
        %6766 = vmatprep.subr.mxu0 0.0
        %6767 = vmatpush1.msra.mxu0 0.0
        %6768 = vmatprep.mubr.f32.mxu0 0.0
        %6769 = vmatmul.mubr.f32.gmra.mrb[0].mxu0 %v6702
        %v6770 = vpop.f32.mrb[0].mxu0
        %v6771 = vadd.f32 0.0, %v6770
        %v6772 = vpop.f32.mrb[0].mxu0
        %6773 = vdwg.mxu0
        %v6775 = vsel %vm1742, %v6552, 0
        %6777 = vmatprep.subr.mxu0 0.0
        %6778 = vmatpush1.msra.mxu0 %v4035
        %6779 = vmatprep.subr.mxu0 0.0
        %6780 = vmatpush1.msra.mxu0 %v4036
        %6781 = vmatprep.subr.mxu0 0.0
        %6782 = vmatpush1.msra.mxu0 %v4037
        %6783 = vmatprep.subr.mxu0 0.0
        %6784 = vmatpush1.msra.mxu0 %v4038
        %6785 = vmatprep.subr.mxu0 0.0
        %6786 = vmatpush1.msra.mxu0 %v4039
        %6787 = vmatprep.subr.mxu0 0.0
        %6788 = vmatpush1.msra.mxu0 %v4040
        %6789 = vmatprep.subr.mxu0 0.0
        %6790 = vmatpush1.msra.mxu0 0.0
        %6791 = vmatprep.subr.mxu0 0.0
        %6792 = vmatpush1.msra.mxu0 0.0
        %6793 = vmatprep.subr.mxu0 0.0
        %6794 = vmatpush1.msra.mxu0 0.0
        %6795 = vmatprep.subr.mxu0 0.0
        %6796 = vmatpush1.msra.mxu0 0.0
        %6797 = vmatprep.subr.mxu0 0.0
        %6798 = vmatpush1.msra.mxu0 0.0
        %6799 = vmatprep.subr.mxu0 0.0
        %6800 = vmatpush1.msra.mxu0 0.0
        %6801 = vmatprep.subr.mxu0 0.0
        %6802 = vmatpush1.msra.mxu0 0.0
        %6803 = vmatprep.subr.mxu0 0.0
        %6804 = vmatpush1.msra.mxu0 0.0
        %6805 = vmatprep.subr.mxu0 0.0
        %6806 = vmatpush1.msra.mxu0 0.0
        %6807 = vmatprep.subr.mxu0 0.0
        %6808 = vmatpush1.msra.mxu0 0.0
        %6809 = vmatprep.subr.mxu0 0.0
        %6810 = vmatpush1.msra.mxu0 0.0
        %6811 = vmatprep.subr.mxu0 0.0
        %6812 = vmatpush1.msra.mxu0 0.0
        %6813 = vmatprep.subr.mxu0 0.0
        %6814 = vmatpush1.msra.mxu0 0.0
        %6815 = vmatprep.subr.mxu0 0.0
        %6816 = vmatpush1.msra.mxu0 0.0
        %6817 = vmatprep.subr.mxu0 0.0
        %6818 = vmatpush1.msra.mxu0 0.0
        %6819 = vmatprep.subr.mxu0 0.0
        %6820 = vmatpush1.msra.mxu0 0.0
        %6821 = vmatprep.subr.mxu0 0.0
        %6822 = vmatpush1.msra.mxu0 0.0
        %6823 = vmatprep.subr.mxu0 0.0
        %6824 = vmatpush1.msra.mxu0 0.0
        %6825 = vmatprep.subr.mxu0 0.0
        %6826 = vmatpush1.msra.mxu0 0.0
        %6827 = vmatprep.subr.mxu0 0.0
        %6828 = vmatpush1.msra.mxu0 0.0
        %6829 = vmatprep.subr.mxu0 0.0
        %6830 = vmatpush1.msra.mxu0 0.0
        %6831 = vmatprep.subr.mxu0 0.0
        %6832 = vmatpush1.msra.mxu0 0.0
        %6833 = vmatprep.subr.mxu0 0.0
        %6834 = vmatpush1.msra.mxu0 0.0
        %6835 = vmatprep.subr.mxu0 0.0
        %6836 = vmatpush1.msra.mxu0 0.0
        %6837 = vmatprep.subr.mxu0 0.0
        %6838 = vmatpush1.msra.mxu0 0.0
        %6839 = vmatprep.subr.mxu0 0.0
        %6840 = vmatpush1.msra.mxu0 0.0
        %6841 = vmatprep.mubr.f32.mxu0 0.0
        %6842 = vmatmul.mubr.f32.gmra.mrb[0].mxu0 %v6775
        %v6843 = vpop.f32.mrb[0].mxu0
        %v6844 = vadd.f32 0.0, %v6843
        %v6845 = vpop.f32.mrb[0].mxu0
        %6846 = vdwg.mxu0
        %v6848 = vsel %vm1742, %v6543, 0
        %6850 = vmatprep.subr.mxu0 0.0
        %6851 = vmatpush1.msra.mxu0 %v4041
        %6852 = vmatprep.subr.mxu0 0.0
        %6853 = vmatpush1.msra.mxu0 %v4042
        %6854 = vmatprep.subr.mxu0 0.0
        %6855 = vmatpush1.msra.mxu0 %v4043
        %6856 = vmatprep.subr.mxu0 0.0
        %6857 = vmatpush1.msra.mxu0 %v4044
        %6858 = vmatprep.subr.mxu0 0.0
        %6859 = vmatpush1.msra.mxu0 %v4045
        %6860 = vmatprep.subr.mxu0 0.0
        %6861 = vmatpush1.msra.mxu0 %v4046
        %6862 = vmatprep.subr.mxu0 0.0
        %6863 = vmatpush1.msra.mxu0 0.0
        %6864 = vmatprep.subr.mxu0 0.0
        %6865 = vmatpush1.msra.mxu0 0.0
        %6866 = vmatprep.subr.mxu0 0.0
        %6867 = vmatpush1.msra.mxu0 0.0
        %6868 = vmatprep.subr.mxu0 0.0
        %6869 = vmatpush1.msra.mxu0 0.0
        %6870 = vmatprep.subr.mxu0 0.0
        %6871 = vmatpush1.msra.mxu0 0.0
        %6872 = vmatprep.subr.mxu0 0.0
        %6873 = vmatpush1.msra.mxu0 0.0
        %6874 = vmatprep.subr.mxu0 0.0
        %6875 = vmatpush1.msra.mxu0 0.0
        %6876 = vmatprep.subr.mxu0 0.0
        %6877 = vmatpush1.msra.mxu0 0.0
        %6878 = vmatprep.subr.mxu0 0.0
        %6879 = vmatpush1.msra.mxu0 0.0
        %6880 = vmatprep.subr.mxu0 0.0
        %6881 = vmatpush1.msra.mxu0 0.0
        %6882 = vmatprep.subr.mxu0 0.0
        %6883 = vmatpush1.msra.mxu0 0.0
        %6884 = vmatprep.subr.mxu0 0.0
        %6885 = vmatpush1.msra.mxu0 0.0
        %6886 = vmatprep.subr.mxu0 0.0
        %6887 = vmatpush1.msra.mxu0 0.0
        %6888 = vmatprep.subr.mxu0 0.0
        %6889 = vmatpush1.msra.mxu0 0.0
        %6890 = vmatprep.subr.mxu0 0.0
        %6891 = vmatpush1.msra.mxu0 0.0
        %6892 = vmatprep.subr.mxu0 0.0
        %6893 = vmatpush1.msra.mxu0 0.0
        %6894 = vmatprep.subr.mxu0 0.0
        %6895 = vmatpush1.msra.mxu0 0.0
        %6896 = vmatprep.subr.mxu0 0.0
        %6897 = vmatpush1.msra.mxu0 0.0
        %6898 = vmatprep.subr.mxu0 0.0
        %6899 = vmatpush1.msra.mxu0 0.0
        %6900 = vmatprep.subr.mxu0 0.0
        %6901 = vmatpush1.msra.mxu0 0.0
        %6902 = vmatprep.subr.mxu0 0.0
        %6903 = vmatpush1.msra.mxu0 0.0
        %6904 = vmatprep.subr.mxu0 0.0
        %6905 = vmatpush1.msra.mxu0 0.0
        %6906 = vmatprep.subr.mxu0 0.0
        %6907 = vmatpush1.msra.mxu0 0.0
        %6908 = vmatprep.subr.mxu0 0.0
        %6909 = vmatpush1.msra.mxu0 0.0
        %6910 = vmatprep.subr.mxu0 0.0
        %6911 = vmatpush1.msra.mxu0 0.0
        %6912 = vmatprep.subr.mxu0 0.0
        %6913 = vmatpush1.msra.mxu0 0.0
        %6914 = vmatprep.mubr.f32.mxu0 0.0
        %6915 = vmatmul.mubr.f32.gmra.mrb[0].mxu0 %v6848
        %v6916 = vpop.f32.mrb[0].mxu0
        %v6917 = vadd.f32 0.0, %v6916
        %v6918 = vpop.f32.mrb[0].mxu0
        %6919 = vdwg.mxu0
        %v6921 = vsel %vm1742, %v6553, 0
        %6923 = vmatprep.subr.mxu0 0.0
        %6924 = vmatpush1.msra.mxu0 %v4047
        %6925 = vmatprep.subr.mxu0 0.0
        %6926 = vmatpush1.msra.mxu0 %v4048
        %6927 = vmatprep.subr.mxu0 0.0
        %6928 = vmatpush1.msra.mxu0 %v4049
        %6929 = vmatprep.subr.mxu0 0.0
        %6930 = vmatpush1.msra.mxu0 %v4050
        %6931 = vmatprep.subr.mxu0 0.0
        %6932 = vmatpush1.msra.mxu0 %v4051
        %6933 = vmatprep.subr.mxu0 0.0
        %6934 = vmatpush1.msra.mxu0 %v4052
        %6935 = vmatprep.subr.mxu0 0.0
        %6936 = vmatpush1.msra.mxu0 0.0
        %6937 = vmatprep.subr.mxu0 0.0
        %6938 = vmatpush1.msra.mxu0 0.0
        %6939 = vmatprep.subr.mxu0 0.0
        %6940 = vmatpush1.msra.mxu0 0.0
        %6941 = vmatprep.subr.mxu0 0.0
        %6942 = vmatpush1.msra.mxu0 0.0
        %6943 = vmatprep.subr.mxu0 0.0
        %6944 = vmatpush1.msra.mxu0 0.0
        %6945 = vmatprep.subr.mxu0 0.0
        %6946 = vmatpush1.msra.mxu0 0.0
        %6947 = vmatprep.subr.mxu0 0.0
        %6948 = vmatpush1.msra.mxu0 0.0
        %6949 = vmatprep.subr.mxu0 0.0
        %6950 = vmatpush1.msra.mxu0 0.0
        %6951 = vmatprep.subr.mxu0 0.0
        %6952 = vmatpush1.msra.mxu0 0.0
        %6953 = vmatprep.subr.mxu0 0.0
        %6954 = vmatpush1.msra.mxu0 0.0
        %6955 = vmatprep.subr.mxu0 0.0
        %6956 = vmatpush1.msra.mxu0 0.0
        %6957 = vmatprep.subr.mxu0 0.0
        %6958 = vmatpush1.msra.mxu0 0.0
        %6959 = vmatprep.subr.mxu0 0.0
        %6960 = vmatpush1.msra.mxu0 0.0
        %6961 = vmatprep.subr.mxu0 0.0
        %6962 = vmatpush1.msra.mxu0 0.0
        %6963 = vmatprep.subr.mxu0 0.0
        %6964 = vmatpush1.msra.mxu0 0.0
        %6965 = vmatprep.subr.mxu0 0.0
        %6966 = vmatpush1.msra.mxu0 0.0
        %6967 = vmatprep.subr.mxu0 0.0
        %6968 = vmatpush1.msra.mxu0 0.0
        %6969 = vmatprep.subr.mxu0 0.0
        %6970 = vmatpush1.msra.mxu0 0.0
        %6971 = vmatprep.subr.mxu0 0.0
        %6972 = vmatpush1.msra.mxu0 0.0
        %6973 = vmatprep.subr.mxu0 0.0
        %6974 = vmatpush1.msra.mxu0 0.0
        %6975 = vmatprep.subr.mxu0 0.0
        %6976 = vmatpush1.msra.mxu0 0.0
        %6977 = vmatprep.subr.mxu0 0.0
        %6978 = vmatpush1.msra.mxu0 0.0
        %6979 = vmatprep.subr.mxu0 0.0
        %6980 = vmatpush1.msra.mxu0 0.0
        %6981 = vmatprep.subr.mxu0 0.0
        %6982 = vmatpush1.msra.mxu0 0.0
        %6983 = vmatprep.subr.mxu0 0.0
        %6984 = vmatpush1.msra.mxu0 0.0
        %6985 = vmatprep.subr.mxu0 0.0
        %6986 = vmatpush1.msra.mxu0 0.0
        %6987 = vmatprep.mubr.f32.mxu0 0.0
        %6988 = vmatmul.mubr.f32.gmra.mrb[0].mxu0 %v6921
        %v6989 = vpop.f32.mrb[0].mxu0
        %v6990 = vadd.f32 0.0, %v6989
        %v6991 = vpop.f32.mrb[0].mxu0
        %6992 = vdwg.mxu0
        %v6994 = vsel %vm1742, %v6550, 0
        %6996 = vmatprep.subr.mxu0 0.0
        %6997 = vmatpush1.msra.mxu0 %v4053
        %6998 = vmatprep.subr.mxu0 0.0
        %6999 = vmatpush1.msra.mxu0 %v4054
        %7000 = vmatprep.subr.mxu0 0.0
        %7001 = vmatpush1.msra.mxu0 %v4055
        %7002 = vmatprep.subr.mxu0 0.0
        %7003 = vmatpush1.msra.mxu0 %v4056
        %7004 = vmatprep.subr.mxu0 0.0
        %7005 = vmatpush1.msra.mxu0 %v4057
        %7006 = vmatprep.subr.mxu0 0.0
        %7007 = vmatpush1.msra.mxu0 %v4058
        %7008 = vmatprep.subr.mxu0 0.0
        %7009 = vmatpush1.msra.mxu0 0.0
        %7010 = vmatprep.subr.mxu0 0.0
        %7011 = vmatpush1.msra.mxu0 0.0
        %7012 = vmatprep.subr.mxu0 0.0
        %7013 = vmatpush1.msra.mxu0 0.0
        %7014 = vmatprep.subr.mxu0 0.0
        %7015 = vmatpush1.msra.mxu0 0.0
        %7016 = vmatprep.subr.mxu0 0.0
        %7017 = vmatpush1.msra.mxu0 0.0
        %7018 = vmatprep.subr.mxu0 0.0
        %7019 = vmatpush1.msra.mxu0 0.0
        %7020 = vmatprep.subr.mxu0 0.0
        %7021 = vmatpush1.msra.mxu0 0.0
        %7022 = vmatprep.subr.mxu0 0.0
        %7023 = vmatpush1.msra.mxu0 0.0
        %7024 = vmatprep.subr.mxu0 0.0
        %7025 = vmatpush1.msra.mxu0 0.0
        %7026 = vmatprep.subr.mxu0 0.0
        %7027 = vmatpush1.msra.mxu0 0.0
        %7028 = vmatprep.subr.mxu0 0.0
        %7029 = vmatpush1.msra.mxu0 0.0
        %7030 = vmatprep.subr.mxu0 0.0
        %7031 = vmatpush1.msra.mxu0 0.0
        %7032 = vmatprep.subr.mxu0 0.0
        %7033 = vmatpush1.msra.mxu0 0.0
        %7034 = vmatprep.subr.mxu0 0.0
        %7035 = vmatpush1.msra.mxu0 0.0
        %7036 = vmatprep.subr.mxu0 0.0
        %7037 = vmatpush1.msra.mxu0 0.0
        %7038 = vmatprep.subr.mxu0 0.0
        %7039 = vmatpush1.msra.mxu0 0.0
        %7040 = vmatprep.subr.mxu0 0.0
        %7041 = vmatpush1.msra.mxu0 0.0
        %7042 = vmatprep.subr.mxu0 0.0
        %7043 = vmatpush1.msra.mxu0 0.0
        %7044 = vmatprep.subr.mxu0 0.0
        %7045 = vmatpush1.msra.mxu0 0.0
        %7046 = vmatprep.subr.mxu0 0.0
        %7047 = vmatpush1.msra.mxu0 0.0
        %7048 = vmatprep.subr.mxu0 0.0
        %7049 = vmatpush1.msra.mxu0 0.0
        %7050 = vmatprep.subr.mxu0 0.0
        %7051 = vmatpush1.msra.mxu0 0.0
        %7052 = vmatprep.subr.mxu0 0.0
        %7053 = vmatpush1.msra.mxu0 0.0
        %7054 = vmatprep.subr.mxu0 0.0
        %7055 = vmatpush1.msra.mxu0 0.0
        %7056 = vmatprep.subr.mxu0 0.0
        %7057 = vmatpush1.msra.mxu0 0.0
        %7058 = vmatprep.subr.mxu0 0.0
        %7059 = vmatpush1.msra.mxu0 0.0
        %7060 = vmatprep.mubr.f32.mxu0 0.0
        %7061 = vmatmul.mubr.f32.gmra.mrb[0].mxu0 %v6994
        %v7062 = vpop.f32.mrb[0].mxu0
        %v7063 = vadd.f32 0.0, %v7062
        %v7064 = vpop.f32.mrb[0].mxu0
        %7065 = vdwg.mxu0
        %v7067 = vsel %vm1742, %v6554, 0
        %7069 = vmatprep.subr.mxu0 0.0
        %7070 = vmatpush1.msra.mxu0 %v4059
        %7071 = vmatprep.subr.mxu0 0.0
        %7072 = vmatpush1.msra.mxu0 %v4060
        %7073 = vmatprep.subr.mxu0 0.0
        %7074 = vmatpush1.msra.mxu0 %v4061
        %7075 = vmatprep.subr.mxu0 0.0
        %7076 = vmatpush1.msra.mxu0 %v4062
        %7077 = vmatprep.subr.mxu0 0.0
        %7078 = vmatpush1.msra.mxu0 %v4063
        %7079 = vmatprep.subr.mxu0 0.0
        %7080 = vmatpush1.msra.mxu0 %v4064
        %7081 = vmatprep.subr.mxu0 0.0
        %7082 = vmatpush1.msra.mxu0 0.0
        %7083 = vmatprep.subr.mxu0 0.0
        %7084 = vmatpush1.msra.mxu0 0.0
        %7085 = vmatprep.subr.mxu0 0.0
        %7086 = vmatpush1.msra.mxu0 0.0
        %7087 = vmatprep.subr.mxu0 0.0
        %7088 = vmatpush1.msra.mxu0 0.0
        %7089 = vmatprep.subr.mxu0 0.0
        %7090 = vmatpush1.msra.mxu0 0.0
        %7091 = vmatprep.subr.mxu0 0.0
        %7092 = vmatpush1.msra.mxu0 0.0
        %7093 = vmatprep.subr.mxu0 0.0
        %7094 = vmatpush1.msra.mxu0 0.0
        %7095 = vmatprep.subr.mxu0 0.0
        %7096 = vmatpush1.msra.mxu0 0.0
        %7097 = vmatprep.subr.mxu0 0.0
        %7098 = vmatpush1.msra.mxu0 0.0
        %7099 = vmatprep.subr.mxu0 0.0
        %7100 = vmatpush1.msra.mxu0 0.0
        %7101 = vmatprep.subr.mxu0 0.0
        %7102 = vmatpush1.msra.mxu0 0.0
        %7103 = vmatprep.subr.mxu0 0.0
        %7104 = vmatpush1.msra.mxu0 0.0
        %7105 = vmatprep.subr.mxu0 0.0
        %7106 = vmatpush1.msra.mxu0 0.0
        %7107 = vmatprep.subr.mxu0 0.0
        %7108 = vmatpush1.msra.mxu0 0.0
        %7109 = vmatprep.subr.mxu0 0.0
        %7110 = vmatpush1.msra.mxu0 0.0
        %7111 = vmatprep.subr.mxu0 0.0
        %7112 = vmatpush1.msra.mxu0 0.0
        %7113 = vmatprep.subr.mxu0 0.0
        %7114 = vmatpush1.msra.mxu0 0.0
        %7115 = vmatprep.subr.mxu0 0.0
        %7116 = vmatpush1.msra.mxu0 0.0
        %7117 = vmatprep.subr.mxu0 0.0
        %7118 = vmatpush1.msra.mxu0 0.0
        %7119 = vmatprep.subr.mxu0 0.0
        %7120 = vmatpush1.msra.mxu0 0.0
        %7121 = vmatprep.subr.mxu0 0.0
        %7122 = vmatpush1.msra.mxu0 0.0
        %7123 = vmatprep.subr.mxu0 0.0
        %7124 = vmatpush1.msra.mxu0 0.0
        %7125 = vmatprep.subr.mxu0 0.0
        %7126 = vmatpush1.msra.mxu0 0.0
        %7127 = vmatprep.subr.mxu0 0.0
        %7128 = vmatpush1.msra.mxu0 0.0
        %7129 = vmatprep.subr.mxu0 0.0
        %7130 = vmatpush1.msra.mxu0 0.0
        %7131 = vmatprep.subr.mxu0 0.0
        %7132 = vmatpush1.msra.mxu0 0.0
        %7133 = vmatprep.mubr.f32.mxu0 0.0
        %7134 = vmatmul.mubr.f32.gmra.mrb[0].mxu0 %v7067
        %v7135 = vpop.f32.mrb[0].mxu0
        %v7136 = vadd.f32 0.0, %v7135
        %v7137 = vpop.f32.mrb[0].mxu0
        %7138 = vdwg.mxu0
        %v7139 = vcombine.low %v6625, %v6771
        %v7141 = vunpack.c.l.s4 1983009808
        %v7142 = vunpack.c.0.s8 %v7141
        %v7143 = vlaneseq
        %v7144 = vshrl.u32 %v7143, 7
        %v7145 = vsub.s32 %v7142, %v7144
        %v7146 = vrot.slane %v7139, %v7145
        %v7147 = vcombine.low %v6698, %v6844
        %v7149 = vunpack.c.l.s4 1983009808
        %v7150 = vunpack.c.0.s8 %v7149
        %v7151 = vlaneseq
        %v7152 = vshrl.u32 %v7151, 7
        %v7153 = vsub.s32 %v7150, %v7152
        %v7154 = vrot.slane %v7147, %v7153
        %v7155 = vcombine.low %v6917, %v7063
        %v7157 = vunpack.c.l.s4 1983009808
        %v7158 = vunpack.c.0.s8 %v7157
        %v7159 = vlaneseq
        %v7160 = vshrl.u32 %v7159, 7
        %v7161 = vsub.s32 %v7158, %v7160
        %v7162 = vrot.slane %v7155, %v7161
        %v7163 = vcombine.low %v6990, %v7136
        %v7165 = vunpack.c.l.s4 1983009808
        %v7166 = vunpack.c.0.s8 %v7165
        %v7167 = vlaneseq
        %v7168 = vshrl.u32 %v7167, 7
        %v7169 = vsub.s32 %v7166, %v7168
        %v7170 = vrot.slane %v7163, %v7169
        %v7171 = vcombine.low %v7146, %v7154
        %v7173 = vunpack.c.l.s4 1934713408
        %v7174 = vunpack.c.0.s8 %v7173
        %v7175 = vlaneseq
        %v7176 = vshrl.u32 %v7175, 7
        %v7177 = vsub.s32 %v7174, %v7176
        %v7178 = vrot.slane %v7171, %v7177
        %v7179 = vcombine.low %v7162, %v7170
        %v7181 = vunpack.c.l.s4 1934713408
        %v7182 = vunpack.c.0.s8 %v7181
        %v7183 = vlaneseq
        %v7184 = vshrl.u32 %v7183, 7
        %v7185 = vsub.s32 %v7182, %v7184
        %v7186 = vrot.slane %v7179, %v7185
        %v7187 = vcombine.low %v7178, %v7186
        %v7188 = vadd.f32 %v6505, %v7187
        %v7189 = vadd.f32 %v7188, %v4065
        %v7190 = vtanh.pop %v7189
        %7192 = vrot.lane.b32.xlu0 %v4067, 16
        %v7193 = vpop.permute.xlu0 %7192
        %v7195 = vmul.f32 %v5743, %v7193
        %v7196 = vsub.f32 1.0, %v5743
        %7198 = vrot.lane.b32.xlu0 %v7190, 16
        %v7199 = vpop.permute.xlu0 %7198
        %v7201 = vmul.f32 %v7196, %v7199
        %v7202 = vadd.f32 %v7195, %v7201
        %7204 = vrot.lane.b32.xlu0 %v7202, 112
        %v7205 = vpop.permute.xlu0 %7204
        %7207 = vst.msk [vmem:[%s4066] sm:$0xff] %vm981, %v7205
        %p7208 = scmp.eq.s32.totalorder %s34, 3
        // Predicated region
        $region85: #{_lambda_.1} parent=79 // pred_check
          %p7209 = pneg %p7208
        $region86: #{_lambda_.1} parent=79 // pred_check_branch
          %7211 = sbr.rel (%p7209) target = $region88
        $region87: #{_lambda_.1} parent=79 // pred_region
          %7212 = vst.msk [vmem:[%s530] sm:$0xff] %vm981, %v7205
        $region88: #{_lambda_.1} parent=79 // pred_fallthru
          _
        %s7213 = sand.u32 %s378, 1
        %s7214 = scalar_lea.sflag [#allocation4], %s7213
        %s7215 = sand.u32 %s378, 1
        %s7216 = smul.addr %s7215, 8
        %s7217 = scalar_lea.vmem [#allocation3], %s7216
        // Predicated region
        $region89: #{_lambda_.1} parent=79 // pred_check
          %p7218 = pneg %p388
        $region90: #{_lambda_.1} parent=79 // pred_check_branch
          %7220 = sbr.rel (%p7218) target = $region92
        $region91: #{_lambda_.1} parent=79 // pred_region
          %s7222 = ssub.s32 128, 128
          %7223 = vsyncadd %s7214, %s7222
          %s7224 = smul.addr %s33, 128
          %s7225 = scalar_lea.hbm %s15, %s7224
          %s7227 = sshll.u32 %s7217, 4
          %s7228 = int_to_ptr.vmem [resolvable:$true] %s7227
          %7230 = dma.vmem_to_hbm [thread:$0]  %s7228, 128, %s7225, %s7214
        $region92: #{_lambda_.1} parent=79 // pred_fallthru
          _
      $region80: #{_lambda_.1} parent=5 // pred_fallthru
        _
      %p7231 = scmp.le.s32.totalorder 2, %s24
      // Predicated region
      $region93: #{_lambda_.1} parent=5 // pred_check
        %p7232 = pneg %p7231
      $region94: #{_lambda_.1} parent=5 // pred_check_branch
        %7234 = sbr.rel (%p7232) target = $region96
      $region95: #{_lambda_.1} parent=5 // pred_region
        %s7235 = ssub.s32 %s24, 2
        // Predicated region
        $region97: #{_lambda_.1} parent=95 // pred_check
          %p7236 = pneg %p394
        $region98: #{_lambda_.1} parent=95 // pred_check_branch
          %7238 = sbr.rel (%p7236) target = $region100
        $region99: #{_lambda_.1} parent=95 // pred_region
          %s7239 = sand.u32 %s379, 1
          %s7240 = scalar_lea.sflag [#allocation4], %s7239
          %s7241 = sand.u32 %s379, 1
          %s7242 = smul.addr %s7241, 8
          %s7243 = scalar_lea.vmem [#allocation3], %s7242
          %7244 = dma.done %s7240, 128
        $region100: #{_lambda_.1} parent=95 // pred_fallthru
          _
      $region96: #{_lambda_.1} parent=5 // pred_fallthru
        _
    $region6: #{_lambda_.1} parent=1 // loop_footer
      %s28 = sadd.s32 1, %s24
    $region7: #{_lambda_.1} parent=1 // loop_footer_branch
      %23 = sbr.rel target = $region3
    $region8: #{_lambda_.1} parent=1 // loop_exit
      _
    %7245 = vsyncpa [#allocation4], 1
    %s7246 = scalar_lea.sflag [#allocation4], 1
    %7247 = vsyncpa %s7246, 1

</llo_original>
